<compile_context>
chip_gen: v7x
topology: tpu7x:2x2x1
jax: 0.10.0
libtpu: 0.0.40
codegen_flags: <defaults>
</compile_context>

<pallas_src>
import functools
import math

import jax
import jax.numpy as jnp
from jax.experimental import pallas as pl
from jax.experimental.pallas import tpu as pltpu

_VMEM = pltpu.MemorySpace.VMEM


# ---------------------------------------------------------------------------
# Single fused kernel: backbone -> N encoder layers -> recover -> softmax
# ---------------------------------------------------------------------------
def _fused_forward_kernel(x_ref, wh512_ref, wff1_ref, wdm_ref, watt_ref,
                          wout_ref, vec_ref, o_ref, *,
                          n_layers, n_head, d_model, d_mz, dff):
    f32 = jnp.float32
    bf16 = jnp.bfloat16
    d = d_model
    hd = d // n_head
    inv_sqrt_hd = 1.0 / math.sqrt(hd)

    def mm(act, w_bf16):
        # Weights are VMEM-resident bf16; activations stay f32 and are cast
        # to bf16 only for the MXU (matches default TPU matmul precision).
        return jnp.dot(act.astype(bf16), w_bf16, preferred_element_type=f32)

    def layernorm(v, g, b, eps=1e-5):
        mu = jnp.mean(v, axis=-1, keepdims=True)
        vc = v - mu
        var = jnp.mean(vc * vc, axis=-1, keepdims=True)
        return vc * jax.lax.rsqrt(var + eps) * g + b

    # ---- unpack the single coalesced f32 bias / LN buffer (static slices) --
    bb_b1 = vec_ref[0:1, 0:512]
    rc_b1 = vec_ref[0:1, 512:1024]
    bb_b2 = vec_ref[0:1, 1024:1024 + d]
    rc_b2 = vec_ref[0:1, 1152:1152 + d_mz]

    # ---- backbone: Linear -> BN -> ReLU -> Linear -> BN (BN pre-folded) ----
    h = jnp.maximum(mm(x_ref[...], wh512_ref[0:d_mz, :]) + bb_b1, 0.0)
    h = mm(h, wdm_ref[0:512, :]) + bb_b2

    # ---- TransformerEncoder layers (post-norm, dropout = identity) ---------
    for l in range(n_layers):
        r = 1 + 2 * l
        b_qk   = vec_ref[r:r + 1, 0:2 * d]
        bo_eff = vec_ref[r:r + 1, 128:128 + d]
        ln1_g  = vec_ref[r:r + 1, 256:256 + d]
        ln1_b  = vec_ref[r:r + 1, 384:384 + d]
        ff_b2  = vec_ref[r:r + 1, 512:512 + d]
        ln2_g  = vec_ref[r:r + 1, 640:640 + d]
        ln2_b  = vec_ref[r:r + 1, 768:768 + d]
        ff_b1  = vec_ref[r + 1:r + 2, 0:dff]

        # One packed projection per layer: [Wq | Wk | Wv_h @ Wo_h per head].
        att = mm(h, watt_ref[l * d:(l + 1) * d, :])      # (n, (2+H)*d)
        qk = att[:, :2 * d] + b_qk                       # (n, 2d)
        vm = att[:, 2 * d:]                              # (n, H*d) = h@Wv_h@Wo_h

        ctx = None
        for hh in range(n_head):                         # static unroll
            q = qk[:, hh * hd:(hh + 1) * hd]
            k = qk[:, d + hh * hd:d + (hh + 1) * hd]
            s = jax.lax.dot_general(q, k, (((1,), (1,)), ((), ())),
                                    preferred_element_type=f32) * inv_sqrt_hd
            s = s - jnp.max(s, axis=-1, keepdims=True)
            e = jnp.exp(s)
            p = e / jnp.sum(e, axis=-1, keepdims=True)   # exact softmax
            pv = jnp.dot(p, vm[:, hh * d:(hh + 1) * d],
                         preferred_element_type=f32)     # (n, d)
            ctx = pv if ctx is None else ctx + pv
        attn = ctx + bo_eff                              # (bo + bv@Wo) folded

        h = layernorm(h + attn, ln1_g, ln1_b)

        ff = jnp.maximum(mm(h, wff1_ref[l * d:(l + 1) * d, :]) + ff_b1, 0.0)
        ff = mm(ff, wdm_ref[512 + l * dff:512 + (l + 1) * dff, :]) + ff_b2
        h = layernorm(h + ff, ln2_g, ln2_b)

    # ---- recover: Linear -> BN -> ReLU -> Linear -> Softmax ----------------
    # TIC_norm divides by the row sum; after an exact softmax that is the
    # identity, so a single exact divide implements Softmax + TIC_norm.
    h = jnp.maximum(mm(h, wh512_ref[d_mz:d_mz + d, :]) + rc_b1, 0.0)
    logits = mm(h, wout_ref[...]) + rc_b2
    mx = jnp.max(logits, axis=-1, keepdims=True)
    e = jnp.exp(logits - mx)
    o_ref[...] = e / jnp.sum(e, axis=-1, keepdims=True)


# ---------------------------------------------------------------------------
# Wrapper
# ---------------------------------------------------------------------------
def model_trans_forward(bufs, x, *, n_head):
    n, d_mz = x.shape
    d_model = bufs["w_dm"].shape[1]
    dff = bufs["w_ff1"].shape[1]
    n_layers = bufs["w_ff1"].shape[0] // d_model

    inputs = [x, bufs["w_h512"], bufs["w_ff1"], bufs["w_dm"],
              bufs["w_att"], bufs["w_out"], bufs["vec"]]

    # Advisory cost estimate for XLA scheduling around the fused call.
    flops = 2 * n * (d_mz * 512 + 512 * d_model)                       # backbone
    per_layer = (2 * n * d_model * ((2 + n_head) * d_model)            # fused attn proj
                 + n_head * 2 * n * n * (d_model // n_head)            # Q@K^T
                 + n_head * 2 * n * n * d_model                        # P@(hM)
                 + 2 * 2 * n * d_model * dff)                          # FFN
    flops += n_layers * per_layer
    flops += 2 * n * (d_model * 512 + 512 * d_mz)                      # recover
    transcendentals = n_layers * n_head * n * n + n * d_mz
    bytes_accessed = (sum(int(a.size) * a.dtype.itemsize for a in inputs)
                      + n * d_mz * 4)

    kernel = functools.partial(_fused_forward_kernel,
                               n_layers=n_layers, n_head=n_head,
                               d_model=d_model, d_mz=d_mz, dff=dff)
    return pl.pallas_call(
        kernel,
        out_shape=jax.ShapeDtypeStruct((n, d_mz), jnp.float32),
        in_specs=[pl.BlockSpec(memory_space=_VMEM) for _ in inputs],
        out_specs=pl.BlockSpec(memory_space=_VMEM),
        cost_estimate=pl.CostEstimate(flops=flops,
                                      transcendentals=transcendentals,
                                      bytes_accessed=bytes_accessed),
    )(*inputs)


# ---------------------------------------------------------------------------
# Deterministic synthetic parameters, BN / attention folding, host packing
# ---------------------------------------------------------------------------
def _bn_affine(key, feat, eps=0.001):                 # module uses eps=0.001
    kg, kb, km, kv = jax.random.split(key, 4)
    gamma = 1.0 + 0.1 * jax.random.normal(kg, (feat,), jnp.float32)
    beta = 0.1 * jax.random.normal(kb, (feat,), jnp.float32)
    rmean = 0.1 * jax.random.normal(km, (feat,), jnp.float32)
    rvar = 1.0 + 0.1 * jnp.abs(jax.random.normal(kv, (feat,), jnp.float32))
    scale = gamma / jnp.sqrt(rvar + eps)
    shift = beta - rmean * scale
    return scale, shift


def _linear_init(key, fan_in, fan_out):
    kw, kb = jax.random.split(key)
    w = 0.05 * jax.random.normal(kw, (fan_in, fan_out), jnp.float32)
    b = 0.05 * jax.random.normal(kb, (fan_out,), jnp.float32)
    return w, b


def build_model_buffers(key, d_mz, d_model, n_layers, n_head, dff=2048):
    d = d_model
    hd = d // n_head
    assert d % n_head == 0 and 2 * d <= 128, "vector-buffer layout assumes 2*d_model <= 128"
    keys = jax.random.split(key, 8 + n_layers)

    # backbone (Linear+BN folded)
    w, b = _linear_init(keys[0], d_mz, 512)
    s, sh = _bn_affine(keys[1], 512)
    bb_w1, bb_b1 = w * s[None, :], b * s + sh
    w, b = _linear_init(keys[2], 512, d)
    s, sh = _bn_affine(keys[3], d)
    bb_w2, bb_b2 = w * s[None, :], b * s + sh

    # recover (Linear+BN folded, then plain Linear)
    w, b = _linear_init(keys[4], d, 512)
    s, sh = _bn_affine(keys[5], 512)
    rc_w1, rc_b1 = w * s[None, :], b * s + sh
    rc_w2, rc_b2 = _linear_init(keys[6], 512, d_mz)

    layers = []
    for i in range(n_layers):
        lk = jax.random.split(keys[8 + i], 10)
        wq, bq = _linear_init(lk[0], d, d)
        wk, bk = _linear_init(lk[1], d, d)
        wv, bv = _linear_init(lk[2], d, d)
        wo, bo = _linear_init(lk[3], d, d)
        # Fold Wv_h @ Wo_h per head; fold bv through Wo into the output bias
        # (softmax rows sum to 1, so P_h @ (1*bv_h) @ Wo_h == 1*(bv_h @ Wo_h)).
        m_packed = jnp.concatenate(
            [wv[:, h * hd:(h + 1) * hd] @ wo[h * hd:(h + 1) * hd, :]
             for h in range(n_head)], axis=1)                  # (d, H*d)
        layer = dict(
            w_att=jnp.concatenate([wq, wk, m_packed], axis=1),  # (d, (2+H)*d)
            b_qk=jnp.concatenate([bq, bk]),
            bo_eff=bo + bv @ wo,
            ln1_g=1.0 + 0.1 * jax.random.normal(lk[4], (d,), jnp.float32),
            ln1_b=0.1 * jax.random.normal(lk[5], (d,), jnp.float32),
            ln2_g=1.0 + 0.1 * jax.random.normal(lk[8], (d,), jnp.float32),
            ln2_b=0.1 * jax.random.normal(lk[9], (d,), jnp.float32),
        )
        layer["ff_w1"], layer["ff_b1"] = _linear_init(lk[6], d, dff)
        layer["ff_w2"], layer["ff_b2"] = _linear_init(lk[7], dff, d)
        layers.append(layer)

    # ---- pack into a few coalesced buffers (weights -> bf16) ----
    bf = jnp.bfloat16
    w_h512 = jnp.concatenate([bb_w1, rc_w1], axis=0).astype(bf)            # (d_mz+d, 512)
    w_ff1 = jnp.concatenate([L["ff_w1"] for L in layers], axis=0).astype(bf)   # (L*d, dff)
    w_dm = jnp.concatenate([bb_w2] + [L["ff_w2"] for L in layers],
                           axis=0).astype(bf)                               # (512+L*dff, d)
    w_att = jnp.concatenate([L["w_att"] for L in layers], axis=0).astype(bf)   # (L*d, (2+H)*d)
    w_out = rc_w2.astype(bf)                                                # (512, d_mz)

    vw = max(dff, 1152 + d_mz, 768 + d)
    vec = jnp.zeros((1 + 2 * n_layers, vw), jnp.float32)
    vec = vec.at[0, 0:512].set(bb_b1)
    vec = vec.at[0, 512:1024].set(rc_b1)
    vec = vec.at[0, 1024:1024 + d].set(bb_b2)
    vec = vec.at[0, 1152:1152 + d_mz].set(rc_b2)
    for l, L in enumerate(layers):
        r = 1 + 2 * l
        vec = vec.at[r, 0:2 * d].set(L["b_qk"])
        vec = vec.at[r, 128:128 + d].set(L["bo_eff"])
        vec = vec.at[r, 256:256 + d].set(L["ln1_g"])
        vec = vec.at[r, 384:384 + d].set(L["ln1_b"])
        vec = vec.at[r, 512:512 + d].set(L["ff_b2"])
        vec = vec.at[r, 640:640 + d].set(L["ln2_g"])
        vec = vec.at[r, 768:768 + d].set(L["ln2_b"])
        vec = vec.at[r + 1, 0:dff].set(L["ff_b1"])

    return dict(w_h512=w_h512, w_ff1=w_ff1, w_dm=w_dm, w_att=w_att,
                w_out=w_out, vec=vec)


if __name__ == "__main__":
    # Small, module-consistent shapes; the 2-D input acts as an unbatched
    # sequence of length `batch` for the TransformerEncoder.
    batch = 8
    d_mz = 64
    d_model = 32
    n_head = 4
    n_layers = 2
    dff = 2048          # PyTorch TransformerEncoderLayer default

    key = jax.random.PRNGKey(0)
    kp, kx = jax.random.split(key)
    bufs = build_model_buffers(kp, d_mz, d_model, n_layers, n_head, dff)
    x = jax.random.normal(kx, (batch, d_mz), jnp.float32)

    fwd = jax.jit(functools.partial(model_trans_forward, n_head=n_head))
    out = jax.block_until_ready(fwd(bufs, x))

    assert out.shape == (batch, d_mz)
    assert bool(jnp.all(jnp.isfinite(out)))
    # rows are normalized probability vectors (softmax + TIC_norm)
    assert bool(jnp.allclose(jnp.sum(out, axis=-1), 1.0, atol=1e-4))
    print("KERNEL_OK")
</pallas_src>

<mosaic_0001>
module attributes {stable_mosaic.version = 11 : i64} {
  func.func @_fused_forward_kernel(%arg0: memref<8x64xf32, #tpu.memory_space<vmem>>, %arg1: memref<96x512xbf16, #tpu.memory_space<vmem>>, %arg2: memref<64x2048xbf16, #tpu.memory_space<vmem>>, %arg3: memref<4608x32xbf16, #tpu.memory_space<vmem>>, %arg4: memref<64x192xbf16, #tpu.memory_space<vmem>>, %arg5: memref<512x64xbf16, #tpu.memory_space<vmem>>, %arg6: memref<5x2048xf32, #tpu.memory_space<vmem>>, %arg7: memref<8x64xf32, #tpu.memory_space<vmem>>) attributes {dimension_semantics = [], scalar_prefetch = 0 : i64, scratch_operands = 0 : i64, tpu.core_type = #tpu.core_type<tc>} {
    %c0 = arith.constant 0 : index
    %c0_0 = arith.constant 0 : index
    %0 = vector.load %arg6[%c0, %c0_0] : memref<5x2048xf32, #tpu.memory_space<vmem>>, vector<1x512xf32>
    %c0_1 = arith.constant 0 : index
    %c512 = arith.constant 512 : index
    %1 = vector.load %arg6[%c0_1, %c512] : memref<5x2048xf32, #tpu.memory_space<vmem>>, vector<1x512xf32>
    %c0_2 = arith.constant 0 : index
    %c1024 = arith.constant 1024 : index
    %2 = vector.load %arg6[%c0_2, %c1024] : memref<5x2048xf32, #tpu.memory_space<vmem>>, vector<1x32xf32>
    %c0_3 = arith.constant 0 : index
    %c1152 = arith.constant 1152 : index
    %3 = vector.load %arg6[%c0_3, %c1152] : memref<5x2048xf32, #tpu.memory_space<vmem>>, vector<1x64xf32>
    %c0_4 = arith.constant 0 : index
    %c0_5 = arith.constant 0 : index
    %4 = vector.load %arg0[%c0_4, %c0_5] : memref<8x64xf32, #tpu.memory_space<vmem>>, vector<8x64xf32>
    %c0_6 = arith.constant 0 : index
    %c0_7 = arith.constant 0 : index
    %5 = vector.load %arg1[%c0_6, %c0_7] : memref<96x512xbf16, #tpu.memory_space<vmem>>, vector<64x512xbf16>
    %6 = arith.truncf %4 : vector<8x64xf32> to vector<8x64xbf16>
    %cst = arith.constant dense<0.000000e+00> : vector<8x512xf32>
    %7 = tpu.matmul %6, %5, %cst {dimension_numbers = #tpu.dot_dimension_numbers<[1], [0], [0], [1], [0, 0, 1, 1], [], []>} : vector<8x64xbf16>, vector<64x512xbf16>, vector<8x512xf32> -> vector<8x512xf32>
    %8 = vector.broadcast %0 : vector<1x512xf32> to vector<8x512xf32>
    %9 = arith.addf %7, %8 : vector<8x512xf32>
    %cst_8 = arith.constant 0.000000e+00 : f32
    %10 = vector.broadcast %cst_8 : f32 to vector<8x512xf32>
    %11 = arith.maximumf %9, %10 : vector<8x512xf32>
    %c0_9 = arith.constant 0 : index
    %c0_10 = arith.constant 0 : index
    %12 = vector.load %arg3[%c0_9, %c0_10] : memref<4608x32xbf16, #tpu.memory_space<vmem>>, vector<512x32xbf16>
    %13 = arith.truncf %11 : vector<8x512xf32> to vector<8x512xbf16>
    %cst_11 = arith.constant dense<0.000000e+00> : vector<8x32xf32>
    %14 = tpu.matmul %13, %12, %cst_11 {dimension_numbers = #tpu.dot_dimension_numbers<[1], [0], [0], [1], [0, 0, 1, 1], [], []>} : vector<8x512xbf16>, vector<512x32xbf16>, vector<8x32xf32> -> vector<8x32xf32>
    %15 = vector.broadcast %2 : vector<1x32xf32> to vector<8x32xf32>
    %16 = arith.addf %14, %15 : vector<8x32xf32>
    %c1 = arith.constant 1 : index
    %c0_12 = arith.constant 0 : index
    %17 = vector.load %arg6[%c1, %c0_12] : memref<5x2048xf32, #tpu.memory_space<vmem>>, vector<1x64xf32>
    %c1_13 = arith.constant 1 : index
    %c128 = arith.constant 128 : index
    %18 = vector.load %arg6[%c1_13, %c128] : memref<5x2048xf32, #tpu.memory_space<vmem>>, vector<1x32xf32>
    %c1_14 = arith.constant 1 : index
    %c256 = arith.constant 256 : index
    %19 = vector.load %arg6[%c1_14, %c256] : memref<5x2048xf32, #tpu.memory_space<vmem>>, vector<1x32xf32>
    %c1_15 = arith.constant 1 : index
    %c384 = arith.constant 384 : index
    %20 = vector.load %arg6[%c1_15, %c384] : memref<5x2048xf32, #tpu.memory_space<vmem>>, vector<1x32xf32>
    %c1_16 = arith.constant 1 : index
    %c512_17 = arith.constant 512 : index
    %21 = vector.load %arg6[%c1_16, %c512_17] : memref<5x2048xf32, #tpu.memory_space<vmem>>, vector<1x32xf32>
    %c1_18 = arith.constant 1 : index
    %c640 = arith.constant 640 : index
    %22 = vector.load %arg6[%c1_18, %c640] : memref<5x2048xf32, #tpu.memory_space<vmem>>, vector<1x32xf32>
    %c1_19 = arith.constant 1 : index
    %c768 = arith.constant 768 : index
    %23 = vector.load %arg6[%c1_19, %c768] : memref<5x2048xf32, #tpu.memory_space<vmem>>, vector<1x32xf32>
    %c2 = arith.constant 2 : index
    %c0_20 = arith.constant 0 : index
    %24 = vector.load %arg6[%c2, %c0_20] : memref<5x2048xf32, #tpu.memory_space<vmem>>, vector<1x2048xf32>
    %c0_21 = arith.constant 0 : index
    %c0_22 = arith.constant 0 : index
    %25 = vector.load %arg4[%c0_21, %c0_22] : memref<64x192xbf16, #tpu.memory_space<vmem>>, vector<32x192xbf16>
    %26 = arith.truncf %16 : vector<8x32xf32> to vector<8x32xbf16>
    %cst_23 = arith.constant dense<0.000000e+00> : vector<8x192xf32>
    %27 = tpu.matmul %26, %25, %cst_23 {dimension_numbers = #tpu.dot_dimension_numbers<[1], [0], [0], [1], [0, 0, 1, 1], [], []>} : vector<8x32xbf16>, vector<32x192xbf16>, vector<8x192xf32> -> vector<8x192xf32>
    %28 = vector.extract_strided_slice %27 {offsets = [0, 0], sizes = [8, 64], strides = [1, 1]} : vector<8x192xf32> to vector<8x64xf32>
    %29 = vector.broadcast %17 : vector<1x64xf32> to vector<8x64xf32>
    %30 = arith.addf %28, %29 : vector<8x64xf32>
    %31 = vector.extract_strided_slice %27 {offsets = [0, 64], sizes = [8, 128], strides = [1, 1]} : vector<8x192xf32> to vector<8x128xf32>
    %32 = vector.extract_strided_slice %30 {offsets = [0, 0], sizes = [8, 8], strides = [1, 1]} : vector<8x64xf32> to vector<8x8xf32>
    %33 = vector.extract_strided_slice %30 {offsets = [0, 32], sizes = [8, 8], strides = [1, 1]} : vector<8x64xf32> to vector<8x8xf32>
    %cst_24 = arith.constant dense<0.000000e+00> : vector<8x8xf32>
    %34 = tpu.matmul %32, %33, %cst_24 {dimension_numbers = #tpu.dot_dimension_numbers<[1], [1], [0], [0], [0, 0, 1, 0], [], []>} : vector<8x8xf32>, vector<8x8xf32>, vector<8x8xf32> -> vector<8x8xf32>
    %cst_25 = arith.constant 0.353553385 : f32
    %35 = vector.broadcast %cst_25 : f32 to vector<8x8xf32>
    %36 = arith.mulf %34, %35 : vector<8x8xf32>
    %cst_26 = arith.constant dense<0xFF800000> : vector<8xf32>
    %37 = vector.multi_reduction <maximumf>, %36, %cst_26 [1] : vector<8x8xf32> to vector<8xf32>
    %38 = vector.shape_cast %37 : vector<8xf32> to vector<8x1xf32>
    %39 = vector.broadcast %38 : vector<8x1xf32> to vector<8x8xf32>
    %40 = arith.subf %36, %39 : vector<8x8xf32>
    %41 = math.exp %40 : vector<8x8xf32>
    %cst_27 = arith.constant dense<0.000000e+00> : vector<8xf32>
    %42 = vector.multi_reduction <add>, %41, %cst_27 [1] : vector<8x8xf32> to vector<8xf32>
    %43 = vector.shape_cast %42 : vector<8xf32> to vector<8x1xf32>
    %44 = vector.broadcast %43 : vector<8x1xf32> to vector<8x8xf32>
    %45 = arith.divf %41, %44 : vector<8x8xf32>
    %46 = vector.extract_strided_slice %31 {offsets = [0, 0], sizes = [8, 32], strides = [1, 1]} : vector<8x128xf32> to vector<8x32xf32>
    %cst_28 = arith.constant dense<0.000000e+00> : vector<8x32xf32>
    %47 = tpu.matmul %45, %46, %cst_28 {dimension_numbers = #tpu.dot_dimension_numbers<[1], [0], [0], [1], [0, 0, 1, 1], [], []>} : vector<8x8xf32>, vector<8x32xf32>, vector<8x32xf32> -> vector<8x32xf32>
    %48 = vector.extract_strided_slice %30 {offsets = [0, 8], sizes = [8, 8], strides = [1, 1]} : vector<8x64xf32> to vector<8x8xf32>
    %49 = vector.extract_strided_slice %30 {offsets = [0, 40], sizes = [8, 8], strides = [1, 1]} : vector<8x64xf32> to vector<8x8xf32>
    %cst_29 = arith.constant dense<0.000000e+00> : vector<8x8xf32>
    %50 = tpu.matmul %48, %49, %cst_29 {dimension_numbers = #tpu.dot_dimension_numbers<[1], [1], [0], [0], [0, 0, 1, 0], [], []>} : vector<8x8xf32>, vector<8x8xf32>, vector<8x8xf32> -> vector<8x8xf32>
    %cst_30 = arith.constant 0.353553385 : f32
    %51 = vector.broadcast %cst_30 : f32 to vector<8x8xf32>
    %52 = arith.mulf %50, %51 : vector<8x8xf32>
    %cst_31 = arith.constant dense<0xFF800000> : vector<8xf32>
    %53 = vector.multi_reduction <maximumf>, %52, %cst_31 [1] : vector<8x8xf32> to vector<8xf32>
    %54 = vector.shape_cast %53 : vector<8xf32> to vector<8x1xf32>
    %55 = vector.broadcast %54 : vector<8x1xf32> to vector<8x8xf32>
    %56 = arith.subf %52, %55 : vector<8x8xf32>
    %57 = math.exp %56 : vector<8x8xf32>
    %cst_32 = arith.constant dense<0.000000e+00> : vector<8xf32>
    %58 = vector.multi_reduction <add>, %57, %cst_32 [1] : vector<8x8xf32> to vector<8xf32>
    %59 = vector.shape_cast %58 : vector<8xf32> to vector<8x1xf32>
    %60 = vector.broadcast %59 : vector<8x1xf32> to vector<8x8xf32>
    %61 = arith.divf %57, %60 : vector<8x8xf32>
    %62 = vector.extract_strided_slice %31 {offsets = [0, 32], sizes = [8, 32], strides = [1, 1]} : vector<8x128xf32> to vector<8x32xf32>
    %cst_33 = arith.constant dense<0.000000e+00> : vector<8x32xf32>
    %63 = tpu.matmul %61, %62, %cst_33 {dimension_numbers = #tpu.dot_dimension_numbers<[1], [0], [0], [1], [0, 0, 1, 1], [], []>} : vector<8x8xf32>, vector<8x32xf32>, vector<8x32xf32> -> vector<8x32xf32>
    %64 = arith.addf %47, %63 : vector<8x32xf32>
    %65 = vector.extract_strided_slice %30 {offsets = [0, 16], sizes = [8, 8], strides = [1, 1]} : vector<8x64xf32> to vector<8x8xf32>
    %66 = vector.extract_strided_slice %30 {offsets = [0, 48], sizes = [8, 8], strides = [1, 1]} : vector<8x64xf32> to vector<8x8xf32>
    %cst_34 = arith.constant dense<0.000000e+00> : vector<8x8xf32>
    %67 = tpu.matmul %65, %66, %cst_34 {dimension_numbers = #tpu.dot_dimension_numbers<[1], [1], [0], [0], [0, 0, 1, 0], [], []>} : vector<8x8xf32>, vector<8x8xf32>, vector<8x8xf32> -> vector<8x8xf32>
    %cst_35 = arith.constant 0.353553385 : f32
    %68 = vector.broadcast %cst_35 : f32 to vector<8x8xf32>
    %69 = arith.mulf %67, %68 : vector<8x8xf32>
    %cst_36 = arith.constant dense<0xFF800000> : vector<8xf32>
    %70 = vector.multi_reduction <maximumf>, %69, %cst_36 [1] : vector<8x8xf32> to vector<8xf32>
    %71 = vector.shape_cast %70 : vector<8xf32> to vector<8x1xf32>
    %72 = vector.broadcast %71 : vector<8x1xf32> to vector<8x8xf32>
    %73 = arith.subf %69, %72 : vector<8x8xf32>
    %74 = math.exp %73 : vector<8x8xf32>
    %cst_37 = arith.constant dense<0.000000e+00> : vector<8xf32>
    %75 = vector.multi_reduction <add>, %74, %cst_37 [1] : vector<8x8xf32> to vector<8xf32>
    %76 = vector.shape_cast %75 : vector<8xf32> to vector<8x1xf32>
    %77 = vector.broadcast %76 : vector<8x1xf32> to vector<8x8xf32>
    %78 = arith.divf %74, %77 : vector<8x8xf32>
    %79 = vector.extract_strided_slice %31 {offsets = [0, 64], sizes = [8, 32], strides = [1, 1]} : vector<8x128xf32> to vector<8x32xf32>
    %cst_38 = arith.constant dense<0.000000e+00> : vector<8x32xf32>
    %80 = tpu.matmul %78, %79, %cst_38 {dimension_numbers = #tpu.dot_dimension_numbers<[1], [0], [0], [1], [0, 0, 1, 1], [], []>} : vector<8x8xf32>, vector<8x32xf32>, vector<8x32xf32> -> vector<8x32xf32>
    %81 = arith.addf %64, %80 : vector<8x32xf32>
    %82 = vector.extract_strided_slice %30 {offsets = [0, 24], sizes = [8, 8], strides = [1, 1]} : vector<8x64xf32> to vector<8x8xf32>
    %83 = vector.extract_strided_slice %30 {offsets = [0, 56], sizes = [8, 8], strides = [1, 1]} : vector<8x64xf32> to vector<8x8xf32>
    %cst_39 = arith.constant dense<0.000000e+00> : vector<8x8xf32>
    %84 = tpu.matmul %82, %83, %cst_39 {dimension_numbers = #tpu.dot_dimension_numbers<[1], [1], [0], [0], [0, 0, 1, 0], [], []>} : vector<8x8xf32>, vector<8x8xf32>, vector<8x8xf32> -> vector<8x8xf32>
    %cst_40 = arith.constant 0.353553385 : f32
    %85 = vector.broadcast %cst_40 : f32 to vector<8x8xf32>
    %86 = arith.mulf %84, %85 : vector<8x8xf32>
    %cst_41 = arith.constant dense<0xFF800000> : vector<8xf32>
    %87 = vector.multi_reduction <maximumf>, %86, %cst_41 [1] : vector<8x8xf32> to vector<8xf32>
    %88 = vector.shape_cast %87 : vector<8xf32> to vector<8x1xf32>
    %89 = vector.broadcast %88 : vector<8x1xf32> to vector<8x8xf32>
    %90 = arith.subf %86, %89 : vector<8x8xf32>
    %91 = math.exp %90 : vector<8x8xf32>
    %cst_42 = arith.constant dense<0.000000e+00> : vector<8xf32>
    %92 = vector.multi_reduction <add>, %91, %cst_42 [1] : vector<8x8xf32> to vector<8xf32>
    %93 = vector.shape_cast %92 : vector<8xf32> to vector<8x1xf32>
    %94 = vector.broadcast %93 : vector<8x1xf32> to vector<8x8xf32>
    %95 = arith.divf %91, %94 : vector<8x8xf32>
    %96 = vector.extract_strided_slice %31 {offsets = [0, 96], sizes = [8, 32], strides = [1, 1]} : vector<8x128xf32> to vector<8x32xf32>
    %cst_43 = arith.constant dense<0.000000e+00> : vector<8x32xf32>
    %97 = tpu.matmul %95, %96, %cst_43 {dimension_numbers = #tpu.dot_dimension_numbers<[1], [0], [0], [1], [0, 0, 1, 1], [], []>} : vector<8x8xf32>, vector<8x32xf32>, vector<8x32xf32> -> vector<8x32xf32>
    %98 = arith.addf %81, %97 : vector<8x32xf32>
    %99 = vector.broadcast %18 : vector<1x32xf32> to vector<8x32xf32>
    %100 = arith.addf %98, %99 : vector<8x32xf32>
    %101 = arith.addf %16, %100 : vector<8x32xf32>
    %cst_44 = arith.constant dense<0.000000e+00> : vector<8xf32>
    %102 = vector.multi_reduction <add>, %101, %cst_44 [1] : vector<8x32xf32> to vector<8xf32>
    %103 = vector.shape_cast %102 : vector<8xf32> to vector<8x1xf32>
    %cst_45 = arith.constant 3.200000e+01 : f32
    %104 = vector.broadcast %cst_45 : f32 to vector<8x1xf32>
    %105 = arith.divf %103, %104 : vector<8x1xf32>
    %106 = vector.broadcast %105 : vector<8x1xf32> to vector<8x32xf32>
    %107 = arith.subf %101, %106 : vector<8x32xf32>
    %108 = arith.mulf %107, %107 : vector<8x32xf32>
    %cst_46 = arith.constant dense<0.000000e+00> : vector<8xf32>
    %109 = vector.multi_reduction <add>, %108, %cst_46 [1] : vector<8x32xf32> to vector<8xf32>
    %110 = vector.shape_cast %109 : vector<8xf32> to vector<8x1xf32>
    %cst_47 = arith.constant 3.200000e+01 : f32
    %111 = vector.broadcast %cst_47 : f32 to vector<8x1xf32>
    %112 = arith.divf %110, %111 : vector<8x1xf32>
    %cst_48 = arith.constant 9.99999974E-6 : f32
    %113 = vector.broadcast %cst_48 : f32 to vector<8x1xf32>
    %114 = arith.addf %112, %113 : vector<8x1xf32>
    %115 = math.rsqrt %114 : vector<8x1xf32>
    %116 = vector.broadcast %115 : vector<8x1xf32> to vector<8x32xf32>
    %117 = arith.mulf %107, %116 : vector<8x32xf32>
    %118 = vector.broadcast %19 : vector<1x32xf32> to vector<8x32xf32>
    %119 = arith.mulf %117, %118 : vector<8x32xf32>
    %120 = vector.broadcast %20 : vector<1x32xf32> to vector<8x32xf32>
    %121 = arith.addf %119, %120 : vector<8x32xf32>
    %c0_49 = arith.constant 0 : index
    %c0_50 = arith.constant 0 : index
    %122 = vector.load %arg2[%c0_49, %c0_50] : memref<64x2048xbf16, #tpu.memory_space<vmem>>, vector<32x2048xbf16>
    %123 = arith.truncf %121 : vector<8x32xf32> to vector<8x32xbf16>
    %cst_51 = arith.constant dense<0.000000e+00> : vector<8x2048xf32>
    %124 = tpu.matmul %123, %122, %cst_51 {dimension_numbers = #tpu.dot_dimension_numbers<[1], [0], [0], [1], [0, 0, 1, 1], [], []>} : vector<8x32xbf16>, vector<32x2048xbf16>, vector<8x2048xf32> -> vector<8x2048xf32>
    %125 = vector.broadcast %24 : vector<1x2048xf32> to vector<8x2048xf32>
    %126 = arith.addf %124, %125 : vector<8x2048xf32>
    %cst_52 = arith.constant 0.000000e+00 : f32
    %127 = vector.broadcast %cst_52 : f32 to vector<8x2048xf32>
    %128 = arith.maximumf %126, %127 : vector<8x2048xf32>
    %c512_53 = arith.constant 512 : index
    %c0_54 = arith.constant 0 : index
    %129 = vector.load %arg3[%c512_53, %c0_54] : memref<4608x32xbf16, #tpu.memory_space<vmem>>, vector<2048x32xbf16>
    %130 = arith.truncf %128 : vector<8x2048xf32> to vector<8x2048xbf16>
    %cst_55 = arith.constant dense<0.000000e+00> : vector<8x32xf32>
    %131 = tpu.matmul %130, %129, %cst_55 {dimension_numbers = #tpu.dot_dimension_numbers<[1], [0], [0], [1], [0, 0, 1, 1], [], []>} : vector<8x2048xbf16>, vector<2048x32xbf16>, vector<8x32xf32> -> vector<8x32xf32>
    %132 = vector.broadcast %21 : vector<1x32xf32> to vector<8x32xf32>
    %133 = arith.addf %131, %132 : vector<8x32xf32>
    %134 = arith.addf %121, %133 : vector<8x32xf32>
    %cst_56 = arith.constant dense<0.000000e+00> : vector<8xf32>
    %135 = vector.multi_reduction <add>, %134, %cst_56 [1] : vector<8x32xf32> to vector<8xf32>
    %136 = vector.shape_cast %135 : vector<8xf32> to vector<8x1xf32>
    %cst_57 = arith.constant 3.200000e+01 : f32
    %137 = vector.broadcast %cst_57 : f32 to vector<8x1xf32>
    %138 = arith.divf %136, %137 : vector<8x1xf32>
    %139 = vector.broadcast %138 : vector<8x1xf32> to vector<8x32xf32>
    %140 = arith.subf %134, %139 : vector<8x32xf32>
    %141 = arith.mulf %140, %140 : vector<8x32xf32>
    %cst_58 = arith.constant dense<0.000000e+00> : vector<8xf32>
    %142 = vector.multi_reduction <add>, %141, %cst_58 [1] : vector<8x32xf32> to vector<8xf32>
    %143 = vector.shape_cast %142 : vector<8xf32> to vector<8x1xf32>
    %cst_59 = arith.constant 3.200000e+01 : f32
    %144 = vector.broadcast %cst_59 : f32 to vector<8x1xf32>
    %145 = arith.divf %143, %144 : vector<8x1xf32>
    %cst_60 = arith.constant 9.99999974E-6 : f32
    %146 = vector.broadcast %cst_60 : f32 to vector<8x1xf32>
    %147 = arith.addf %145, %146 : vector<8x1xf32>
    %148 = math.rsqrt %147 : vector<8x1xf32>
    %149 = vector.broadcast %148 : vector<8x1xf32> to vector<8x32xf32>
    %150 = arith.mulf %140, %149 : vector<8x32xf32>
    %151 = vector.broadcast %22 : vector<1x32xf32> to vector<8x32xf32>
    %152 = arith.mulf %150, %151 : vector<8x32xf32>
    %153 = vector.broadcast %23 : vector<1x32xf32> to vector<8x32xf32>
    %154 = arith.addf %152, %153 : vector<8x32xf32>
    %c3 = arith.constant 3 : index
    %c0_61 = arith.constant 0 : index
    %155 = vector.load %arg6[%c3, %c0_61] : memref<5x2048xf32, #tpu.memory_space<vmem>>, vector<1x64xf32>
    %c3_62 = arith.constant 3 : index
    %c128_63 = arith.constant 128 : index
    %156 = vector.load %arg6[%c3_62, %c128_63] : memref<5x2048xf32, #tpu.memory_space<vmem>>, vector<1x32xf32>
    %c3_64 = arith.constant 3 : index
    %c256_65 = arith.constant 256 : index
    %157 = vector.load %arg6[%c3_64, %c256_65] : memref<5x2048xf32, #tpu.memory_space<vmem>>, vector<1x32xf32>
    %c3_66 = arith.constant 3 : index
    %c384_67 = arith.constant 384 : index
    %158 = vector.load %arg6[%c3_66, %c384_67] : memref<5x2048xf32, #tpu.memory_space<vmem>>, vector<1x32xf32>
    %c3_68 = arith.constant 3 : index
    %c512_69 = arith.constant 512 : index
    %159 = vector.load %arg6[%c3_68, %c512_69] : memref<5x2048xf32, #tpu.memory_space<vmem>>, vector<1x32xf32>
    %c3_70 = arith.constant 3 : index
    %c640_71 = arith.constant 640 : index
    %160 = vector.load %arg6[%c3_70, %c640_71] : memref<5x2048xf32, #tpu.memory_space<vmem>>, vector<1x32xf32>
    %c3_72 = arith.constant 3 : index
    %c768_73 = arith.constant 768 : index
    %161 = vector.load %arg6[%c3_72, %c768_73] : memref<5x2048xf32, #tpu.memory_space<vmem>>, vector<1x32xf32>
    %c4 = arith.constant 4 : index
    %c0_74 = arith.constant 0 : index
    %162 = vector.load %arg6[%c4, %c0_74] : memref<5x2048xf32, #tpu.memory_space<vmem>>, vector<1x2048xf32>
    %c32 = arith.constant 32 : index
    %c0_75 = arith.constant 0 : index
    %163 = vector.load %arg4[%c32, %c0_75] : memref<64x192xbf16, #tpu.memory_space<vmem>>, vector<32x192xbf16>
    %164 = arith.truncf %154 : vector<8x32xf32> to vector<8x32xbf16>
    %cst_76 = arith.constant dense<0.000000e+00> : vector<8x192xf32>
    %165 = tpu.matmul %164, %163, %cst_76 {dimension_numbers = #tpu.dot_dimension_numbers<[1], [0], [0], [1], [0, 0, 1, 1], [], []>} : vector<8x32xbf16>, vector<32x192xbf16>, vector<8x192xf32> -> vector<8x192xf32>
    %166 = vector.extract_strided_slice %165 {offsets = [0, 0], sizes = [8, 64], strides = [1, 1]} : vector<8x192xf32> to vector<8x64xf32>
    %167 = vector.broadcast %155 : vector<1x64xf32> to vector<8x64xf32>
    %168 = arith.addf %166, %167 : vector<8x64xf32>
    %169 = vector.extract_strided_slice %165 {offsets = [0, 64], sizes = [8, 128], strides = [1, 1]} : vector<8x192xf32> to vector<8x128xf32>
    %170 = vector.extract_strided_slice %168 {offsets = [0, 0], sizes = [8, 8], strides = [1, 1]} : vector<8x64xf32> to vector<8x8xf32>
    %171 = vector.extract_strided_slice %168 {offsets = [0, 32], sizes = [8, 8], strides = [1, 1]} : vector<8x64xf32> to vector<8x8xf32>
    %cst_77 = arith.constant dense<0.000000e+00> : vector<8x8xf32>
    %172 = tpu.matmul %170, %171, %cst_77 {dimension_numbers = #tpu.dot_dimension_numbers<[1], [1], [0], [0], [0, 0, 1, 0], [], []>} : vector<8x8xf32>, vector<8x8xf32>, vector<8x8xf32> -> vector<8x8xf32>
    %cst_78 = arith.constant 0.353553385 : f32
    %173 = vector.broadcast %cst_78 : f32 to vector<8x8xf32>
    %174 = arith.mulf %172, %173 : vector<8x8xf32>
    %cst_79 = arith.constant dense<0xFF800000> : vector<8xf32>
    %175 = vector.multi_reduction <maximumf>, %174, %cst_79 [1] : vector<8x8xf32> to vector<8xf32>
    %176 = vector.shape_cast %175 : vector<8xf32> to vector<8x1xf32>
    %177 = vector.broadcast %176 : vector<8x1xf32> to vector<8x8xf32>
    %178 = arith.subf %174, %177 : vector<8x8xf32>
    %179 = math.exp %178 : vector<8x8xf32>
    %cst_80 = arith.constant dense<0.000000e+00> : vector<8xf32>
    %180 = vector.multi_reduction <add>, %179, %cst_80 [1] : vector<8x8xf32> to vector<8xf32>
    %181 = vector.shape_cast %180 : vector<8xf32> to vector<8x1xf32>
    %182 = vector.broadcast %181 : vector<8x1xf32> to vector<8x8xf32>
    %183 = arith.divf %179, %182 : vector<8x8xf32>
    %184 = vector.extract_strided_slice %169 {offsets = [0, 0], sizes = [8, 32], strides = [1, 1]} : vector<8x128xf32> to vector<8x32xf32>
    %cst_81 = arith.constant dense<0.000000e+00> : vector<8x32xf32>
    %185 = tpu.matmul %183, %184, %cst_81 {dimension_numbers = #tpu.dot_dimension_numbers<[1], [0], [0], [1], [0, 0, 1, 1], [], []>} : vector<8x8xf32>, vector<8x32xf32>, vector<8x32xf32> -> vector<8x32xf32>
    %186 = vector.extract_strided_slice %168 {offsets = [0, 8], sizes = [8, 8], strides = [1, 1]} : vector<8x64xf32> to vector<8x8xf32>
    %187 = vector.extract_strided_slice %168 {offsets = [0, 40], sizes = [8, 8], strides = [1, 1]} : vector<8x64xf32> to vector<8x8xf32>
    %cst_82 = arith.constant dense<0.000000e+00> : vector<8x8xf32>
    %188 = tpu.matmul %186, %187, %cst_82 {dimension_numbers = #tpu.dot_dimension_numbers<[1], [1], [0], [0], [0, 0, 1, 0], [], []>} : vector<8x8xf32>, vector<8x8xf32>, vector<8x8xf32> -> vector<8x8xf32>
    %cst_83 = arith.constant 0.353553385 : f32
    %189 = vector.broadcast %cst_83 : f32 to vector<8x8xf32>
    %190 = arith.mulf %188, %189 : vector<8x8xf32>
    %cst_84 = arith.constant dense<0xFF800000> : vector<8xf32>
    %191 = vector.multi_reduction <maximumf>, %190, %cst_84 [1] : vector<8x8xf32> to vector<8xf32>
    %192 = vector.shape_cast %191 : vector<8xf32> to vector<8x1xf32>
    %193 = vector.broadcast %192 : vector<8x1xf32> to vector<8x8xf32>
    %194 = arith.subf %190, %193 : vector<8x8xf32>
    %195 = math.exp %194 : vector<8x8xf32>
    %cst_85 = arith.constant dense<0.000000e+00> : vector<8xf32>
    %196 = vector.multi_reduction <add>, %195, %cst_85 [1] : vector<8x8xf32> to vector<8xf32>
    %197 = vector.shape_cast %196 : vector<8xf32> to vector<8x1xf32>
    %198 = vector.broadcast %197 : vector<8x1xf32> to vector<8x8xf32>
    %199 = arith.divf %195, %198 : vector<8x8xf32>
    %200 = vector.extract_strided_slice %169 {offsets = [0, 32], sizes = [8, 32], strides = [1, 1]} : vector<8x128xf32> to vector<8x32xf32>
    %cst_86 = arith.constant dense<0.000000e+00> : vector<8x32xf32>
    %201 = tpu.matmul %199, %200, %cst_86 {dimension_numbers = #tpu.dot_dimension_numbers<[1], [0], [0], [1], [0, 0, 1, 1], [], []>} : vector<8x8xf32>, vector<8x32xf32>, vector<8x32xf32> -> vector<8x32xf32>
    %202 = arith.addf %185, %201 : vector<8x32xf32>
    %203 = vector.extract_strided_slice %168 {offsets = [0, 16], sizes = [8, 8], strides = [1, 1]} : vector<8x64xf32> to vector<8x8xf32>
    %204 = vector.extract_strided_slice %168 {offsets = [0, 48], sizes = [8, 8], strides = [1, 1]} : vector<8x64xf32> to vector<8x8xf32>
    %cst_87 = arith.constant dense<0.000000e+00> : vector<8x8xf32>
    %205 = tpu.matmul %203, %204, %cst_87 {dimension_numbers = #tpu.dot_dimension_numbers<[1], [1], [0], [0], [0, 0, 1, 0], [], []>} : vector<8x8xf32>, vector<8x8xf32>, vector<8x8xf32> -> vector<8x8xf32>
    %cst_88 = arith.constant 0.353553385 : f32
    %206 = vector.broadcast %cst_88 : f32 to vector<8x8xf32>
    %207 = arith.mulf %205, %206 : vector<8x8xf32>
    %cst_89 = arith.constant dense<0xFF800000> : vector<8xf32>
    %208 = vector.multi_reduction <maximumf>, %207, %cst_89 [1] : vector<8x8xf32> to vector<8xf32>
    %209 = vector.shape_cast %208 : vector<8xf32> to vector<8x1xf32>
    %210 = vector.broadcast %209 : vector<8x1xf32> to vector<8x8xf32>
    %211 = arith.subf %207, %210 : vector<8x8xf32>
    %212 = math.exp %211 : vector<8x8xf32>
    %cst_90 = arith.constant dense<0.000000e+00> : vector<8xf32>
    %213 = vector.multi_reduction <add>, %212, %cst_90 [1] : vector<8x8xf32> to vector<8xf32>
    %214 = vector.shape_cast %213 : vector<8xf32> to vector<8x1xf32>
    %215 = vector.broadcast %214 : vector<8x1xf32> to vector<8x8xf32>
    %216 = arith.divf %212, %215 : vector<8x8xf32>
    %217 = vector.extract_strided_slice %169 {offsets = [0, 64], sizes = [8, 32], strides = [1, 1]} : vector<8x128xf32> to vector<8x32xf32>
    %cst_91 = arith.constant dense<0.000000e+00> : vector<8x32xf32>
    %218 = tpu.matmul %216, %217, %cst_91 {dimension_numbers = #tpu.dot_dimension_numbers<[1], [0], [0], [1], [0, 0, 1, 1], [], []>} : vector<8x8xf32>, vector<8x32xf32>, vector<8x32xf32> -> vector<8x32xf32>
    %219 = arith.addf %202, %218 : vector<8x32xf32>
    %220 = vector.extract_strided_slice %168 {offsets = [0, 24], sizes = [8, 8], strides = [1, 1]} : vector<8x64xf32> to vector<8x8xf32>
    %221 = vector.extract_strided_slice %168 {offsets = [0, 56], sizes = [8, 8], strides = [1, 1]} : vector<8x64xf32> to vector<8x8xf32>
    %cst_92 = arith.constant dense<0.000000e+00> : vector<8x8xf32>
    %222 = tpu.matmul %220, %221, %cst_92 {dimension_numbers = #tpu.dot_dimension_numbers<[1], [1], [0], [0], [0, 0, 1, 0], [], []>} : vector<8x8xf32>, vector<8x8xf32>, vector<8x8xf32> -> vector<8x8xf32>
    %cst_93 = arith.constant 0.353553385 : f32
    %223 = vector.broadcast %cst_93 : f32 to vector<8x8xf32>
    %224 = arith.mulf %222, %223 : vector<8x8xf32>
    %cst_94 = arith.constant dense<0xFF800000> : vector<8xf32>
    %225 = vector.multi_reduction <maximumf>, %224, %cst_94 [1] : vector<8x8xf32> to vector<8xf32>
    %226 = vector.shape_cast %225 : vector<8xf32> to vector<8x1xf32>
    %227 = vector.broadcast %226 : vector<8x1xf32> to vector<8x8xf32>
    %228 = arith.subf %224, %227 : vector<8x8xf32>
    %229 = math.exp %228 : vector<8x8xf32>
    %cst_95 = arith.constant dense<0.000000e+00> : vector<8xf32>
    %230 = vector.multi_reduction <add>, %229, %cst_95 [1] : vector<8x8xf32> to vector<8xf32>
    %231 = vector.shape_cast %230 : vector<8xf32> to vector<8x1xf32>
    %232 = vector.broadcast %231 : vector<8x1xf32> to vector<8x8xf32>
    %233 = arith.divf %229, %232 : vector<8x8xf32>
    %234 = vector.extract_strided_slice %169 {offsets = [0, 96], sizes = [8, 32], strides = [1, 1]} : vector<8x128xf32> to vector<8x32xf32>
    %cst_96 = arith.constant dense<0.000000e+00> : vector<8x32xf32>
    %235 = tpu.matmul %233, %234, %cst_96 {dimension_numbers = #tpu.dot_dimension_numbers<[1], [0], [0], [1], [0, 0, 1, 1], [], []>} : vector<8x8xf32>, vector<8x32xf32>, vector<8x32xf32> -> vector<8x32xf32>
    %236 = arith.addf %219, %235 : vector<8x32xf32>
    %237 = vector.broadcast %156 : vector<1x32xf32> to vector<8x32xf32>
    %238 = arith.addf %236, %237 : vector<8x32xf32>
    %239 = arith.addf %154, %238 : vector<8x32xf32>
    %cst_97 = arith.constant dense<0.000000e+00> : vector<8xf32>
    %240 = vector.multi_reduction <add>, %239, %cst_97 [1] : vector<8x32xf32> to vector<8xf32>
    %241 = vector.shape_cast %240 : vector<8xf32> to vector<8x1xf32>
    %cst_98 = arith.constant 3.200000e+01 : f32
    %242 = vector.broadcast %cst_98 : f32 to vector<8x1xf32>
    %243 = arith.divf %241, %242 : vector<8x1xf32>
    %244 = vector.broadcast %243 : vector<8x1xf32> to vector<8x32xf32>
    %245 = arith.subf %239, %244 : vector<8x32xf32>
    %246 = arith.mulf %245, %245 : vector<8x32xf32>
    %cst_99 = arith.constant dense<0.000000e+00> : vector<8xf32>
    %247 = vector.multi_reduction <add>, %246, %cst_99 [1] : vector<8x32xf32> to vector<8xf32>
    %248 = vector.shape_cast %247 : vector<8xf32> to vector<8x1xf32>
    %cst_100 = arith.constant 3.200000e+01 : f32
    %249 = vector.broadcast %cst_100 : f32 to vector<8x1xf32>
    %250 = arith.divf %248, %249 : vector<8x1xf32>
    %cst_101 = arith.constant 9.99999974E-6 : f32
    %251 = vector.broadcast %cst_101 : f32 to vector<8x1xf32>
    %252 = arith.addf %250, %251 : vector<8x1xf32>
    %253 = math.rsqrt %252 : vector<8x1xf32>
    %254 = vector.broadcast %253 : vector<8x1xf32> to vector<8x32xf32>
    %255 = arith.mulf %245, %254 : vector<8x32xf32>
    %256 = vector.broadcast %157 : vector<1x32xf32> to vector<8x32xf32>
    %257 = arith.mulf %255, %256 : vector<8x32xf32>
    %258 = vector.broadcast %158 : vector<1x32xf32> to vector<8x32xf32>
    %259 = arith.addf %257, %258 : vector<8x32xf32>
    %c32_102 = arith.constant 32 : index
    %c0_103 = arith.constant 0 : index
    %260 = vector.load %arg2[%c32_102, %c0_103] : memref<64x2048xbf16, #tpu.memory_space<vmem>>, vector<32x2048xbf16>
    %261 = arith.truncf %259 : vector<8x32xf32> to vector<8x32xbf16>
    %cst_104 = arith.constant dense<0.000000e+00> : vector<8x2048xf32>
    %262 = tpu.matmul %261, %260, %cst_104 {dimension_numbers = #tpu.dot_dimension_numbers<[1], [0], [0], [1], [0, 0, 1, 1], [], []>} : vector<8x32xbf16>, vector<32x2048xbf16>, vector<8x2048xf32> -> vector<8x2048xf32>
    %263 = vector.broadcast %162 : vector<1x2048xf32> to vector<8x2048xf32>
    %264 = arith.addf %262, %263 : vector<8x2048xf32>
    %cst_105 = arith.constant 0.000000e+00 : f32
    %265 = vector.broadcast %cst_105 : f32 to vector<8x2048xf32>
    %266 = arith.maximumf %264, %265 : vector<8x2048xf32>
    %c2560 = arith.constant 2560 : index
    %c0_106 = arith.constant 0 : index
    %267 = vector.load %arg3[%c2560, %c0_106] : memref<4608x32xbf16, #tpu.memory_space<vmem>>, vector<2048x32xbf16>
    %268 = arith.truncf %266 : vector<8x2048xf32> to vector<8x2048xbf16>
    %cst_107 = arith.constant dense<0.000000e+00> : vector<8x32xf32>
    %269 = tpu.matmul %268, %267, %cst_107 {dimension_numbers = #tpu.dot_dimension_numbers<[1], [0], [0], [1], [0, 0, 1, 1], [], []>} : vector<8x2048xbf16>, vector<2048x32xbf16>, vector<8x32xf32> -> vector<8x32xf32>
    %270 = vector.broadcast %159 : vector<1x32xf32> to vector<8x32xf32>
    %271 = arith.addf %269, %270 : vector<8x32xf32>
    %272 = arith.addf %259, %271 : vector<8x32xf32>
    %cst_108 = arith.constant dense<0.000000e+00> : vector<8xf32>
    %273 = vector.multi_reduction <add>, %272, %cst_108 [1] : vector<8x32xf32> to vector<8xf32>
    %274 = vector.shape_cast %273 : vector<8xf32> to vector<8x1xf32>
    %cst_109 = arith.constant 3.200000e+01 : f32
    %275 = vector.broadcast %cst_109 : f32 to vector<8x1xf32>
    %276 = arith.divf %274, %275 : vector<8x1xf32>
    %277 = vector.broadcast %276 : vector<8x1xf32> to vector<8x32xf32>
    %278 = arith.subf %272, %277 : vector<8x32xf32>
    %279 = arith.mulf %278, %278 : vector<8x32xf32>
    %cst_110 = arith.constant dense<0.000000e+00> : vector<8xf32>
    %280 = vector.multi_reduction <add>, %279, %cst_110 [1] : vector<8x32xf32> to vector<8xf32>
    %281 = vector.shape_cast %280 : vector<8xf32> to vector<8x1xf32>
    %cst_111 = arith.constant 3.200000e+01 : f32
    %282 = vector.broadcast %cst_111 : f32 to vector<8x1xf32>
    %283 = arith.divf %281, %282 : vector<8x1xf32>
    %cst_112 = arith.constant 9.99999974E-6 : f32
    %284 = vector.broadcast %cst_112 : f32 to vector<8x1xf32>
    %285 = arith.addf %283, %284 : vector<8x1xf32>
    %286 = math.rsqrt %285 : vector<8x1xf32>
    %287 = vector.broadcast %286 : vector<8x1xf32> to vector<8x32xf32>
    %288 = arith.mulf %278, %287 : vector<8x32xf32>
    %289 = vector.broadcast %160 : vector<1x32xf32> to vector<8x32xf32>
    %290 = arith.mulf %288, %289 : vector<8x32xf32>
    %291 = vector.broadcast %161 : vector<1x32xf32> to vector<8x32xf32>
    %292 = arith.addf %290, %291 : vector<8x32xf32>
    %c64 = arith.constant 64 : index
    %c0_113 = arith.constant 0 : index
    %293 = vector.load %arg1[%c64, %c0_113] : memref<96x512xbf16, #tpu.memory_space<vmem>>, vector<32x512xbf16>
    %294 = arith.truncf %292 : vector<8x32xf32> to vector<8x32xbf16>
    %cst_114 = arith.constant dense<0.000000e+00> : vector<8x512xf32>
    %295 = tpu.matmul %294, %293, %cst_114 {dimension_numbers = #tpu.dot_dimension_numbers<[1], [0], [0], [1], [0, 0, 1, 1], [], []>} : vector<8x32xbf16>, vector<32x512xbf16>, vector<8x512xf32> -> vector<8x512xf32>
    %296 = vector.broadcast %1 : vector<1x512xf32> to vector<8x512xf32>
    %297 = arith.addf %295, %296 : vector<8x512xf32>
    %cst_115 = arith.constant 0.000000e+00 : f32
    %298 = vector.broadcast %cst_115 : f32 to vector<8x512xf32>
    %299 = arith.maximumf %297, %298 : vector<8x512xf32>
    %c0_116 = arith.constant 0 : index
    %c0_117 = arith.constant 0 : index
    %300 = vector.load %arg5[%c0_116, %c0_117] : memref<512x64xbf16, #tpu.memory_space<vmem>>, vector<512x64xbf16>
    %301 = arith.truncf %299 : vector<8x512xf32> to vector<8x512xbf16>
    %cst_118 = arith.constant dense<0.000000e+00> : vector<8x64xf32>
    %302 = tpu.matmul %301, %300, %cst_118 {dimension_numbers = #tpu.dot_dimension_numbers<[1], [0], [0], [1], [0, 0, 1, 1], [], []>} : vector<8x512xbf16>, vector<512x64xbf16>, vector<8x64xf32> -> vector<8x64xf32>
    %303 = vector.broadcast %3 : vector<1x64xf32> to vector<8x64xf32>
    %304 = arith.addf %302, %303 : vector<8x64xf32>
    %cst_119 = arith.constant dense<0xFF800000> : vector<8xf32>
    %305 = vector.multi_reduction <maximumf>, %304, %cst_119 [1] : vector<8x64xf32> to vector<8xf32>
    %306 = vector.shape_cast %305 : vector<8xf32> to vector<8x1xf32>
    %307 = vector.broadcast %306 : vector<8x1xf32> to vector<8x64xf32>
    %308 = arith.subf %304, %307 : vector<8x64xf32>
    %309 = math.exp %308 : vector<8x64xf32>
    %cst_120 = arith.constant dense<0.000000e+00> : vector<8xf32>
    %310 = vector.multi_reduction <add>, %309, %cst_120 [1] : vector<8x64xf32> to vector<8xf32>
    %311 = vector.shape_cast %310 : vector<8xf32> to vector<8x1xf32>
    %312 = vector.broadcast %311 : vector<8x1xf32> to vector<8x64xf32>
    %313 = arith.divf %309, %312 : vector<8x64xf32>
    %c0_121 = arith.constant 0 : index
    %c0_122 = arith.constant 0 : index
    %314 = vector.load %arg7[%c0_121, %c0_122] : memref<8x64xf32, #tpu.memory_space<vmem>>, vector<8x64xf32>
    tpu.vector_store %arg7[%c0_121, %c0_122], %313 {strides = array<i32>} : memref<8x64xf32, #tpu.memory_space<vmem>>, vector<8x64xf32>,
    return
  }
}

</mosaic_0001>

<llo_original>
// kernel: model_trans_forward.1
$region0: #{model_trans_forward.1}
  #allocation0 [shape = 'u32[]', space=smem, size = 0x4, offset = 0x4, fixed_abs, tag = 'smem constant byte address 0x4 - core index']
  #allocation1 [shape = 'u32[144,128]{1,0:T(1,128)}', space=vmem, size = 0x12000, scoped, tag = 'internal scratch']
  %s0 = inlined_call_operand.vmem [shape: f32[8,64], index: 0, kind: input, shape index: {}]
  %s1 = inlined_call_operand.vmem [shape: bf16[96,512], index: 1, kind: input, shape index: {}]
  %s2 = inlined_call_operand.vmem [shape: bf16[64,2048], index: 2, kind: input, shape index: {}]
  %s3 = inlined_call_operand.vmem [shape: bf16[4608,32], index: 3, kind: input, shape index: {}]
  %s4 = inlined_call_operand.vmem [shape: bf16[64,192], index: 4, kind: input, shape index: {}]
  %s5 = inlined_call_operand.vmem [shape: bf16[512,64], index: 5, kind: input, shape index: {}]
  %s6 = inlined_call_operand.vmem [shape: f32[5,2048], index: 6, kind: input, shape index: {}]
  %s7 = inlined_call_operand.hbm [shape: f32[8,64], index: 7, kind: output, shape index: {}]
  %s8 = sld [smem:[#allocation0]]
  $region38: #{model_trans_forward.1} parent=0
    _
  %s10 = ssub.s32 1, %s8
  %s11 = scalar_select 0, %s10, %s8
  $region1: #{model_trans_forward.1} parent=0
    #allocation2 [shape = 'u8[4096]{0}', space=vmem, size = 0x1000, scoped, tag = 'output window, operand 0, single buffered']
    #allocation3 [shape = 's32[1]{0}', space=sflag, size = 0x4, scoped, tag = 'scoped memory for model_trans_forward.1']
    %12 = vsyncpa [#allocation3], 0
    // Predicated region
    $region2: #{model_trans_forward.1} parent=1 // pred_check
      _
    $region3: #{model_trans_forward.1} parent=1 // pred_check_branch
      %14 = sbr.rel (0) target = $region5
    $region4: #{model_trans_forward.1} parent=1 // pred_region
      _
    $region5: #{model_trans_forward.1} parent=1 // pred_fallthru
      _
    // Predicated region
    $region6: #{model_trans_forward.1} parent=1 // pred_check
      _
    $region7: #{model_trans_forward.1} parent=1 // pred_check_branch
      %16 = sbr.rel (0) target = $region9
    $region8: #{model_trans_forward.1} parent=1 // pred_region
      _
    $region9: #{model_trans_forward.1} parent=1 // pred_fallthru
      _
    // Predicated region
    $region10: #{model_trans_forward.1} parent=1 // pred_check
      _
    $region11: #{model_trans_forward.1} parent=1 // pred_check_branch
      %18 = sbr.rel (0) target = $region13
    $region12: #{model_trans_forward.1} parent=1 // pred_region
      _
    $region13: #{model_trans_forward.1} parent=1 // pred_fallthru
      _
    // Predicated region
    $region14: #{model_trans_forward.1} parent=1 // pred_check
      _
    $region15: #{model_trans_forward.1} parent=1 // pred_check_branch
      %20 = sbr.rel (0) target = $region17
    $region16: #{model_trans_forward.1} parent=1 // pred_region
      _
    $region17: #{model_trans_forward.1} parent=1 // pred_fallthru
      _
    // Predicated region
    $region18: #{model_trans_forward.1} parent=1 // pred_check
      _
    $region19: #{model_trans_forward.1} parent=1 // pred_check_branch
      %22 = sbr.rel (0) target = $region21
    $region20: #{model_trans_forward.1} parent=1 // pred_region
      _
    $region21: #{model_trans_forward.1} parent=1 // pred_fallthru
      _
    // Predicated region
    $region22: #{model_trans_forward.1} parent=1 // pred_check
      _
    $region23: #{model_trans_forward.1} parent=1 // pred_check_branch
      %24 = sbr.rel (0) target = $region25
    $region24: #{model_trans_forward.1} parent=1 // pred_region
      _
    $region25: #{model_trans_forward.1} parent=1 // pred_fallthru
      _
    // Predicated region
    $region26: #{model_trans_forward.1} parent=1 // pred_check
      _
    $region27: #{model_trans_forward.1} parent=1 // pred_check_branch
      %26 = sbr.rel (0) target = $region29
    $region28: #{model_trans_forward.1} parent=1 // pred_region
      _
    $region29: #{model_trans_forward.1} parent=1 // pred_fallthru
      _
    %v28 = vld [vmem:[%s6] ss:$8 sm:$0xf]
    %s29 = scalar_lea.vmem %s6, 32
    %v30 = vld [vmem:[%s29] ss:$8 sm:$0xf]
    %v31 = vld [vmem:[%s6 + $0x40] ss:$0 sm:$0xff]
    %v32 = vld [vmem:[%s6 + $0x48] ss:$0 sm:$0xff]
    %v33 = vld [vmem:[%s0] sm:$0xff]
    %v34 = vld [vmem:[%s1] sm:$0xff]
    %v35 = vld [vmem:[%s1 + $0x8] sm:$0xff]
    %v36 = vld [vmem:[%s1 + $0x10] sm:$0xff]
    %v37 = vld [vmem:[%s1 + $0x18] sm:$0xff]
    %v38 = vld [vmem:[%s1 + $0x20] sm:$0xff]
    %v39 = vld [vmem:[%s1 + $0x28] sm:$0xff]
    %v40 = vld [vmem:[%s1 + $0x30] sm:$0xff]
    %v41 = vld [vmem:[%s1 + $0x38] sm:$0xff]
    %v42 = vld [vmem:[%s1 + $0x40] sm:$0xff]
    %v43 = vld [vmem:[%s1 + $0x48] sm:$0xff]
    %v44 = vld [vmem:[%s1 + $0x50] sm:$0xff]
    %v45 = vld [vmem:[%s1 + $0x58] sm:$0xff]
    %v46 = vld [vmem:[%s1 + $0x60] sm:$0xff]
    %v47 = vld [vmem:[%s1 + $0x68] sm:$0xff]
    %v48 = vld [vmem:[%s1 + $0x70] sm:$0xff]
    %v49 = vld [vmem:[%s1 + $0x78] sm:$0xff]
    %v50 = vpack.c.bf16 %v33, %v33
    %v52 = vlaneseq
    %v53 = vshrl.u32 %v52, 7
    %v54 = vsub.s32 0, %v53
    %v55 = vrot.slane %v28, %v54
    %v56 = vlaneseq
    %v57 = vshrl.u32 %v56, 7
    %v58 = vsub.s32 1, %v57
    %v59 = vrot.slane %v28, %v58
    %v60 = vlaneseq
    %v61 = vshrl.u32 %v60, 7
    %v62 = vsub.s32 2, %v61
    %v63 = vrot.slane %v28, %v62
    %v64 = vlaneseq
    %v65 = vshrl.u32 %v64, 7
    %v66 = vsub.s32 3, %v65
    %v67 = vrot.slane %v28, %v66
    %v88 = vunpack.c.l.b16 %v34
    %v89 = vunpack.c.h.b16 %v34
    %v90 = vunpack.c.l.b16 %v35
    %v91 = vunpack.c.h.b16 %v35
    %v92 = vunpack.c.l.b16 %v36
    %v93 = vunpack.c.h.b16 %v36
    %v94 = vunpack.c.l.b16 %v37
    %v95 = vunpack.c.h.b16 %v37
    %v96 = vunpack.c.l.b16 %v38
    %v97 = vunpack.c.h.b16 %v38
    %v98 = vunpack.c.l.b16 %v39
    %v99 = vunpack.c.h.b16 %v39
    %v100 = vunpack.c.l.b16 %v40
    %v101 = vunpack.c.h.b16 %v40
    %v102 = vunpack.c.l.b16 %v41
    %v103 = vunpack.c.h.b16 %v41
    %v104 = vunpack.c.l.b16 %v42
    %v105 = vunpack.c.h.b16 %v42
    %v106 = vunpack.c.l.b16 %v43
    %v107 = vunpack.c.h.b16 %v43
    %v108 = vunpack.c.l.b16 %v44
    %v109 = vunpack.c.h.b16 %v44
    %v110 = vunpack.c.l.b16 %v45
    %v111 = vunpack.c.h.b16 %v45
    %v112 = vunpack.c.l.b16 %v46
    %v113 = vunpack.c.h.b16 %v46
    %v114 = vunpack.c.l.b16 %v47
    %v115 = vunpack.c.h.b16 %v47
    %v116 = vunpack.c.l.b16 %v48
    %v117 = vunpack.c.h.b16 %v48
    %v118 = vunpack.c.l.b16 %v49
    %v119 = vunpack.c.h.b16 %v49
    %v120 = vpack.c.b16 %v92, %v88
    %v121 = vpack.c.b16 %v93, %v89
    %v122 = vpack.c.b16 %v94, %v90
    %v123 = vpack.c.b16 %v95, %v91
    %v124 = vpack.c.b16 %v100, %v96
    %v125 = vpack.c.b16 %v101, %v97
    %v126 = vpack.c.b16 %v102, %v98
    %v127 = vpack.c.b16 %v103, %v99
    %v128 = vpack.c.b16 %v108, %v104
    %v129 = vpack.c.b16 %v109, %v105
    %v130 = vpack.c.b16 %v110, %v106
    %v131 = vpack.c.b16 %v111, %v107
    %v132 = vpack.c.b16 %v116, %v112
    %v133 = vpack.c.b16 %v117, %v113
    %v134 = vpack.c.b16 %v118, %v114
    %v135 = vpack.c.b16 %v119, %v115
    %vm152 = vcmask 523264
    %v154 = vsel %vm152, %v50, 0
    %156 = vmatprep.subr.bf16.mxu0 %v121
    %157 = vmatpush1.bf16.msra.mxu0 %v120
    %158 = vmatprep.subr.bf16.mxu0 %v125
    %159 = vmatpush1.bf16.msra.mxu0 %v124
    %160 = vmatprep.subr.bf16.mxu0 %v129
    %161 = vmatpush1.bf16.msra.mxu0 %v128
    %162 = vmatprep.subr.bf16.mxu0 %v133
    %163 = vmatpush1.bf16.msra.mxu0 %v132
    %164 = vmatprep.subr.bf16.mxu0 0
    %165 = vmatpush1.bf16.msra.mxu0 0
    %166 = vmatprep.subr.bf16.mxu0 0
    %167 = vmatpush1.bf16.msra.mxu0 0
    %168 = vmatprep.subr.bf16.mxu0 0
    %169 = vmatpush1.bf16.msra.mxu0 0
    %170 = vmatprep.subr.bf16.mxu0 0
    %171 = vmatpush1.bf16.msra.mxu0 0
    %172 = vmatprep.subr.bf16.mxu0 0
    %173 = vmatpush1.bf16.msra.mxu0 0
    %174 = vmatprep.subr.bf16.mxu0 0
    %175 = vmatpush1.bf16.msra.mxu0 0
    %176 = vmatprep.subr.bf16.mxu0 0
    %177 = vmatpush1.bf16.msra.mxu0 0
    %178 = vmatprep.subr.bf16.mxu0 0
    %179 = vmatpush1.bf16.msra.mxu0 0
    %180 = vmatprep.subr.bf16.mxu0 0
    %181 = vmatpush1.bf16.msra.mxu0 0
    %182 = vmatprep.subr.bf16.mxu0 0
    %183 = vmatpush1.bf16.msra.mxu0 0
    %184 = vmatprep.subr.bf16.mxu0 0
    %185 = vmatpush1.bf16.msra.mxu0 0
    %186 = vmatprep.subr.bf16.mxu0 0
    %187 = vmatpush1.bf16.msra.mxu0 0
    %188 = vmatprep.mubr.bf16.mxu0 0
    %189 = vmatmul.mubr.bf16.gmra.mrb[0].mxu0 %v154
    %v190 = vpop.f32.mrb[0].mxu0
    %v191 = vadd.f32 %v55, %v190
    %v192 = vpop.f32.mrb[0].mxu0
    %v193 = vadd.f32 %v59, %v192
    %v194 = vpop.f32.mrb[0].mxu0
    %v195 = vpop.f32.mrb[0].mxu0
    %196 = vdwg.mxu0
    %197 = vmatprep.subr.bf16.mxu0 %v123
    %198 = vmatpush1.bf16.msra.mxu0 %v122
    %199 = vmatprep.subr.bf16.mxu0 %v127
    %200 = vmatpush1.bf16.msra.mxu0 %v126
    %201 = vmatprep.subr.bf16.mxu0 %v131
    %202 = vmatpush1.bf16.msra.mxu0 %v130
    %203 = vmatprep.subr.bf16.mxu0 %v135
    %204 = vmatpush1.bf16.msra.mxu0 %v134
    %205 = vmatprep.subr.bf16.mxu0 0
    %206 = vmatpush1.bf16.msra.mxu0 0
    %207 = vmatprep.subr.bf16.mxu0 0
    %208 = vmatpush1.bf16.msra.mxu0 0
    %209 = vmatprep.subr.bf16.mxu0 0
    %210 = vmatpush1.bf16.msra.mxu0 0
    %211 = vmatprep.subr.bf16.mxu0 0
    %212 = vmatpush1.bf16.msra.mxu0 0
    %213 = vmatprep.subr.bf16.mxu0 0
    %214 = vmatpush1.bf16.msra.mxu0 0
    %215 = vmatprep.subr.bf16.mxu0 0
    %216 = vmatpush1.bf16.msra.mxu0 0
    %217 = vmatprep.subr.bf16.mxu0 0
    %218 = vmatpush1.bf16.msra.mxu0 0
    %219 = vmatprep.subr.bf16.mxu0 0
    %220 = vmatpush1.bf16.msra.mxu0 0
    %221 = vmatprep.subr.bf16.mxu0 0
    %222 = vmatpush1.bf16.msra.mxu0 0
    %223 = vmatprep.subr.bf16.mxu0 0
    %224 = vmatpush1.bf16.msra.mxu0 0
    %225 = vmatprep.subr.bf16.mxu0 0
    %226 = vmatpush1.bf16.msra.mxu0 0
    %227 = vmatprep.subr.bf16.mxu0 0
    %228 = vmatpush1.bf16.msra.mxu0 0
    %229 = vmatprep.mubr.bf16.mxu0 0
    %230 = vmatmul.mubr.bf16.gmra.mrb[0].mxu0 %v154
    %v231 = vpop.f32.mrb[0].mxu0
    %v232 = vadd.f32 %v63, %v231
    %v233 = vpop.f32.mrb[0].mxu0
    %v234 = vadd.f32 %v67, %v233
    %v235 = vpop.f32.mrb[0].mxu0
    %v236 = vpop.f32.mrb[0].mxu0
    %237 = vdwg.mxu0
    %v238 = vmax.f32 %v191, 0.0
    %v239 = vmax.f32 %v193, 0.0
    %v240 = vmax.f32 %v232, 0.0
    %v241 = vmax.f32 %v234, 0.0
    %v242 = vld [vmem:[%s3] sm:$0xf]
    %v243 = vld [vmem:[%s3 + $0x4] sm:$0xf]
    %v244 = vld [vmem:[%s3 + $0x8] sm:$0xf]
    %v245 = vld [vmem:[%s3 + $0xc] sm:$0xf]
    %v246 = vld [vmem:[%s3 + $0x10] sm:$0xf]
    %v247 = vld [vmem:[%s3 + $0x14] sm:$0xf]
    %v248 = vld [vmem:[%s3 + $0x18] sm:$0xf]
    %v249 = vld [vmem:[%s3 + $0x1c] sm:$0xf]
    %v250 = vld [vmem:[%s3 + $0x20] sm:$0xf]
    %v251 = vld [vmem:[%s3 + $0x24] sm:$0xf]
    %v252 = vld [vmem:[%s3 + $0x28] sm:$0xf]
    %v253 = vld [vmem:[%s3 + $0x2c] sm:$0xf]
    %v254 = vld [vmem:[%s3 + $0x30] sm:$0xf]
    %v255 = vld [vmem:[%s3 + $0x34] sm:$0xf]
    %v256 = vld [vmem:[%s3 + $0x38] sm:$0xf]
    %v257 = vld [vmem:[%s3 + $0x3c] sm:$0xf]
    %v258 = vld [vmem:[%s3 + $0x40] sm:$0xf]
    %v259 = vld [vmem:[%s3 + $0x44] sm:$0xf]
    %v260 = vld [vmem:[%s3 + $0x48] sm:$0xf]
    %v261 = vld [vmem:[%s3 + $0x4c] sm:$0xf]
    %v262 = vld [vmem:[%s3 + $0x50] sm:$0xf]
    %v263 = vld [vmem:[%s3 + $0x54] sm:$0xf]
    %v264 = vld [vmem:[%s3 + $0x58] sm:$0xf]
    %v265 = vld [vmem:[%s3 + $0x5c] sm:$0xf]
    %v266 = vld [vmem:[%s3 + $0x60] sm:$0xf]
    %v267 = vld [vmem:[%s3 + $0x64] sm:$0xf]
    %v268 = vld [vmem:[%s3 + $0x68] sm:$0xf]
    %v269 = vld [vmem:[%s3 + $0x6c] sm:$0xf]
    %v270 = vld [vmem:[%s3 + $0x70] sm:$0xf]
    %v271 = vld [vmem:[%s3 + $0x74] sm:$0xf]
    %v272 = vld [vmem:[%s3 + $0x78] sm:$0xf]
    %v273 = vld [vmem:[%s3 + $0x7c] sm:$0xf]
    %v274 = vld [vmem:[%s3 + $0x80] sm:$0xf]
    %v275 = vld [vmem:[%s3 + $0x84] sm:$0xf]
    %v276 = vld [vmem:[%s3 + $0x88] sm:$0xf]
    %v277 = vld [vmem:[%s3 + $0x8c] sm:$0xf]
    %v278 = vld [vmem:[%s3 + $0x90] sm:$0xf]
    %v279 = vld [vmem:[%s3 + $0x94] sm:$0xf]
    %v280 = vld [vmem:[%s3 + $0x98] sm:$0xf]
    %v281 = vld [vmem:[%s3 + $0x9c] sm:$0xf]
    %v282 = vld [vmem:[%s3 + $0xa0] sm:$0xf]
    %v283 = vld [vmem:[%s3 + $0xa4] sm:$0xf]
    %v284 = vld [vmem:[%s3 + $0xa8] sm:$0xf]
    %v285 = vld [vmem:[%s3 + $0xac] sm:$0xf]
    %v286 = vld [vmem:[%s3 + $0xb0] sm:$0xf]
    %v287 = vld [vmem:[%s3 + $0xb4] sm:$0xf]
    %v288 = vld [vmem:[%s3 + $0xb8] sm:$0xf]
    %v289 = vld [vmem:[%s3 + $0xbc] sm:$0xf]
    %v290 = vld [vmem:[%s3 + $0xc0] sm:$0xf]
    %v291 = vld [vmem:[%s3 + $0xc4] sm:$0xf]
    %v292 = vld [vmem:[%s3 + $0xc8] sm:$0xf]
    %v293 = vld [vmem:[%s3 + $0xcc] sm:$0xf]
    %v294 = vld [vmem:[%s3 + $0xd0] sm:$0xf]
    %v295 = vld [vmem:[%s3 + $0xd4] sm:$0xf]
    %v296 = vld [vmem:[%s3 + $0xd8] sm:$0xf]
    %v297 = vld [vmem:[%s3 + $0xdc] sm:$0xf]
    %v298 = vld [vmem:[%s3 + $0xe0] sm:$0xf]
    %v299 = vld [vmem:[%s3 + $0xe4] sm:$0xf]
    %v300 = vld [vmem:[%s3 + $0xe8] sm:$0xf]
    %v301 = vld [vmem:[%s3 + $0xec] sm:$0xf]
    %v302 = vld [vmem:[%s3 + $0xf0] sm:$0xf]
    %v303 = vld [vmem:[%s3 + $0xf4] sm:$0xf]
    %v304 = vld [vmem:[%s3 + $0xf8] sm:$0xf]
    %v305 = vld [vmem:[%s3 + $0xfc] sm:$0xf]
    %v306 = vpack.c.bf16 %v238, %v238
    %v307 = vpack.c.bf16 %v239, %v239
    %v308 = vpack.c.bf16 %v240, %v240
    %v309 = vpack.c.bf16 %v241, %v241
    %v374 = vunpack.c.l.b16 %v242
    %v375 = vunpack.c.l.b16 %v243
    %v376 = vunpack.c.l.b16 %v244
    %v377 = vunpack.c.l.b16 %v245
    %v378 = vunpack.c.l.b16 %v246
    %v379 = vunpack.c.l.b16 %v247
    %v380 = vunpack.c.l.b16 %v248
    %v381 = vunpack.c.l.b16 %v249
    %v382 = vunpack.c.l.b16 %v250
    %v383 = vunpack.c.l.b16 %v251
    %v384 = vunpack.c.l.b16 %v252
    %v385 = vunpack.c.l.b16 %v253
    %v386 = vunpack.c.l.b16 %v254
    %v387 = vunpack.c.l.b16 %v255
    %v388 = vunpack.c.l.b16 %v256
    %v389 = vunpack.c.l.b16 %v257
    %v390 = vunpack.c.l.b16 %v258
    %v391 = vunpack.c.l.b16 %v259
    %v392 = vunpack.c.l.b16 %v260
    %v393 = vunpack.c.l.b16 %v261
    %v394 = vunpack.c.l.b16 %v262
    %v395 = vunpack.c.l.b16 %v263
    %v396 = vunpack.c.l.b16 %v264
    %v397 = vunpack.c.l.b16 %v265
    %v398 = vunpack.c.l.b16 %v266
    %v399 = vunpack.c.l.b16 %v267
    %v400 = vunpack.c.l.b16 %v268
    %v401 = vunpack.c.l.b16 %v269
    %v402 = vunpack.c.l.b16 %v270
    %v403 = vunpack.c.l.b16 %v271
    %v404 = vunpack.c.l.b16 %v272
    %v405 = vunpack.c.l.b16 %v273
    %v406 = vunpack.c.l.b16 %v274
    %v407 = vunpack.c.l.b16 %v275
    %v408 = vunpack.c.l.b16 %v276
    %v409 = vunpack.c.l.b16 %v277
    %v410 = vunpack.c.l.b16 %v278
    %v411 = vunpack.c.l.b16 %v279
    %v412 = vunpack.c.l.b16 %v280
    %v413 = vunpack.c.l.b16 %v281
    %v414 = vunpack.c.l.b16 %v282
    %v415 = vunpack.c.l.b16 %v283
    %v416 = vunpack.c.l.b16 %v284
    %v417 = vunpack.c.l.b16 %v285
    %v418 = vunpack.c.l.b16 %v286
    %v419 = vunpack.c.l.b16 %v287
    %v420 = vunpack.c.l.b16 %v288
    %v421 = vunpack.c.l.b16 %v289
    %v422 = vunpack.c.l.b16 %v290
    %v423 = vunpack.c.l.b16 %v291
    %v424 = vunpack.c.l.b16 %v292
    %v425 = vunpack.c.l.b16 %v293
    %v426 = vunpack.c.l.b16 %v294
    %v427 = vunpack.c.l.b16 %v295
    %v428 = vunpack.c.l.b16 %v296
    %v429 = vunpack.c.l.b16 %v297
    %v430 = vunpack.c.l.b16 %v298
    %v431 = vunpack.c.l.b16 %v299
    %v432 = vunpack.c.l.b16 %v300
    %v433 = vunpack.c.l.b16 %v301
    %v434 = vunpack.c.l.b16 %v302
    %v435 = vunpack.c.l.b16 %v303
    %v436 = vunpack.c.l.b16 %v304
    %v437 = vunpack.c.l.b16 %v305
    %v438 = vpack.c.b16 %v375, %v374
    %v439 = vpack.c.b16 %v377, %v376
    %v440 = vpack.c.b16 %v379, %v378
    %v441 = vpack.c.b16 %v381, %v380
    %v442 = vpack.c.b16 %v383, %v382
    %v443 = vpack.c.b16 %v385, %v384
    %v444 = vpack.c.b16 %v387, %v386
    %v445 = vpack.c.b16 %v389, %v388
    %v446 = vpack.c.b16 %v391, %v390
    %v447 = vpack.c.b16 %v393, %v392
    %v448 = vpack.c.b16 %v395, %v394
    %v449 = vpack.c.b16 %v397, %v396
    %v450 = vpack.c.b16 %v399, %v398
    %v451 = vpack.c.b16 %v401, %v400
    %v452 = vpack.c.b16 %v403, %v402
    %v453 = vpack.c.b16 %v405, %v404
    %v454 = vpack.c.b16 %v407, %v406
    %v455 = vpack.c.b16 %v409, %v408
    %v456 = vpack.c.b16 %v411, %v410
    %v457 = vpack.c.b16 %v413, %v412
    %v458 = vpack.c.b16 %v415, %v414
    %v459 = vpack.c.b16 %v417, %v416
    %v460 = vpack.c.b16 %v419, %v418
    %v461 = vpack.c.b16 %v421, %v420
    %v462 = vpack.c.b16 %v423, %v422
    %v463 = vpack.c.b16 %v425, %v424
    %v464 = vpack.c.b16 %v427, %v426
    %v465 = vpack.c.b16 %v429, %v428
    %v466 = vpack.c.b16 %v431, %v430
    %v467 = vpack.c.b16 %v433, %v432
    %v468 = vpack.c.b16 %v435, %v434
    %v469 = vpack.c.b16 %v437, %v436
    %502 = vmatprep.subr.bf16.mxu0 0
    %503 = vmatpush1.bf16.msra.mxu0 %v438
    %504 = vmatprep.subr.bf16.mxu0 0
    %505 = vmatpush1.bf16.msra.mxu0 %v439
    %506 = vmatprep.subr.bf16.mxu0 0
    %507 = vmatpush1.bf16.msra.mxu0 %v440
    %508 = vmatprep.subr.bf16.mxu0 0
    %509 = vmatpush1.bf16.msra.mxu0 %v441
    %510 = vmatprep.subr.bf16.mxu0 0
    %511 = vmatpush1.bf16.msra.mxu0 %v442
    %512 = vmatprep.subr.bf16.mxu0 0
    %513 = vmatpush1.bf16.msra.mxu0 %v443
    %514 = vmatprep.subr.bf16.mxu0 0
    %515 = vmatpush1.bf16.msra.mxu0 %v444
    %516 = vmatprep.subr.bf16.mxu0 0
    %517 = vmatpush1.bf16.msra.mxu0 %v445
    %518 = vmatprep.subr.bf16.mxu0 0
    %519 = vmatpush1.bf16.msra.mxu0 %v446
    %520 = vmatprep.subr.bf16.mxu0 0
    %521 = vmatpush1.bf16.msra.mxu0 %v447
    %522 = vmatprep.subr.bf16.mxu0 0
    %523 = vmatpush1.bf16.msra.mxu0 %v448
    %524 = vmatprep.subr.bf16.mxu0 0
    %525 = vmatpush1.bf16.msra.mxu0 %v449
    %526 = vmatprep.subr.bf16.mxu0 0
    %527 = vmatpush1.bf16.msra.mxu0 %v450
    %528 = vmatprep.subr.bf16.mxu0 0
    %529 = vmatpush1.bf16.msra.mxu0 %v451
    %530 = vmatprep.subr.bf16.mxu0 0
    %531 = vmatpush1.bf16.msra.mxu0 %v452
    %532 = vmatprep.subr.bf16.mxu0 0
    %533 = vmatpush1.bf16.msra.mxu0 %v453
    %534 = vmatprep.mubr.bf16.mxu0 %v307
    %535 = vmatmul.mubr.bf16.gmra.mrb[0].mxu0 %v306
    %v536 = vpop.f32.mrb[0].mxu0
    %v537 = vadd.f32 %v31, %v536
    %v538 = vpop.f32.mrb[0].mxu0
    %v539 = vpop.f32.mrb[0].mxu0
    %v540 = vpop.f32.mrb[0].mxu0
    %541 = vdwg.mxu0
    %542 = vmatprep.subr.bf16.mxu0 0
    %543 = vmatpush1.bf16.msra.mxu0 %v454
    %544 = vmatprep.subr.bf16.mxu0 0
    %545 = vmatpush1.bf16.msra.mxu0 %v455
    %546 = vmatprep.subr.bf16.mxu0 0
    %547 = vmatpush1.bf16.msra.mxu0 %v456
    %548 = vmatprep.subr.bf16.mxu0 0
    %549 = vmatpush1.bf16.msra.mxu0 %v457
    %550 = vmatprep.subr.bf16.mxu0 0
    %551 = vmatpush1.bf16.msra.mxu0 %v458
    %552 = vmatprep.subr.bf16.mxu0 0
    %553 = vmatpush1.bf16.msra.mxu0 %v459
    %554 = vmatprep.subr.bf16.mxu0 0
    %555 = vmatpush1.bf16.msra.mxu0 %v460
    %556 = vmatprep.subr.bf16.mxu0 0
    %557 = vmatpush1.bf16.msra.mxu0 %v461
    %558 = vmatprep.subr.bf16.mxu0 0
    %559 = vmatpush1.bf16.msra.mxu0 %v462
    %560 = vmatprep.subr.bf16.mxu0 0
    %561 = vmatpush1.bf16.msra.mxu0 %v463
    %562 = vmatprep.subr.bf16.mxu0 0
    %563 = vmatpush1.bf16.msra.mxu0 %v464
    %564 = vmatprep.subr.bf16.mxu0 0
    %565 = vmatpush1.bf16.msra.mxu0 %v465
    %566 = vmatprep.subr.bf16.mxu0 0
    %567 = vmatpush1.bf16.msra.mxu0 %v466
    %568 = vmatprep.subr.bf16.mxu0 0
    %569 = vmatpush1.bf16.msra.mxu0 %v467
    %570 = vmatprep.subr.bf16.mxu0 0
    %571 = vmatpush1.bf16.msra.mxu0 %v468
    %572 = vmatprep.subr.bf16.mxu0 0
    %573 = vmatpush1.bf16.msra.mxu0 %v469
    %574 = vmatprep.mubr.bf16.mxu0 %v309
    %575 = vmatmul.mubr.bf16.gmra.mrb[0].mxu0 %v308
    %v576 = vpop.f32.mrb[0].mxu0
    %v577 = vadd.f32 %v537, %v576
    %v578 = vpop.f32.mrb[0].mxu0
    %v579 = vpop.f32.mrb[0].mxu0
    %v580 = vpop.f32.mrb[0].mxu0
    %581 = vdwg.mxu0
    %v582 = vld [vmem:[%s6 + $0x1] ss:$0 sm:$0xff]
    %v583 = vld [vmem:[%s6 + $0x9] ss:$0 sm:$0xff]
    %v584 = vld [vmem:[%s6 + $0x11] ss:$0 sm:$0xff]
    %v585 = vld [vmem:[%s6 + $0x19] ss:$0 sm:$0xff]
    %v586 = vld [vmem:[%s6 + $0x21] ss:$0 sm:$0xff]
    %v587 = vld [vmem:[%s6 + $0x29] ss:$0 sm:$0xff]
    %v588 = vld [vmem:[%s6 + $0x31] ss:$0 sm:$0xff]
    %s589 = scalar_lea.vmem %s6, 2
    %v590 = vld [vmem:[%s589] ss:$8 sm:$0xf]
    %v591 = vld [vmem:[%s589] ss:$8 sm:$0xf0]
    %v592 = vor.u32 %v590, %v591
    %s593 = scalar_lea.vmem %s6, 66
    %v594 = vld [vmem:[%s593] ss:$8 sm:$0xf]
    %v595 = vld [vmem:[%s593] ss:$8 sm:$0xf0]
    %v596 = vor.u32 %v594, %v595
    %v597 = vld [vmem:[%s4] sm:$0xff]
    %v598 = vld [vmem:[%s4 + $0x8] sm:$0xff]
    %v599 = vld [vmem:[%s4 + $0x10] sm:$0xff]
    %v600 = vld [vmem:[%s4 + $0x18] sm:$0xff]
    %v601 = vpack.c.bf16 %v577, %v577
    %v606 = vunpack.c.l.b16 %v597
    %v607 = vunpack.c.h.b16 %v597
    %v608 = vunpack.c.l.b16 %v598
    %v609 = vunpack.c.h.b16 %v598
    %v610 = vunpack.c.l.b16 %v599
    %v611 = vunpack.c.h.b16 %v599
    %v612 = vunpack.c.l.b16 %v600
    %v613 = vunpack.c.h.b16 %v600
    %v614 = vpack.c.b16 %v608, %v606
    %v615 = vpack.c.b16 %v609, %v607
    %v616 = vpack.c.b16 %v612, %v610
    %v617 = vpack.c.b16 %v613, %v611
    %vm622 = vcmask 261120
    %v624 = vsel %vm622, %v601, 0
    %626 = vmatprep.subr.bf16.mxu0 %v615
    %627 = vmatpush1.bf16.msra.mxu0 %v614
    %628 = vmatprep.subr.bf16.mxu0 %v617
    %629 = vmatpush1.bf16.msra.mxu0 %v616
    %630 = vmatprep.subr.bf16.mxu0 0
    %631 = vmatpush1.bf16.msra.mxu0 0
    %632 = vmatprep.subr.bf16.mxu0 0
    %633 = vmatpush1.bf16.msra.mxu0 0
    %634 = vmatprep.subr.bf16.mxu0 0
    %635 = vmatpush1.bf16.msra.mxu0 0
    %636 = vmatprep.subr.bf16.mxu0 0
    %637 = vmatpush1.bf16.msra.mxu0 0
    %638 = vmatprep.subr.bf16.mxu0 0
    %639 = vmatpush1.bf16.msra.mxu0 0
    %640 = vmatprep.subr.bf16.mxu0 0
    %641 = vmatpush1.bf16.msra.mxu0 0
    %642 = vmatprep.subr.bf16.mxu0 0
    %643 = vmatpush1.bf16.msra.mxu0 0
    %644 = vmatprep.subr.bf16.mxu0 0
    %645 = vmatpush1.bf16.msra.mxu0 0
    %646 = vmatprep.subr.bf16.mxu0 0
    %647 = vmatpush1.bf16.msra.mxu0 0
    %648 = vmatprep.subr.bf16.mxu0 0
    %649 = vmatpush1.bf16.msra.mxu0 0
    %650 = vmatprep.subr.bf16.mxu0 0
    %651 = vmatpush1.bf16.msra.mxu0 0
    %652 = vmatprep.subr.bf16.mxu0 0
    %653 = vmatpush1.bf16.msra.mxu0 0
    %654 = vmatprep.subr.bf16.mxu0 0
    %655 = vmatpush1.bf16.msra.mxu0 0
    %656 = vmatprep.subr.bf16.mxu0 0
    %657 = vmatpush1.bf16.msra.mxu0 0
    %658 = vmatprep.mubr.bf16.mxu0 0
    %659 = vmatmul.mubr.bf16.gmra.mrb[0].mxu0 %v624
    %v660 = vpop.f32.mrb[0].mxu0
    %v661 = vadd.f32 0.0, %v660
    %v662 = vpop.f32.mrb[0].mxu0
    %v663 = vadd.f32 0.0, %v662
    %v664 = vpop.f32.mrb[0].mxu0
    %v665 = vpop.f32.mrb[0].mxu0
    %666 = vdwg.mxu0
    %v667 = vadd.f32 %v661, %v582
    %669 = vrot.lane.b32.xlu0 %v667, 96
    %v670 = vpop.permute.xlu0 %669
    %vm671 = vcmask 64512
    %v672 = vsel %vm671, %v667, 0
    %v674 = vsel %vm671, %v670, 0
    %676 = vmatprep.subr.mxu0 0.0
    %677 = vmatpush1.xpose.msra.mxu0 %v674
    %678 = vmatprep.subr.mxu0 0.0
    %679 = vmatpush1.xpose.msra.mxu0 0.0
    %680 = vmatprep.subr.mxu0 0.0
    %681 = vmatpush1.xpose.msra.mxu0 0.0
    %682 = vmatprep.subr.mxu0 0.0
    %683 = vmatpush1.xpose.msra.mxu0 0.0
    %684 = vmatprep.subr.mxu0 0.0
    %685 = vmatpush1.xpose.msra.mxu0 0.0
    %686 = vmatprep.subr.mxu0 0.0
    %687 = vmatpush1.xpose.msra.mxu0 0.0
    %688 = vmatprep.subr.mxu0 0.0
    %689 = vmatpush1.xpose.msra.mxu0 0.0
    %690 = vmatprep.subr.mxu0 0.0
    %691 = vmatpush1.xpose.msra.mxu0 0.0
    %692 = vmatprep.subr.mxu0 0.0
    %693 = vmatpush1.xpose.msra.mxu0 0.0
    %694 = vmatprep.subr.mxu0 0.0
    %695 = vmatpush1.xpose.msra.mxu0 0.0
    %696 = vmatprep.subr.mxu0 0.0
    %697 = vmatpush1.xpose.msra.mxu0 0.0
    %698 = vmatprep.subr.mxu0 0.0
    %699 = vmatpush1.xpose.msra.mxu0 0.0
    %700 = vmatprep.subr.mxu0 0.0
    %701 = vmatpush1.xpose.msra.mxu0 0.0
    %702 = vmatprep.subr.mxu0 0.0
    %703 = vmatpush1.xpose.msra.mxu0 0.0
    %704 = vmatprep.subr.mxu0 0.0
    %705 = vmatpush1.xpose.msra.mxu0 0.0
    %706 = vmatprep.subr.mxu0 0.0
    %707 = vmatpush1.xpose.msra.mxu0 0.0
    %708 = vmatprep.subr.mxu0 0.0
    %709 = vmatpush1.xpose.msra.mxu0 0.0
    %710 = vmatprep.subr.mxu0 0.0
    %711 = vmatpush1.xpose.msra.mxu0 0.0
    %712 = vmatprep.subr.mxu0 0.0
    %713 = vmatpush1.xpose.msra.mxu0 0.0
    %714 = vmatprep.subr.mxu0 0.0
    %715 = vmatpush1.xpose.msra.mxu0 0.0
    %716 = vmatprep.subr.mxu0 0.0
    %717 = vmatpush1.xpose.msra.mxu0 0.0
    %718 = vmatprep.subr.mxu0 0.0
    %719 = vmatpush1.xpose.msra.mxu0 0.0
    %720 = vmatprep.subr.mxu0 0.0
    %721 = vmatpush1.xpose.msra.mxu0 0.0
    %722 = vmatprep.subr.mxu0 0.0
    %723 = vmatpush1.xpose.msra.mxu0 0.0
    %724 = vmatprep.subr.mxu0 0.0
    %725 = vmatpush1.xpose.msra.mxu0 0.0
    %726 = vmatprep.subr.mxu0 0.0
    %727 = vmatpush1.xpose.msra.mxu0 0.0
    %728 = vmatprep.subr.mxu0 0.0
    %729 = vmatpush1.xpose.msra.mxu0 0.0
    %730 = vmatprep.subr.mxu0 0.0
    %731 = vmatpush1.xpose.msra.mxu0 0.0
    %732 = vmatprep.subr.mxu0 0.0
    %733 = vmatpush1.xpose.msra.mxu0 0.0
    %734 = vmatprep.subr.mxu0 0.0
    %735 = vmatpush1.xpose.msra.mxu0 0.0
    %736 = vmatprep.subr.mxu0 0.0
    %737 = vmatpush1.xpose.msra.mxu0 0.0
    %738 = vmatprep.subr.mxu0 0.0
    %739 = vmatpush1.xpose.msra.mxu0 0.0
    %740 = vmatprep.mubr.f32.mxu0 0.0
    %741 = vmatmul.mubr.f32.gmra.mrb[0].mxu0 %v672
    %v742 = vpop.f32.mrb[0].mxu0
    %v743 = vadd.f32 0.0, %v742
    %v744 = vpop.f32.mrb[0].mxu0
    %745 = vdwg.mxu0
    %v746 = vmul.f32 %v743, 0.35355338
    %v747 = vsel %vm671, %v746, -inf
    %748 = vmax.xlane.f32.xlu0 %v747
    %v749 = vpop.xlane.xlu0 %748
    %v750 = vsub.f32 %v746, %v749
    %v751 = vmul.f32 %v750, 1.442695
    %v752 = vpow.pop %v751
    %v753 = vsel %vm671, %v752, 0.0
    %754 = vadd.xlane.f32.xlu0 %v753
    %v755 = vpop.xlane.xlu0 %754
    %v756 = vrcp.pop %v755
    %v757 = vmul.f32 %v752, %v756
    %758 = vrot.lane.b32.xlu0 %v667, 120
    %v759 = vpop.permute.xlu0 %758
    %760 = vrot.lane.b32.xlu0 %v667, 88
    %v761 = vpop.permute.xlu0 %760
    %v762 = vsel %vm671, %v759, 0
    %v764 = vsel %vm671, %v761, 0
    %766 = vmatprep.subr.mxu0 0.0
    %767 = vmatpush1.xpose.msra.mxu0 %v764
    %768 = vmatprep.subr.mxu0 0.0
    %769 = vmatpush1.xpose.msra.mxu0 0.0
    %770 = vmatprep.subr.mxu0 0.0
    %771 = vmatpush1.xpose.msra.mxu0 0.0
    %772 = vmatprep.subr.mxu0 0.0
    %773 = vmatpush1.xpose.msra.mxu0 0.0
    %774 = vmatprep.subr.mxu0 0.0
    %775 = vmatpush1.xpose.msra.mxu0 0.0
    %776 = vmatprep.subr.mxu0 0.0
    %777 = vmatpush1.xpose.msra.mxu0 0.0
    %778 = vmatprep.subr.mxu0 0.0
    %779 = vmatpush1.xpose.msra.mxu0 0.0
    %780 = vmatprep.subr.mxu0 0.0
    %781 = vmatpush1.xpose.msra.mxu0 0.0
    %782 = vmatprep.subr.mxu0 0.0
    %783 = vmatpush1.xpose.msra.mxu0 0.0
    %784 = vmatprep.subr.mxu0 0.0
    %785 = vmatpush1.xpose.msra.mxu0 0.0
    %786 = vmatprep.subr.mxu0 0.0
    %787 = vmatpush1.xpose.msra.mxu0 0.0
    %788 = vmatprep.subr.mxu0 0.0
    %789 = vmatpush1.xpose.msra.mxu0 0.0
    %790 = vmatprep.subr.mxu0 0.0
    %791 = vmatpush1.xpose.msra.mxu0 0.0
    %792 = vmatprep.subr.mxu0 0.0
    %793 = vmatpush1.xpose.msra.mxu0 0.0
    %794 = vmatprep.subr.mxu0 0.0
    %795 = vmatpush1.xpose.msra.mxu0 0.0
    %796 = vmatprep.subr.mxu0 0.0
    %797 = vmatpush1.xpose.msra.mxu0 0.0
    %798 = vmatprep.subr.mxu0 0.0
    %799 = vmatpush1.xpose.msra.mxu0 0.0
    %800 = vmatprep.subr.mxu0 0.0
    %801 = vmatpush1.xpose.msra.mxu0 0.0
    %802 = vmatprep.subr.mxu0 0.0
    %803 = vmatpush1.xpose.msra.mxu0 0.0
    %804 = vmatprep.subr.mxu0 0.0
    %805 = vmatpush1.xpose.msra.mxu0 0.0
    %806 = vmatprep.subr.mxu0 0.0
    %807 = vmatpush1.xpose.msra.mxu0 0.0
    %808 = vmatprep.subr.mxu0 0.0
    %809 = vmatpush1.xpose.msra.mxu0 0.0
    %810 = vmatprep.subr.mxu0 0.0
    %811 = vmatpush1.xpose.msra.mxu0 0.0
    %812 = vmatprep.subr.mxu0 0.0
    %813 = vmatpush1.xpose.msra.mxu0 0.0
    %814 = vmatprep.subr.mxu0 0.0
    %815 = vmatpush1.xpose.msra.mxu0 0.0
    %816 = vmatprep.subr.mxu0 0.0
    %817 = vmatpush1.xpose.msra.mxu0 0.0
    %818 = vmatprep.subr.mxu0 0.0
    %819 = vmatpush1.xpose.msra.mxu0 0.0
    %820 = vmatprep.subr.mxu0 0.0
    %821 = vmatpush1.xpose.msra.mxu0 0.0
    %822 = vmatprep.subr.mxu0 0.0
    %823 = vmatpush1.xpose.msra.mxu0 0.0
    %824 = vmatprep.subr.mxu0 0.0
    %825 = vmatpush1.xpose.msra.mxu0 0.0
    %826 = vmatprep.subr.mxu0 0.0
    %827 = vmatpush1.xpose.msra.mxu0 0.0
    %828 = vmatprep.subr.mxu0 0.0
    %829 = vmatpush1.xpose.msra.mxu0 0.0
    %830 = vmatprep.mubr.f32.mxu0 0.0
    %831 = vmatmul.mubr.f32.gmra.mrb[0].mxu0 %v762
    %v832 = vpop.f32.mrb[0].mxu0
    %v833 = vadd.f32 0.0, %v832
    %v834 = vpop.f32.mrb[0].mxu0
    %835 = vdwg.mxu0
    %v836 = vmul.f32 %v833, 0.35355338
    %v837 = vsel %vm671, %v836, -inf
    %838 = vmax.xlane.f32.xlu0 %v837
    %v839 = vpop.xlane.xlu0 %838
    %v840 = vsub.f32 %v836, %v839
    %v841 = vmul.f32 %v840, 1.442695
    %v842 = vpow.pop %v841
    %v843 = vsel %vm671, %v842, 0.0
    %844 = vadd.xlane.f32.xlu0 %v843
    %v845 = vpop.xlane.xlu0 %844
    %v846 = vrcp.pop %v845
    %v847 = vmul.f32 %v842, %v846
    %849 = vrot.lane.b32.xlu0 %v661, 32
    %v850 = vpop.permute.xlu0 %849
    %v853 = vsel %vm671, %v847, 0
    %855 = vmatprep.subr.mxu0 0.0
    %856 = vmatpush1.msra.mxu0 %v850
    %857 = vmatprep.subr.mxu0 0.0
    %858 = vmatpush1.msra.mxu0 0.0
    %859 = vmatprep.subr.mxu0 0.0
    %860 = vmatpush1.msra.mxu0 0.0
    %861 = vmatprep.subr.mxu0 0.0
    %862 = vmatpush1.msra.mxu0 0.0
    %863 = vmatprep.subr.mxu0 0.0
    %864 = vmatpush1.msra.mxu0 0.0
    %865 = vmatprep.subr.mxu0 0.0
    %866 = vmatpush1.msra.mxu0 0.0
    %867 = vmatprep.subr.mxu0 0.0
    %868 = vmatpush1.msra.mxu0 0.0
    %869 = vmatprep.subr.mxu0 0.0
    %870 = vmatpush1.msra.mxu0 0.0
    %871 = vmatprep.subr.mxu0 0.0
    %872 = vmatpush1.msra.mxu0 0.0
    %873 = vmatprep.subr.mxu0 0.0
    %874 = vmatpush1.msra.mxu0 0.0
    %875 = vmatprep.subr.mxu0 0.0
    %876 = vmatpush1.msra.mxu0 0.0
    %877 = vmatprep.subr.mxu0 0.0
    %878 = vmatpush1.msra.mxu0 0.0
    %879 = vmatprep.subr.mxu0 0.0
    %880 = vmatpush1.msra.mxu0 0.0
    %881 = vmatprep.subr.mxu0 0.0
    %882 = vmatpush1.msra.mxu0 0.0
    %883 = vmatprep.subr.mxu0 0.0
    %884 = vmatpush1.msra.mxu0 0.0
    %885 = vmatprep.subr.mxu0 0.0
    %886 = vmatpush1.msra.mxu0 0.0
    %887 = vmatprep.subr.mxu0 0.0
    %888 = vmatpush1.msra.mxu0 0.0
    %889 = vmatprep.subr.mxu0 0.0
    %890 = vmatpush1.msra.mxu0 0.0
    %891 = vmatprep.subr.mxu0 0.0
    %892 = vmatpush1.msra.mxu0 0.0
    %893 = vmatprep.subr.mxu0 0.0
    %894 = vmatpush1.msra.mxu0 0.0
    %895 = vmatprep.subr.mxu0 0.0
    %896 = vmatpush1.msra.mxu0 0.0
    %897 = vmatprep.subr.mxu0 0.0
    %898 = vmatpush1.msra.mxu0 0.0
    %899 = vmatprep.subr.mxu0 0.0
    %900 = vmatpush1.msra.mxu0 0.0
    %901 = vmatprep.subr.mxu0 0.0
    %902 = vmatpush1.msra.mxu0 0.0
    %903 = vmatprep.subr.mxu0 0.0
    %904 = vmatpush1.msra.mxu0 0.0
    %905 = vmatprep.subr.mxu0 0.0
    %906 = vmatpush1.msra.mxu0 0.0
    %907 = vmatprep.subr.mxu0 0.0
    %908 = vmatpush1.msra.mxu0 0.0
    %909 = vmatprep.subr.mxu0 0.0
    %910 = vmatpush1.msra.mxu0 0.0
    %911 = vmatprep.subr.mxu0 0.0
    %912 = vmatpush1.msra.mxu0 0.0
    %913 = vmatprep.subr.mxu0 0.0
    %914 = vmatpush1.msra.mxu0 0.0
    %915 = vmatprep.subr.mxu0 0.0
    %916 = vmatpush1.msra.mxu0 0.0
    %917 = vmatprep.subr.mxu0 0.0
    %918 = vmatpush1.msra.mxu0 0.0
    %919 = vmatprep.mubr.f32.mxu0 0.0
    %920 = vmatmul.mubr.f32.gmra.mrb[0].mxu0 %v853
    %v921 = vpop.f32.mrb[0].mxu0
    %v922 = vadd.f32 0.0, %v921
    %v923 = vpop.f32.mrb[0].mxu0
    %924 = vdwg.mxu0
    %925 = vrot.lane.b32.xlu0 %v661, 64
    %v926 = vpop.permute.xlu0 %925
    %v929 = vsel %vm671, %v757, 0
    %931 = vmatprep.subr.mxu0 0.0
    %932 = vmatpush1.msra.mxu0 %v926
    %933 = vmatprep.subr.mxu0 0.0
    %934 = vmatpush1.msra.mxu0 0.0
    %935 = vmatprep.subr.mxu0 0.0
    %936 = vmatpush1.msra.mxu0 0.0
    %937 = vmatprep.subr.mxu0 0.0
    %938 = vmatpush1.msra.mxu0 0.0
    %939 = vmatprep.subr.mxu0 0.0
    %940 = vmatpush1.msra.mxu0 0.0
    %941 = vmatprep.subr.mxu0 0.0
    %942 = vmatpush1.msra.mxu0 0.0
    %943 = vmatprep.subr.mxu0 0.0
    %944 = vmatpush1.msra.mxu0 0.0
    %945 = vmatprep.subr.mxu0 0.0
    %946 = vmatpush1.msra.mxu0 0.0
    %947 = vmatprep.subr.mxu0 0.0
    %948 = vmatpush1.msra.mxu0 0.0
    %949 = vmatprep.subr.mxu0 0.0
    %950 = vmatpush1.msra.mxu0 0.0
    %951 = vmatprep.subr.mxu0 0.0
    %952 = vmatpush1.msra.mxu0 0.0
    %953 = vmatprep.subr.mxu0 0.0
    %954 = vmatpush1.msra.mxu0 0.0
    %955 = vmatprep.subr.mxu0 0.0
    %956 = vmatpush1.msra.mxu0 0.0
    %957 = vmatprep.subr.mxu0 0.0
    %958 = vmatpush1.msra.mxu0 0.0
    %959 = vmatprep.subr.mxu0 0.0
    %960 = vmatpush1.msra.mxu0 0.0
    %961 = vmatprep.subr.mxu0 0.0
    %962 = vmatpush1.msra.mxu0 0.0
    %963 = vmatprep.subr.mxu0 0.0
    %964 = vmatpush1.msra.mxu0 0.0
    %965 = vmatprep.subr.mxu0 0.0
    %966 = vmatpush1.msra.mxu0 0.0
    %967 = vmatprep.subr.mxu0 0.0
    %968 = vmatpush1.msra.mxu0 0.0
    %969 = vmatprep.subr.mxu0 0.0
    %970 = vmatpush1.msra.mxu0 0.0
    %971 = vmatprep.subr.mxu0 0.0
    %972 = vmatpush1.msra.mxu0 0.0
    %973 = vmatprep.subr.mxu0 0.0
    %974 = vmatpush1.msra.mxu0 0.0
    %975 = vmatprep.subr.mxu0 0.0
    %976 = vmatpush1.msra.mxu0 0.0
    %977 = vmatprep.subr.mxu0 0.0
    %978 = vmatpush1.msra.mxu0 0.0
    %979 = vmatprep.subr.mxu0 0.0
    %980 = vmatpush1.msra.mxu0 0.0
    %981 = vmatprep.subr.mxu0 0.0
    %982 = vmatpush1.msra.mxu0 0.0
    %983 = vmatprep.subr.mxu0 0.0
    %984 = vmatpush1.msra.mxu0 0.0
    %985 = vmatprep.subr.mxu0 0.0
    %986 = vmatpush1.msra.mxu0 0.0
    %987 = vmatprep.subr.mxu0 0.0
    %988 = vmatpush1.msra.mxu0 0.0
    %989 = vmatprep.subr.mxu0 0.0
    %990 = vmatpush1.msra.mxu0 0.0
    %991 = vmatprep.subr.mxu0 0.0
    %992 = vmatpush1.msra.mxu0 0.0
    %993 = vmatprep.subr.mxu0 0.0
    %994 = vmatpush1.msra.mxu0 0.0
    %995 = vmatprep.mubr.f32.mxu0 0.0
    %996 = vmatmul.mubr.f32.gmra.mrb[0].mxu0 %v929
    %v997 = vpop.f32.mrb[0].mxu0
    %v998 = vadd.f32 %v922, %v997
    %v999 = vpop.f32.mrb[0].mxu0
    %1000 = vdwg.mxu0
    %1001 = vrot.lane.b32.xlu0 %v667, 112
    %v1002 = vpop.permute.xlu0 %1001
    %1003 = vrot.lane.b32.xlu0 %v667, 80
    %v1004 = vpop.permute.xlu0 %1003
    %v1005 = vsel %vm671, %v1002, 0
    %v1007 = vsel %vm671, %v1004, 0
    %1009 = vmatprep.subr.mxu0 0.0
    %1010 = vmatpush1.xpose.msra.mxu0 %v1007
    %1011 = vmatprep.subr.mxu0 0.0
    %1012 = vmatpush1.xpose.msra.mxu0 0.0
    %1013 = vmatprep.subr.mxu0 0.0
    %1014 = vmatpush1.xpose.msra.mxu0 0.0
    %1015 = vmatprep.subr.mxu0 0.0
    %1016 = vmatpush1.xpose.msra.mxu0 0.0
    %1017 = vmatprep.subr.mxu0 0.0
    %1018 = vmatpush1.xpose.msra.mxu0 0.0
    %1019 = vmatprep.subr.mxu0 0.0
    %1020 = vmatpush1.xpose.msra.mxu0 0.0
    %1021 = vmatprep.subr.mxu0 0.0
    %1022 = vmatpush1.xpose.msra.mxu0 0.0
    %1023 = vmatprep.subr.mxu0 0.0
    %1024 = vmatpush1.xpose.msra.mxu0 0.0
    %1025 = vmatprep.subr.mxu0 0.0
    %1026 = vmatpush1.xpose.msra.mxu0 0.0
    %1027 = vmatprep.subr.mxu0 0.0
    %1028 = vmatpush1.xpose.msra.mxu0 0.0
    %1029 = vmatprep.subr.mxu0 0.0
    %1030 = vmatpush1.xpose.msra.mxu0 0.0
    %1031 = vmatprep.subr.mxu0 0.0
    %1032 = vmatpush1.xpose.msra.mxu0 0.0
    %1033 = vmatprep.subr.mxu0 0.0
    %1034 = vmatpush1.xpose.msra.mxu0 0.0
    %1035 = vmatprep.subr.mxu0 0.0
    %1036 = vmatpush1.xpose.msra.mxu0 0.0
    %1037 = vmatprep.subr.mxu0 0.0
    %1038 = vmatpush1.xpose.msra.mxu0 0.0
    %1039 = vmatprep.subr.mxu0 0.0
    %1040 = vmatpush1.xpose.msra.mxu0 0.0
    %1041 = vmatprep.subr.mxu0 0.0
    %1042 = vmatpush1.xpose.msra.mxu0 0.0
    %1043 = vmatprep.subr.mxu0 0.0
    %1044 = vmatpush1.xpose.msra.mxu0 0.0
    %1045 = vmatprep.subr.mxu0 0.0
    %1046 = vmatpush1.xpose.msra.mxu0 0.0
    %1047 = vmatprep.subr.mxu0 0.0
    %1048 = vmatpush1.xpose.msra.mxu0 0.0
    %1049 = vmatprep.subr.mxu0 0.0
    %1050 = vmatpush1.xpose.msra.mxu0 0.0
    %1051 = vmatprep.subr.mxu0 0.0
    %1052 = vmatpush1.xpose.msra.mxu0 0.0
    %1053 = vmatprep.subr.mxu0 0.0
    %1054 = vmatpush1.xpose.msra.mxu0 0.0
    %1055 = vmatprep.subr.mxu0 0.0
    %1056 = vmatpush1.xpose.msra.mxu0 0.0
    %1057 = vmatprep.subr.mxu0 0.0
    %1058 = vmatpush1.xpose.msra.mxu0 0.0
    %1059 = vmatprep.subr.mxu0 0.0
    %1060 = vmatpush1.xpose.msra.mxu0 0.0
    %1061 = vmatprep.subr.mxu0 0.0
    %1062 = vmatpush1.xpose.msra.mxu0 0.0
    %1063 = vmatprep.subr.mxu0 0.0
    %1064 = vmatpush1.xpose.msra.mxu0 0.0
    %1065 = vmatprep.subr.mxu0 0.0
    %1066 = vmatpush1.xpose.msra.mxu0 0.0
    %1067 = vmatprep.subr.mxu0 0.0
    %1068 = vmatpush1.xpose.msra.mxu0 0.0
    %1069 = vmatprep.subr.mxu0 0.0
    %1070 = vmatpush1.xpose.msra.mxu0 0.0
    %1071 = vmatprep.subr.mxu0 0.0
    %1072 = vmatpush1.xpose.msra.mxu0 0.0
    %1073 = vmatprep.mubr.f32.mxu0 0.0
    %1074 = vmatmul.mubr.f32.gmra.mrb[0].mxu0 %v1005
    %v1075 = vpop.f32.mrb[0].mxu0
    %v1076 = vadd.f32 0.0, %v1075
    %v1077 = vpop.f32.mrb[0].mxu0
    %1078 = vdwg.mxu0
    %v1079 = vmul.f32 %v1076, 0.35355338
    %v1080 = vsel %vm671, %v1079, -inf
    %1081 = vmax.xlane.f32.xlu0 %v1080
    %v1082 = vpop.xlane.xlu0 %1081
    %v1083 = vsub.f32 %v1079, %v1082
    %v1084 = vmul.f32 %v1083, 1.442695
    %v1085 = vpow.pop %v1084
    %v1086 = vsel %vm671, %v1085, 0.0
    %1087 = vadd.xlane.f32.xlu0 %v1086
    %v1088 = vpop.xlane.xlu0 %1087
    %v1089 = vrcp.pop %v1088
    %v1090 = vmul.f32 %v1085, %v1089
    %v1092 = vsel %vm671, %v1090, 0
    %1094 = vmatprep.subr.mxu0 0.0
    %1095 = vmatpush1.msra.mxu0 %v663
    %1096 = vmatprep.subr.mxu0 0.0
    %1097 = vmatpush1.msra.mxu0 0.0
    %1098 = vmatprep.subr.mxu0 0.0
    %1099 = vmatpush1.msra.mxu0 0.0
    %1100 = vmatprep.subr.mxu0 0.0
    %1101 = vmatpush1.msra.mxu0 0.0
    %1102 = vmatprep.subr.mxu0 0.0
    %1103 = vmatpush1.msra.mxu0 0.0
    %1104 = vmatprep.subr.mxu0 0.0
    %1105 = vmatpush1.msra.mxu0 0.0
    %1106 = vmatprep.subr.mxu0 0.0
    %1107 = vmatpush1.msra.mxu0 0.0
    %1108 = vmatprep.subr.mxu0 0.0
    %1109 = vmatpush1.msra.mxu0 0.0
    %1110 = vmatprep.subr.mxu0 0.0
    %1111 = vmatpush1.msra.mxu0 0.0
    %1112 = vmatprep.subr.mxu0 0.0
    %1113 = vmatpush1.msra.mxu0 0.0
    %1114 = vmatprep.subr.mxu0 0.0
    %1115 = vmatpush1.msra.mxu0 0.0
    %1116 = vmatprep.subr.mxu0 0.0
    %1117 = vmatpush1.msra.mxu0 0.0
    %1118 = vmatprep.subr.mxu0 0.0
    %1119 = vmatpush1.msra.mxu0 0.0
    %1120 = vmatprep.subr.mxu0 0.0
    %1121 = vmatpush1.msra.mxu0 0.0
    %1122 = vmatprep.subr.mxu0 0.0
    %1123 = vmatpush1.msra.mxu0 0.0
    %1124 = vmatprep.subr.mxu0 0.0
    %1125 = vmatpush1.msra.mxu0 0.0
    %1126 = vmatprep.subr.mxu0 0.0
    %1127 = vmatpush1.msra.mxu0 0.0
    %1128 = vmatprep.subr.mxu0 0.0
    %1129 = vmatpush1.msra.mxu0 0.0
    %1130 = vmatprep.subr.mxu0 0.0
    %1131 = vmatpush1.msra.mxu0 0.0
    %1132 = vmatprep.subr.mxu0 0.0
    %1133 = vmatpush1.msra.mxu0 0.0
    %1134 = vmatprep.subr.mxu0 0.0
    %1135 = vmatpush1.msra.mxu0 0.0
    %1136 = vmatprep.subr.mxu0 0.0
    %1137 = vmatpush1.msra.mxu0 0.0
    %1138 = vmatprep.subr.mxu0 0.0
    %1139 = vmatpush1.msra.mxu0 0.0
    %1140 = vmatprep.subr.mxu0 0.0
    %1141 = vmatpush1.msra.mxu0 0.0
    %1142 = vmatprep.subr.mxu0 0.0
    %1143 = vmatpush1.msra.mxu0 0.0
    %1144 = vmatprep.subr.mxu0 0.0
    %1145 = vmatpush1.msra.mxu0 0.0
    %1146 = vmatprep.subr.mxu0 0.0
    %1147 = vmatpush1.msra.mxu0 0.0
    %1148 = vmatprep.subr.mxu0 0.0
    %1149 = vmatpush1.msra.mxu0 0.0
    %1150 = vmatprep.subr.mxu0 0.0
    %1151 = vmatpush1.msra.mxu0 0.0
    %1152 = vmatprep.subr.mxu0 0.0
    %1153 = vmatpush1.msra.mxu0 0.0
    %1154 = vmatprep.subr.mxu0 0.0
    %1155 = vmatpush1.msra.mxu0 0.0
    %1156 = vmatprep.subr.mxu0 0.0
    %1157 = vmatpush1.msra.mxu0 0.0
    %1158 = vmatprep.mubr.f32.mxu0 0.0
    %1159 = vmatmul.mubr.f32.gmra.mrb[0].mxu0 %v1092
    %v1160 = vpop.f32.mrb[0].mxu0
    %v1161 = vadd.f32 0.0, %v1160
    %v1162 = vpop.f32.mrb[0].mxu0
    %1163 = vdwg.mxu0
    %v1164 = vadd.f32 %v998, %v1161
    %1165 = vrot.lane.b32.xlu0 %v667, 104
    %v1166 = vpop.permute.xlu0 %1165
    %1167 = vrot.lane.b32.xlu0 %v667, 72
    %v1168 = vpop.permute.xlu0 %1167
    %v1169 = vsel %vm671, %v1166, 0
    %v1171 = vsel %vm671, %v1168, 0
    %1173 = vmatprep.subr.mxu0 0.0
    %1174 = vmatpush1.xpose.msra.mxu0 %v1171
    %1175 = vmatprep.subr.mxu0 0.0
    %1176 = vmatpush1.xpose.msra.mxu0 0.0
    %1177 = vmatprep.subr.mxu0 0.0
    %1178 = vmatpush1.xpose.msra.mxu0 0.0
    %1179 = vmatprep.subr.mxu0 0.0
    %1180 = vmatpush1.xpose.msra.mxu0 0.0
    %1181 = vmatprep.subr.mxu0 0.0
    %1182 = vmatpush1.xpose.msra.mxu0 0.0
    %1183 = vmatprep.subr.mxu0 0.0
    %1184 = vmatpush1.xpose.msra.mxu0 0.0
    %1185 = vmatprep.subr.mxu0 0.0
    %1186 = vmatpush1.xpose.msra.mxu0 0.0
    %1187 = vmatprep.subr.mxu0 0.0
    %1188 = vmatpush1.xpose.msra.mxu0 0.0
    %1189 = vmatprep.subr.mxu0 0.0
    %1190 = vmatpush1.xpose.msra.mxu0 0.0
    %1191 = vmatprep.subr.mxu0 0.0
    %1192 = vmatpush1.xpose.msra.mxu0 0.0
    %1193 = vmatprep.subr.mxu0 0.0
    %1194 = vmatpush1.xpose.msra.mxu0 0.0
    %1195 = vmatprep.subr.mxu0 0.0
    %1196 = vmatpush1.xpose.msra.mxu0 0.0
    %1197 = vmatprep.subr.mxu0 0.0
    %1198 = vmatpush1.xpose.msra.mxu0 0.0
    %1199 = vmatprep.subr.mxu0 0.0
    %1200 = vmatpush1.xpose.msra.mxu0 0.0
    %1201 = vmatprep.subr.mxu0 0.0
    %1202 = vmatpush1.xpose.msra.mxu0 0.0
    %1203 = vmatprep.subr.mxu0 0.0
    %1204 = vmatpush1.xpose.msra.mxu0 0.0
    %1205 = vmatprep.subr.mxu0 0.0
    %1206 = vmatpush1.xpose.msra.mxu0 0.0
    %1207 = vmatprep.subr.mxu0 0.0
    %1208 = vmatpush1.xpose.msra.mxu0 0.0
    %1209 = vmatprep.subr.mxu0 0.0
    %1210 = vmatpush1.xpose.msra.mxu0 0.0
    %1211 = vmatprep.subr.mxu0 0.0
    %1212 = vmatpush1.xpose.msra.mxu0 0.0
    %1213 = vmatprep.subr.mxu0 0.0
    %1214 = vmatpush1.xpose.msra.mxu0 0.0
    %1215 = vmatprep.subr.mxu0 0.0
    %1216 = vmatpush1.xpose.msra.mxu0 0.0
    %1217 = vmatprep.subr.mxu0 0.0
    %1218 = vmatpush1.xpose.msra.mxu0 0.0
    %1219 = vmatprep.subr.mxu0 0.0
    %1220 = vmatpush1.xpose.msra.mxu0 0.0
    %1221 = vmatprep.subr.mxu0 0.0
    %1222 = vmatpush1.xpose.msra.mxu0 0.0
    %1223 = vmatprep.subr.mxu0 0.0
    %1224 = vmatpush1.xpose.msra.mxu0 0.0
    %1225 = vmatprep.subr.mxu0 0.0
    %1226 = vmatpush1.xpose.msra.mxu0 0.0
    %1227 = vmatprep.subr.mxu0 0.0
    %1228 = vmatpush1.xpose.msra.mxu0 0.0
    %1229 = vmatprep.subr.mxu0 0.0
    %1230 = vmatpush1.xpose.msra.mxu0 0.0
    %1231 = vmatprep.subr.mxu0 0.0
    %1232 = vmatpush1.xpose.msra.mxu0 0.0
    %1233 = vmatprep.subr.mxu0 0.0
    %1234 = vmatpush1.xpose.msra.mxu0 0.0
    %1235 = vmatprep.subr.mxu0 0.0
    %1236 = vmatpush1.xpose.msra.mxu0 0.0
    %1237 = vmatprep.mubr.f32.mxu0 0.0
    %1238 = vmatmul.mubr.f32.gmra.mrb[0].mxu0 %v1169
    %v1239 = vpop.f32.mrb[0].mxu0
    %v1240 = vadd.f32 0.0, %v1239
    %v1241 = vpop.f32.mrb[0].mxu0
    %1242 = vdwg.mxu0
    %v1243 = vmul.f32 %v1240, 0.35355338
    %v1244 = vsel %vm671, %v1243, -inf
    %1245 = vmax.xlane.f32.xlu0 %v1244
    %v1246 = vpop.xlane.xlu0 %1245
    %v1247 = vsub.f32 %v1243, %v1246
    %v1248 = vmul.f32 %v1247, 1.442695
    %v1249 = vpow.pop %v1248
    %v1250 = vsel %vm671, %v1249, 0.0
    %1251 = vadd.xlane.f32.xlu0 %v1250
    %v1252 = vpop.xlane.xlu0 %1251
    %v1253 = vrcp.pop %v1252
    %v1254 = vmul.f32 %v1249, %v1253
    %1256 = vrot.lane.b32.xlu0 %v663, 96
    %v1257 = vpop.permute.xlu0 %1256
    %v1260 = vsel %vm671, %v1254, 0
    %1262 = vmatprep.subr.mxu0 0.0
    %1263 = vmatpush1.msra.mxu0 %v1257
    %1264 = vmatprep.subr.mxu0 0.0
    %1265 = vmatpush1.msra.mxu0 0.0
    %1266 = vmatprep.subr.mxu0 0.0
    %1267 = vmatpush1.msra.mxu0 0.0
    %1268 = vmatprep.subr.mxu0 0.0
    %1269 = vmatpush1.msra.mxu0 0.0
    %1270 = vmatprep.subr.mxu0 0.0
    %1271 = vmatpush1.msra.mxu0 0.0
    %1272 = vmatprep.subr.mxu0 0.0
    %1273 = vmatpush1.msra.mxu0 0.0
    %1274 = vmatprep.subr.mxu0 0.0
    %1275 = vmatpush1.msra.mxu0 0.0
    %1276 = vmatprep.subr.mxu0 0.0
    %1277 = vmatpush1.msra.mxu0 0.0
    %1278 = vmatprep.subr.mxu0 0.0
    %1279 = vmatpush1.msra.mxu0 0.0
    %1280 = vmatprep.subr.mxu0 0.0
    %1281 = vmatpush1.msra.mxu0 0.0
    %1282 = vmatprep.subr.mxu0 0.0
    %1283 = vmatpush1.msra.mxu0 0.0
    %1284 = vmatprep.subr.mxu0 0.0
    %1285 = vmatpush1.msra.mxu0 0.0
    %1286 = vmatprep.subr.mxu0 0.0
    %1287 = vmatpush1.msra.mxu0 0.0
    %1288 = vmatprep.subr.mxu0 0.0
    %1289 = vmatpush1.msra.mxu0 0.0
    %1290 = vmatprep.subr.mxu0 0.0
    %1291 = vmatpush1.msra.mxu0 0.0
    %1292 = vmatprep.subr.mxu0 0.0
    %1293 = vmatpush1.msra.mxu0 0.0
    %1294 = vmatprep.subr.mxu0 0.0
    %1295 = vmatpush1.msra.mxu0 0.0
    %1296 = vmatprep.subr.mxu0 0.0
    %1297 = vmatpush1.msra.mxu0 0.0
    %1298 = vmatprep.subr.mxu0 0.0
    %1299 = vmatpush1.msra.mxu0 0.0
    %1300 = vmatprep.subr.mxu0 0.0
    %1301 = vmatpush1.msra.mxu0 0.0
    %1302 = vmatprep.subr.mxu0 0.0
    %1303 = vmatpush1.msra.mxu0 0.0
    %1304 = vmatprep.subr.mxu0 0.0
    %1305 = vmatpush1.msra.mxu0 0.0
    %1306 = vmatprep.subr.mxu0 0.0
    %1307 = vmatpush1.msra.mxu0 0.0
    %1308 = vmatprep.subr.mxu0 0.0
    %1309 = vmatpush1.msra.mxu0 0.0
    %1310 = vmatprep.subr.mxu0 0.0
    %1311 = vmatpush1.msra.mxu0 0.0
    %1312 = vmatprep.subr.mxu0 0.0
    %1313 = vmatpush1.msra.mxu0 0.0
    %1314 = vmatprep.subr.mxu0 0.0
    %1315 = vmatpush1.msra.mxu0 0.0
    %1316 = vmatprep.subr.mxu0 0.0
    %1317 = vmatpush1.msra.mxu0 0.0
    %1318 = vmatprep.subr.mxu0 0.0
    %1319 = vmatpush1.msra.mxu0 0.0
    %1320 = vmatprep.subr.mxu0 0.0
    %1321 = vmatpush1.msra.mxu0 0.0
    %1322 = vmatprep.subr.mxu0 0.0
    %1323 = vmatpush1.msra.mxu0 0.0
    %1324 = vmatprep.subr.mxu0 0.0
    %1325 = vmatpush1.msra.mxu0 0.0
    %1326 = vmatprep.mubr.f32.mxu0 0.0
    %1327 = vmatmul.mubr.f32.gmra.mrb[0].mxu0 %v1260
    %v1328 = vpop.f32.mrb[0].mxu0
    %v1329 = vadd.f32 0.0, %v1328
    %v1330 = vpop.f32.mrb[0].mxu0
    %1331 = vdwg.mxu0
    %v1332 = vadd.f32 %v1164, %v1329
    %v1333 = vadd.f32 %v1332, %v583
    %v1334 = vadd.f32 %v577, %v1333
    %v1335 = vsel %vm622, %v1334, 0.0
    %1336 = vadd.xlane.f32.xlu0 %v1335
    %v1337 = vpop.xlane.xlu0 %1336
    %v1338 = vrcp.pop 32.0
    %v1339 = vmul.f32 %v1337, %v1338
    %v1340 = vsub.f32 %v1334, %v1339
    %v1341 = vmul.f32 %v1340, %v1340
    %v1342 = vsel %vm622, %v1341, 0.0
    %1343 = vadd.xlane.f32.xlu0 %v1342
    %v1344 = vpop.xlane.xlu0 %1343
    %v1345 = vmul.f32 %v1344, %v1338
    %v1346 = vadd.f32 %v1345, 1e-05
    %v1347 = vrsqrt.pop %v1346
    %v1348 = vmul.f32 %v1340, %v1347
    %v1349 = vmul.f32 %v1348, %v584
    %v1350 = vadd.f32 %v1349, %v585
    %v1351 = vld [vmem:[%s2] sm:$0xff]
    %v1352 = vld [vmem:[%s2 + $0x8] sm:$0xff]
    %v1353 = vld [vmem:[%s2 + $0x10] sm:$0xff]
    %v1354 = vld [vmem:[%s2 + $0x18] sm:$0xff]
    %v1355 = vld [vmem:[%s2 + $0x20] sm:$0xff]
    %v1356 = vld [vmem:[%s2 + $0x28] sm:$0xff]
    %v1357 = vld [vmem:[%s2 + $0x30] sm:$0xff]
    %v1358 = vld [vmem:[%s2 + $0x38] sm:$0xff]
    %v1359 = vld [vmem:[%s2 + $0x40] sm:$0xff]
    %v1360 = vld [vmem:[%s2 + $0x48] sm:$0xff]
    %v1361 = vld [vmem:[%s2 + $0x50] sm:$0xff]
    %v1362 = vld [vmem:[%s2 + $0x58] sm:$0xff]
    %v1363 = vld [vmem:[%s2 + $0x60] sm:$0xff]
    %v1364 = vld [vmem:[%s2 + $0x68] sm:$0xff]
    %v1365 = vld [vmem:[%s2 + $0x70] sm:$0xff]
    %v1366 = vld [vmem:[%s2 + $0x78] sm:$0xff]
    %v1367 = vld [vmem:[%s2 + $0x80] sm:$0xff]
    %v1368 = vld [vmem:[%s2 + $0x88] sm:$0xff]
    %v1369 = vld [vmem:[%s2 + $0x90] sm:$0xff]
    %v1370 = vld [vmem:[%s2 + $0x98] sm:$0xff]
    %v1371 = vld [vmem:[%s2 + $0xa0] sm:$0xff]
    %v1372 = vld [vmem:[%s2 + $0xa8] sm:$0xff]
    %v1373 = vld [vmem:[%s2 + $0xb0] sm:$0xff]
    %v1374 = vld [vmem:[%s2 + $0xb8] sm:$0xff]
    %v1375 = vld [vmem:[%s2 + $0xc0] sm:$0xff]
    %v1376 = vld [vmem:[%s2 + $0xc8] sm:$0xff]
    %v1377 = vld [vmem:[%s2 + $0xd0] sm:$0xff]
    %v1378 = vld [vmem:[%s2 + $0xd8] sm:$0xff]
    %v1379 = vld [vmem:[%s2 + $0xe0] sm:$0xff]
    %v1380 = vld [vmem:[%s2 + $0xe8] sm:$0xff]
    %v1381 = vld [vmem:[%s2 + $0xf0] sm:$0xff]
    %v1382 = vld [vmem:[%s2 + $0xf8] sm:$0xff]
    %v1383 = vpack.c.bf16 %v1350, %v1350
    %v1386 = vlaneseq
    %v1387 = vshrl.u32 %v1386, 7
    %v1388 = vsub.s32 0, %v1387
    %v1389 = vrot.slane %v592, %v1388
    %v1390 = vlaneseq
    %v1391 = vshrl.u32 %v1390, 7
    %v1392 = vsub.s32 1, %v1391
    %v1393 = vrot.slane %v592, %v1392
    %v1394 = vlaneseq
    %v1395 = vshrl.u32 %v1394, 7
    %v1396 = vsub.s32 2, %v1395
    %v1397 = vrot.slane %v592, %v1396
    %v1398 = vlaneseq
    %v1399 = vshrl.u32 %v1398, 7
    %v1400 = vsub.s32 3, %v1399
    %v1401 = vrot.slane %v592, %v1400
    %v1402 = vlaneseq
    %v1403 = vshrl.u32 %v1402, 7
    %v1404 = vsub.s32 4, %v1403
    %v1405 = vrot.slane %v592, %v1404
    %v1406 = vlaneseq
    %v1407 = vshrl.u32 %v1406, 7
    %v1408 = vsub.s32 5, %v1407
    %v1409 = vrot.slane %v592, %v1408
    %v1410 = vlaneseq
    %v1411 = vshrl.u32 %v1410, 7
    %v1412 = vsub.s32 6, %v1411
    %v1413 = vrot.slane %v592, %v1412
    %v1414 = vlaneseq
    %v1415 = vshrl.u32 %v1414, 7
    %v1416 = vsub.s32 7, %v1415
    %v1417 = vrot.slane %v592, %v1416
    %v1418 = vlaneseq
    %v1419 = vshrl.u32 %v1418, 7
    %v1420 = vsub.s32 0, %v1419
    %v1421 = vrot.slane %v596, %v1420
    %v1422 = vlaneseq
    %v1423 = vshrl.u32 %v1422, 7
    %v1424 = vsub.s32 1, %v1423
    %v1425 = vrot.slane %v596, %v1424
    %v1426 = vlaneseq
    %v1427 = vshrl.u32 %v1426, 7
    %v1428 = vsub.s32 2, %v1427
    %v1429 = vrot.slane %v596, %v1428
    %v1430 = vlaneseq
    %v1431 = vshrl.u32 %v1430, 7
    %v1432 = vsub.s32 3, %v1431
    %v1433 = vrot.slane %v596, %v1432
    %v1434 = vlaneseq
    %v1435 = vshrl.u32 %v1434, 7
    %v1436 = vsub.s32 4, %v1435
    %v1437 = vrot.slane %v596, %v1436
    %v1438 = vlaneseq
    %v1439 = vshrl.u32 %v1438, 7
    %v1440 = vsub.s32 5, %v1439
    %v1441 = vrot.slane %v596, %v1440
    %v1442 = vlaneseq
    %v1443 = vshrl.u32 %v1442, 7
    %v1444 = vsub.s32 6, %v1443
    %v1445 = vrot.slane %v596, %v1444
    %v1446 = vlaneseq
    %v1447 = vshrl.u32 %v1446, 7
    %v1448 = vsub.s32 7, %v1447
    %v1449 = vrot.slane %v596, %v1448
    %v1498 = vunpack.c.l.b16 %v1351
    %v1499 = vunpack.c.h.b16 %v1351
    %v1500 = vunpack.c.l.b16 %v1352
    %v1501 = vunpack.c.h.b16 %v1352
    %v1502 = vunpack.c.l.b16 %v1353
    %v1503 = vunpack.c.h.b16 %v1353
    %v1504 = vunpack.c.l.b16 %v1354
    %v1505 = vunpack.c.h.b16 %v1354
    %v1506 = vunpack.c.l.b16 %v1355
    %v1507 = vunpack.c.h.b16 %v1355
    %v1508 = vunpack.c.l.b16 %v1356
    %v1509 = vunpack.c.h.b16 %v1356
    %v1510 = vunpack.c.l.b16 %v1357
    %v1511 = vunpack.c.h.b16 %v1357
    %v1512 = vunpack.c.l.b16 %v1358
    %v1513 = vunpack.c.h.b16 %v1358
    %v1514 = vunpack.c.l.b16 %v1359
    %v1515 = vunpack.c.h.b16 %v1359
    %v1516 = vunpack.c.l.b16 %v1360
    %v1517 = vunpack.c.h.b16 %v1360
    %v1518 = vunpack.c.l.b16 %v1361
    %v1519 = vunpack.c.h.b16 %v1361
    %v1520 = vunpack.c.l.b16 %v1362
    %v1521 = vunpack.c.h.b16 %v1362
    %v1522 = vunpack.c.l.b16 %v1363
    %v1523 = vunpack.c.h.b16 %v1363
    %v1524 = vunpack.c.l.b16 %v1364
    %v1525 = vunpack.c.h.b16 %v1364
    %v1526 = vunpack.c.l.b16 %v1365
    %v1527 = vunpack.c.h.b16 %v1365
    %v1528 = vunpack.c.l.b16 %v1366
    %v1529 = vunpack.c.h.b16 %v1366
    %v1530 = vunpack.c.l.b16 %v1367
    %v1531 = vunpack.c.h.b16 %v1367
    %v1532 = vunpack.c.l.b16 %v1368
    %v1533 = vunpack.c.h.b16 %v1368
    %v1534 = vunpack.c.l.b16 %v1369
    %v1535 = vunpack.c.h.b16 %v1369
    %v1536 = vunpack.c.l.b16 %v1370
    %v1537 = vunpack.c.h.b16 %v1370
    %v1538 = vunpack.c.l.b16 %v1371
    %v1539 = vunpack.c.h.b16 %v1371
    %v1540 = vunpack.c.l.b16 %v1372
    %v1541 = vunpack.c.h.b16 %v1372
    %v1542 = vunpack.c.l.b16 %v1373
    %v1543 = vunpack.c.h.b16 %v1373
    %v1544 = vunpack.c.l.b16 %v1374
    %v1545 = vunpack.c.h.b16 %v1374
    %v1546 = vunpack.c.l.b16 %v1375
    %v1547 = vunpack.c.h.b16 %v1375
    %v1548 = vunpack.c.l.b16 %v1376
    %v1549 = vunpack.c.h.b16 %v1376
    %v1550 = vunpack.c.l.b16 %v1377
    %v1551 = vunpack.c.h.b16 %v1377
    %v1552 = vunpack.c.l.b16 %v1378
    %v1553 = vunpack.c.h.b16 %v1378
    %v1554 = vunpack.c.l.b16 %v1379
    %v1555 = vunpack.c.h.b16 %v1379
    %v1556 = vunpack.c.l.b16 %v1380
    %v1557 = vunpack.c.h.b16 %v1380
    %v1558 = vunpack.c.l.b16 %v1381
    %v1559 = vunpack.c.h.b16 %v1381
    %v1560 = vunpack.c.l.b16 %v1382
    %v1561 = vunpack.c.h.b16 %v1382
    %v1562 = vpack.c.b16 %v1514, %v1498
    %v1563 = vpack.c.b16 %v1515, %v1499
    %v1564 = vpack.c.b16 %v1516, %v1500
    %v1565 = vpack.c.b16 %v1517, %v1501
    %v1566 = vpack.c.b16 %v1518, %v1502
    %v1567 = vpack.c.b16 %v1519, %v1503
    %v1568 = vpack.c.b16 %v1520, %v1504
    %v1569 = vpack.c.b16 %v1521, %v1505
    %v1570 = vpack.c.b16 %v1522, %v1506
    %v1571 = vpack.c.b16 %v1523, %v1507
    %v1572 = vpack.c.b16 %v1524, %v1508
    %v1573 = vpack.c.b16 %v1525, %v1509
    %v1574 = vpack.c.b16 %v1526, %v1510
    %v1575 = vpack.c.b16 %v1527, %v1511
    %v1576 = vpack.c.b16 %v1528, %v1512
    %v1577 = vpack.c.b16 %v1529, %v1513
    %v1578 = vpack.c.b16 %v1546, %v1530
    %v1579 = vpack.c.b16 %v1547, %v1531
    %v1580 = vpack.c.b16 %v1548, %v1532
    %v1581 = vpack.c.b16 %v1549, %v1533
    %v1582 = vpack.c.b16 %v1550, %v1534
    %v1583 = vpack.c.b16 %v1551, %v1535
    %v1584 = vpack.c.b16 %v1552, %v1536
    %v1585 = vpack.c.b16 %v1553, %v1537
    %v1586 = vpack.c.b16 %v1554, %v1538
    %v1587 = vpack.c.b16 %v1555, %v1539
    %v1588 = vpack.c.b16 %v1556, %v1540
    %v1589 = vpack.c.b16 %v1557, %v1541
    %v1590 = vpack.c.b16 %v1558, %v1542
    %v1591 = vpack.c.b16 %v1559, %v1543
    %v1592 = vpack.c.b16 %v1560, %v1544
    %v1593 = vpack.c.b16 %v1561, %v1545
    %v1627 = vsel %vm622, %v1383, 0
    %1629 = vmatprep.subr.bf16.mxu0 %v1563
    %1630 = vmatpush1.bf16.msra.mxu0 %v1562
    %1631 = vmatprep.subr.bf16.mxu0 %v1579
    %1632 = vmatpush1.bf16.msra.mxu0 %v1578
    %1633 = vmatprep.subr.bf16.mxu0 0
    %1634 = vmatpush1.bf16.msra.mxu0 0
    %1635 = vmatprep.subr.bf16.mxu0 0
    %1636 = vmatpush1.bf16.msra.mxu0 0
    %1637 = vmatprep.subr.bf16.mxu0 0
    %1638 = vmatpush1.bf16.msra.mxu0 0
    %1639 = vmatprep.subr.bf16.mxu0 0
    %1640 = vmatpush1.bf16.msra.mxu0 0
    %1641 = vmatprep.subr.bf16.mxu0 0
    %1642 = vmatpush1.bf16.msra.mxu0 0
    %1643 = vmatprep.subr.bf16.mxu0 0
    %1644 = vmatpush1.bf16.msra.mxu0 0
    %1645 = vmatprep.subr.bf16.mxu0 0
    %1646 = vmatpush1.bf16.msra.mxu0 0
    %1647 = vmatprep.subr.bf16.mxu0 0
    %1648 = vmatpush1.bf16.msra.mxu0 0
    %1649 = vmatprep.subr.bf16.mxu0 0
    %1650 = vmatpush1.bf16.msra.mxu0 0
    %1651 = vmatprep.subr.bf16.mxu0 0
    %1652 = vmatpush1.bf16.msra.mxu0 0
    %1653 = vmatprep.subr.bf16.mxu0 0
    %1654 = vmatpush1.bf16.msra.mxu0 0
    %1655 = vmatprep.subr.bf16.mxu0 0
    %1656 = vmatpush1.bf16.msra.mxu0 0
    %1657 = vmatprep.subr.bf16.mxu0 0
    %1658 = vmatpush1.bf16.msra.mxu0 0
    %1659 = vmatprep.subr.bf16.mxu0 0
    %1660 = vmatpush1.bf16.msra.mxu0 0
    %1661 = vmatprep.mubr.bf16.mxu0 0
    %1662 = vmatmul.mubr.bf16.gmra.mrb[0].mxu0 %v1627
    %v1663 = vpop.f32.mrb[0].mxu0
    %v1664 = vadd.f32 %v1389, %v1663
    %v1665 = vpop.f32.mrb[0].mxu0
    %v1666 = vadd.f32 %v1393, %v1665
    %v1667 = vpop.f32.mrb[0].mxu0
    %v1668 = vpop.f32.mrb[0].mxu0
    %1669 = vdwg.mxu0
    %1670 = vmatprep.subr.bf16.mxu0 %v1565
    %1671 = vmatpush1.bf16.msra.mxu0 %v1564
    %1672 = vmatprep.subr.bf16.mxu0 %v1581
    %1673 = vmatpush1.bf16.msra.mxu0 %v1580
    %1674 = vmatprep.subr.bf16.mxu0 0
    %1675 = vmatpush1.bf16.msra.mxu0 0
    %1676 = vmatprep.subr.bf16.mxu0 0
    %1677 = vmatpush1.bf16.msra.mxu0 0
    %1678 = vmatprep.subr.bf16.mxu0 0
    %1679 = vmatpush1.bf16.msra.mxu0 0
    %1680 = vmatprep.subr.bf16.mxu0 0
    %1681 = vmatpush1.bf16.msra.mxu0 0
    %1682 = vmatprep.subr.bf16.mxu0 0
    %1683 = vmatpush1.bf16.msra.mxu0 0
    %1684 = vmatprep.subr.bf16.mxu0 0
    %1685 = vmatpush1.bf16.msra.mxu0 0
    %1686 = vmatprep.subr.bf16.mxu0 0
    %1687 = vmatpush1.bf16.msra.mxu0 0
    %1688 = vmatprep.subr.bf16.mxu0 0
    %1689 = vmatpush1.bf16.msra.mxu0 0
    %1690 = vmatprep.subr.bf16.mxu0 0
    %1691 = vmatpush1.bf16.msra.mxu0 0
    %1692 = vmatprep.subr.bf16.mxu0 0
    %1693 = vmatpush1.bf16.msra.mxu0 0
    %1694 = vmatprep.subr.bf16.mxu0 0
    %1695 = vmatpush1.bf16.msra.mxu0 0
    %1696 = vmatprep.subr.bf16.mxu0 0
    %1697 = vmatpush1.bf16.msra.mxu0 0
    %1698 = vmatprep.subr.bf16.mxu0 0
    %1699 = vmatpush1.bf16.msra.mxu0 0
    %1700 = vmatprep.subr.bf16.mxu0 0
    %1701 = vmatpush1.bf16.msra.mxu0 0
    %1702 = vmatprep.mubr.bf16.mxu0 0
    %1703 = vmatmul.mubr.bf16.gmra.mrb[0].mxu0 %v1627
    %v1704 = vpop.f32.mrb[0].mxu0
    %v1705 = vadd.f32 %v1397, %v1704
    %v1706 = vpop.f32.mrb[0].mxu0
    %v1707 = vadd.f32 %v1401, %v1706
    %v1708 = vpop.f32.mrb[0].mxu0
    %v1709 = vpop.f32.mrb[0].mxu0
    %1710 = vdwg.mxu0
    %1711 = vmatprep.subr.bf16.mxu0 %v1567
    %1712 = vmatpush1.bf16.msra.mxu0 %v1566
    %1713 = vmatprep.subr.bf16.mxu0 %v1583
    %1714 = vmatpush1.bf16.msra.mxu0 %v1582
    %1715 = vmatprep.subr.bf16.mxu0 0
    %1716 = vmatpush1.bf16.msra.mxu0 0
    %1717 = vmatprep.subr.bf16.mxu0 0
    %1718 = vmatpush1.bf16.msra.mxu0 0
    %1719 = vmatprep.subr.bf16.mxu0 0
    %1720 = vmatpush1.bf16.msra.mxu0 0
    %1721 = vmatprep.subr.bf16.mxu0 0
    %1722 = vmatpush1.bf16.msra.mxu0 0
    %1723 = vmatprep.subr.bf16.mxu0 0
    %1724 = vmatpush1.bf16.msra.mxu0 0
    %1725 = vmatprep.subr.bf16.mxu0 0
    %1726 = vmatpush1.bf16.msra.mxu0 0
    %1727 = vmatprep.subr.bf16.mxu0 0
    %1728 = vmatpush1.bf16.msra.mxu0 0
    %1729 = vmatprep.subr.bf16.mxu0 0
    %1730 = vmatpush1.bf16.msra.mxu0 0
    %1731 = vmatprep.subr.bf16.mxu0 0
    %1732 = vmatpush1.bf16.msra.mxu0 0
    %1733 = vmatprep.subr.bf16.mxu0 0
    %1734 = vmatpush1.bf16.msra.mxu0 0
    %1735 = vmatprep.subr.bf16.mxu0 0
    %1736 = vmatpush1.bf16.msra.mxu0 0
    %1737 = vmatprep.subr.bf16.mxu0 0
    %1738 = vmatpush1.bf16.msra.mxu0 0
    %1739 = vmatprep.subr.bf16.mxu0 0
    %1740 = vmatpush1.bf16.msra.mxu0 0
    %1741 = vmatprep.subr.bf16.mxu0 0
    %1742 = vmatpush1.bf16.msra.mxu0 0
    %1743 = vmatprep.mubr.bf16.mxu0 0
    %1744 = vmatmul.mubr.bf16.gmra.mrb[0].mxu0 %v1627
    %v1745 = vpop.f32.mrb[0].mxu0
    %v1746 = vadd.f32 %v1405, %v1745
    %v1747 = vpop.f32.mrb[0].mxu0
    %v1748 = vadd.f32 %v1409, %v1747
    %v1749 = vpop.f32.mrb[0].mxu0
    %v1750 = vpop.f32.mrb[0].mxu0
    %1751 = vdwg.mxu0
    %1752 = vmatprep.subr.bf16.mxu0 %v1569
    %1753 = vmatpush1.bf16.msra.mxu0 %v1568
    %1754 = vmatprep.subr.bf16.mxu0 %v1585
    %1755 = vmatpush1.bf16.msra.mxu0 %v1584
    %1756 = vmatprep.subr.bf16.mxu0 0
    %1757 = vmatpush1.bf16.msra.mxu0 0
    %1758 = vmatprep.subr.bf16.mxu0 0
    %1759 = vmatpush1.bf16.msra.mxu0 0
    %1760 = vmatprep.subr.bf16.mxu0 0
    %1761 = vmatpush1.bf16.msra.mxu0 0
    %1762 = vmatprep.subr.bf16.mxu0 0
    %1763 = vmatpush1.bf16.msra.mxu0 0
    %1764 = vmatprep.subr.bf16.mxu0 0
    %1765 = vmatpush1.bf16.msra.mxu0 0
    %1766 = vmatprep.subr.bf16.mxu0 0
    %1767 = vmatpush1.bf16.msra.mxu0 0
    %1768 = vmatprep.subr.bf16.mxu0 0
    %1769 = vmatpush1.bf16.msra.mxu0 0
    %1770 = vmatprep.subr.bf16.mxu0 0
    %1771 = vmatpush1.bf16.msra.mxu0 0
    %1772 = vmatprep.subr.bf16.mxu0 0
    %1773 = vmatpush1.bf16.msra.mxu0 0
    %1774 = vmatprep.subr.bf16.mxu0 0
    %1775 = vmatpush1.bf16.msra.mxu0 0
    %1776 = vmatprep.subr.bf16.mxu0 0
    %1777 = vmatpush1.bf16.msra.mxu0 0
    %1778 = vmatprep.subr.bf16.mxu0 0
    %1779 = vmatpush1.bf16.msra.mxu0 0
    %1780 = vmatprep.subr.bf16.mxu0 0
    %1781 = vmatpush1.bf16.msra.mxu0 0
    %1782 = vmatprep.subr.bf16.mxu0 0
    %1783 = vmatpush1.bf16.msra.mxu0 0
    %1784 = vmatprep.mubr.bf16.mxu0 0
    %1785 = vmatmul.mubr.bf16.gmra.mrb[0].mxu0 %v1627
    %v1786 = vpop.f32.mrb[0].mxu0
    %v1787 = vadd.f32 %v1413, %v1786
    %v1788 = vpop.f32.mrb[0].mxu0
    %v1789 = vadd.f32 %v1417, %v1788
    %v1790 = vpop.f32.mrb[0].mxu0
    %v1791 = vpop.f32.mrb[0].mxu0
    %1792 = vdwg.mxu0
    %1793 = vmatprep.subr.bf16.mxu0 %v1571
    %1794 = vmatpush1.bf16.msra.mxu0 %v1570
    %1795 = vmatprep.subr.bf16.mxu0 %v1587
    %1796 = vmatpush1.bf16.msra.mxu0 %v1586
    %1797 = vmatprep.subr.bf16.mxu0 0
    %1798 = vmatpush1.bf16.msra.mxu0 0
    %1799 = vmatprep.subr.bf16.mxu0 0
    %1800 = vmatpush1.bf16.msra.mxu0 0
    %1801 = vmatprep.subr.bf16.mxu0 0
    %1802 = vmatpush1.bf16.msra.mxu0 0
    %1803 = vmatprep.subr.bf16.mxu0 0
    %1804 = vmatpush1.bf16.msra.mxu0 0
    %1805 = vmatprep.subr.bf16.mxu0 0
    %1806 = vmatpush1.bf16.msra.mxu0 0
    %1807 = vmatprep.subr.bf16.mxu0 0
    %1808 = vmatpush1.bf16.msra.mxu0 0
    %1809 = vmatprep.subr.bf16.mxu0 0
    %1810 = vmatpush1.bf16.msra.mxu0 0
    %1811 = vmatprep.subr.bf16.mxu0 0
    %1812 = vmatpush1.bf16.msra.mxu0 0
    %1813 = vmatprep.subr.bf16.mxu0 0
    %1814 = vmatpush1.bf16.msra.mxu0 0
    %1815 = vmatprep.subr.bf16.mxu0 0
    %1816 = vmatpush1.bf16.msra.mxu0 0
    %1817 = vmatprep.subr.bf16.mxu0 0
    %1818 = vmatpush1.bf16.msra.mxu0 0
    %1819 = vmatprep.subr.bf16.mxu0 0
    %1820 = vmatpush1.bf16.msra.mxu0 0
    %1821 = vmatprep.subr.bf16.mxu0 0
    %1822 = vmatpush1.bf16.msra.mxu0 0
    %1823 = vmatprep.subr.bf16.mxu0 0
    %1824 = vmatpush1.bf16.msra.mxu0 0
    %1825 = vmatprep.mubr.bf16.mxu0 0
    %1826 = vmatmul.mubr.bf16.gmra.mrb[0].mxu0 %v1627
    %v1827 = vpop.f32.mrb[0].mxu0
    %v1828 = vadd.f32 %v1421, %v1827
    %v1829 = vpop.f32.mrb[0].mxu0
    %v1830 = vadd.f32 %v1425, %v1829
    %v1831 = vpop.f32.mrb[0].mxu0
    %v1832 = vpop.f32.mrb[0].mxu0
    %1833 = vdwg.mxu0
    %1834 = vmatprep.subr.bf16.mxu0 %v1573
    %1835 = vmatpush1.bf16.msra.mxu0 %v1572
    %1836 = vmatprep.subr.bf16.mxu0 %v1589
    %1837 = vmatpush1.bf16.msra.mxu0 %v1588
    %1838 = vmatprep.subr.bf16.mxu0 0
    %1839 = vmatpush1.bf16.msra.mxu0 0
    %1840 = vmatprep.subr.bf16.mxu0 0
    %1841 = vmatpush1.bf16.msra.mxu0 0
    %1842 = vmatprep.subr.bf16.mxu0 0
    %1843 = vmatpush1.bf16.msra.mxu0 0
    %1844 = vmatprep.subr.bf16.mxu0 0
    %1845 = vmatpush1.bf16.msra.mxu0 0
    %1846 = vmatprep.subr.bf16.mxu0 0
    %1847 = vmatpush1.bf16.msra.mxu0 0
    %1848 = vmatprep.subr.bf16.mxu0 0
    %1849 = vmatpush1.bf16.msra.mxu0 0
    %1850 = vmatprep.subr.bf16.mxu0 0
    %1851 = vmatpush1.bf16.msra.mxu0 0
    %1852 = vmatprep.subr.bf16.mxu0 0
    %1853 = vmatpush1.bf16.msra.mxu0 0
    %1854 = vmatprep.subr.bf16.mxu0 0
    %1855 = vmatpush1.bf16.msra.mxu0 0
    %1856 = vmatprep.subr.bf16.mxu0 0
    %1857 = vmatpush1.bf16.msra.mxu0 0
    %1858 = vmatprep.subr.bf16.mxu0 0
    %1859 = vmatpush1.bf16.msra.mxu0 0
    %1860 = vmatprep.subr.bf16.mxu0 0
    %1861 = vmatpush1.bf16.msra.mxu0 0
    %1862 = vmatprep.subr.bf16.mxu0 0
    %1863 = vmatpush1.bf16.msra.mxu0 0
    %1864 = vmatprep.subr.bf16.mxu0 0
    %1865 = vmatpush1.bf16.msra.mxu0 0
    %1866 = vmatprep.mubr.bf16.mxu0 0
    %1867 = vmatmul.mubr.bf16.gmra.mrb[0].mxu0 %v1627
    %v1868 = vpop.f32.mrb[0].mxu0
    %v1869 = vadd.f32 %v1429, %v1868
    %v1870 = vpop.f32.mrb[0].mxu0
    %v1871 = vadd.f32 %v1433, %v1870
    %v1872 = vpop.f32.mrb[0].mxu0
    %v1873 = vpop.f32.mrb[0].mxu0
    %1874 = vdwg.mxu0
    %1875 = vmatprep.subr.bf16.mxu0 %v1575
    %1876 = vmatpush1.bf16.msra.mxu0 %v1574
    %1877 = vmatprep.subr.bf16.mxu0 %v1591
    %1878 = vmatpush1.bf16.msra.mxu0 %v1590
    %1879 = vmatprep.subr.bf16.mxu0 0
    %1880 = vmatpush1.bf16.msra.mxu0 0
    %1881 = vmatprep.subr.bf16.mxu0 0
    %1882 = vmatpush1.bf16.msra.mxu0 0
    %1883 = vmatprep.subr.bf16.mxu0 0
    %1884 = vmatpush1.bf16.msra.mxu0 0
    %1885 = vmatprep.subr.bf16.mxu0 0
    %1886 = vmatpush1.bf16.msra.mxu0 0
    %1887 = vmatprep.subr.bf16.mxu0 0
    %1888 = vmatpush1.bf16.msra.mxu0 0
    %1889 = vmatprep.subr.bf16.mxu0 0
    %1890 = vmatpush1.bf16.msra.mxu0 0
    %1891 = vmatprep.subr.bf16.mxu0 0
    %1892 = vmatpush1.bf16.msra.mxu0 0
    %1893 = vmatprep.subr.bf16.mxu0 0
    %1894 = vmatpush1.bf16.msra.mxu0 0
    %1895 = vmatprep.subr.bf16.mxu0 0
    %1896 = vmatpush1.bf16.msra.mxu0 0
    %1897 = vmatprep.subr.bf16.mxu0 0
    %1898 = vmatpush1.bf16.msra.mxu0 0
    %1899 = vmatprep.subr.bf16.mxu0 0
    %1900 = vmatpush1.bf16.msra.mxu0 0
    %1901 = vmatprep.subr.bf16.mxu0 0
    %1902 = vmatpush1.bf16.msra.mxu0 0
    %1903 = vmatprep.subr.bf16.mxu0 0
    %1904 = vmatpush1.bf16.msra.mxu0 0
    %1905 = vmatprep.subr.bf16.mxu0 0
    %1906 = vmatpush1.bf16.msra.mxu0 0
    %1907 = vmatprep.mubr.bf16.mxu0 0
    %1908 = vmatmul.mubr.bf16.gmra.mrb[0].mxu0 %v1627
    %v1909 = vpop.f32.mrb[0].mxu0
    %v1910 = vadd.f32 %v1437, %v1909
    %v1911 = vpop.f32.mrb[0].mxu0
    %v1912 = vadd.f32 %v1441, %v1911
    %v1913 = vpop.f32.mrb[0].mxu0
    %v1914 = vpop.f32.mrb[0].mxu0
    %1915 = vdwg.mxu0
    %1916 = vmatprep.subr.bf16.mxu0 %v1577
    %1917 = vmatpush1.bf16.msra.mxu0 %v1576
    %1918 = vmatprep.subr.bf16.mxu0 %v1593
    %1919 = vmatpush1.bf16.msra.mxu0 %v1592
    %1920 = vmatprep.subr.bf16.mxu0 0
    %1921 = vmatpush1.bf16.msra.mxu0 0
    %1922 = vmatprep.subr.bf16.mxu0 0
    %1923 = vmatpush1.bf16.msra.mxu0 0
    %1924 = vmatprep.subr.bf16.mxu0 0
    %1925 = vmatpush1.bf16.msra.mxu0 0
    %1926 = vmatprep.subr.bf16.mxu0 0
    %1927 = vmatpush1.bf16.msra.mxu0 0
    %1928 = vmatprep.subr.bf16.mxu0 0
    %1929 = vmatpush1.bf16.msra.mxu0 0
    %1930 = vmatprep.subr.bf16.mxu0 0
    %1931 = vmatpush1.bf16.msra.mxu0 0
    %1932 = vmatprep.subr.bf16.mxu0 0
    %1933 = vmatpush1.bf16.msra.mxu0 0
    %1934 = vmatprep.subr.bf16.mxu0 0
    %1935 = vmatpush1.bf16.msra.mxu0 0
    %1936 = vmatprep.subr.bf16.mxu0 0
    %1937 = vmatpush1.bf16.msra.mxu0 0
    %1938 = vmatprep.subr.bf16.mxu0 0
    %1939 = vmatpush1.bf16.msra.mxu0 0
    %1940 = vmatprep.subr.bf16.mxu0 0
    %1941 = vmatpush1.bf16.msra.mxu0 0
    %1942 = vmatprep.subr.bf16.mxu0 0
    %1943 = vmatpush1.bf16.msra.mxu0 0
    %1944 = vmatprep.subr.bf16.mxu0 0
    %1945 = vmatpush1.bf16.msra.mxu0 0
    %1946 = vmatprep.subr.bf16.mxu0 0
    %1947 = vmatpush1.bf16.msra.mxu0 0
    %1948 = vmatprep.mubr.bf16.mxu0 0
    %1949 = vmatmul.mubr.bf16.gmra.mrb[0].mxu0 %v1627
    %v1950 = vpop.f32.mrb[0].mxu0
    %v1951 = vadd.f32 %v1445, %v1950
    %v1952 = vpop.f32.mrb[0].mxu0
    %v1953 = vadd.f32 %v1449, %v1952
    %v1954 = vpop.f32.mrb[0].mxu0
    %v1955 = vpop.f32.mrb[0].mxu0
    %1956 = vdwg.mxu0
    %v1957 = vmax.f32 %v1664, 0.0
    %v1958 = vmax.f32 %v1666, 0.0
    %v1959 = vmax.f32 %v1705, 0.0
    %v1960 = vmax.f32 %v1707, 0.0
    %v1961 = vmax.f32 %v1746, 0.0
    %v1962 = vmax.f32 %v1748, 0.0
    %v1963 = vmax.f32 %v1787, 0.0
    %v1964 = vmax.f32 %v1789, 0.0
    %v1965 = vmax.f32 %v1828, 0.0
    %v1966 = vmax.f32 %v1830, 0.0
    %v1967 = vmax.f32 %v1869, 0.0
    %v1968 = vmax.f32 %v1871, 0.0
    %v1969 = vmax.f32 %v1910, 0.0
    %v1970 = vmax.f32 %v1912, 0.0
    %v1971 = vmax.f32 %v1951, 0.0
    %v1972 = vmax.f32 %v1953, 0.0
    %v1973 = vld [vmem:[%s3 + $0x100] sm:$0xf]
    %v1974 = vld [vmem:[%s3 + $0x104] sm:$0xf]
    %v1975 = vld [vmem:[%s3 + $0x108] sm:$0xf]
    %v1976 = vld [vmem:[%s3 + $0x10c] sm:$0xf]
    %v1977 = vld [vmem:[%s3 + $0x110] sm:$0xf]
    %v1978 = vld [vmem:[%s3 + $0x114] sm:$0xf]
    %v1979 = vld [vmem:[%s3 + $0x118] sm:$0xf]
    %v1980 = vld [vmem:[%s3 + $0x11c] sm:$0xf]
    %v1981 = vld [vmem:[%s3 + $0x120] sm:$0xf]
    %v1982 = vld [vmem:[%s3 + $0x124] sm:$0xf]
    %v1983 = vld [vmem:[%s3 + $0x128] sm:$0xf]
    %v1984 = vld [vmem:[%s3 + $0x12c] sm:$0xf]
    %v1985 = vld [vmem:[%s3 + $0x130] sm:$0xf]
    %v1986 = vld [vmem:[%s3 + $0x134] sm:$0xf]
    %v1987 = vld [vmem:[%s3 + $0x138] sm:$0xf]
    %v1988 = vld [vmem:[%s3 + $0x13c] sm:$0xf]
    %v1989 = vld [vmem:[%s3 + $0x140] sm:$0xf]
    %v1990 = vld [vmem:[%s3 + $0x144] sm:$0xf]
    %v1991 = vld [vmem:[%s3 + $0x148] sm:$0xf]
    %v1992 = vld [vmem:[%s3 + $0x14c] sm:$0xf]
    %v1993 = vld [vmem:[%s3 + $0x150] sm:$0xf]
    %v1994 = vld [vmem:[%s3 + $0x154] sm:$0xf]
    %v1995 = vld [vmem:[%s3 + $0x158] sm:$0xf]
    %v1996 = vld [vmem:[%s3 + $0x15c] sm:$0xf]
    %v1997 = vld [vmem:[%s3 + $0x160] sm:$0xf]
    %v1998 = vld [vmem:[%s3 + $0x164] sm:$0xf]
    %v1999 = vld [vmem:[%s3 + $0x168] sm:$0xf]
    %v2000 = vld [vmem:[%s3 + $0x16c] sm:$0xf]
    %v2001 = vld [vmem:[%s3 + $0x170] sm:$0xf]
    %v2002 = vld [vmem:[%s3 + $0x174] sm:$0xf]
    %v2003 = vld [vmem:[%s3 + $0x178] sm:$0xf]
    %v2004 = vld [vmem:[%s3 + $0x17c] sm:$0xf]
    %v2005 = vld [vmem:[%s3 + $0x180] sm:$0xf]
    %v2006 = vld [vmem:[%s3 + $0x184] sm:$0xf]
    %v2007 = vld [vmem:[%s3 + $0x188] sm:$0xf]
    %v2008 = vld [vmem:[%s3 + $0x18c] sm:$0xf]
    %v2009 = vld [vmem:[%s3 + $0x190] sm:$0xf]
    %v2010 = vld [vmem:[%s3 + $0x194] sm:$0xf]
    %v2011 = vld [vmem:[%s3 + $0x198] sm:$0xf]
    %v2012 = vld [vmem:[%s3 + $0x19c] sm:$0xf]
    %v2013 = vld [vmem:[%s3 + $0x1a0] sm:$0xf]
    %v2014 = vld [vmem:[%s3 + $0x1a4] sm:$0xf]
    %v2015 = vld [vmem:[%s3 + $0x1a8] sm:$0xf]
    %v2016 = vld [vmem:[%s3 + $0x1ac] sm:$0xf]
    %v2017 = vld [vmem:[%s3 + $0x1b0] sm:$0xf]
    %v2018 = vld [vmem:[%s3 + $0x1b4] sm:$0xf]
    %v2019 = vld [vmem:[%s3 + $0x1b8] sm:$0xf]
    %v2020 = vld [vmem:[%s3 + $0x1bc] sm:$0xf]
    %v2021 = vld [vmem:[%s3 + $0x1c0] sm:$0xf]
    %v2022 = vld [vmem:[%s3 + $0x1c4] sm:$0xf]
    %v2023 = vld [vmem:[%s3 + $0x1c8] sm:$0xf]
    %v2024 = vld [vmem:[%s3 + $0x1cc] sm:$0xf]
    %v2025 = vld [vmem:[%s3 + $0x1d0] sm:$0xf]
    %v2026 = vld [vmem:[%s3 + $0x1d4] sm:$0xf]
    %v2027 = vld [vmem:[%s3 + $0x1d8] sm:$0xf]
    %v2028 = vld [vmem:[%s3 + $0x1dc] sm:$0xf]
    %v2029 = vld [vmem:[%s3 + $0x1e0] sm:$0xf]
    %v2030 = vld [vmem:[%s3 + $0x1e4] sm:$0xf]
    %v2031 = vld [vmem:[%s3 + $0x1e8] sm:$0xf]
    %v2032 = vld [vmem:[%s3 + $0x1ec] sm:$0xf]
    %v2033 = vld [vmem:[%s3 + $0x1f0] sm:$0xf]
    %v2034 = vld [vmem:[%s3 + $0x1f4] sm:$0xf]
    %v2035 = vld [vmem:[%s3 + $0x1f8] sm:$0xf]
    %v2036 = vld [vmem:[%s3 + $0x1fc] sm:$0xf]
    %v2037 = vld [vmem:[%s3 + $0x200] sm:$0xf]
    %v2038 = vld [vmem:[%s3 + $0x204] sm:$0xf]
    %v2039 = vld [vmem:[%s3 + $0x208] sm:$0xf]
    %v2040 = vld [vmem:[%s3 + $0x20c] sm:$0xf]
    %v2041 = vld [vmem:[%s3 + $0x210] sm:$0xf]
    %v2042 = vld [vmem:[%s3 + $0x214] sm:$0xf]
    %v2043 = vld [vmem:[%s3 + $0x218] sm:$0xf]
    %v2044 = vld [vmem:[%s3 + $0x21c] sm:$0xf]
    %v2045 = vld [vmem:[%s3 + $0x220] sm:$0xf]
    %v2046 = vld [vmem:[%s3 + $0x224] sm:$0xf]
    %v2047 = vld [vmem:[%s3 + $0x228] sm:$0xf]
    %v2048 = vld [vmem:[%s3 + $0x22c] sm:$0xf]
    %v2049 = vld [vmem:[%s3 + $0x230] sm:$0xf]
    %v2050 = vld [vmem:[%s3 + $0x234] sm:$0xf]
    %v2051 = vld [vmem:[%s3 + $0x238] sm:$0xf]
    %v2052 = vld [vmem:[%s3 + $0x23c] sm:$0xf]
    %v2053 = vld [vmem:[%s3 + $0x240] sm:$0xf]
    %v2054 = vld [vmem:[%s3 + $0x244] sm:$0xf]
    %v2055 = vld [vmem:[%s3 + $0x248] sm:$0xf]
    %v2056 = vld [vmem:[%s3 + $0x24c] sm:$0xf]
    %v2057 = vld [vmem:[%s3 + $0x250] sm:$0xf]
    %v2058 = vld [vmem:[%s3 + $0x254] sm:$0xf]
    %v2059 = vld [vmem:[%s3 + $0x258] sm:$0xf]
    %v2060 = vld [vmem:[%s3 + $0x25c] sm:$0xf]
    %v2061 = vld [vmem:[%s3 + $0x260] sm:$0xf]
    %v2062 = vld [vmem:[%s3 + $0x264] sm:$0xf]
    %v2063 = vld [vmem:[%s3 + $0x268] sm:$0xf]
    %v2064 = vld [vmem:[%s3 + $0x26c] sm:$0xf]
    %v2065 = vld [vmem:[%s3 + $0x270] sm:$0xf]
    %v2066 = vld [vmem:[%s3 + $0x274] sm:$0xf]
    %v2067 = vld [vmem:[%s3 + $0x278] sm:$0xf]
    %v2068 = vld [vmem:[%s3 + $0x27c] sm:$0xf]
    %v2069 = vld [vmem:[%s3 + $0x280] sm:$0xf]
    %v2070 = vld [vmem:[%s3 + $0x284] sm:$0xf]
    %v2071 = vld [vmem:[%s3 + $0x288] sm:$0xf]
    %v2072 = vld [vmem:[%s3 + $0x28c] sm:$0xf]
    %v2073 = vld [vmem:[%s3 + $0x290] sm:$0xf]
    %v2074 = vld [vmem:[%s3 + $0x294] sm:$0xf]
    %v2075 = vld [vmem:[%s3 + $0x298] sm:$0xf]
    %v2076 = vld [vmem:[%s3 + $0x29c] sm:$0xf]
    %v2077 = vld [vmem:[%s3 + $0x2a0] sm:$0xf]
    %v2078 = vld [vmem:[%s3 + $0x2a4] sm:$0xf]
    %v2079 = vld [vmem:[%s3 + $0x2a8] sm:$0xf]
    %v2080 = vld [vmem:[%s3 + $0x2ac] sm:$0xf]
    %v2081 = vld [vmem:[%s3 + $0x2b0] sm:$0xf]
    %v2082 = vld [vmem:[%s3 + $0x2b4] sm:$0xf]
    %v2083 = vld [vmem:[%s3 + $0x2b8] sm:$0xf]
    %v2084 = vld [vmem:[%s3 + $0x2bc] sm:$0xf]
    %v2085 = vld [vmem:[%s3 + $0x2c0] sm:$0xf]
    %v2086 = vld [vmem:[%s3 + $0x2c4] sm:$0xf]
    %v2087 = vld [vmem:[%s3 + $0x2c8] sm:$0xf]
    %v2088 = vld [vmem:[%s3 + $0x2cc] sm:$0xf]
    %v2089 = vld [vmem:[%s3 + $0x2d0] sm:$0xf]
    %v2090 = vld [vmem:[%s3 + $0x2d4] sm:$0xf]
    %v2091 = vld [vmem:[%s3 + $0x2d8] sm:$0xf]
    %v2092 = vld [vmem:[%s3 + $0x2dc] sm:$0xf]
    %v2093 = vld [vmem:[%s3 + $0x2e0] sm:$0xf]
    %v2094 = vld [vmem:[%s3 + $0x2e4] sm:$0xf]
    %v2095 = vld [vmem:[%s3 + $0x2e8] sm:$0xf]
    %v2096 = vld [vmem:[%s3 + $0x2ec] sm:$0xf]
    %v2097 = vld [vmem:[%s3 + $0x2f0] sm:$0xf]
    %v2098 = vld [vmem:[%s3 + $0x2f4] sm:$0xf]
    %v2099 = vld [vmem:[%s3 + $0x2f8] sm:$0xf]
    %v2100 = vld [vmem:[%s3 + $0x2fc] sm:$0xf]
    %v2101 = vld [vmem:[%s3 + $0x300] sm:$0xf]
    %v2102 = vld [vmem:[%s3 + $0x304] sm:$0xf]
    %v2103 = vld [vmem:[%s3 + $0x308] sm:$0xf]
    %v2104 = vld [vmem:[%s3 + $0x30c] sm:$0xf]
    %v2105 = vld [vmem:[%s3 + $0x310] sm:$0xf]
    %v2106 = vld [vmem:[%s3 + $0x314] sm:$0xf]
    %v2107 = vld [vmem:[%s3 + $0x318] sm:$0xf]
    %v2108 = vld [vmem:[%s3 + $0x31c] sm:$0xf]
    %v2109 = vld [vmem:[%s3 + $0x320] sm:$0xf]
    %v2110 = vld [vmem:[%s3 + $0x324] sm:$0xf]
    %v2111 = vld [vmem:[%s3 + $0x328] sm:$0xf]
    %v2112 = vld [vmem:[%s3 + $0x32c] sm:$0xf]
    %v2113 = vld [vmem:[%s3 + $0x330] sm:$0xf]
    %v2114 = vld [vmem:[%s3 + $0x334] sm:$0xf]
    %v2115 = vld [vmem:[%s3 + $0x338] sm:$0xf]
    %v2116 = vld [vmem:[%s3 + $0x33c] sm:$0xf]
    %v2117 = vld [vmem:[%s3 + $0x340] sm:$0xf]
    %v2118 = vld [vmem:[%s3 + $0x344] sm:$0xf]
    %v2119 = vld [vmem:[%s3 + $0x348] sm:$0xf]
    %v2120 = vld [vmem:[%s3 + $0x34c] sm:$0xf]
    %v2121 = vld [vmem:[%s3 + $0x350] sm:$0xf]
    %v2122 = vld [vmem:[%s3 + $0x354] sm:$0xf]
    %v2123 = vld [vmem:[%s3 + $0x358] sm:$0xf]
    %v2124 = vld [vmem:[%s3 + $0x35c] sm:$0xf]
    %v2125 = vld [vmem:[%s3 + $0x360] sm:$0xf]
    %v2126 = vld [vmem:[%s3 + $0x364] sm:$0xf]
    %v2127 = vld [vmem:[%s3 + $0x368] sm:$0xf]
    %v2128 = vld [vmem:[%s3 + $0x36c] sm:$0xf]
    %v2129 = vld [vmem:[%s3 + $0x370] sm:$0xf]
    %v2130 = vld [vmem:[%s3 + $0x374] sm:$0xf]
    %v2131 = vld [vmem:[%s3 + $0x378] sm:$0xf]
    %v2132 = vld [vmem:[%s3 + $0x37c] sm:$0xf]
    %v2133 = vld [vmem:[%s3 + $0x380] sm:$0xf]
    %v2134 = vld [vmem:[%s3 + $0x384] sm:$0xf]
    %v2135 = vld [vmem:[%s3 + $0x388] sm:$0xf]
    %v2136 = vld [vmem:[%s3 + $0x38c] sm:$0xf]
    %v2137 = vld [vmem:[%s3 + $0x390] sm:$0xf]
    %v2138 = vld [vmem:[%s3 + $0x394] sm:$0xf]
    %v2139 = vld [vmem:[%s3 + $0x398] sm:$0xf]
    %v2140 = vld [vmem:[%s3 + $0x39c] sm:$0xf]
    %v2141 = vld [vmem:[%s3 + $0x3a0] sm:$0xf]
    %v2142 = vld [vmem:[%s3 + $0x3a4] sm:$0xf]
    %v2143 = vld [vmem:[%s3 + $0x3a8] sm:$0xf]
    %v2144 = vld [vmem:[%s3 + $0x3ac] sm:$0xf]
    %v2145 = vld [vmem:[%s3 + $0x3b0] sm:$0xf]
    %v2146 = vld [vmem:[%s3 + $0x3b4] sm:$0xf]
    %v2147 = vld [vmem:[%s3 + $0x3b8] sm:$0xf]
    %v2148 = vld [vmem:[%s3 + $0x3bc] sm:$0xf]
    %v2149 = vld [vmem:[%s3 + $0x3c0] sm:$0xf]
    %v2150 = vld [vmem:[%s3 + $0x3c4] sm:$0xf]
    %v2151 = vld [vmem:[%s3 + $0x3c8] sm:$0xf]
    %v2152 = vld [vmem:[%s3 + $0x3cc] sm:$0xf]
    %v2153 = vld [vmem:[%s3 + $0x3d0] sm:$0xf]
    %v2154 = vld [vmem:[%s3 + $0x3d4] sm:$0xf]
    %v2155 = vld [vmem:[%s3 + $0x3d8] sm:$0xf]
    %v2156 = vld [vmem:[%s3 + $0x3dc] sm:$0xf]
    %v2157 = vld [vmem:[%s3 + $0x3e0] sm:$0xf]
    %v2158 = vld [vmem:[%s3 + $0x3e4] sm:$0xf]
    %v2159 = vld [vmem:[%s3 + $0x3e8] sm:$0xf]
    %v2160 = vld [vmem:[%s3 + $0x3ec] sm:$0xf]
    %v2161 = vld [vmem:[%s3 + $0x3f0] sm:$0xf]
    %v2162 = vld [vmem:[%s3 + $0x3f4] sm:$0xf]
    %v2163 = vld [vmem:[%s3 + $0x3f8] sm:$0xf]
    %v2164 = vld [vmem:[%s3 + $0x3fc] sm:$0xf]
    %v2165 = vld [vmem:[%s3 + $0x400] sm:$0xf]
    %v2166 = vld [vmem:[%s3 + $0x404] sm:$0xf]
    %v2167 = vld [vmem:[%s3 + $0x408] sm:$0xf]
    %v2168 = vld [vmem:[%s3 + $0x40c] sm:$0xf]
    %v2169 = vld [vmem:[%s3 + $0x410] sm:$0xf]
    %v2170 = vld [vmem:[%s3 + $0x414] sm:$0xf]
    %v2171 = vld [vmem:[%s3 + $0x418] sm:$0xf]
    %v2172 = vld [vmem:[%s3 + $0x41c] sm:$0xf]
    %v2173 = vld [vmem:[%s3 + $0x420] sm:$0xf]
    %v2174 = vld [vmem:[%s3 + $0x424] sm:$0xf]
    %v2175 = vld [vmem:[%s3 + $0x428] sm:$0xf]
    %v2176 = vld [vmem:[%s3 + $0x42c] sm:$0xf]
    %v2177 = vld [vmem:[%s3 + $0x430] sm:$0xf]
    %v2178 = vld [vmem:[%s3 + $0x434] sm:$0xf]
    %v2179 = vld [vmem:[%s3 + $0x438] sm:$0xf]
    %v2180 = vld [vmem:[%s3 + $0x43c] sm:$0xf]
    %v2181 = vld [vmem:[%s3 + $0x440] sm:$0xf]
    %v2182 = vld [vmem:[%s3 + $0x444] sm:$0xf]
    %v2183 = vld [vmem:[%s3 + $0x448] sm:$0xf]
    %v2184 = vld [vmem:[%s3 + $0x44c] sm:$0xf]
    %v2185 = vld [vmem:[%s3 + $0x450] sm:$0xf]
    %v2186 = vld [vmem:[%s3 + $0x454] sm:$0xf]
    %v2187 = vld [vmem:[%s3 + $0x458] sm:$0xf]
    %v2188 = vld [vmem:[%s3 + $0x45c] sm:$0xf]
    %v2189 = vld [vmem:[%s3 + $0x460] sm:$0xf]
    %v2190 = vld [vmem:[%s3 + $0x464] sm:$0xf]
    %v2191 = vld [vmem:[%s3 + $0x468] sm:$0xf]
    %v2192 = vld [vmem:[%s3 + $0x46c] sm:$0xf]
    %v2193 = vld [vmem:[%s3 + $0x470] sm:$0xf]
    %v2194 = vld [vmem:[%s3 + $0x474] sm:$0xf]
    %v2195 = vld [vmem:[%s3 + $0x478] sm:$0xf]
    %v2196 = vld [vmem:[%s3 + $0x47c] sm:$0xf]
    %v2197 = vld [vmem:[%s3 + $0x480] sm:$0xf]
    %v2198 = vld [vmem:[%s3 + $0x484] sm:$0xf]
    %v2199 = vld [vmem:[%s3 + $0x488] sm:$0xf]
    %v2200 = vld [vmem:[%s3 + $0x48c] sm:$0xf]
    %v2201 = vld [vmem:[%s3 + $0x490] sm:$0xf]
    %v2202 = vld [vmem:[%s3 + $0x494] sm:$0xf]
    %v2203 = vld [vmem:[%s3 + $0x498] sm:$0xf]
    %v2204 = vld [vmem:[%s3 + $0x49c] sm:$0xf]
    %v2205 = vld [vmem:[%s3 + $0x4a0] sm:$0xf]
    %v2206 = vld [vmem:[%s3 + $0x4a4] sm:$0xf]
    %v2207 = vld [vmem:[%s3 + $0x4a8] sm:$0xf]
    %v2208 = vld [vmem:[%s3 + $0x4ac] sm:$0xf]
    %v2209 = vld [vmem:[%s3 + $0x4b0] sm:$0xf]
    %v2210 = vld [vmem:[%s3 + $0x4b4] sm:$0xf]
    %v2211 = vld [vmem:[%s3 + $0x4b8] sm:$0xf]
    %v2212 = vld [vmem:[%s3 + $0x4bc] sm:$0xf]
    %v2213 = vld [vmem:[%s3 + $0x4c0] sm:$0xf]
    %v2214 = vld [vmem:[%s3 + $0x4c4] sm:$0xf]
    %v2215 = vld [vmem:[%s3 + $0x4c8] sm:$0xf]
    %v2216 = vld [vmem:[%s3 + $0x4cc] sm:$0xf]
    %v2217 = vld [vmem:[%s3 + $0x4d0] sm:$0xf]
    %v2218 = vld [vmem:[%s3 + $0x4d4] sm:$0xf]
    %v2219 = vld [vmem:[%s3 + $0x4d8] sm:$0xf]
    %v2220 = vld [vmem:[%s3 + $0x4dc] sm:$0xf]
    %v2221 = vld [vmem:[%s3 + $0x4e0] sm:$0xf]
    %v2222 = vld [vmem:[%s3 + $0x4e4] sm:$0xf]
    %v2223 = vld [vmem:[%s3 + $0x4e8] sm:$0xf]
    %v2224 = vld [vmem:[%s3 + $0x4ec] sm:$0xf]
    %v2225 = vld [vmem:[%s3 + $0x4f0] sm:$0xf]
    %v2226 = vld [vmem:[%s3 + $0x4f4] sm:$0xf]
    %v2227 = vld [vmem:[%s3 + $0x4f8] sm:$0xf]
    %v2228 = vld [vmem:[%s3 + $0x4fc] sm:$0xf]
    %v2229 = vpack.c.bf16 %v1957, %v1957
    %v2230 = vpack.c.bf16 %v1958, %v1958
    %v2231 = vpack.c.bf16 %v1959, %v1959
    %v2232 = vpack.c.bf16 %v1960, %v1960
    %v2233 = vpack.c.bf16 %v1961, %v1961
    %v2234 = vpack.c.bf16 %v1962, %v1962
    %v2235 = vpack.c.bf16 %v1963, %v1963
    %v2236 = vpack.c.bf16 %v1964, %v1964
    %v2237 = vpack.c.bf16 %v1965, %v1965
    %v2238 = vpack.c.bf16 %v1966, %v1966
    %v2239 = vpack.c.bf16 %v1967, %v1967
    %v2240 = vpack.c.bf16 %v1968, %v1968
    %v2241 = vpack.c.bf16 %v1969, %v1969
    %v2242 = vpack.c.bf16 %v1970, %v1970
    %v2243 = vpack.c.bf16 %v1971, %v1971
    %v2244 = vpack.c.bf16 %v1972, %v1972
    %v2501 = vunpack.c.l.b16 %v1973
    %v2502 = vunpack.c.l.b16 %v1974
    %v2503 = vunpack.c.l.b16 %v1975
    %v2504 = vunpack.c.l.b16 %v1976
    %v2505 = vunpack.c.l.b16 %v1977
    %v2506 = vunpack.c.l.b16 %v1978
    %v2507 = vunpack.c.l.b16 %v1979
    %v2508 = vunpack.c.l.b16 %v1980
    %v2509 = vunpack.c.l.b16 %v1981
    %v2510 = vunpack.c.l.b16 %v1982
    %v2511 = vunpack.c.l.b16 %v1983
    %v2512 = vunpack.c.l.b16 %v1984
    %v2513 = vunpack.c.l.b16 %v1985
    %v2514 = vunpack.c.l.b16 %v1986
    %v2515 = vunpack.c.l.b16 %v1987
    %v2516 = vunpack.c.l.b16 %v1988
    %v2517 = vunpack.c.l.b16 %v1989
    %v2518 = vunpack.c.l.b16 %v1990
    %v2519 = vunpack.c.l.b16 %v1991
    %v2520 = vunpack.c.l.b16 %v1992
    %v2521 = vunpack.c.l.b16 %v1993
    %v2522 = vunpack.c.l.b16 %v1994
    %v2523 = vunpack.c.l.b16 %v1995
    %v2524 = vunpack.c.l.b16 %v1996
    %v2525 = vunpack.c.l.b16 %v1997
    %v2526 = vunpack.c.l.b16 %v1998
    %v2527 = vunpack.c.l.b16 %v1999
    %v2528 = vunpack.c.l.b16 %v2000
    %v2529 = vunpack.c.l.b16 %v2001
    %v2530 = vunpack.c.l.b16 %v2002
    %v2531 = vunpack.c.l.b16 %v2003
    %v2532 = vunpack.c.l.b16 %v2004
    %v2533 = vunpack.c.l.b16 %v2005
    %v2534 = vunpack.c.l.b16 %v2006
    %v2535 = vunpack.c.l.b16 %v2007
    %v2536 = vunpack.c.l.b16 %v2008
    %v2537 = vunpack.c.l.b16 %v2009
    %v2538 = vunpack.c.l.b16 %v2010
    %v2539 = vunpack.c.l.b16 %v2011
    %v2540 = vunpack.c.l.b16 %v2012
    %v2541 = vunpack.c.l.b16 %v2013
    %v2542 = vunpack.c.l.b16 %v2014
    %v2543 = vunpack.c.l.b16 %v2015
    %v2544 = vunpack.c.l.b16 %v2016
    %v2545 = vunpack.c.l.b16 %v2017
    %v2546 = vunpack.c.l.b16 %v2018
    %v2547 = vunpack.c.l.b16 %v2019
    %v2548 = vunpack.c.l.b16 %v2020
    %v2549 = vunpack.c.l.b16 %v2021
    %v2550 = vunpack.c.l.b16 %v2022
    %v2551 = vunpack.c.l.b16 %v2023
    %v2552 = vunpack.c.l.b16 %v2024
    %v2553 = vunpack.c.l.b16 %v2025
    %v2554 = vunpack.c.l.b16 %v2026
    %v2555 = vunpack.c.l.b16 %v2027
    %v2556 = vunpack.c.l.b16 %v2028
    %v2557 = vunpack.c.l.b16 %v2029
    %v2558 = vunpack.c.l.b16 %v2030
    %v2559 = vunpack.c.l.b16 %v2031
    %v2560 = vunpack.c.l.b16 %v2032
    %v2561 = vunpack.c.l.b16 %v2033
    %v2562 = vunpack.c.l.b16 %v2034
    %v2563 = vunpack.c.l.b16 %v2035
    %v2564 = vunpack.c.l.b16 %v2036
    %v2565 = vunpack.c.l.b16 %v2037
    %v2566 = vunpack.c.l.b16 %v2038
    %v2567 = vunpack.c.l.b16 %v2039
    %v2568 = vunpack.c.l.b16 %v2040
    %v2569 = vunpack.c.l.b16 %v2041
    %v2570 = vunpack.c.l.b16 %v2042
    %v2571 = vunpack.c.l.b16 %v2043
    %v2572 = vunpack.c.l.b16 %v2044
    %v2573 = vunpack.c.l.b16 %v2045
    %v2574 = vunpack.c.l.b16 %v2046
    %v2575 = vunpack.c.l.b16 %v2047
    %v2576 = vunpack.c.l.b16 %v2048
    %v2577 = vunpack.c.l.b16 %v2049
    %v2578 = vunpack.c.l.b16 %v2050
    %v2579 = vunpack.c.l.b16 %v2051
    %v2580 = vunpack.c.l.b16 %v2052
    %v2581 = vunpack.c.l.b16 %v2053
    %v2582 = vunpack.c.l.b16 %v2054
    %v2583 = vunpack.c.l.b16 %v2055
    %v2584 = vunpack.c.l.b16 %v2056
    %v2585 = vunpack.c.l.b16 %v2057
    %v2586 = vunpack.c.l.b16 %v2058
    %v2587 = vunpack.c.l.b16 %v2059
    %v2588 = vunpack.c.l.b16 %v2060
    %v2589 = vunpack.c.l.b16 %v2061
    %v2590 = vunpack.c.l.b16 %v2062
    %v2591 = vunpack.c.l.b16 %v2063
    %v2592 = vunpack.c.l.b16 %v2064
    %v2593 = vunpack.c.l.b16 %v2065
    %v2594 = vunpack.c.l.b16 %v2066
    %v2595 = vunpack.c.l.b16 %v2067
    %v2596 = vunpack.c.l.b16 %v2068
    %v2597 = vunpack.c.l.b16 %v2069
    %v2598 = vunpack.c.l.b16 %v2070
    %v2599 = vunpack.c.l.b16 %v2071
    %v2600 = vunpack.c.l.b16 %v2072
    %v2601 = vunpack.c.l.b16 %v2073
    %v2602 = vunpack.c.l.b16 %v2074
    %v2603 = vunpack.c.l.b16 %v2075
    %v2604 = vunpack.c.l.b16 %v2076
    %v2605 = vunpack.c.l.b16 %v2077
    %v2606 = vunpack.c.l.b16 %v2078
    %v2607 = vunpack.c.l.b16 %v2079
    %v2608 = vunpack.c.l.b16 %v2080
    %v2609 = vunpack.c.l.b16 %v2081
    %v2610 = vunpack.c.l.b16 %v2082
    %v2611 = vunpack.c.l.b16 %v2083
    %v2612 = vunpack.c.l.b16 %v2084
    %v2613 = vunpack.c.l.b16 %v2085
    %v2614 = vunpack.c.l.b16 %v2086
    %v2615 = vunpack.c.l.b16 %v2087
    %v2616 = vunpack.c.l.b16 %v2088
    %v2617 = vunpack.c.l.b16 %v2089
    %v2618 = vunpack.c.l.b16 %v2090
    %v2619 = vunpack.c.l.b16 %v2091
    %v2620 = vunpack.c.l.b16 %v2092
    %v2621 = vunpack.c.l.b16 %v2093
    %v2622 = vunpack.c.l.b16 %v2094
    %v2623 = vunpack.c.l.b16 %v2095
    %v2624 = vunpack.c.l.b16 %v2096
    %v2625 = vunpack.c.l.b16 %v2097
    %v2626 = vunpack.c.l.b16 %v2098
    %v2627 = vunpack.c.l.b16 %v2099
    %v2628 = vunpack.c.l.b16 %v2100
    %v2629 = vunpack.c.l.b16 %v2101
    %v2630 = vunpack.c.l.b16 %v2102
    %v2631 = vunpack.c.l.b16 %v2103
    %v2632 = vunpack.c.l.b16 %v2104
    %v2633 = vunpack.c.l.b16 %v2105
    %v2634 = vunpack.c.l.b16 %v2106
    %v2635 = vunpack.c.l.b16 %v2107
    %v2636 = vunpack.c.l.b16 %v2108
    %v2637 = vunpack.c.l.b16 %v2109
    %v2638 = vunpack.c.l.b16 %v2110
    %v2639 = vunpack.c.l.b16 %v2111
    %v2640 = vunpack.c.l.b16 %v2112
    %v2641 = vunpack.c.l.b16 %v2113
    %v2642 = vunpack.c.l.b16 %v2114
    %v2643 = vunpack.c.l.b16 %v2115
    %v2644 = vunpack.c.l.b16 %v2116
    %v2645 = vunpack.c.l.b16 %v2117
    %v2646 = vunpack.c.l.b16 %v2118
    %v2647 = vunpack.c.l.b16 %v2119
    %v2648 = vunpack.c.l.b16 %v2120
    %v2649 = vunpack.c.l.b16 %v2121
    %v2650 = vunpack.c.l.b16 %v2122
    %v2651 = vunpack.c.l.b16 %v2123
    %v2652 = vunpack.c.l.b16 %v2124
    %v2653 = vunpack.c.l.b16 %v2125
    %v2654 = vunpack.c.l.b16 %v2126
    %v2655 = vunpack.c.l.b16 %v2127
    %v2656 = vunpack.c.l.b16 %v2128
    %v2657 = vunpack.c.l.b16 %v2129
    %v2658 = vunpack.c.l.b16 %v2130
    %v2659 = vunpack.c.l.b16 %v2131
    %v2660 = vunpack.c.l.b16 %v2132
    %v2661 = vunpack.c.l.b16 %v2133
    %v2662 = vunpack.c.l.b16 %v2134
    %v2663 = vunpack.c.l.b16 %v2135
    %v2664 = vunpack.c.l.b16 %v2136
    %v2665 = vunpack.c.l.b16 %v2137
    %v2666 = vunpack.c.l.b16 %v2138
    %v2667 = vunpack.c.l.b16 %v2139
    %v2668 = vunpack.c.l.b16 %v2140
    %v2669 = vunpack.c.l.b16 %v2141
    %v2670 = vunpack.c.l.b16 %v2142
    %v2671 = vunpack.c.l.b16 %v2143
    %v2672 = vunpack.c.l.b16 %v2144
    %v2673 = vunpack.c.l.b16 %v2145
    %v2674 = vunpack.c.l.b16 %v2146
    %v2675 = vunpack.c.l.b16 %v2147
    %v2676 = vunpack.c.l.b16 %v2148
    %v2677 = vunpack.c.l.b16 %v2149
    %v2678 = vunpack.c.l.b16 %v2150
    %v2679 = vunpack.c.l.b16 %v2151
    %v2680 = vunpack.c.l.b16 %v2152
    %v2681 = vunpack.c.l.b16 %v2153
    %v2682 = vunpack.c.l.b16 %v2154
    %v2683 = vunpack.c.l.b16 %v2155
    %v2684 = vunpack.c.l.b16 %v2156
    %v2685 = vunpack.c.l.b16 %v2157
    %v2686 = vunpack.c.l.b16 %v2158
    %v2687 = vunpack.c.l.b16 %v2159
    %v2688 = vunpack.c.l.b16 %v2160
    %v2689 = vunpack.c.l.b16 %v2161
    %v2690 = vunpack.c.l.b16 %v2162
    %v2691 = vunpack.c.l.b16 %v2163
    %v2692 = vunpack.c.l.b16 %v2164
    %v2693 = vunpack.c.l.b16 %v2165
    %v2694 = vunpack.c.l.b16 %v2166
    %v2695 = vunpack.c.l.b16 %v2167
    %v2696 = vunpack.c.l.b16 %v2168
    %v2697 = vunpack.c.l.b16 %v2169
    %v2698 = vunpack.c.l.b16 %v2170
    %v2699 = vunpack.c.l.b16 %v2171
    %v2700 = vunpack.c.l.b16 %v2172
    %v2701 = vunpack.c.l.b16 %v2173
    %v2702 = vunpack.c.l.b16 %v2174
    %v2703 = vunpack.c.l.b16 %v2175
    %v2704 = vunpack.c.l.b16 %v2176
    %v2705 = vunpack.c.l.b16 %v2177
    %v2706 = vunpack.c.l.b16 %v2178
    %v2707 = vunpack.c.l.b16 %v2179
    %v2708 = vunpack.c.l.b16 %v2180
    %v2709 = vunpack.c.l.b16 %v2181
    %v2710 = vunpack.c.l.b16 %v2182
    %v2711 = vunpack.c.l.b16 %v2183
    %v2712 = vunpack.c.l.b16 %v2184
    %v2713 = vunpack.c.l.b16 %v2185
    %v2714 = vunpack.c.l.b16 %v2186
    %v2715 = vunpack.c.l.b16 %v2187
    %v2716 = vunpack.c.l.b16 %v2188
    %v2717 = vunpack.c.l.b16 %v2189
    %v2718 = vunpack.c.l.b16 %v2190
    %v2719 = vunpack.c.l.b16 %v2191
    %v2720 = vunpack.c.l.b16 %v2192
    %v2721 = vunpack.c.l.b16 %v2193
    %v2722 = vunpack.c.l.b16 %v2194
    %v2723 = vunpack.c.l.b16 %v2195
    %v2724 = vunpack.c.l.b16 %v2196
    %v2725 = vunpack.c.l.b16 %v2197
    %v2726 = vunpack.c.l.b16 %v2198
    %v2727 = vunpack.c.l.b16 %v2199
    %v2728 = vunpack.c.l.b16 %v2200
    %v2729 = vunpack.c.l.b16 %v2201
    %v2730 = vunpack.c.l.b16 %v2202
    %v2731 = vunpack.c.l.b16 %v2203
    %v2732 = vunpack.c.l.b16 %v2204
    %v2733 = vunpack.c.l.b16 %v2205
    %v2734 = vunpack.c.l.b16 %v2206
    %v2735 = vunpack.c.l.b16 %v2207
    %v2736 = vunpack.c.l.b16 %v2208
    %v2737 = vunpack.c.l.b16 %v2209
    %v2738 = vunpack.c.l.b16 %v2210
    %v2739 = vunpack.c.l.b16 %v2211
    %v2740 = vunpack.c.l.b16 %v2212
    %v2741 = vunpack.c.l.b16 %v2213
    %v2742 = vunpack.c.l.b16 %v2214
    %v2743 = vunpack.c.l.b16 %v2215
    %v2744 = vunpack.c.l.b16 %v2216
    %v2745 = vunpack.c.l.b16 %v2217
    %v2746 = vunpack.c.l.b16 %v2218
    %v2747 = vunpack.c.l.b16 %v2219
    %v2748 = vunpack.c.l.b16 %v2220
    %v2749 = vunpack.c.l.b16 %v2221
    %v2750 = vunpack.c.l.b16 %v2222
    %v2751 = vunpack.c.l.b16 %v2223
    %v2752 = vunpack.c.l.b16 %v2224
    %v2753 = vunpack.c.l.b16 %v2225
    %v2754 = vunpack.c.l.b16 %v2226
    %v2755 = vunpack.c.l.b16 %v2227
    %v2756 = vunpack.c.l.b16 %v2228
    %v2757 = vpack.c.b16 %v2502, %v2501
    %v2758 = vpack.c.b16 %v2504, %v2503
    %v2759 = vpack.c.b16 %v2506, %v2505
    %v2760 = vpack.c.b16 %v2508, %v2507
    %v2761 = vpack.c.b16 %v2510, %v2509
    %v2762 = vpack.c.b16 %v2512, %v2511
    %v2763 = vpack.c.b16 %v2514, %v2513
    %v2764 = vpack.c.b16 %v2516, %v2515
    %v2765 = vpack.c.b16 %v2518, %v2517
    %v2766 = vpack.c.b16 %v2520, %v2519
    %v2767 = vpack.c.b16 %v2522, %v2521
    %v2768 = vpack.c.b16 %v2524, %v2523
    %v2769 = vpack.c.b16 %v2526, %v2525
    %v2770 = vpack.c.b16 %v2528, %v2527
    %v2771 = vpack.c.b16 %v2530, %v2529
    %v2772 = vpack.c.b16 %v2532, %v2531
    %v2773 = vpack.c.b16 %v2534, %v2533
    %v2774 = vpack.c.b16 %v2536, %v2535
    %v2775 = vpack.c.b16 %v2538, %v2537
    %v2776 = vpack.c.b16 %v2540, %v2539
    %v2777 = vpack.c.b16 %v2542, %v2541
    %v2778 = vpack.c.b16 %v2544, %v2543
    %v2779 = vpack.c.b16 %v2546, %v2545
    %v2780 = vpack.c.b16 %v2548, %v2547
    %v2781 = vpack.c.b16 %v2550, %v2549
    %v2782 = vpack.c.b16 %v2552, %v2551
    %v2783 = vpack.c.b16 %v2554, %v2553
    %v2784 = vpack.c.b16 %v2556, %v2555
    %v2785 = vpack.c.b16 %v2558, %v2557
    %v2786 = vpack.c.b16 %v2560, %v2559
    %v2787 = vpack.c.b16 %v2562, %v2561
    %v2788 = vpack.c.b16 %v2564, %v2563
    %v2789 = vpack.c.b16 %v2566, %v2565
    %v2790 = vpack.c.b16 %v2568, %v2567
    %v2791 = vpack.c.b16 %v2570, %v2569
    %v2792 = vpack.c.b16 %v2572, %v2571
    %v2793 = vpack.c.b16 %v2574, %v2573
    %v2794 = vpack.c.b16 %v2576, %v2575
    %v2795 = vpack.c.b16 %v2578, %v2577
    %v2796 = vpack.c.b16 %v2580, %v2579
    %v2797 = vpack.c.b16 %v2582, %v2581
    %v2798 = vpack.c.b16 %v2584, %v2583
    %v2799 = vpack.c.b16 %v2586, %v2585
    %v2800 = vpack.c.b16 %v2588, %v2587
    %v2801 = vpack.c.b16 %v2590, %v2589
    %v2802 = vpack.c.b16 %v2592, %v2591
    %v2803 = vpack.c.b16 %v2594, %v2593
    %v2804 = vpack.c.b16 %v2596, %v2595
    %v2805 = vpack.c.b16 %v2598, %v2597
    %v2806 = vpack.c.b16 %v2600, %v2599
    %v2807 = vpack.c.b16 %v2602, %v2601
    %v2808 = vpack.c.b16 %v2604, %v2603
    %v2809 = vpack.c.b16 %v2606, %v2605
    %v2810 = vpack.c.b16 %v2608, %v2607
    %v2811 = vpack.c.b16 %v2610, %v2609
    %v2812 = vpack.c.b16 %v2612, %v2611
    %v2813 = vpack.c.b16 %v2614, %v2613
    %v2814 = vpack.c.b16 %v2616, %v2615
    %v2815 = vpack.c.b16 %v2618, %v2617
    %v2816 = vpack.c.b16 %v2620, %v2619
    %v2817 = vpack.c.b16 %v2622, %v2621
    %v2818 = vpack.c.b16 %v2624, %v2623
    %v2819 = vpack.c.b16 %v2626, %v2625
    %v2820 = vpack.c.b16 %v2628, %v2627
    %v2821 = vpack.c.b16 %v2630, %v2629
    %v2822 = vpack.c.b16 %v2632, %v2631
    %v2823 = vpack.c.b16 %v2634, %v2633
    %v2824 = vpack.c.b16 %v2636, %v2635
    %v2825 = vpack.c.b16 %v2638, %v2637
    %v2826 = vpack.c.b16 %v2640, %v2639
    %v2827 = vpack.c.b16 %v2642, %v2641
    %v2828 = vpack.c.b16 %v2644, %v2643
    %v2829 = vpack.c.b16 %v2646, %v2645
    %v2830 = vpack.c.b16 %v2648, %v2647
    %v2831 = vpack.c.b16 %v2650, %v2649
    %v2832 = vpack.c.b16 %v2652, %v2651
    %v2833 = vpack.c.b16 %v2654, %v2653
    %v2834 = vpack.c.b16 %v2656, %v2655
    %v2835 = vpack.c.b16 %v2658, %v2657
    %v2836 = vpack.c.b16 %v2660, %v2659
    %v2837 = vpack.c.b16 %v2662, %v2661
    %v2838 = vpack.c.b16 %v2664, %v2663
    %v2839 = vpack.c.b16 %v2666, %v2665
    %v2840 = vpack.c.b16 %v2668, %v2667
    %v2841 = vpack.c.b16 %v2670, %v2669
    %v2842 = vpack.c.b16 %v2672, %v2671
    %v2843 = vpack.c.b16 %v2674, %v2673
    %v2844 = vpack.c.b16 %v2676, %v2675
    %v2845 = vpack.c.b16 %v2678, %v2677
    %v2846 = vpack.c.b16 %v2680, %v2679
    %v2847 = vpack.c.b16 %v2682, %v2681
    %v2848 = vpack.c.b16 %v2684, %v2683
    %v2849 = vpack.c.b16 %v2686, %v2685
    %v2850 = vpack.c.b16 %v2688, %v2687
    %v2851 = vpack.c.b16 %v2690, %v2689
    %v2852 = vpack.c.b16 %v2692, %v2691
    %v2853 = vpack.c.b16 %v2694, %v2693
    %v2854 = vpack.c.b16 %v2696, %v2695
    %v2855 = vpack.c.b16 %v2698, %v2697
    %v2856 = vpack.c.b16 %v2700, %v2699
    %v2857 = vpack.c.b16 %v2702, %v2701
    %v2858 = vpack.c.b16 %v2704, %v2703
    %v2859 = vpack.c.b16 %v2706, %v2705
    %v2860 = vpack.c.b16 %v2708, %v2707
    %v2861 = vpack.c.b16 %v2710, %v2709
    %v2862 = vpack.c.b16 %v2712, %v2711
    %v2863 = vpack.c.b16 %v2714, %v2713
    %v2864 = vpack.c.b16 %v2716, %v2715
    %v2865 = vpack.c.b16 %v2718, %v2717
    %v2866 = vpack.c.b16 %v2720, %v2719
    %v2867 = vpack.c.b16 %v2722, %v2721
    %v2868 = vpack.c.b16 %v2724, %v2723
    %v2869 = vpack.c.b16 %v2726, %v2725
    %v2870 = vpack.c.b16 %v2728, %v2727
    %v2871 = vpack.c.b16 %v2730, %v2729
    %v2872 = vpack.c.b16 %v2732, %v2731
    %v2873 = vpack.c.b16 %v2734, %v2733
    %v2874 = vpack.c.b16 %v2736, %v2735
    %v2875 = vpack.c.b16 %v2738, %v2737
    %v2876 = vpack.c.b16 %v2740, %v2739
    %v2877 = vpack.c.b16 %v2742, %v2741
    %v2878 = vpack.c.b16 %v2744, %v2743
    %v2879 = vpack.c.b16 %v2746, %v2745
    %v2880 = vpack.c.b16 %v2748, %v2747
    %v2881 = vpack.c.b16 %v2750, %v2749
    %v2882 = vpack.c.b16 %v2752, %v2751
    %v2883 = vpack.c.b16 %v2754, %v2753
    %v2884 = vpack.c.b16 %v2756, %v2755
    %3013 = vmatprep.subr.bf16.mxu0 0
    %3014 = vmatpush1.bf16.msra.mxu0 %v2757
    %3015 = vmatprep.subr.bf16.mxu0 0
    %3016 = vmatpush1.bf16.msra.mxu0 %v2758
    %3017 = vmatprep.subr.bf16.mxu0 0
    %3018 = vmatpush1.bf16.msra.mxu0 %v2759
    %3019 = vmatprep.subr.bf16.mxu0 0
    %3020 = vmatpush1.bf16.msra.mxu0 %v2760
    %3021 = vmatprep.subr.bf16.mxu0 0
    %3022 = vmatpush1.bf16.msra.mxu0 %v2761
    %3023 = vmatprep.subr.bf16.mxu0 0
    %3024 = vmatpush1.bf16.msra.mxu0 %v2762
    %3025 = vmatprep.subr.bf16.mxu0 0
    %3026 = vmatpush1.bf16.msra.mxu0 %v2763
    %3027 = vmatprep.subr.bf16.mxu0 0
    %3028 = vmatpush1.bf16.msra.mxu0 %v2764
    %3029 = vmatprep.subr.bf16.mxu0 0
    %3030 = vmatpush1.bf16.msra.mxu0 %v2765
    %3031 = vmatprep.subr.bf16.mxu0 0
    %3032 = vmatpush1.bf16.msra.mxu0 %v2766
    %3033 = vmatprep.subr.bf16.mxu0 0
    %3034 = vmatpush1.bf16.msra.mxu0 %v2767
    %3035 = vmatprep.subr.bf16.mxu0 0
    %3036 = vmatpush1.bf16.msra.mxu0 %v2768
    %3037 = vmatprep.subr.bf16.mxu0 0
    %3038 = vmatpush1.bf16.msra.mxu0 %v2769
    %3039 = vmatprep.subr.bf16.mxu0 0
    %3040 = vmatpush1.bf16.msra.mxu0 %v2770
    %3041 = vmatprep.subr.bf16.mxu0 0
    %3042 = vmatpush1.bf16.msra.mxu0 %v2771
    %3043 = vmatprep.subr.bf16.mxu0 0
    %3044 = vmatpush1.bf16.msra.mxu0 %v2772
    %3045 = vmatprep.mubr.bf16.mxu0 %v2230
    %3046 = vmatmul.mubr.bf16.gmra.mrb[0].mxu0 %v2229
    %v3047 = vpop.f32.mrb[0].mxu0
    %v3048 = vadd.f32 %v586, %v3047
    %v3049 = vpop.f32.mrb[0].mxu0
    %v3050 = vpop.f32.mrb[0].mxu0
    %v3051 = vpop.f32.mrb[0].mxu0
    %3052 = vdwg.mxu0
    %3053 = vmatprep.subr.bf16.mxu0 0
    %3054 = vmatpush1.bf16.msra.mxu0 %v2773
    %3055 = vmatprep.subr.bf16.mxu0 0
    %3056 = vmatpush1.bf16.msra.mxu0 %v2774
    %3057 = vmatprep.subr.bf16.mxu0 0
    %3058 = vmatpush1.bf16.msra.mxu0 %v2775
    %3059 = vmatprep.subr.bf16.mxu0 0
    %3060 = vmatpush1.bf16.msra.mxu0 %v2776
    %3061 = vmatprep.subr.bf16.mxu0 0
    %3062 = vmatpush1.bf16.msra.mxu0 %v2777
    %3063 = vmatprep.subr.bf16.mxu0 0
    %3064 = vmatpush1.bf16.msra.mxu0 %v2778
    %3065 = vmatprep.subr.bf16.mxu0 0
    %3066 = vmatpush1.bf16.msra.mxu0 %v2779
    %3067 = vmatprep.subr.bf16.mxu0 0
    %3068 = vmatpush1.bf16.msra.mxu0 %v2780
    %3069 = vmatprep.subr.bf16.mxu0 0
    %3070 = vmatpush1.bf16.msra.mxu0 %v2781
    %3071 = vmatprep.subr.bf16.mxu0 0
    %3072 = vmatpush1.bf16.msra.mxu0 %v2782
    %3073 = vmatprep.subr.bf16.mxu0 0
    %3074 = vmatpush1.bf16.msra.mxu0 %v2783
    %3075 = vmatprep.subr.bf16.mxu0 0
    %3076 = vmatpush1.bf16.msra.mxu0 %v2784
    %3077 = vmatprep.subr.bf16.mxu0 0
    %3078 = vmatpush1.bf16.msra.mxu0 %v2785
    %3079 = vmatprep.subr.bf16.mxu0 0
    %3080 = vmatpush1.bf16.msra.mxu0 %v2786
    %3081 = vmatprep.subr.bf16.mxu0 0
    %3082 = vmatpush1.bf16.msra.mxu0 %v2787
    %3083 = vmatprep.subr.bf16.mxu0 0
    %3084 = vmatpush1.bf16.msra.mxu0 %v2788
    %3085 = vmatprep.mubr.bf16.mxu0 %v2232
    %3086 = vmatmul.mubr.bf16.gmra.mrb[0].mxu0 %v2231
    %v3087 = vpop.f32.mrb[0].mxu0
    %v3088 = vadd.f32 %v3048, %v3087
    %v3089 = vpop.f32.mrb[0].mxu0
    %v3090 = vpop.f32.mrb[0].mxu0
    %v3091 = vpop.f32.mrb[0].mxu0
    %3092 = vdwg.mxu0
    %3093 = vmatprep.subr.bf16.mxu0 0
    %3094 = vmatpush1.bf16.msra.mxu0 %v2789
    %3095 = vmatprep.subr.bf16.mxu0 0
    %3096 = vmatpush1.bf16.msra.mxu0 %v2790
    %3097 = vmatprep.subr.bf16.mxu0 0
    %3098 = vmatpush1.bf16.msra.mxu0 %v2791
    %3099 = vmatprep.subr.bf16.mxu0 0
    %3100 = vmatpush1.bf16.msra.mxu0 %v2792
    %3101 = vmatprep.subr.bf16.mxu0 0
    %3102 = vmatpush1.bf16.msra.mxu0 %v2793
    %3103 = vmatprep.subr.bf16.mxu0 0
    %3104 = vmatpush1.bf16.msra.mxu0 %v2794
    %3105 = vmatprep.subr.bf16.mxu0 0
    %3106 = vmatpush1.bf16.msra.mxu0 %v2795
    %3107 = vmatprep.subr.bf16.mxu0 0
    %3108 = vmatpush1.bf16.msra.mxu0 %v2796
    %3109 = vmatprep.subr.bf16.mxu0 0
    %3110 = vmatpush1.bf16.msra.mxu0 %v2797
    %3111 = vmatprep.subr.bf16.mxu0 0
    %3112 = vmatpush1.bf16.msra.mxu0 %v2798
    %3113 = vmatprep.subr.bf16.mxu0 0
    %3114 = vmatpush1.bf16.msra.mxu0 %v2799
    %3115 = vmatprep.subr.bf16.mxu0 0
    %3116 = vmatpush1.bf16.msra.mxu0 %v2800
    %3117 = vmatprep.subr.bf16.mxu0 0
    %3118 = vmatpush1.bf16.msra.mxu0 %v2801
    %3119 = vmatprep.subr.bf16.mxu0 0
    %3120 = vmatpush1.bf16.msra.mxu0 %v2802
    %3121 = vmatprep.subr.bf16.mxu0 0
    %3122 = vmatpush1.bf16.msra.mxu0 %v2803
    %3123 = vmatprep.subr.bf16.mxu0 0
    %3124 = vmatpush1.bf16.msra.mxu0 %v2804
    %3125 = vmatprep.mubr.bf16.mxu0 %v2234
    %3126 = vmatmul.mubr.bf16.gmra.mrb[0].mxu0 %v2233
    %v3127 = vpop.f32.mrb[0].mxu0
    %v3128 = vadd.f32 %v3088, %v3127
    %v3129 = vpop.f32.mrb[0].mxu0
    %v3130 = vpop.f32.mrb[0].mxu0
    %v3131 = vpop.f32.mrb[0].mxu0
    %3132 = vdwg.mxu0
    %3133 = vmatprep.subr.bf16.mxu0 0
    %3134 = vmatpush1.bf16.msra.mxu0 %v2805
    %3135 = vmatprep.subr.bf16.mxu0 0
    %3136 = vmatpush1.bf16.msra.mxu0 %v2806
    %3137 = vmatprep.subr.bf16.mxu0 0
    %3138 = vmatpush1.bf16.msra.mxu0 %v2807
    %3139 = vmatprep.subr.bf16.mxu0 0
    %3140 = vmatpush1.bf16.msra.mxu0 %v2808
    %3141 = vmatprep.subr.bf16.mxu0 0
    %3142 = vmatpush1.bf16.msra.mxu0 %v2809
    %3143 = vmatprep.subr.bf16.mxu0 0
    %3144 = vmatpush1.bf16.msra.mxu0 %v2810
    %3145 = vmatprep.subr.bf16.mxu0 0
    %3146 = vmatpush1.bf16.msra.mxu0 %v2811
    %3147 = vmatprep.subr.bf16.mxu0 0
    %3148 = vmatpush1.bf16.msra.mxu0 %v2812
    %3149 = vmatprep.subr.bf16.mxu0 0
    %3150 = vmatpush1.bf16.msra.mxu0 %v2813
    %3151 = vmatprep.subr.bf16.mxu0 0
    %3152 = vmatpush1.bf16.msra.mxu0 %v2814
    %3153 = vmatprep.subr.bf16.mxu0 0
    %3154 = vmatpush1.bf16.msra.mxu0 %v2815
    %3155 = vmatprep.subr.bf16.mxu0 0
    %3156 = vmatpush1.bf16.msra.mxu0 %v2816
    %3157 = vmatprep.subr.bf16.mxu0 0
    %3158 = vmatpush1.bf16.msra.mxu0 %v2817
    %3159 = vmatprep.subr.bf16.mxu0 0
    %3160 = vmatpush1.bf16.msra.mxu0 %v2818
    %3161 = vmatprep.subr.bf16.mxu0 0
    %3162 = vmatpush1.bf16.msra.mxu0 %v2819
    %3163 = vmatprep.subr.bf16.mxu0 0
    %3164 = vmatpush1.bf16.msra.mxu0 %v2820
    %3165 = vmatprep.mubr.bf16.mxu0 %v2236
    %3166 = vmatmul.mubr.bf16.gmra.mrb[0].mxu0 %v2235
    %v3167 = vpop.f32.mrb[0].mxu0
    %v3168 = vadd.f32 %v3128, %v3167
    %v3169 = vpop.f32.mrb[0].mxu0
    %v3170 = vpop.f32.mrb[0].mxu0
    %v3171 = vpop.f32.mrb[0].mxu0
    %3172 = vdwg.mxu0
    %3173 = vmatprep.subr.bf16.mxu0 0
    %3174 = vmatpush1.bf16.msra.mxu0 %v2821
    %3175 = vmatprep.subr.bf16.mxu0 0
    %3176 = vmatpush1.bf16.msra.mxu0 %v2822
    %3177 = vmatprep.subr.bf16.mxu0 0
    %3178 = vmatpush1.bf16.msra.mxu0 %v2823
    %3179 = vmatprep.subr.bf16.mxu0 0
    %3180 = vmatpush1.bf16.msra.mxu0 %v2824
    %3181 = vmatprep.subr.bf16.mxu0 0
    %3182 = vmatpush1.bf16.msra.mxu0 %v2825
    %3183 = vmatprep.subr.bf16.mxu0 0
    %3184 = vmatpush1.bf16.msra.mxu0 %v2826
    %3185 = vmatprep.subr.bf16.mxu0 0
    %3186 = vmatpush1.bf16.msra.mxu0 %v2827
    %3187 = vmatprep.subr.bf16.mxu0 0
    %3188 = vmatpush1.bf16.msra.mxu0 %v2828
    %3189 = vmatprep.subr.bf16.mxu0 0
    %3190 = vmatpush1.bf16.msra.mxu0 %v2829
    %3191 = vmatprep.subr.bf16.mxu0 0
    %3192 = vmatpush1.bf16.msra.mxu0 %v2830
    %3193 = vmatprep.subr.bf16.mxu0 0
    %3194 = vmatpush1.bf16.msra.mxu0 %v2831
    %3195 = vmatprep.subr.bf16.mxu0 0
    %3196 = vmatpush1.bf16.msra.mxu0 %v2832
    %3197 = vmatprep.subr.bf16.mxu0 0
    %3198 = vmatpush1.bf16.msra.mxu0 %v2833
    %3199 = vmatprep.subr.bf16.mxu0 0
    %3200 = vmatpush1.bf16.msra.mxu0 %v2834
    %3201 = vmatprep.subr.bf16.mxu0 0
    %3202 = vmatpush1.bf16.msra.mxu0 %v2835
    %3203 = vmatprep.subr.bf16.mxu0 0
    %3204 = vmatpush1.bf16.msra.mxu0 %v2836
    %3205 = vmatprep.mubr.bf16.mxu0 %v2238
    %3206 = vmatmul.mubr.bf16.gmra.mrb[0].mxu0 %v2237
    %v3207 = vpop.f32.mrb[0].mxu0
    %v3208 = vadd.f32 %v3168, %v3207
    %v3209 = vpop.f32.mrb[0].mxu0
    %v3210 = vpop.f32.mrb[0].mxu0
    %v3211 = vpop.f32.mrb[0].mxu0
    %3212 = vdwg.mxu0
    %3213 = vmatprep.subr.bf16.mxu0 0
    %3214 = vmatpush1.bf16.msra.mxu0 %v2837
    %3215 = vmatprep.subr.bf16.mxu0 0
    %3216 = vmatpush1.bf16.msra.mxu0 %v2838
    %3217 = vmatprep.subr.bf16.mxu0 0
    %3218 = vmatpush1.bf16.msra.mxu0 %v2839
    %3219 = vmatprep.subr.bf16.mxu0 0
    %3220 = vmatpush1.bf16.msra.mxu0 %v2840
    %3221 = vmatprep.subr.bf16.mxu0 0
    %3222 = vmatpush1.bf16.msra.mxu0 %v2841
    %3223 = vmatprep.subr.bf16.mxu0 0
    %3224 = vmatpush1.bf16.msra.mxu0 %v2842
    %3225 = vmatprep.subr.bf16.mxu0 0
    %3226 = vmatpush1.bf16.msra.mxu0 %v2843
    %3227 = vmatprep.subr.bf16.mxu0 0
    %3228 = vmatpush1.bf16.msra.mxu0 %v2844
    %3229 = vmatprep.subr.bf16.mxu0 0
    %3230 = vmatpush1.bf16.msra.mxu0 %v2845
    %3231 = vmatprep.subr.bf16.mxu0 0
    %3232 = vmatpush1.bf16.msra.mxu0 %v2846
    %3233 = vmatprep.subr.bf16.mxu0 0
    %3234 = vmatpush1.bf16.msra.mxu0 %v2847
    %3235 = vmatprep.subr.bf16.mxu0 0
    %3236 = vmatpush1.bf16.msra.mxu0 %v2848
    %3237 = vmatprep.subr.bf16.mxu0 0
    %3238 = vmatpush1.bf16.msra.mxu0 %v2849
    %3239 = vmatprep.subr.bf16.mxu0 0
    %3240 = vmatpush1.bf16.msra.mxu0 %v2850
    %3241 = vmatprep.subr.bf16.mxu0 0
    %3242 = vmatpush1.bf16.msra.mxu0 %v2851
    %3243 = vmatprep.subr.bf16.mxu0 0
    %3244 = vmatpush1.bf16.msra.mxu0 %v2852
    %3245 = vmatprep.mubr.bf16.mxu0 %v2240
    %3246 = vmatmul.mubr.bf16.gmra.mrb[0].mxu0 %v2239
    %v3247 = vpop.f32.mrb[0].mxu0
    %v3248 = vadd.f32 %v3208, %v3247
    %v3249 = vpop.f32.mrb[0].mxu0
    %v3250 = vpop.f32.mrb[0].mxu0
    %v3251 = vpop.f32.mrb[0].mxu0
    %3252 = vdwg.mxu0
    %3253 = vmatprep.subr.bf16.mxu0 0
    %3254 = vmatpush1.bf16.msra.mxu0 %v2853
    %3255 = vmatprep.subr.bf16.mxu0 0
    %3256 = vmatpush1.bf16.msra.mxu0 %v2854
    %3257 = vmatprep.subr.bf16.mxu0 0
    %3258 = vmatpush1.bf16.msra.mxu0 %v2855
    %3259 = vmatprep.subr.bf16.mxu0 0
    %3260 = vmatpush1.bf16.msra.mxu0 %v2856
    %3261 = vmatprep.subr.bf16.mxu0 0
    %3262 = vmatpush1.bf16.msra.mxu0 %v2857
    %3263 = vmatprep.subr.bf16.mxu0 0
    %3264 = vmatpush1.bf16.msra.mxu0 %v2858
    %3265 = vmatprep.subr.bf16.mxu0 0
    %3266 = vmatpush1.bf16.msra.mxu0 %v2859
    %3267 = vmatprep.subr.bf16.mxu0 0
    %3268 = vmatpush1.bf16.msra.mxu0 %v2860
    %3269 = vmatprep.subr.bf16.mxu0 0
    %3270 = vmatpush1.bf16.msra.mxu0 %v2861
    %3271 = vmatprep.subr.bf16.mxu0 0
    %3272 = vmatpush1.bf16.msra.mxu0 %v2862
    %3273 = vmatprep.subr.bf16.mxu0 0
    %3274 = vmatpush1.bf16.msra.mxu0 %v2863
    %3275 = vmatprep.subr.bf16.mxu0 0
    %3276 = vmatpush1.bf16.msra.mxu0 %v2864
    %3277 = vmatprep.subr.bf16.mxu0 0
    %3278 = vmatpush1.bf16.msra.mxu0 %v2865
    %3279 = vmatprep.subr.bf16.mxu0 0
    %3280 = vmatpush1.bf16.msra.mxu0 %v2866
    %3281 = vmatprep.subr.bf16.mxu0 0
    %3282 = vmatpush1.bf16.msra.mxu0 %v2867
    %3283 = vmatprep.subr.bf16.mxu0 0
    %3284 = vmatpush1.bf16.msra.mxu0 %v2868
    %3285 = vmatprep.mubr.bf16.mxu0 %v2242
    %3286 = vmatmul.mubr.bf16.gmra.mrb[0].mxu0 %v2241
    %v3287 = vpop.f32.mrb[0].mxu0
    %v3288 = vadd.f32 %v3248, %v3287
    %v3289 = vpop.f32.mrb[0].mxu0
    %v3290 = vpop.f32.mrb[0].mxu0
    %v3291 = vpop.f32.mrb[0].mxu0
    %3292 = vdwg.mxu0
    %3293 = vmatprep.subr.bf16.mxu0 0
    %3294 = vmatpush1.bf16.msra.mxu0 %v2869
    %3295 = vmatprep.subr.bf16.mxu0 0
    %3296 = vmatpush1.bf16.msra.mxu0 %v2870
    %3297 = vmatprep.subr.bf16.mxu0 0
    %3298 = vmatpush1.bf16.msra.mxu0 %v2871
    %3299 = vmatprep.subr.bf16.mxu0 0
    %3300 = vmatpush1.bf16.msra.mxu0 %v2872
    %3301 = vmatprep.subr.bf16.mxu0 0
    %3302 = vmatpush1.bf16.msra.mxu0 %v2873
    %3303 = vmatprep.subr.bf16.mxu0 0
    %3304 = vmatpush1.bf16.msra.mxu0 %v2874
    %3305 = vmatprep.subr.bf16.mxu0 0
    %3306 = vmatpush1.bf16.msra.mxu0 %v2875
    %3307 = vmatprep.subr.bf16.mxu0 0
    %3308 = vmatpush1.bf16.msra.mxu0 %v2876
    %3309 = vmatprep.subr.bf16.mxu0 0
    %3310 = vmatpush1.bf16.msra.mxu0 %v2877
    %3311 = vmatprep.subr.bf16.mxu0 0
    %3312 = vmatpush1.bf16.msra.mxu0 %v2878
    %3313 = vmatprep.subr.bf16.mxu0 0
    %3314 = vmatpush1.bf16.msra.mxu0 %v2879
    %3315 = vmatprep.subr.bf16.mxu0 0
    %3316 = vmatpush1.bf16.msra.mxu0 %v2880
    %3317 = vmatprep.subr.bf16.mxu0 0
    %3318 = vmatpush1.bf16.msra.mxu0 %v2881
    %3319 = vmatprep.subr.bf16.mxu0 0
    %3320 = vmatpush1.bf16.msra.mxu0 %v2882
    %3321 = vmatprep.subr.bf16.mxu0 0
    %3322 = vmatpush1.bf16.msra.mxu0 %v2883
    %3323 = vmatprep.subr.bf16.mxu0 0
    %3324 = vmatpush1.bf16.msra.mxu0 %v2884
    %3325 = vmatprep.mubr.bf16.mxu0 %v2244
    %3326 = vmatmul.mubr.bf16.gmra.mrb[0].mxu0 %v2243
    %v3327 = vpop.f32.mrb[0].mxu0
    %v3328 = vadd.f32 %v3288, %v3327
    %v3329 = vpop.f32.mrb[0].mxu0
    %v3330 = vpop.f32.mrb[0].mxu0
    %v3331 = vpop.f32.mrb[0].mxu0
    %3332 = vdwg.mxu0
    %v3333 = vadd.f32 %v1350, %v3328
    %v3334 = vsel %vm622, %v3333, 0.0
    %3335 = vadd.xlane.f32.xlu0 %v3334
    %v3336 = vpop.xlane.xlu0 %3335
    %v3337 = vmul.f32 %v3336, %v1338
    %v3338 = vsub.f32 %v3333, %v3337
    %v3339 = vmul.f32 %v3338, %v3338
    %v3340 = vsel %vm622, %v3339, 0.0
    %3341 = vadd.xlane.f32.xlu0 %v3340
    %v3342 = vpop.xlane.xlu0 %3341
    %v3343 = vmul.f32 %v3342, %v1338
    %v3344 = vadd.f32 %v3343, 1e-05
    %v3345 = vrsqrt.pop %v3344
    %v3346 = vmul.f32 %v3338, %v3345
    %v3347 = vmul.f32 %v3346, %v587
    %v3348 = vadd.f32 %v3347, %v588
    %v3349 = vld [vmem:[%s6 + $0x3] ss:$0 sm:$0xff]
    %v3350 = vld [vmem:[%s6 + $0xb] ss:$0 sm:$0xff]
    %v3351 = vld [vmem:[%s6 + $0x13] ss:$0 sm:$0xff]
    %v3352 = vld [vmem:[%s6 + $0x1b] ss:$0 sm:$0xff]
    %v3353 = vld [vmem:[%s6 + $0x23] ss:$0 sm:$0xff]
    %v3354 = vld [vmem:[%s6 + $0x2b] ss:$0 sm:$0xff]
    %v3355 = vld [vmem:[%s6 + $0x33] ss:$0 sm:$0xff]
    %s3356 = scalar_lea.vmem %s6, 4
    %v3357 = vld [vmem:[%s3356] ss:$8 sm:$0xf]
    %v3358 = vld [vmem:[%s3356] ss:$8 sm:$0xf0]
    %v3359 = vor.u32 %v3357, %v3358
    %s3360 = scalar_lea.vmem %s6, 68
    %v3361 = vld [vmem:[%s3360] ss:$8 sm:$0xf]
    %v3362 = vld [vmem:[%s3360] ss:$8 sm:$0xf0]
    %v3363 = vor.u32 %v3361, %v3362
    %v3364 = vld [vmem:[%s4 + $0x20] sm:$0xff]
    %v3365 = vld [vmem:[%s4 + $0x28] sm:$0xff]
    %v3366 = vld [vmem:[%s4 + $0x30] sm:$0xff]
    %v3367 = vld [vmem:[%s4 + $0x38] sm:$0xff]
    %v3368 = vpack.c.bf16 %v3348, %v3348
    %v3373 = vunpack.c.l.b16 %v3364
    %v3374 = vunpack.c.h.b16 %v3364
    %v3375 = vunpack.c.l.b16 %v3365
    %v3376 = vunpack.c.h.b16 %v3365
    %v3377 = vunpack.c.l.b16 %v3366
    %v3378 = vunpack.c.h.b16 %v3366
    %v3379 = vunpack.c.l.b16 %v3367
    %v3380 = vunpack.c.h.b16 %v3367
    %v3381 = vpack.c.b16 %v3375, %v3373
    %v3382 = vpack.c.b16 %v3376, %v3374
    %v3383 = vpack.c.b16 %v3379, %v3377
    %v3384 = vpack.c.b16 %v3380, %v3378
    %v3390 = vsel %vm622, %v3368, 0
    %3392 = vmatprep.subr.bf16.mxu0 %v3382
    %3393 = vmatpush1.bf16.msra.mxu0 %v3381
    %3394 = vmatprep.subr.bf16.mxu0 %v3384
    %3395 = vmatpush1.bf16.msra.mxu0 %v3383
    %3396 = vmatprep.subr.bf16.mxu0 0
    %3397 = vmatpush1.bf16.msra.mxu0 0
    %3398 = vmatprep.subr.bf16.mxu0 0
    %3399 = vmatpush1.bf16.msra.mxu0 0
    %3400 = vmatprep.subr.bf16.mxu0 0
    %3401 = vmatpush1.bf16.msra.mxu0 0
    %3402 = vmatprep.subr.bf16.mxu0 0
    %3403 = vmatpush1.bf16.msra.mxu0 0
    %3404 = vmatprep.subr.bf16.mxu0 0
    %3405 = vmatpush1.bf16.msra.mxu0 0
    %3406 = vmatprep.subr.bf16.mxu0 0
    %3407 = vmatpush1.bf16.msra.mxu0 0
    %3408 = vmatprep.subr.bf16.mxu0 0
    %3409 = vmatpush1.bf16.msra.mxu0 0
    %3410 = vmatprep.subr.bf16.mxu0 0
    %3411 = vmatpush1.bf16.msra.mxu0 0
    %3412 = vmatprep.subr.bf16.mxu0 0
    %3413 = vmatpush1.bf16.msra.mxu0 0
    %3414 = vmatprep.subr.bf16.mxu0 0
    %3415 = vmatpush1.bf16.msra.mxu0 0
    %3416 = vmatprep.subr.bf16.mxu0 0
    %3417 = vmatpush1.bf16.msra.mxu0 0
    %3418 = vmatprep.subr.bf16.mxu0 0
    %3419 = vmatpush1.bf16.msra.mxu0 0
    %3420 = vmatprep.subr.bf16.mxu0 0
    %3421 = vmatpush1.bf16.msra.mxu0 0
    %3422 = vmatprep.subr.bf16.mxu0 0
    %3423 = vmatpush1.bf16.msra.mxu0 0
    %3424 = vmatprep.mubr.bf16.mxu0 0
    %3425 = vmatmul.mubr.bf16.gmra.mrb[0].mxu0 %v3390
    %v3426 = vpop.f32.mrb[0].mxu0
    %v3427 = vadd.f32 0.0, %v3426
    %v3428 = vpop.f32.mrb[0].mxu0
    %v3429 = vadd.f32 0.0, %v3428
    %v3430 = vpop.f32.mrb[0].mxu0
    %v3431 = vpop.f32.mrb[0].mxu0
    %3432 = vdwg.mxu0
    %v3433 = vadd.f32 %v3427, %v3349
    %3435 = vrot.lane.b32.xlu0 %v3433, 96
    %v3436 = vpop.permute.xlu0 %3435
    %v3437 = vsel %vm671, %v3433, 0
    %v3439 = vsel %vm671, %v3436, 0
    %3441 = vmatprep.subr.mxu0 0.0
    %3442 = vmatpush1.xpose.msra.mxu0 %v3439
    %3443 = vmatprep.subr.mxu0 0.0
    %3444 = vmatpush1.xpose.msra.mxu0 0.0
    %3445 = vmatprep.subr.mxu0 0.0
    %3446 = vmatpush1.xpose.msra.mxu0 0.0
    %3447 = vmatprep.subr.mxu0 0.0
    %3448 = vmatpush1.xpose.msra.mxu0 0.0
    %3449 = vmatprep.subr.mxu0 0.0
    %3450 = vmatpush1.xpose.msra.mxu0 0.0
    %3451 = vmatprep.subr.mxu0 0.0
    %3452 = vmatpush1.xpose.msra.mxu0 0.0
    %3453 = vmatprep.subr.mxu0 0.0
    %3454 = vmatpush1.xpose.msra.mxu0 0.0
    %3455 = vmatprep.subr.mxu0 0.0
    %3456 = vmatpush1.xpose.msra.mxu0 0.0
    %3457 = vmatprep.subr.mxu0 0.0
    %3458 = vmatpush1.xpose.msra.mxu0 0.0
    %3459 = vmatprep.subr.mxu0 0.0
    %3460 = vmatpush1.xpose.msra.mxu0 0.0
    %3461 = vmatprep.subr.mxu0 0.0
    %3462 = vmatpush1.xpose.msra.mxu0 0.0
    %3463 = vmatprep.subr.mxu0 0.0
    %3464 = vmatpush1.xpose.msra.mxu0 0.0
    %3465 = vmatprep.subr.mxu0 0.0
    %3466 = vmatpush1.xpose.msra.mxu0 0.0
    %3467 = vmatprep.subr.mxu0 0.0
    %3468 = vmatpush1.xpose.msra.mxu0 0.0
    %3469 = vmatprep.subr.mxu0 0.0
    %3470 = vmatpush1.xpose.msra.mxu0 0.0
    %3471 = vmatprep.subr.mxu0 0.0
    %3472 = vmatpush1.xpose.msra.mxu0 0.0
    %3473 = vmatprep.subr.mxu0 0.0
    %3474 = vmatpush1.xpose.msra.mxu0 0.0
    %3475 = vmatprep.subr.mxu0 0.0
    %3476 = vmatpush1.xpose.msra.mxu0 0.0
    %3477 = vmatprep.subr.mxu0 0.0
    %3478 = vmatpush1.xpose.msra.mxu0 0.0
    %3479 = vmatprep.subr.mxu0 0.0
    %3480 = vmatpush1.xpose.msra.mxu0 0.0
    %3481 = vmatprep.subr.mxu0 0.0
    %3482 = vmatpush1.xpose.msra.mxu0 0.0
    %3483 = vmatprep.subr.mxu0 0.0
    %3484 = vmatpush1.xpose.msra.mxu0 0.0
    %3485 = vmatprep.subr.mxu0 0.0
    %3486 = vmatpush1.xpose.msra.mxu0 0.0
    %3487 = vmatprep.subr.mxu0 0.0
    %3488 = vmatpush1.xpose.msra.mxu0 0.0
    %3489 = vmatprep.subr.mxu0 0.0
    %3490 = vmatpush1.xpose.msra.mxu0 0.0
    %3491 = vmatprep.subr.mxu0 0.0
    %3492 = vmatpush1.xpose.msra.mxu0 0.0
    %3493 = vmatprep.subr.mxu0 0.0
    %3494 = vmatpush1.xpose.msra.mxu0 0.0
    %3495 = vmatprep.subr.mxu0 0.0
    %3496 = vmatpush1.xpose.msra.mxu0 0.0
    %3497 = vmatprep.subr.mxu0 0.0
    %3498 = vmatpush1.xpose.msra.mxu0 0.0
    %3499 = vmatprep.subr.mxu0 0.0
    %3500 = vmatpush1.xpose.msra.mxu0 0.0
    %3501 = vmatprep.subr.mxu0 0.0
    %3502 = vmatpush1.xpose.msra.mxu0 0.0
    %3503 = vmatprep.subr.mxu0 0.0
    %3504 = vmatpush1.xpose.msra.mxu0 0.0
    %3505 = vmatprep.mubr.f32.mxu0 0.0
    %3506 = vmatmul.mubr.f32.gmra.mrb[0].mxu0 %v3437
    %v3507 = vpop.f32.mrb[0].mxu0
    %v3508 = vadd.f32 0.0, %v3507
    %v3509 = vpop.f32.mrb[0].mxu0
    %3510 = vdwg.mxu0
    %v3511 = vmul.f32 %v3508, 0.35355338
    %v3512 = vsel %vm671, %v3511, -inf
    %3513 = vmax.xlane.f32.xlu0 %v3512
    %v3514 = vpop.xlane.xlu0 %3513
    %v3515 = vsub.f32 %v3511, %v3514
    %v3516 = vmul.f32 %v3515, 1.442695
    %v3517 = vpow.pop %v3516
    %v3518 = vsel %vm671, %v3517, 0.0
    %3519 = vadd.xlane.f32.xlu0 %v3518
    %v3520 = vpop.xlane.xlu0 %3519
    %v3521 = vrcp.pop %v3520
    %v3522 = vmul.f32 %v3517, %v3521
    %3523 = vrot.lane.b32.xlu0 %v3433, 120
    %v3524 = vpop.permute.xlu0 %3523
    %3525 = vrot.lane.b32.xlu0 %v3433, 88
    %v3526 = vpop.permute.xlu0 %3525
    %v3527 = vsel %vm671, %v3524, 0
    %v3529 = vsel %vm671, %v3526, 0
    %3531 = vmatprep.subr.mxu0 0.0
    %3532 = vmatpush1.xpose.msra.mxu0 %v3529
    %3533 = vmatprep.subr.mxu0 0.0
    %3534 = vmatpush1.xpose.msra.mxu0 0.0
    %3535 = vmatprep.subr.mxu0 0.0
    %3536 = vmatpush1.xpose.msra.mxu0 0.0
    %3537 = vmatprep.subr.mxu0 0.0
    %3538 = vmatpush1.xpose.msra.mxu0 0.0
    %3539 = vmatprep.subr.mxu0 0.0
    %3540 = vmatpush1.xpose.msra.mxu0 0.0
    %3541 = vmatprep.subr.mxu0 0.0
    %3542 = vmatpush1.xpose.msra.mxu0 0.0
    %3543 = vmatprep.subr.mxu0 0.0
    %3544 = vmatpush1.xpose.msra.mxu0 0.0
    %3545 = vmatprep.subr.mxu0 0.0
    %3546 = vmatpush1.xpose.msra.mxu0 0.0
    %3547 = vmatprep.subr.mxu0 0.0
    %3548 = vmatpush1.xpose.msra.mxu0 0.0
    %3549 = vmatprep.subr.mxu0 0.0
    %3550 = vmatpush1.xpose.msra.mxu0 0.0
    %3551 = vmatprep.subr.mxu0 0.0
    %3552 = vmatpush1.xpose.msra.mxu0 0.0
    %3553 = vmatprep.subr.mxu0 0.0
    %3554 = vmatpush1.xpose.msra.mxu0 0.0
    %3555 = vmatprep.subr.mxu0 0.0
    %3556 = vmatpush1.xpose.msra.mxu0 0.0
    %3557 = vmatprep.subr.mxu0 0.0
    %3558 = vmatpush1.xpose.msra.mxu0 0.0
    %3559 = vmatprep.subr.mxu0 0.0
    %3560 = vmatpush1.xpose.msra.mxu0 0.0
    %3561 = vmatprep.subr.mxu0 0.0
    %3562 = vmatpush1.xpose.msra.mxu0 0.0
    %3563 = vmatprep.subr.mxu0 0.0
    %3564 = vmatpush1.xpose.msra.mxu0 0.0
    %3565 = vmatprep.subr.mxu0 0.0
    %3566 = vmatpush1.xpose.msra.mxu0 0.0
    %3567 = vmatprep.subr.mxu0 0.0
    %3568 = vmatpush1.xpose.msra.mxu0 0.0
    %3569 = vmatprep.subr.mxu0 0.0
    %3570 = vmatpush1.xpose.msra.mxu0 0.0
    %3571 = vmatprep.subr.mxu0 0.0
    %3572 = vmatpush1.xpose.msra.mxu0 0.0
    %3573 = vmatprep.subr.mxu0 0.0
    %3574 = vmatpush1.xpose.msra.mxu0 0.0
    %3575 = vmatprep.subr.mxu0 0.0
    %3576 = vmatpush1.xpose.msra.mxu0 0.0
    %3577 = vmatprep.subr.mxu0 0.0
    %3578 = vmatpush1.xpose.msra.mxu0 0.0
    %3579 = vmatprep.subr.mxu0 0.0
    %3580 = vmatpush1.xpose.msra.mxu0 0.0
    %3581 = vmatprep.subr.mxu0 0.0
    %3582 = vmatpush1.xpose.msra.mxu0 0.0
    %3583 = vmatprep.subr.mxu0 0.0
    %3584 = vmatpush1.xpose.msra.mxu0 0.0
    %3585 = vmatprep.subr.mxu0 0.0
    %3586 = vmatpush1.xpose.msra.mxu0 0.0
    %3587 = vmatprep.subr.mxu0 0.0
    %3588 = vmatpush1.xpose.msra.mxu0 0.0
    %3589 = vmatprep.subr.mxu0 0.0
    %3590 = vmatpush1.xpose.msra.mxu0 0.0
    %3591 = vmatprep.subr.mxu0 0.0
    %3592 = vmatpush1.xpose.msra.mxu0 0.0
    %3593 = vmatprep.subr.mxu0 0.0
    %3594 = vmatpush1.xpose.msra.mxu0 0.0
    %3595 = vmatprep.mubr.f32.mxu0 0.0
    %3596 = vmatmul.mubr.f32.gmra.mrb[0].mxu0 %v3527
    %v3597 = vpop.f32.mrb[0].mxu0
    %v3598 = vadd.f32 0.0, %v3597
    %v3599 = vpop.f32.mrb[0].mxu0
    %3600 = vdwg.mxu0
    %v3601 = vmul.f32 %v3598, 0.35355338
    %v3602 = vsel %vm671, %v3601, -inf
    %3603 = vmax.xlane.f32.xlu0 %v3602
    %v3604 = vpop.xlane.xlu0 %3603
    %v3605 = vsub.f32 %v3601, %v3604
    %v3606 = vmul.f32 %v3605, 1.442695
    %v3607 = vpow.pop %v3606
    %v3608 = vsel %vm671, %v3607, 0.0
    %3609 = vadd.xlane.f32.xlu0 %v3608
    %v3610 = vpop.xlane.xlu0 %3609
    %v3611 = vrcp.pop %v3610
    %v3612 = vmul.f32 %v3607, %v3611
    %3614 = vrot.lane.b32.xlu0 %v3427, 32
    %v3615 = vpop.permute.xlu0 %3614
    %v3618 = vsel %vm671, %v3612, 0
    %3620 = vmatprep.subr.mxu0 0.0
    %3621 = vmatpush1.msra.mxu0 %v3615
    %3622 = vmatprep.subr.mxu0 0.0
    %3623 = vmatpush1.msra.mxu0 0.0
    %3624 = vmatprep.subr.mxu0 0.0
    %3625 = vmatpush1.msra.mxu0 0.0
    %3626 = vmatprep.subr.mxu0 0.0
    %3627 = vmatpush1.msra.mxu0 0.0
    %3628 = vmatprep.subr.mxu0 0.0
    %3629 = vmatpush1.msra.mxu0 0.0
    %3630 = vmatprep.subr.mxu0 0.0
    %3631 = vmatpush1.msra.mxu0 0.0
    %3632 = vmatprep.subr.mxu0 0.0
    %3633 = vmatpush1.msra.mxu0 0.0
    %3634 = vmatprep.subr.mxu0 0.0
    %3635 = vmatpush1.msra.mxu0 0.0
    %3636 = vmatprep.subr.mxu0 0.0
    %3637 = vmatpush1.msra.mxu0 0.0
    %3638 = vmatprep.subr.mxu0 0.0
    %3639 = vmatpush1.msra.mxu0 0.0
    %3640 = vmatprep.subr.mxu0 0.0
    %3641 = vmatpush1.msra.mxu0 0.0
    %3642 = vmatprep.subr.mxu0 0.0
    %3643 = vmatpush1.msra.mxu0 0.0
    %3644 = vmatprep.subr.mxu0 0.0
    %3645 = vmatpush1.msra.mxu0 0.0
    %3646 = vmatprep.subr.mxu0 0.0
    %3647 = vmatpush1.msra.mxu0 0.0
    %3648 = vmatprep.subr.mxu0 0.0
    %3649 = vmatpush1.msra.mxu0 0.0
    %3650 = vmatprep.subr.mxu0 0.0
    %3651 = vmatpush1.msra.mxu0 0.0
    %3652 = vmatprep.subr.mxu0 0.0
    %3653 = vmatpush1.msra.mxu0 0.0
    %3654 = vmatprep.subr.mxu0 0.0
    %3655 = vmatpush1.msra.mxu0 0.0
    %3656 = vmatprep.subr.mxu0 0.0
    %3657 = vmatpush1.msra.mxu0 0.0
    %3658 = vmatprep.subr.mxu0 0.0
    %3659 = vmatpush1.msra.mxu0 0.0
    %3660 = vmatprep.subr.mxu0 0.0
    %3661 = vmatpush1.msra.mxu0 0.0
    %3662 = vmatprep.subr.mxu0 0.0
    %3663 = vmatpush1.msra.mxu0 0.0
    %3664 = vmatprep.subr.mxu0 0.0
    %3665 = vmatpush1.msra.mxu0 0.0
    %3666 = vmatprep.subr.mxu0 0.0
    %3667 = vmatpush1.msra.mxu0 0.0
    %3668 = vmatprep.subr.mxu0 0.0
    %3669 = vmatpush1.msra.mxu0 0.0
    %3670 = vmatprep.subr.mxu0 0.0
    %3671 = vmatpush1.msra.mxu0 0.0
    %3672 = vmatprep.subr.mxu0 0.0
    %3673 = vmatpush1.msra.mxu0 0.0
    %3674 = vmatprep.subr.mxu0 0.0
    %3675 = vmatpush1.msra.mxu0 0.0
    %3676 = vmatprep.subr.mxu0 0.0
    %3677 = vmatpush1.msra.mxu0 0.0
    %3678 = vmatprep.subr.mxu0 0.0
    %3679 = vmatpush1.msra.mxu0 0.0
    %3680 = vmatprep.subr.mxu0 0.0
    %3681 = vmatpush1.msra.mxu0 0.0
    %3682 = vmatprep.subr.mxu0 0.0
    %3683 = vmatpush1.msra.mxu0 0.0
    %3684 = vmatprep.mubr.f32.mxu0 0.0
    %3685 = vmatmul.mubr.f32.gmra.mrb[0].mxu0 %v3618
    %v3686 = vpop.f32.mrb[0].mxu0
    %v3687 = vadd.f32 0.0, %v3686
    %v3688 = vpop.f32.mrb[0].mxu0
    %3689 = vdwg.mxu0
    %3690 = vrot.lane.b32.xlu0 %v3427, 64
    %v3691 = vpop.permute.xlu0 %3690
    %v3694 = vsel %vm671, %v3522, 0
    %3696 = vmatprep.subr.mxu0 0.0
    %3697 = vmatpush1.msra.mxu0 %v3691
    %3698 = vmatprep.subr.mxu0 0.0
    %3699 = vmatpush1.msra.mxu0 0.0
    %3700 = vmatprep.subr.mxu0 0.0
    %3701 = vmatpush1.msra.mxu0 0.0
    %3702 = vmatprep.subr.mxu0 0.0
    %3703 = vmatpush1.msra.mxu0 0.0
    %3704 = vmatprep.subr.mxu0 0.0
    %3705 = vmatpush1.msra.mxu0 0.0
    %3706 = vmatprep.subr.mxu0 0.0
    %3707 = vmatpush1.msra.mxu0 0.0
    %3708 = vmatprep.subr.mxu0 0.0
    %3709 = vmatpush1.msra.mxu0 0.0
    %3710 = vmatprep.subr.mxu0 0.0
    %3711 = vmatpush1.msra.mxu0 0.0
    %3712 = vmatprep.subr.mxu0 0.0
    %3713 = vmatpush1.msra.mxu0 0.0
    %3714 = vmatprep.subr.mxu0 0.0
    %3715 = vmatpush1.msra.mxu0 0.0
    %3716 = vmatprep.subr.mxu0 0.0
    %3717 = vmatpush1.msra.mxu0 0.0
    %3718 = vmatprep.subr.mxu0 0.0
    %3719 = vmatpush1.msra.mxu0 0.0
    %3720 = vmatprep.subr.mxu0 0.0
    %3721 = vmatpush1.msra.mxu0 0.0
    %3722 = vmatprep.subr.mxu0 0.0
    %3723 = vmatpush1.msra.mxu0 0.0
    %3724 = vmatprep.subr.mxu0 0.0
    %3725 = vmatpush1.msra.mxu0 0.0
    %3726 = vmatprep.subr.mxu0 0.0
    %3727 = vmatpush1.msra.mxu0 0.0
    %3728 = vmatprep.subr.mxu0 0.0
    %3729 = vmatpush1.msra.mxu0 0.0
    %3730 = vmatprep.subr.mxu0 0.0
    %3731 = vmatpush1.msra.mxu0 0.0
    %3732 = vmatprep.subr.mxu0 0.0
    %3733 = vmatpush1.msra.mxu0 0.0
    %3734 = vmatprep.subr.mxu0 0.0
    %3735 = vmatpush1.msra.mxu0 0.0
    %3736 = vmatprep.subr.mxu0 0.0
    %3737 = vmatpush1.msra.mxu0 0.0
    %3738 = vmatprep.subr.mxu0 0.0
    %3739 = vmatpush1.msra.mxu0 0.0
    %3740 = vmatprep.subr.mxu0 0.0
    %3741 = vmatpush1.msra.mxu0 0.0
    %3742 = vmatprep.subr.mxu0 0.0
    %3743 = vmatpush1.msra.mxu0 0.0
    %3744 = vmatprep.subr.mxu0 0.0
    %3745 = vmatpush1.msra.mxu0 0.0
    %3746 = vmatprep.subr.mxu0 0.0
    %3747 = vmatpush1.msra.mxu0 0.0
    %3748 = vmatprep.subr.mxu0 0.0
    %3749 = vmatpush1.msra.mxu0 0.0
    %3750 = vmatprep.subr.mxu0 0.0
    %3751 = vmatpush1.msra.mxu0 0.0
    %3752 = vmatprep.subr.mxu0 0.0
    %3753 = vmatpush1.msra.mxu0 0.0
    %3754 = vmatprep.subr.mxu0 0.0
    %3755 = vmatpush1.msra.mxu0 0.0
    %3756 = vmatprep.subr.mxu0 0.0
    %3757 = vmatpush1.msra.mxu0 0.0
    %3758 = vmatprep.subr.mxu0 0.0
    %3759 = vmatpush1.msra.mxu0 0.0
    %3760 = vmatprep.mubr.f32.mxu0 0.0
    %3761 = vmatmul.mubr.f32.gmra.mrb[0].mxu0 %v3694
    %v3762 = vpop.f32.mrb[0].mxu0
    %v3763 = vadd.f32 %v3687, %v3762
    %v3764 = vpop.f32.mrb[0].mxu0
    %3765 = vdwg.mxu0
    %3766 = vrot.lane.b32.xlu0 %v3433, 112
    %v3767 = vpop.permute.xlu0 %3766
    %3768 = vrot.lane.b32.xlu0 %v3433, 80
    %v3769 = vpop.permute.xlu0 %3768
    %v3770 = vsel %vm671, %v3767, 0
    %v3772 = vsel %vm671, %v3769, 0
    %3774 = vmatprep.subr.mxu0 0.0
    %3775 = vmatpush1.xpose.msra.mxu0 %v3772
    %3776 = vmatprep.subr.mxu0 0.0
    %3777 = vmatpush1.xpose.msra.mxu0 0.0
    %3778 = vmatprep.subr.mxu0 0.0
    %3779 = vmatpush1.xpose.msra.mxu0 0.0
    %3780 = vmatprep.subr.mxu0 0.0
    %3781 = vmatpush1.xpose.msra.mxu0 0.0
    %3782 = vmatprep.subr.mxu0 0.0
    %3783 = vmatpush1.xpose.msra.mxu0 0.0
    %3784 = vmatprep.subr.mxu0 0.0
    %3785 = vmatpush1.xpose.msra.mxu0 0.0
    %3786 = vmatprep.subr.mxu0 0.0
    %3787 = vmatpush1.xpose.msra.mxu0 0.0
    %3788 = vmatprep.subr.mxu0 0.0
    %3789 = vmatpush1.xpose.msra.mxu0 0.0
    %3790 = vmatprep.subr.mxu0 0.0
    %3791 = vmatpush1.xpose.msra.mxu0 0.0
    %3792 = vmatprep.subr.mxu0 0.0
    %3793 = vmatpush1.xpose.msra.mxu0 0.0
    %3794 = vmatprep.subr.mxu0 0.0
    %3795 = vmatpush1.xpose.msra.mxu0 0.0
    %3796 = vmatprep.subr.mxu0 0.0
    %3797 = vmatpush1.xpose.msra.mxu0 0.0
    %3798 = vmatprep.subr.mxu0 0.0
    %3799 = vmatpush1.xpose.msra.mxu0 0.0
    %3800 = vmatprep.subr.mxu0 0.0
    %3801 = vmatpush1.xpose.msra.mxu0 0.0
    %3802 = vmatprep.subr.mxu0 0.0
    %3803 = vmatpush1.xpose.msra.mxu0 0.0
    %3804 = vmatprep.subr.mxu0 0.0
    %3805 = vmatpush1.xpose.msra.mxu0 0.0
    %3806 = vmatprep.subr.mxu0 0.0
    %3807 = vmatpush1.xpose.msra.mxu0 0.0
    %3808 = vmatprep.subr.mxu0 0.0
    %3809 = vmatpush1.xpose.msra.mxu0 0.0
    %3810 = vmatprep.subr.mxu0 0.0
    %3811 = vmatpush1.xpose.msra.mxu0 0.0
    %3812 = vmatprep.subr.mxu0 0.0
    %3813 = vmatpush1.xpose.msra.mxu0 0.0
    %3814 = vmatprep.subr.mxu0 0.0
    %3815 = vmatpush1.xpose.msra.mxu0 0.0
    %3816 = vmatprep.subr.mxu0 0.0
    %3817 = vmatpush1.xpose.msra.mxu0 0.0
    %3818 = vmatprep.subr.mxu0 0.0
    %3819 = vmatpush1.xpose.msra.mxu0 0.0
    %3820 = vmatprep.subr.mxu0 0.0
    %3821 = vmatpush1.xpose.msra.mxu0 0.0
    %3822 = vmatprep.subr.mxu0 0.0
    %3823 = vmatpush1.xpose.msra.mxu0 0.0
    %3824 = vmatprep.subr.mxu0 0.0
    %3825 = vmatpush1.xpose.msra.mxu0 0.0
    %3826 = vmatprep.subr.mxu0 0.0
    %3827 = vmatpush1.xpose.msra.mxu0 0.0
    %3828 = vmatprep.subr.mxu0 0.0
    %3829 = vmatpush1.xpose.msra.mxu0 0.0
    %3830 = vmatprep.subr.mxu0 0.0
    %3831 = vmatpush1.xpose.msra.mxu0 0.0
    %3832 = vmatprep.subr.mxu0 0.0
    %3833 = vmatpush1.xpose.msra.mxu0 0.0
    %3834 = vmatprep.subr.mxu0 0.0
    %3835 = vmatpush1.xpose.msra.mxu0 0.0
    %3836 = vmatprep.subr.mxu0 0.0
    %3837 = vmatpush1.xpose.msra.mxu0 0.0
    %3838 = vmatprep.mubr.f32.mxu0 0.0
    %3839 = vmatmul.mubr.f32.gmra.mrb[0].mxu0 %v3770
    %v3840 = vpop.f32.mrb[0].mxu0
    %v3841 = vadd.f32 0.0, %v3840
    %v3842 = vpop.f32.mrb[0].mxu0
    %3843 = vdwg.mxu0
    %v3844 = vmul.f32 %v3841, 0.35355338
    %v3845 = vsel %vm671, %v3844, -inf
    %3846 = vmax.xlane.f32.xlu0 %v3845
    %v3847 = vpop.xlane.xlu0 %3846
    %v3848 = vsub.f32 %v3844, %v3847
    %v3849 = vmul.f32 %v3848, 1.442695
    %v3850 = vpow.pop %v3849
    %v3851 = vsel %vm671, %v3850, 0.0
    %3852 = vadd.xlane.f32.xlu0 %v3851
    %v3853 = vpop.xlane.xlu0 %3852
    %v3854 = vrcp.pop %v3853
    %v3855 = vmul.f32 %v3850, %v3854
    %v3857 = vsel %vm671, %v3855, 0
    %3859 = vmatprep.subr.mxu0 0.0
    %3860 = vmatpush1.msra.mxu0 %v3429
    %3861 = vmatprep.subr.mxu0 0.0
    %3862 = vmatpush1.msra.mxu0 0.0
    %3863 = vmatprep.subr.mxu0 0.0
    %3864 = vmatpush1.msra.mxu0 0.0
    %3865 = vmatprep.subr.mxu0 0.0
    %3866 = vmatpush1.msra.mxu0 0.0
    %3867 = vmatprep.subr.mxu0 0.0
    %3868 = vmatpush1.msra.mxu0 0.0
    %3869 = vmatprep.subr.mxu0 0.0
    %3870 = vmatpush1.msra.mxu0 0.0
    %3871 = vmatprep.subr.mxu0 0.0
    %3872 = vmatpush1.msra.mxu0 0.0
    %3873 = vmatprep.subr.mxu0 0.0
    %3874 = vmatpush1.msra.mxu0 0.0
    %3875 = vmatprep.subr.mxu0 0.0
    %3876 = vmatpush1.msra.mxu0 0.0
    %3877 = vmatprep.subr.mxu0 0.0
    %3878 = vmatpush1.msra.mxu0 0.0
    %3879 = vmatprep.subr.mxu0 0.0
    %3880 = vmatpush1.msra.mxu0 0.0
    %3881 = vmatprep.subr.mxu0 0.0
    %3882 = vmatpush1.msra.mxu0 0.0
    %3883 = vmatprep.subr.mxu0 0.0
    %3884 = vmatpush1.msra.mxu0 0.0
    %3885 = vmatprep.subr.mxu0 0.0
    %3886 = vmatpush1.msra.mxu0 0.0
    %3887 = vmatprep.subr.mxu0 0.0
    %3888 = vmatpush1.msra.mxu0 0.0
    %3889 = vmatprep.subr.mxu0 0.0
    %3890 = vmatpush1.msra.mxu0 0.0
    %3891 = vmatprep.subr.mxu0 0.0
    %3892 = vmatpush1.msra.mxu0 0.0
    %3893 = vmatprep.subr.mxu0 0.0
    %3894 = vmatpush1.msra.mxu0 0.0
    %3895 = vmatprep.subr.mxu0 0.0
    %3896 = vmatpush1.msra.mxu0 0.0
    %3897 = vmatprep.subr.mxu0 0.0
    %3898 = vmatpush1.msra.mxu0 0.0
    %3899 = vmatprep.subr.mxu0 0.0
    %3900 = vmatpush1.msra.mxu0 0.0
    %3901 = vmatprep.subr.mxu0 0.0
    %3902 = vmatpush1.msra.mxu0 0.0
    %3903 = vmatprep.subr.mxu0 0.0
    %3904 = vmatpush1.msra.mxu0 0.0
    %3905 = vmatprep.subr.mxu0 0.0
    %3906 = vmatpush1.msra.mxu0 0.0
    %3907 = vmatprep.subr.mxu0 0.0
    %3908 = vmatpush1.msra.mxu0 0.0
    %3909 = vmatprep.subr.mxu0 0.0
    %3910 = vmatpush1.msra.mxu0 0.0
    %3911 = vmatprep.subr.mxu0 0.0
    %3912 = vmatpush1.msra.mxu0 0.0
    %3913 = vmatprep.subr.mxu0 0.0
    %3914 = vmatpush1.msra.mxu0 0.0
    %3915 = vmatprep.subr.mxu0 0.0
    %3916 = vmatpush1.msra.mxu0 0.0
    %3917 = vmatprep.subr.mxu0 0.0
    %3918 = vmatpush1.msra.mxu0 0.0
    %3919 = vmatprep.subr.mxu0 0.0
    %3920 = vmatpush1.msra.mxu0 0.0
    %3921 = vmatprep.subr.mxu0 0.0
    %3922 = vmatpush1.msra.mxu0 0.0
    %3923 = vmatprep.mubr.f32.mxu0 0.0
    %3924 = vmatmul.mubr.f32.gmra.mrb[0].mxu0 %v3857
    %v3925 = vpop.f32.mrb[0].mxu0
    %v3926 = vadd.f32 0.0, %v3925
    %v3927 = vpop.f32.mrb[0].mxu0
    %3928 = vdwg.mxu0
    %v3929 = vadd.f32 %v3763, %v3926
    %3930 = vrot.lane.b32.xlu0 %v3433, 104
    %v3931 = vpop.permute.xlu0 %3930
    %3932 = vrot.lane.b32.xlu0 %v3433, 72
    %v3933 = vpop.permute.xlu0 %3932
    %v3934 = vsel %vm671, %v3931, 0
    %v3936 = vsel %vm671, %v3933, 0
    %3938 = vmatprep.subr.mxu0 0.0
    %3939 = vmatpush1.xpose.msra.mxu0 %v3936
    %3940 = vmatprep.subr.mxu0 0.0
    %3941 = vmatpush1.xpose.msra.mxu0 0.0
    %3942 = vmatprep.subr.mxu0 0.0
    %3943 = vmatpush1.xpose.msra.mxu0 0.0
    %3944 = vmatprep.subr.mxu0 0.0
    %3945 = vmatpush1.xpose.msra.mxu0 0.0
    %3946 = vmatprep.subr.mxu0 0.0
    %3947 = vmatpush1.xpose.msra.mxu0 0.0
    %3948 = vmatprep.subr.mxu0 0.0
    %3949 = vmatpush1.xpose.msra.mxu0 0.0
    %3950 = vmatprep.subr.mxu0 0.0
    %3951 = vmatpush1.xpose.msra.mxu0 0.0
    %3952 = vmatprep.subr.mxu0 0.0
    %3953 = vmatpush1.xpose.msra.mxu0 0.0
    %3954 = vmatprep.subr.mxu0 0.0
    %3955 = vmatpush1.xpose.msra.mxu0 0.0
    %3956 = vmatprep.subr.mxu0 0.0
    %3957 = vmatpush1.xpose.msra.mxu0 0.0
    %3958 = vmatprep.subr.mxu0 0.0
    %3959 = vmatpush1.xpose.msra.mxu0 0.0
    %3960 = vmatprep.subr.mxu0 0.0
    %3961 = vmatpush1.xpose.msra.mxu0 0.0
    %3962 = vmatprep.subr.mxu0 0.0
    %3963 = vmatpush1.xpose.msra.mxu0 0.0
    %3964 = vmatprep.subr.mxu0 0.0
    %3965 = vmatpush1.xpose.msra.mxu0 0.0
    %3966 = vmatprep.subr.mxu0 0.0
    %3967 = vmatpush1.xpose.msra.mxu0 0.0
    %3968 = vmatprep.subr.mxu0 0.0
    %3969 = vmatpush1.xpose.msra.mxu0 0.0
    %3970 = vmatprep.subr.mxu0 0.0
    %3971 = vmatpush1.xpose.msra.mxu0 0.0
    %3972 = vmatprep.subr.mxu0 0.0
    %3973 = vmatpush1.xpose.msra.mxu0 0.0
    %3974 = vmatprep.subr.mxu0 0.0
    %3975 = vmatpush1.xpose.msra.mxu0 0.0
    %3976 = vmatprep.subr.mxu0 0.0
    %3977 = vmatpush1.xpose.msra.mxu0 0.0
    %3978 = vmatprep.subr.mxu0 0.0
    %3979 = vmatpush1.xpose.msra.mxu0 0.0
    %3980 = vmatprep.subr.mxu0 0.0
    %3981 = vmatpush1.xpose.msra.mxu0 0.0
    %3982 = vmatprep.subr.mxu0 0.0
    %3983 = vmatpush1.xpose.msra.mxu0 0.0
    %3984 = vmatprep.subr.mxu0 0.0
    %3985 = vmatpush1.xpose.msra.mxu0 0.0
    %3986 = vmatprep.subr.mxu0 0.0
    %3987 = vmatpush1.xpose.msra.mxu0 0.0
    %3988 = vmatprep.subr.mxu0 0.0
    %3989 = vmatpush1.xpose.msra.mxu0 0.0
    %3990 = vmatprep.subr.mxu0 0.0
    %3991 = vmatpush1.xpose.msra.mxu0 0.0
    %3992 = vmatprep.subr.mxu0 0.0
    %3993 = vmatpush1.xpose.msra.mxu0 0.0
    %3994 = vmatprep.subr.mxu0 0.0
    %3995 = vmatpush1.xpose.msra.mxu0 0.0
    %3996 = vmatprep.subr.mxu0 0.0
    %3997 = vmatpush1.xpose.msra.mxu0 0.0
    %3998 = vmatprep.subr.mxu0 0.0
    %3999 = vmatpush1.xpose.msra.mxu0 0.0
    %4000 = vmatprep.subr.mxu0 0.0
    %4001 = vmatpush1.xpose.msra.mxu0 0.0
    %4002 = vmatprep.mubr.f32.mxu0 0.0
    %4003 = vmatmul.mubr.f32.gmra.mrb[0].mxu0 %v3934
    %v4004 = vpop.f32.mrb[0].mxu0
    %v4005 = vadd.f32 0.0, %v4004
    %v4006 = vpop.f32.mrb[0].mxu0
    %4007 = vdwg.mxu0
    %v4008 = vmul.f32 %v4005, 0.35355338
    %v4009 = vsel %vm671, %v4008, -inf
    %4010 = vmax.xlane.f32.xlu0 %v4009
    %v4011 = vpop.xlane.xlu0 %4010
    %v4012 = vsub.f32 %v4008, %v4011
    %v4013 = vmul.f32 %v4012, 1.442695
    %v4014 = vpow.pop %v4013
    %v4015 = vsel %vm671, %v4014, 0.0
    %4016 = vadd.xlane.f32.xlu0 %v4015
    %v4017 = vpop.xlane.xlu0 %4016
    %v4018 = vrcp.pop %v4017
    %v4019 = vmul.f32 %v4014, %v4018
    %4021 = vrot.lane.b32.xlu0 %v3429, 96
    %v4022 = vpop.permute.xlu0 %4021
    %v4025 = vsel %vm671, %v4019, 0
    %4027 = vmatprep.subr.mxu0 0.0
    %4028 = vmatpush1.msra.mxu0 %v4022
    %4029 = vmatprep.subr.mxu0 0.0
    %4030 = vmatpush1.msra.mxu0 0.0
    %4031 = vmatprep.subr.mxu0 0.0
    %4032 = vmatpush1.msra.mxu0 0.0
    %4033 = vmatprep.subr.mxu0 0.0
    %4034 = vmatpush1.msra.mxu0 0.0
    %4035 = vmatprep.subr.mxu0 0.0
    %4036 = vmatpush1.msra.mxu0 0.0
    %4037 = vmatprep.subr.mxu0 0.0
    %4038 = vmatpush1.msra.mxu0 0.0
    %4039 = vmatprep.subr.mxu0 0.0
    %4040 = vmatpush1.msra.mxu0 0.0
    %4041 = vmatprep.subr.mxu0 0.0
    %4042 = vmatpush1.msra.mxu0 0.0
    %4043 = vmatprep.subr.mxu0 0.0
    %4044 = vmatpush1.msra.mxu0 0.0
    %4045 = vmatprep.subr.mxu0 0.0
    %4046 = vmatpush1.msra.mxu0 0.0
    %4047 = vmatprep.subr.mxu0 0.0
    %4048 = vmatpush1.msra.mxu0 0.0
    %4049 = vmatprep.subr.mxu0 0.0
    %4050 = vmatpush1.msra.mxu0 0.0
    %4051 = vmatprep.subr.mxu0 0.0
    %4052 = vmatpush1.msra.mxu0 0.0
    %4053 = vmatprep.subr.mxu0 0.0
    %4054 = vmatpush1.msra.mxu0 0.0
    %4055 = vmatprep.subr.mxu0 0.0
    %4056 = vmatpush1.msra.mxu0 0.0
    %4057 = vmatprep.subr.mxu0 0.0
    %4058 = vmatpush1.msra.mxu0 0.0
    %4059 = vmatprep.subr.mxu0 0.0
    %4060 = vmatpush1.msra.mxu0 0.0
    %4061 = vmatprep.subr.mxu0 0.0
    %4062 = vmatpush1.msra.mxu0 0.0
    %4063 = vmatprep.subr.mxu0 0.0
    %4064 = vmatpush1.msra.mxu0 0.0
    %4065 = vmatprep.subr.mxu0 0.0
    %4066 = vmatpush1.msra.mxu0 0.0
    %4067 = vmatprep.subr.mxu0 0.0
    %4068 = vmatpush1.msra.mxu0 0.0
    %4069 = vmatprep.subr.mxu0 0.0
    %4070 = vmatpush1.msra.mxu0 0.0
    %4071 = vmatprep.subr.mxu0 0.0
    %4072 = vmatpush1.msra.mxu0 0.0
    %4073 = vmatprep.subr.mxu0 0.0
    %4074 = vmatpush1.msra.mxu0 0.0
    %4075 = vmatprep.subr.mxu0 0.0
    %4076 = vmatpush1.msra.mxu0 0.0
    %4077 = vmatprep.subr.mxu0 0.0
    %4078 = vmatpush1.msra.mxu0 0.0
    %4079 = vmatprep.subr.mxu0 0.0
    %4080 = vmatpush1.msra.mxu0 0.0
    %4081 = vmatprep.subr.mxu0 0.0
    %4082 = vmatpush1.msra.mxu0 0.0
    %4083 = vmatprep.subr.mxu0 0.0
    %4084 = vmatpush1.msra.mxu0 0.0
    %4085 = vmatprep.subr.mxu0 0.0
    %4086 = vmatpush1.msra.mxu0 0.0
    %4087 = vmatprep.subr.mxu0 0.0
    %4088 = vmatpush1.msra.mxu0 0.0
    %4089 = vmatprep.subr.mxu0 0.0
    %4090 = vmatpush1.msra.mxu0 0.0
    %4091 = vmatprep.mubr.f32.mxu0 0.0
    %4092 = vmatmul.mubr.f32.gmra.mrb[0].mxu0 %v4025
    %v4093 = vpop.f32.mrb[0].mxu0
    %v4094 = vadd.f32 0.0, %v4093
    %v4095 = vpop.f32.mrb[0].mxu0
    %4096 = vdwg.mxu0
    %v4097 = vadd.f32 %v3929, %v4094
    %v4098 = vadd.f32 %v4097, %v3350
    %v4099 = vadd.f32 %v3348, %v4098
    %v4100 = vsel %vm622, %v4099, 0.0
    %4101 = vadd.xlane.f32.xlu0 %v4100
    %v4102 = vpop.xlane.xlu0 %4101
    %v4103 = vmul.f32 %v4102, %v1338
    %v4104 = vsub.f32 %v4099, %v4103
    %v4105 = vmul.f32 %v4104, %v4104
    %v4106 = vsel %vm622, %v4105, 0.0
    %4107 = vadd.xlane.f32.xlu0 %v4106
    %v4108 = vpop.xlane.xlu0 %4107
    %v4109 = vmul.f32 %v4108, %v1338
    %v4110 = vadd.f32 %v4109, 1e-05
    %v4111 = vrsqrt.pop %v4110
    %v4112 = vmul.f32 %v4104, %v4111
    %v4113 = vmul.f32 %v4112, %v3351
    %v4114 = vadd.f32 %v4113, %v3352
    %v4115 = vld [vmem:[%s2 + $0x100] sm:$0xff]
    %v4116 = vld [vmem:[%s2 + $0x108] sm:$0xff]
    %v4117 = vld [vmem:[%s2 + $0x110] sm:$0xff]
    %v4118 = vld [vmem:[%s2 + $0x118] sm:$0xff]
    %v4119 = vld [vmem:[%s2 + $0x120] sm:$0xff]
    %v4120 = vld [vmem:[%s2 + $0x128] sm:$0xff]
    %v4121 = vld [vmem:[%s2 + $0x130] sm:$0xff]
    %v4122 = vld [vmem:[%s2 + $0x138] sm:$0xff]
    %v4123 = vld [vmem:[%s2 + $0x140] sm:$0xff]
    %v4124 = vld [vmem:[%s2 + $0x148] sm:$0xff]
    %v4125 = vld [vmem:[%s2 + $0x150] sm:$0xff]
    %v4126 = vld [vmem:[%s2 + $0x158] sm:$0xff]
    %v4127 = vld [vmem:[%s2 + $0x160] sm:$0xff]
    %v4128 = vld [vmem:[%s2 + $0x168] sm:$0xff]
    %v4129 = vld [vmem:[%s2 + $0x170] sm:$0xff]
    %v4130 = vld [vmem:[%s2 + $0x178] sm:$0xff]
    %v4131 = vld [vmem:[%s2 + $0x180] sm:$0xff]
    %v4132 = vld [vmem:[%s2 + $0x188] sm:$0xff]
    %v4133 = vld [vmem:[%s2 + $0x190] sm:$0xff]
    %v4134 = vld [vmem:[%s2 + $0x198] sm:$0xff]
    %v4135 = vld [vmem:[%s2 + $0x1a0] sm:$0xff]
    %v4136 = vld [vmem:[%s2 + $0x1a8] sm:$0xff]
    %v4137 = vld [vmem:[%s2 + $0x1b0] sm:$0xff]
    %v4138 = vld [vmem:[%s2 + $0x1b8] sm:$0xff]
    %v4139 = vld [vmem:[%s2 + $0x1c0] sm:$0xff]
    %v4140 = vld [vmem:[%s2 + $0x1c8] sm:$0xff]
    %v4141 = vld [vmem:[%s2 + $0x1d0] sm:$0xff]
    %v4142 = vld [vmem:[%s2 + $0x1d8] sm:$0xff]
    %v4143 = vld [vmem:[%s2 + $0x1e0] sm:$0xff]
    %v4144 = vld [vmem:[%s2 + $0x1e8] sm:$0xff]
    %v4145 = vld [vmem:[%s2 + $0x1f0] sm:$0xff]
    %v4146 = vld [vmem:[%s2 + $0x1f8] sm:$0xff]
    %v4147 = vpack.c.bf16 %v4114, %v4114
    %v4150 = vlaneseq
    %v4151 = vshrl.u32 %v4150, 7
    %v4152 = vsub.s32 0, %v4151
    %v4153 = vrot.slane %v3359, %v4152
    %v4154 = vlaneseq
    %v4155 = vshrl.u32 %v4154, 7
    %v4156 = vsub.s32 1, %v4155
    %v4157 = vrot.slane %v3359, %v4156
    %v4158 = vlaneseq
    %v4159 = vshrl.u32 %v4158, 7
    %v4160 = vsub.s32 2, %v4159
    %v4161 = vrot.slane %v3359, %v4160
    %v4162 = vlaneseq
    %v4163 = vshrl.u32 %v4162, 7
    %v4164 = vsub.s32 3, %v4163
    %v4165 = vrot.slane %v3359, %v4164
    %v4166 = vlaneseq
    %v4167 = vshrl.u32 %v4166, 7
    %v4168 = vsub.s32 4, %v4167
    %v4169 = vrot.slane %v3359, %v4168
    %v4170 = vlaneseq
    %v4171 = vshrl.u32 %v4170, 7
    %v4172 = vsub.s32 5, %v4171
    %v4173 = vrot.slane %v3359, %v4172
    %v4174 = vlaneseq
    %v4175 = vshrl.u32 %v4174, 7
    %v4176 = vsub.s32 6, %v4175
    %v4177 = vrot.slane %v3359, %v4176
    %v4178 = vlaneseq
    %v4179 = vshrl.u32 %v4178, 7
    %v4180 = vsub.s32 7, %v4179
    %v4181 = vrot.slane %v3359, %v4180
    %v4182 = vlaneseq
    %v4183 = vshrl.u32 %v4182, 7
    %v4184 = vsub.s32 0, %v4183
    %v4185 = vrot.slane %v3363, %v4184
    %v4186 = vlaneseq
    %v4187 = vshrl.u32 %v4186, 7
    %v4188 = vsub.s32 1, %v4187
    %v4189 = vrot.slane %v3363, %v4188
    %v4190 = vlaneseq
    %v4191 = vshrl.u32 %v4190, 7
    %v4192 = vsub.s32 2, %v4191
    %v4193 = vrot.slane %v3363, %v4192
    %v4194 = vlaneseq
    %v4195 = vshrl.u32 %v4194, 7
    %v4196 = vsub.s32 3, %v4195
    %v4197 = vrot.slane %v3363, %v4196
    %v4198 = vlaneseq
    %v4199 = vshrl.u32 %v4198, 7
    %v4200 = vsub.s32 4, %v4199
    %v4201 = vrot.slane %v3363, %v4200
    %v4202 = vlaneseq
    %v4203 = vshrl.u32 %v4202, 7
    %v4204 = vsub.s32 5, %v4203
    %v4205 = vrot.slane %v3363, %v4204
    %v4206 = vlaneseq
    %v4207 = vshrl.u32 %v4206, 7
    %v4208 = vsub.s32 6, %v4207
    %v4209 = vrot.slane %v3363, %v4208
    %v4210 = vlaneseq
    %v4211 = vshrl.u32 %v4210, 7
    %v4212 = vsub.s32 7, %v4211
    %v4213 = vrot.slane %v3363, %v4212
    %v4262 = vunpack.c.l.b16 %v4115
    %v4263 = vunpack.c.h.b16 %v4115
    %v4264 = vunpack.c.l.b16 %v4116
    %v4265 = vunpack.c.h.b16 %v4116
    %v4266 = vunpack.c.l.b16 %v4117
    %v4267 = vunpack.c.h.b16 %v4117
    %v4268 = vunpack.c.l.b16 %v4118
    %v4269 = vunpack.c.h.b16 %v4118
    %v4270 = vunpack.c.l.b16 %v4119
    %v4271 = vunpack.c.h.b16 %v4119
    %v4272 = vunpack.c.l.b16 %v4120
    %v4273 = vunpack.c.h.b16 %v4120
    %v4274 = vunpack.c.l.b16 %v4121
    %v4275 = vunpack.c.h.b16 %v4121
    %v4276 = vunpack.c.l.b16 %v4122
    %v4277 = vunpack.c.h.b16 %v4122
    %v4278 = vunpack.c.l.b16 %v4123
    %v4279 = vunpack.c.h.b16 %v4123
    %v4280 = vunpack.c.l.b16 %v4124
    %v4281 = vunpack.c.h.b16 %v4124
    %v4282 = vunpack.c.l.b16 %v4125
    %v4283 = vunpack.c.h.b16 %v4125
    %v4284 = vunpack.c.l.b16 %v4126
    %v4285 = vunpack.c.h.b16 %v4126
    %v4286 = vunpack.c.l.b16 %v4127
    %v4287 = vunpack.c.h.b16 %v4127
    %v4288 = vunpack.c.l.b16 %v4128
    %v4289 = vunpack.c.h.b16 %v4128
    %v4290 = vunpack.c.l.b16 %v4129
    %v4291 = vunpack.c.h.b16 %v4129
    %v4292 = vunpack.c.l.b16 %v4130
    %v4293 = vunpack.c.h.b16 %v4130
    %v4294 = vunpack.c.l.b16 %v4131
    %v4295 = vunpack.c.h.b16 %v4131
    %v4296 = vunpack.c.l.b16 %v4132
    %v4297 = vunpack.c.h.b16 %v4132
    %v4298 = vunpack.c.l.b16 %v4133
    %v4299 = vunpack.c.h.b16 %v4133
    %v4300 = vunpack.c.l.b16 %v4134
    %v4301 = vunpack.c.h.b16 %v4134
    %v4302 = vunpack.c.l.b16 %v4135
    %v4303 = vunpack.c.h.b16 %v4135
    %v4304 = vunpack.c.l.b16 %v4136
    %v4305 = vunpack.c.h.b16 %v4136
    %v4306 = vunpack.c.l.b16 %v4137
    %v4307 = vunpack.c.h.b16 %v4137
    %v4308 = vunpack.c.l.b16 %v4138
    %v4309 = vunpack.c.h.b16 %v4138
    %v4310 = vunpack.c.l.b16 %v4139
    %v4311 = vunpack.c.h.b16 %v4139
    %v4312 = vunpack.c.l.b16 %v4140
    %v4313 = vunpack.c.h.b16 %v4140
    %v4314 = vunpack.c.l.b16 %v4141
    %v4315 = vunpack.c.h.b16 %v4141
    %v4316 = vunpack.c.l.b16 %v4142
    %v4317 = vunpack.c.h.b16 %v4142
    %v4318 = vunpack.c.l.b16 %v4143
    %v4319 = vunpack.c.h.b16 %v4143
    %v4320 = vunpack.c.l.b16 %v4144
    %v4321 = vunpack.c.h.b16 %v4144
    %v4322 = vunpack.c.l.b16 %v4145
    %v4323 = vunpack.c.h.b16 %v4145
    %v4324 = vunpack.c.l.b16 %v4146
    %v4325 = vunpack.c.h.b16 %v4146
    %v4326 = vpack.c.b16 %v4278, %v4262
    %v4327 = vpack.c.b16 %v4279, %v4263
    %v4328 = vpack.c.b16 %v4280, %v4264
    %v4329 = vpack.c.b16 %v4281, %v4265
    %v4330 = vpack.c.b16 %v4282, %v4266
    %v4331 = vpack.c.b16 %v4283, %v4267
    %v4332 = vpack.c.b16 %v4284, %v4268
    %v4333 = vpack.c.b16 %v4285, %v4269
    %v4334 = vpack.c.b16 %v4286, %v4270
    %v4335 = vpack.c.b16 %v4287, %v4271
    %v4336 = vpack.c.b16 %v4288, %v4272
    %v4337 = vpack.c.b16 %v4289, %v4273
    %v4338 = vpack.c.b16 %v4290, %v4274
    %v4339 = vpack.c.b16 %v4291, %v4275
    %v4340 = vpack.c.b16 %v4292, %v4276
    %v4341 = vpack.c.b16 %v4293, %v4277
    %v4342 = vpack.c.b16 %v4310, %v4294
    %v4343 = vpack.c.b16 %v4311, %v4295
    %v4344 = vpack.c.b16 %v4312, %v4296
    %v4345 = vpack.c.b16 %v4313, %v4297
    %v4346 = vpack.c.b16 %v4314, %v4298
    %v4347 = vpack.c.b16 %v4315, %v4299
    %v4348 = vpack.c.b16 %v4316, %v4300
    %v4349 = vpack.c.b16 %v4317, %v4301
    %v4350 = vpack.c.b16 %v4318, %v4302
    %v4351 = vpack.c.b16 %v4319, %v4303
    %v4352 = vpack.c.b16 %v4320, %v4304
    %v4353 = vpack.c.b16 %v4321, %v4305
    %v4354 = vpack.c.b16 %v4322, %v4306
    %v4355 = vpack.c.b16 %v4323, %v4307
    %v4356 = vpack.c.b16 %v4324, %v4308
    %v4357 = vpack.c.b16 %v4325, %v4309
    %v4391 = vsel %vm622, %v4147, 0
    %4393 = vmatprep.subr.bf16.mxu0 %v4327
    %4394 = vmatpush1.bf16.msra.mxu0 %v4326
    %4395 = vmatprep.subr.bf16.mxu0 %v4343
    %4396 = vmatpush1.bf16.msra.mxu0 %v4342
    %4397 = vmatprep.subr.bf16.mxu0 0
    %4398 = vmatpush1.bf16.msra.mxu0 0
    %4399 = vmatprep.subr.bf16.mxu0 0
    %4400 = vmatpush1.bf16.msra.mxu0 0
    %4401 = vmatprep.subr.bf16.mxu0 0
    %4402 = vmatpush1.bf16.msra.mxu0 0
    %4403 = vmatprep.subr.bf16.mxu0 0
    %4404 = vmatpush1.bf16.msra.mxu0 0
    %4405 = vmatprep.subr.bf16.mxu0 0
    %4406 = vmatpush1.bf16.msra.mxu0 0
    %4407 = vmatprep.subr.bf16.mxu0 0
    %4408 = vmatpush1.bf16.msra.mxu0 0
    %4409 = vmatprep.subr.bf16.mxu0 0
    %4410 = vmatpush1.bf16.msra.mxu0 0
    %4411 = vmatprep.subr.bf16.mxu0 0
    %4412 = vmatpush1.bf16.msra.mxu0 0
    %4413 = vmatprep.subr.bf16.mxu0 0
    %4414 = vmatpush1.bf16.msra.mxu0 0
    %4415 = vmatprep.subr.bf16.mxu0 0
    %4416 = vmatpush1.bf16.msra.mxu0 0
    %4417 = vmatprep.subr.bf16.mxu0 0
    %4418 = vmatpush1.bf16.msra.mxu0 0
    %4419 = vmatprep.subr.bf16.mxu0 0
    %4420 = vmatpush1.bf16.msra.mxu0 0
    %4421 = vmatprep.subr.bf16.mxu0 0
    %4422 = vmatpush1.bf16.msra.mxu0 0
    %4423 = vmatprep.subr.bf16.mxu0 0
    %4424 = vmatpush1.bf16.msra.mxu0 0
    %4425 = vmatprep.mubr.bf16.mxu0 0
    %4426 = vmatmul.mubr.bf16.gmra.mrb[0].mxu0 %v4391
    %v4427 = vpop.f32.mrb[0].mxu0
    %v4428 = vadd.f32 %v4153, %v4427
    %v4429 = vpop.f32.mrb[0].mxu0
    %v4430 = vadd.f32 %v4157, %v4429
    %v4431 = vpop.f32.mrb[0].mxu0
    %v4432 = vpop.f32.mrb[0].mxu0
    %4433 = vdwg.mxu0
    %4434 = vmatprep.subr.bf16.mxu0 %v4329
    %4435 = vmatpush1.bf16.msra.mxu0 %v4328
    %4436 = vmatprep.subr.bf16.mxu0 %v4345
    %4437 = vmatpush1.bf16.msra.mxu0 %v4344
    %4438 = vmatprep.subr.bf16.mxu0 0
    %4439 = vmatpush1.bf16.msra.mxu0 0
    %4440 = vmatprep.subr.bf16.mxu0 0
    %4441 = vmatpush1.bf16.msra.mxu0 0
    %4442 = vmatprep.subr.bf16.mxu0 0
    %4443 = vmatpush1.bf16.msra.mxu0 0
    %4444 = vmatprep.subr.bf16.mxu0 0
    %4445 = vmatpush1.bf16.msra.mxu0 0
    %4446 = vmatprep.subr.bf16.mxu0 0
    %4447 = vmatpush1.bf16.msra.mxu0 0
    %4448 = vmatprep.subr.bf16.mxu0 0
    %4449 = vmatpush1.bf16.msra.mxu0 0
    %4450 = vmatprep.subr.bf16.mxu0 0
    %4451 = vmatpush1.bf16.msra.mxu0 0
    %4452 = vmatprep.subr.bf16.mxu0 0
    %4453 = vmatpush1.bf16.msra.mxu0 0
    %4454 = vmatprep.subr.bf16.mxu0 0
    %4455 = vmatpush1.bf16.msra.mxu0 0
    %4456 = vmatprep.subr.bf16.mxu0 0
    %4457 = vmatpush1.bf16.msra.mxu0 0
    %4458 = vmatprep.subr.bf16.mxu0 0
    %4459 = vmatpush1.bf16.msra.mxu0 0
    %4460 = vmatprep.subr.bf16.mxu0 0
    %4461 = vmatpush1.bf16.msra.mxu0 0
    %4462 = vmatprep.subr.bf16.mxu0 0
    %4463 = vmatpush1.bf16.msra.mxu0 0
    %4464 = vmatprep.subr.bf16.mxu0 0
    %4465 = vmatpush1.bf16.msra.mxu0 0
    %4466 = vmatprep.mubr.bf16.mxu0 0
    %4467 = vmatmul.mubr.bf16.gmra.mrb[0].mxu0 %v4391
    %v4468 = vpop.f32.mrb[0].mxu0
    %v4469 = vadd.f32 %v4161, %v4468
    %v4470 = vpop.f32.mrb[0].mxu0
    %v4471 = vadd.f32 %v4165, %v4470
    %v4472 = vpop.f32.mrb[0].mxu0
    %v4473 = vpop.f32.mrb[0].mxu0
    %4474 = vdwg.mxu0
    %4475 = vmatprep.subr.bf16.mxu0 %v4331
    %4476 = vmatpush1.bf16.msra.mxu0 %v4330
    %4477 = vmatprep.subr.bf16.mxu0 %v4347
    %4478 = vmatpush1.bf16.msra.mxu0 %v4346
    %4479 = vmatprep.subr.bf16.mxu0 0
    %4480 = vmatpush1.bf16.msra.mxu0 0
    %4481 = vmatprep.subr.bf16.mxu0 0
    %4482 = vmatpush1.bf16.msra.mxu0 0
    %4483 = vmatprep.subr.bf16.mxu0 0
    %4484 = vmatpush1.bf16.msra.mxu0 0
    %4485 = vmatprep.subr.bf16.mxu0 0
    %4486 = vmatpush1.bf16.msra.mxu0 0
    %4487 = vmatprep.subr.bf16.mxu0 0
    %4488 = vmatpush1.bf16.msra.mxu0 0
    %4489 = vmatprep.subr.bf16.mxu0 0
    %4490 = vmatpush1.bf16.msra.mxu0 0
    %4491 = vmatprep.subr.bf16.mxu0 0
    %4492 = vmatpush1.bf16.msra.mxu0 0
    %4493 = vmatprep.subr.bf16.mxu0 0
    %4494 = vmatpush1.bf16.msra.mxu0 0
    %4495 = vmatprep.subr.bf16.mxu0 0
    %4496 = vmatpush1.bf16.msra.mxu0 0
    %4497 = vmatprep.subr.bf16.mxu0 0
    %4498 = vmatpush1.bf16.msra.mxu0 0
    %4499 = vmatprep.subr.bf16.mxu0 0
    %4500 = vmatpush1.bf16.msra.mxu0 0
    %4501 = vmatprep.subr.bf16.mxu0 0
    %4502 = vmatpush1.bf16.msra.mxu0 0
    %4503 = vmatprep.subr.bf16.mxu0 0
    %4504 = vmatpush1.bf16.msra.mxu0 0
    %4505 = vmatprep.subr.bf16.mxu0 0
    %4506 = vmatpush1.bf16.msra.mxu0 0
    %4507 = vmatprep.mubr.bf16.mxu0 0
    %4508 = vmatmul.mubr.bf16.gmra.mrb[0].mxu0 %v4391
    %v4509 = vpop.f32.mrb[0].mxu0
    %v4510 = vadd.f32 %v4169, %v4509
    %v4511 = vpop.f32.mrb[0].mxu0
    %v4512 = vadd.f32 %v4173, %v4511
    %v4513 = vpop.f32.mrb[0].mxu0
    %v4514 = vpop.f32.mrb[0].mxu0
    %4515 = vdwg.mxu0
    %4516 = vmatprep.subr.bf16.mxu0 %v4333
    %4517 = vmatpush1.bf16.msra.mxu0 %v4332
    %4518 = vmatprep.subr.bf16.mxu0 %v4349
    %4519 = vmatpush1.bf16.msra.mxu0 %v4348
    %4520 = vmatprep.subr.bf16.mxu0 0
    %4521 = vmatpush1.bf16.msra.mxu0 0
    %4522 = vmatprep.subr.bf16.mxu0 0
    %4523 = vmatpush1.bf16.msra.mxu0 0
    %4524 = vmatprep.subr.bf16.mxu0 0
    %4525 = vmatpush1.bf16.msra.mxu0 0
    %4526 = vmatprep.subr.bf16.mxu0 0
    %4527 = vmatpush1.bf16.msra.mxu0 0
    %4528 = vmatprep.subr.bf16.mxu0 0
    %4529 = vmatpush1.bf16.msra.mxu0 0
    %4530 = vmatprep.subr.bf16.mxu0 0
    %4531 = vmatpush1.bf16.msra.mxu0 0
    %4532 = vmatprep.subr.bf16.mxu0 0
    %4533 = vmatpush1.bf16.msra.mxu0 0
    %4534 = vmatprep.subr.bf16.mxu0 0
    %4535 = vmatpush1.bf16.msra.mxu0 0
    %4536 = vmatprep.subr.bf16.mxu0 0
    %4537 = vmatpush1.bf16.msra.mxu0 0
    %4538 = vmatprep.subr.bf16.mxu0 0
    %4539 = vmatpush1.bf16.msra.mxu0 0
    %4540 = vmatprep.subr.bf16.mxu0 0
    %4541 = vmatpush1.bf16.msra.mxu0 0
    %4542 = vmatprep.subr.bf16.mxu0 0
    %4543 = vmatpush1.bf16.msra.mxu0 0
    %4544 = vmatprep.subr.bf16.mxu0 0
    %4545 = vmatpush1.bf16.msra.mxu0 0
    %4546 = vmatprep.subr.bf16.mxu0 0
    %4547 = vmatpush1.bf16.msra.mxu0 0
    %4548 = vmatprep.mubr.bf16.mxu0 0
    %4549 = vmatmul.mubr.bf16.gmra.mrb[0].mxu0 %v4391
    %v4550 = vpop.f32.mrb[0].mxu0
    %v4551 = vadd.f32 %v4177, %v4550
    %v4552 = vpop.f32.mrb[0].mxu0
    %v4553 = vadd.f32 %v4181, %v4552
    %v4554 = vpop.f32.mrb[0].mxu0
    %v4555 = vpop.f32.mrb[0].mxu0
    %4556 = vdwg.mxu0
    %4557 = vmatprep.subr.bf16.mxu0 %v4335
    %4558 = vmatpush1.bf16.msra.mxu0 %v4334
    %4559 = vmatprep.subr.bf16.mxu0 %v4351
    %4560 = vmatpush1.bf16.msra.mxu0 %v4350
    %4561 = vmatprep.subr.bf16.mxu0 0
    %4562 = vmatpush1.bf16.msra.mxu0 0
    %4563 = vmatprep.subr.bf16.mxu0 0
    %4564 = vmatpush1.bf16.msra.mxu0 0
    %4565 = vmatprep.subr.bf16.mxu0 0
    %4566 = vmatpush1.bf16.msra.mxu0 0
    %4567 = vmatprep.subr.bf16.mxu0 0
    %4568 = vmatpush1.bf16.msra.mxu0 0
    %4569 = vmatprep.subr.bf16.mxu0 0
    %4570 = vmatpush1.bf16.msra.mxu0 0
    %4571 = vmatprep.subr.bf16.mxu0 0
    %4572 = vmatpush1.bf16.msra.mxu0 0
    %4573 = vmatprep.subr.bf16.mxu0 0
    %4574 = vmatpush1.bf16.msra.mxu0 0
    %4575 = vmatprep.subr.bf16.mxu0 0
    %4576 = vmatpush1.bf16.msra.mxu0 0
    %4577 = vmatprep.subr.bf16.mxu0 0
    %4578 = vmatpush1.bf16.msra.mxu0 0
    %4579 = vmatprep.subr.bf16.mxu0 0
    %4580 = vmatpush1.bf16.msra.mxu0 0
    %4581 = vmatprep.subr.bf16.mxu0 0
    %4582 = vmatpush1.bf16.msra.mxu0 0
    %4583 = vmatprep.subr.bf16.mxu0 0
    %4584 = vmatpush1.bf16.msra.mxu0 0
    %4585 = vmatprep.subr.bf16.mxu0 0
    %4586 = vmatpush1.bf16.msra.mxu0 0
    %4587 = vmatprep.subr.bf16.mxu0 0
    %4588 = vmatpush1.bf16.msra.mxu0 0
    %4589 = vmatprep.mubr.bf16.mxu0 0
    %4590 = vmatmul.mubr.bf16.gmra.mrb[0].mxu0 %v4391
    %v4591 = vpop.f32.mrb[0].mxu0
    %v4592 = vadd.f32 %v4185, %v4591
    %v4593 = vpop.f32.mrb[0].mxu0
    %v4594 = vadd.f32 %v4189, %v4593
    %v4595 = vpop.f32.mrb[0].mxu0
    %v4596 = vpop.f32.mrb[0].mxu0
    %4597 = vdwg.mxu0
    %4598 = vmatprep.subr.bf16.mxu0 %v4337
    %4599 = vmatpush1.bf16.msra.mxu0 %v4336
    %4600 = vmatprep.subr.bf16.mxu0 %v4353
    %4601 = vmatpush1.bf16.msra.mxu0 %v4352
    %4602 = vmatprep.subr.bf16.mxu0 0
    %4603 = vmatpush1.bf16.msra.mxu0 0
    %4604 = vmatprep.subr.bf16.mxu0 0
    %4605 = vmatpush1.bf16.msra.mxu0 0
    %4606 = vmatprep.subr.bf16.mxu0 0
    %4607 = vmatpush1.bf16.msra.mxu0 0
    %4608 = vmatprep.subr.bf16.mxu0 0
    %4609 = vmatpush1.bf16.msra.mxu0 0
    %4610 = vmatprep.subr.bf16.mxu0 0
    %4611 = vmatpush1.bf16.msra.mxu0 0
    %4612 = vmatprep.subr.bf16.mxu0 0
    %4613 = vmatpush1.bf16.msra.mxu0 0
    %4614 = vmatprep.subr.bf16.mxu0 0
    %4615 = vmatpush1.bf16.msra.mxu0 0
    %4616 = vmatprep.subr.bf16.mxu0 0
    %4617 = vmatpush1.bf16.msra.mxu0 0
    %4618 = vmatprep.subr.bf16.mxu0 0
    %4619 = vmatpush1.bf16.msra.mxu0 0
    %4620 = vmatprep.subr.bf16.mxu0 0
    %4621 = vmatpush1.bf16.msra.mxu0 0
    %4622 = vmatprep.subr.bf16.mxu0 0
    %4623 = vmatpush1.bf16.msra.mxu0 0
    %4624 = vmatprep.subr.bf16.mxu0 0
    %4625 = vmatpush1.bf16.msra.mxu0 0
    %4626 = vmatprep.subr.bf16.mxu0 0
    %4627 = vmatpush1.bf16.msra.mxu0 0
    %4628 = vmatprep.subr.bf16.mxu0 0
    %4629 = vmatpush1.bf16.msra.mxu0 0
    %4630 = vmatprep.mubr.bf16.mxu0 0
    %4631 = vmatmul.mubr.bf16.gmra.mrb[0].mxu0 %v4391
    %v4632 = vpop.f32.mrb[0].mxu0
    %v4633 = vadd.f32 %v4193, %v4632
    %v4634 = vpop.f32.mrb[0].mxu0
    %v4635 = vadd.f32 %v4197, %v4634
    %v4636 = vpop.f32.mrb[0].mxu0
    %v4637 = vpop.f32.mrb[0].mxu0
    %4638 = vdwg.mxu0
    %4639 = vmatprep.subr.bf16.mxu0 %v4339
    %4640 = vmatpush1.bf16.msra.mxu0 %v4338
    %4641 = vmatprep.subr.bf16.mxu0 %v4355
    %4642 = vmatpush1.bf16.msra.mxu0 %v4354
    %4643 = vmatprep.subr.bf16.mxu0 0
    %4644 = vmatpush1.bf16.msra.mxu0 0
    %4645 = vmatprep.subr.bf16.mxu0 0
    %4646 = vmatpush1.bf16.msra.mxu0 0
    %4647 = vmatprep.subr.bf16.mxu0 0
    %4648 = vmatpush1.bf16.msra.mxu0 0
    %4649 = vmatprep.subr.bf16.mxu0 0
    %4650 = vmatpush1.bf16.msra.mxu0 0
    %4651 = vmatprep.subr.bf16.mxu0 0
    %4652 = vmatpush1.bf16.msra.mxu0 0
    %4653 = vmatprep.subr.bf16.mxu0 0
    %4654 = vmatpush1.bf16.msra.mxu0 0
    %4655 = vmatprep.subr.bf16.mxu0 0
    %4656 = vmatpush1.bf16.msra.mxu0 0
    %4657 = vmatprep.subr.bf16.mxu0 0
    %4658 = vmatpush1.bf16.msra.mxu0 0
    %4659 = vmatprep.subr.bf16.mxu0 0
    %4660 = vmatpush1.bf16.msra.mxu0 0
    %4661 = vmatprep.subr.bf16.mxu0 0
    %4662 = vmatpush1.bf16.msra.mxu0 0
    %4663 = vmatprep.subr.bf16.mxu0 0
    %4664 = vmatpush1.bf16.msra.mxu0 0
    %4665 = vmatprep.subr.bf16.mxu0 0
    %4666 = vmatpush1.bf16.msra.mxu0 0
    %4667 = vmatprep.subr.bf16.mxu0 0
    %4668 = vmatpush1.bf16.msra.mxu0 0
    %4669 = vmatprep.subr.bf16.mxu0 0
    %4670 = vmatpush1.bf16.msra.mxu0 0
    %4671 = vmatprep.mubr.bf16.mxu0 0
    %4672 = vmatmul.mubr.bf16.gmra.mrb[0].mxu0 %v4391
    %v4673 = vpop.f32.mrb[0].mxu0
    %v4674 = vadd.f32 %v4201, %v4673
    %v4675 = vpop.f32.mrb[0].mxu0
    %v4676 = vadd.f32 %v4205, %v4675
    %v4677 = vpop.f32.mrb[0].mxu0
    %v4678 = vpop.f32.mrb[0].mxu0
    %4679 = vdwg.mxu0
    %4680 = vmatprep.subr.bf16.mxu0 %v4341
    %4681 = vmatpush1.bf16.msra.mxu0 %v4340
    %4682 = vmatprep.subr.bf16.mxu0 %v4357
    %4683 = vmatpush1.bf16.msra.mxu0 %v4356
    %4684 = vmatprep.subr.bf16.mxu0 0
    %4685 = vmatpush1.bf16.msra.mxu0 0
    %4686 = vmatprep.subr.bf16.mxu0 0
    %4687 = vmatpush1.bf16.msra.mxu0 0
    %4688 = vmatprep.subr.bf16.mxu0 0
    %4689 = vmatpush1.bf16.msra.mxu0 0
    %4690 = vmatprep.subr.bf16.mxu0 0
    %4691 = vmatpush1.bf16.msra.mxu0 0
    %4692 = vmatprep.subr.bf16.mxu0 0
    %4693 = vmatpush1.bf16.msra.mxu0 0
    %4694 = vmatprep.subr.bf16.mxu0 0
    %4695 = vmatpush1.bf16.msra.mxu0 0
    %4696 = vmatprep.subr.bf16.mxu0 0
    %4697 = vmatpush1.bf16.msra.mxu0 0
    %4698 = vmatprep.subr.bf16.mxu0 0
    %4699 = vmatpush1.bf16.msra.mxu0 0
    %4700 = vmatprep.subr.bf16.mxu0 0
    %4701 = vmatpush1.bf16.msra.mxu0 0
    %4702 = vmatprep.subr.bf16.mxu0 0
    %4703 = vmatpush1.bf16.msra.mxu0 0
    %4704 = vmatprep.subr.bf16.mxu0 0
    %4705 = vmatpush1.bf16.msra.mxu0 0
    %4706 = vmatprep.subr.bf16.mxu0 0
    %4707 = vmatpush1.bf16.msra.mxu0 0
    %4708 = vmatprep.subr.bf16.mxu0 0
    %4709 = vmatpush1.bf16.msra.mxu0 0
    %4710 = vmatprep.subr.bf16.mxu0 0
    %4711 = vmatpush1.bf16.msra.mxu0 0
    %4712 = vmatprep.mubr.bf16.mxu0 0
    %4713 = vmatmul.mubr.bf16.gmra.mrb[0].mxu0 %v4391
    %v4714 = vpop.f32.mrb[0].mxu0
    %v4715 = vadd.f32 %v4209, %v4714
    %v4716 = vpop.f32.mrb[0].mxu0
    %v4717 = vadd.f32 %v4213, %v4716
    %v4718 = vpop.f32.mrb[0].mxu0
    %v4719 = vpop.f32.mrb[0].mxu0
    %4720 = vdwg.mxu0
    %v4721 = vmax.f32 %v4428, 0.0
    %v4722 = vmax.f32 %v4430, 0.0
    %v4723 = vmax.f32 %v4469, 0.0
    %v4724 = vmax.f32 %v4471, 0.0
    %v4725 = vmax.f32 %v4510, 0.0
    %v4726 = vmax.f32 %v4512, 0.0
    %v4727 = vmax.f32 %v4551, 0.0
    %v4728 = vmax.f32 %v4553, 0.0
    %v4729 = vmax.f32 %v4592, 0.0
    %v4730 = vmax.f32 %v4594, 0.0
    %v4731 = vmax.f32 %v4633, 0.0
    %v4732 = vmax.f32 %v4635, 0.0
    %v4733 = vmax.f32 %v4674, 0.0
    %v4734 = vmax.f32 %v4676, 0.0
    %v4735 = vmax.f32 %v4715, 0.0
    %v4736 = vmax.f32 %v4717, 0.0
    %v4737 = vld [vmem:[%s3 + $0x500] sm:$0xf]
    %v4738 = vld [vmem:[%s3 + $0x504] sm:$0xf]
    %v4739 = vld [vmem:[%s3 + $0x508] sm:$0xf]
    %v4740 = vld [vmem:[%s3 + $0x50c] sm:$0xf]
    %v4741 = vld [vmem:[%s3 + $0x510] sm:$0xf]
    %v4742 = vld [vmem:[%s3 + $0x514] sm:$0xf]
    %v4743 = vld [vmem:[%s3 + $0x518] sm:$0xf]
    %v4744 = vld [vmem:[%s3 + $0x51c] sm:$0xf]
    %v4745 = vld [vmem:[%s3 + $0x520] sm:$0xf]
    %v4746 = vld [vmem:[%s3 + $0x524] sm:$0xf]
    %v4747 = vld [vmem:[%s3 + $0x528] sm:$0xf]
    %v4748 = vld [vmem:[%s3 + $0x52c] sm:$0xf]
    %v4749 = vld [vmem:[%s3 + $0x530] sm:$0xf]
    %v4750 = vld [vmem:[%s3 + $0x534] sm:$0xf]
    %v4751 = vld [vmem:[%s3 + $0x538] sm:$0xf]
    %v4752 = vld [vmem:[%s3 + $0x53c] sm:$0xf]
    %v4753 = vld [vmem:[%s3 + $0x540] sm:$0xf]
    %v4754 = vld [vmem:[%s3 + $0x544] sm:$0xf]
    %v4755 = vld [vmem:[%s3 + $0x548] sm:$0xf]
    %v4756 = vld [vmem:[%s3 + $0x54c] sm:$0xf]
    %v4757 = vld [vmem:[%s3 + $0x550] sm:$0xf]
    %v4758 = vld [vmem:[%s3 + $0x554] sm:$0xf]
    %v4759 = vld [vmem:[%s3 + $0x558] sm:$0xf]
    %v4760 = vld [vmem:[%s3 + $0x55c] sm:$0xf]
    %v4761 = vld [vmem:[%s3 + $0x560] sm:$0xf]
    %v4762 = vld [vmem:[%s3 + $0x564] sm:$0xf]
    %v4763 = vld [vmem:[%s3 + $0x568] sm:$0xf]
    %v4764 = vld [vmem:[%s3 + $0x56c] sm:$0xf]
    %v4765 = vld [vmem:[%s3 + $0x570] sm:$0xf]
    %v4766 = vld [vmem:[%s3 + $0x574] sm:$0xf]
    %v4767 = vld [vmem:[%s3 + $0x578] sm:$0xf]
    %v4768 = vld [vmem:[%s3 + $0x57c] sm:$0xf]
    %v4769 = vld [vmem:[%s3 + $0x580] sm:$0xf]
    %v4770 = vld [vmem:[%s3 + $0x584] sm:$0xf]
    %v4771 = vld [vmem:[%s3 + $0x588] sm:$0xf]
    %v4772 = vld [vmem:[%s3 + $0x58c] sm:$0xf]
    %v4773 = vld [vmem:[%s3 + $0x590] sm:$0xf]
    %v4774 = vld [vmem:[%s3 + $0x594] sm:$0xf]
    %v4775 = vld [vmem:[%s3 + $0x598] sm:$0xf]
    %v4776 = vld [vmem:[%s3 + $0x59c] sm:$0xf]
    %v4777 = vld [vmem:[%s3 + $0x5a0] sm:$0xf]
    %v4778 = vld [vmem:[%s3 + $0x5a4] sm:$0xf]
    %v4779 = vld [vmem:[%s3 + $0x5a8] sm:$0xf]
    %v4780 = vld [vmem:[%s3 + $0x5ac] sm:$0xf]
    %v4781 = vld [vmem:[%s3 + $0x5b0] sm:$0xf]
    %v4782 = vld [vmem:[%s3 + $0x5b4] sm:$0xf]
    %v4783 = vld [vmem:[%s3 + $0x5b8] sm:$0xf]
    %v4784 = vld [vmem:[%s3 + $0x5bc] sm:$0xf]
    %v4785 = vld [vmem:[%s3 + $0x5c0] sm:$0xf]
    %v4786 = vld [vmem:[%s3 + $0x5c4] sm:$0xf]
    %v4787 = vld [vmem:[%s3 + $0x5c8] sm:$0xf]
    %v4788 = vld [vmem:[%s3 + $0x5cc] sm:$0xf]
    %v4789 = vld [vmem:[%s3 + $0x5d0] sm:$0xf]
    %v4790 = vld [vmem:[%s3 + $0x5d4] sm:$0xf]
    %v4791 = vld [vmem:[%s3 + $0x5d8] sm:$0xf]
    %v4792 = vld [vmem:[%s3 + $0x5dc] sm:$0xf]
    %v4793 = vld [vmem:[%s3 + $0x5e0] sm:$0xf]
    %v4794 = vld [vmem:[%s3 + $0x5e4] sm:$0xf]
    %v4795 = vld [vmem:[%s3 + $0x5e8] sm:$0xf]
    %v4796 = vld [vmem:[%s3 + $0x5ec] sm:$0xf]
    %v4797 = vld [vmem:[%s3 + $0x5f0] sm:$0xf]
    %v4798 = vld [vmem:[%s3 + $0x5f4] sm:$0xf]
    %v4799 = vld [vmem:[%s3 + $0x5f8] sm:$0xf]
    %v4800 = vld [vmem:[%s3 + $0x5fc] sm:$0xf]
    %v4801 = vld [vmem:[%s3 + $0x600] sm:$0xf]
    %v4802 = vld [vmem:[%s3 + $0x604] sm:$0xf]
    %v4803 = vld [vmem:[%s3 + $0x608] sm:$0xf]
    %v4804 = vld [vmem:[%s3 + $0x60c] sm:$0xf]
    %v4805 = vld [vmem:[%s3 + $0x610] sm:$0xf]
    %v4806 = vld [vmem:[%s3 + $0x614] sm:$0xf]
    %v4807 = vld [vmem:[%s3 + $0x618] sm:$0xf]
    %v4808 = vld [vmem:[%s3 + $0x61c] sm:$0xf]
    %v4809 = vld [vmem:[%s3 + $0x620] sm:$0xf]
    %v4810 = vld [vmem:[%s3 + $0x624] sm:$0xf]
    %v4811 = vld [vmem:[%s3 + $0x628] sm:$0xf]
    %v4812 = vld [vmem:[%s3 + $0x62c] sm:$0xf]
    %v4813 = vld [vmem:[%s3 + $0x630] sm:$0xf]
    %v4814 = vld [vmem:[%s3 + $0x634] sm:$0xf]
    %v4815 = vld [vmem:[%s3 + $0x638] sm:$0xf]
    %v4816 = vld [vmem:[%s3 + $0x63c] sm:$0xf]
    %v4817 = vld [vmem:[%s3 + $0x640] sm:$0xf]
    %v4818 = vld [vmem:[%s3 + $0x644] sm:$0xf]
    %v4819 = vld [vmem:[%s3 + $0x648] sm:$0xf]
    %v4820 = vld [vmem:[%s3 + $0x64c] sm:$0xf]
    %v4821 = vld [vmem:[%s3 + $0x650] sm:$0xf]
    %v4822 = vld [vmem:[%s3 + $0x654] sm:$0xf]
    %v4823 = vld [vmem:[%s3 + $0x658] sm:$0xf]
    %v4824 = vld [vmem:[%s3 + $0x65c] sm:$0xf]
    %v4825 = vld [vmem:[%s3 + $0x660] sm:$0xf]
    %v4826 = vld [vmem:[%s3 + $0x664] sm:$0xf]
    %v4827 = vld [vmem:[%s3 + $0x668] sm:$0xf]
    %v4828 = vld [vmem:[%s3 + $0x66c] sm:$0xf]
    %v4829 = vld [vmem:[%s3 + $0x670] sm:$0xf]
    %v4830 = vld [vmem:[%s3 + $0x674] sm:$0xf]
    %v4831 = vld [vmem:[%s3 + $0x678] sm:$0xf]
    %v4832 = vld [vmem:[%s3 + $0x67c] sm:$0xf]
    %v4833 = vld [vmem:[%s3 + $0x680] sm:$0xf]
    %v4834 = vld [vmem:[%s3 + $0x684] sm:$0xf]
    %v4835 = vld [vmem:[%s3 + $0x688] sm:$0xf]
    %v4836 = vld [vmem:[%s3 + $0x68c] sm:$0xf]
    %v4837 = vld [vmem:[%s3 + $0x690] sm:$0xf]
    %v4838 = vld [vmem:[%s3 + $0x694] sm:$0xf]
    %v4839 = vld [vmem:[%s3 + $0x698] sm:$0xf]
    %v4840 = vld [vmem:[%s3 + $0x69c] sm:$0xf]
    %v4841 = vld [vmem:[%s3 + $0x6a0] sm:$0xf]
    %v4842 = vld [vmem:[%s3 + $0x6a4] sm:$0xf]
    %v4843 = vld [vmem:[%s3 + $0x6a8] sm:$0xf]
    %v4844 = vld [vmem:[%s3 + $0x6ac] sm:$0xf]
    %v4845 = vld [vmem:[%s3 + $0x6b0] sm:$0xf]
    %v4846 = vld [vmem:[%s3 + $0x6b4] sm:$0xf]
    %v4847 = vld [vmem:[%s3 + $0x6b8] sm:$0xf]
    %v4848 = vld [vmem:[%s3 + $0x6bc] sm:$0xf]
    %v4849 = vld [vmem:[%s3 + $0x6c0] sm:$0xf]
    %v4850 = vld [vmem:[%s3 + $0x6c4] sm:$0xf]
    %v4851 = vld [vmem:[%s3 + $0x6c8] sm:$0xf]
    %v4852 = vld [vmem:[%s3 + $0x6cc] sm:$0xf]
    %v4853 = vld [vmem:[%s3 + $0x6d0] sm:$0xf]
    %v4854 = vld [vmem:[%s3 + $0x6d4] sm:$0xf]
    %v4855 = vld [vmem:[%s3 + $0x6d8] sm:$0xf]
    %v4856 = vld [vmem:[%s3 + $0x6dc] sm:$0xf]
    %v4857 = vld [vmem:[%s3 + $0x6e0] sm:$0xf]
    %v4858 = vld [vmem:[%s3 + $0x6e4] sm:$0xf]
    %v4859 = vld [vmem:[%s3 + $0x6e8] sm:$0xf]
    %v4860 = vld [vmem:[%s3 + $0x6ec] sm:$0xf]
    %v4861 = vld [vmem:[%s3 + $0x6f0] sm:$0xf]
    %v4862 = vld [vmem:[%s3 + $0x6f4] sm:$0xf]
    %v4863 = vld [vmem:[%s3 + $0x6f8] sm:$0xf]
    %v4864 = vld [vmem:[%s3 + $0x6fc] sm:$0xf]
    %v4865 = vld [vmem:[%s3 + $0x700] sm:$0xf]
    %v4866 = vld [vmem:[%s3 + $0x704] sm:$0xf]
    %v4867 = vld [vmem:[%s3 + $0x708] sm:$0xf]
    %v4868 = vld [vmem:[%s3 + $0x70c] sm:$0xf]
    %v4869 = vld [vmem:[%s3 + $0x710] sm:$0xf]
    %v4870 = vld [vmem:[%s3 + $0x714] sm:$0xf]
    %v4871 = vld [vmem:[%s3 + $0x718] sm:$0xf]
    %v4872 = vld [vmem:[%s3 + $0x71c] sm:$0xf]
    %v4873 = vld [vmem:[%s3 + $0x720] sm:$0xf]
    %v4874 = vld [vmem:[%s3 + $0x724] sm:$0xf]
    %v4875 = vld [vmem:[%s3 + $0x728] sm:$0xf]
    %v4876 = vld [vmem:[%s3 + $0x72c] sm:$0xf]
    %v4877 = vld [vmem:[%s3 + $0x730] sm:$0xf]
    %v4878 = vld [vmem:[%s3 + $0x734] sm:$0xf]
    %v4879 = vld [vmem:[%s3 + $0x738] sm:$0xf]
    %v4880 = vld [vmem:[%s3 + $0x73c] sm:$0xf]
    %v4881 = vld [vmem:[%s3 + $0x740] sm:$0xf]
    %v4882 = vld [vmem:[%s3 + $0x744] sm:$0xf]
    %v4883 = vld [vmem:[%s3 + $0x748] sm:$0xf]
    %v4884 = vld [vmem:[%s3 + $0x74c] sm:$0xf]
    %v4885 = vld [vmem:[%s3 + $0x750] sm:$0xf]
    %v4886 = vld [vmem:[%s3 + $0x754] sm:$0xf]
    %v4887 = vld [vmem:[%s3 + $0x758] sm:$0xf]
    %v4888 = vld [vmem:[%s3 + $0x75c] sm:$0xf]
    %v4889 = vld [vmem:[%s3 + $0x760] sm:$0xf]
    %v4890 = vld [vmem:[%s3 + $0x764] sm:$0xf]
    %v4891 = vld [vmem:[%s3 + $0x768] sm:$0xf]
    %v4892 = vld [vmem:[%s3 + $0x76c] sm:$0xf]
    %v4893 = vld [vmem:[%s3 + $0x770] sm:$0xf]
    %v4894 = vld [vmem:[%s3 + $0x774] sm:$0xf]
    %v4895 = vld [vmem:[%s3 + $0x778] sm:$0xf]
    %v4896 = vld [vmem:[%s3 + $0x77c] sm:$0xf]
    %v4897 = vld [vmem:[%s3 + $0x780] sm:$0xf]
    %v4898 = vld [vmem:[%s3 + $0x784] sm:$0xf]
    %v4899 = vld [vmem:[%s3 + $0x788] sm:$0xf]
    %v4900 = vld [vmem:[%s3 + $0x78c] sm:$0xf]
    %v4901 = vld [vmem:[%s3 + $0x790] sm:$0xf]
    %v4902 = vld [vmem:[%s3 + $0x794] sm:$0xf]
    %v4903 = vld [vmem:[%s3 + $0x798] sm:$0xf]
    %v4904 = vld [vmem:[%s3 + $0x79c] sm:$0xf]
    %v4905 = vld [vmem:[%s3 + $0x7a0] sm:$0xf]
    %v4906 = vld [vmem:[%s3 + $0x7a4] sm:$0xf]
    %v4907 = vld [vmem:[%s3 + $0x7a8] sm:$0xf]
    %v4908 = vld [vmem:[%s3 + $0x7ac] sm:$0xf]
    %v4909 = vld [vmem:[%s3 + $0x7b0] sm:$0xf]
    %v4910 = vld [vmem:[%s3 + $0x7b4] sm:$0xf]
    %v4911 = vld [vmem:[%s3 + $0x7b8] sm:$0xf]
    %v4912 = vld [vmem:[%s3 + $0x7bc] sm:$0xf]
    %v4913 = vld [vmem:[%s3 + $0x7c0] sm:$0xf]
    %v4914 = vld [vmem:[%s3 + $0x7c4] sm:$0xf]
    %v4915 = vld [vmem:[%s3 + $0x7c8] sm:$0xf]
    %v4916 = vld [vmem:[%s3 + $0x7cc] sm:$0xf]
    %v4917 = vld [vmem:[%s3 + $0x7d0] sm:$0xf]
    %v4918 = vld [vmem:[%s3 + $0x7d4] sm:$0xf]
    %v4919 = vld [vmem:[%s3 + $0x7d8] sm:$0xf]
    %v4920 = vld [vmem:[%s3 + $0x7dc] sm:$0xf]
    %v4921 = vld [vmem:[%s3 + $0x7e0] sm:$0xf]
    %v4922 = vld [vmem:[%s3 + $0x7e4] sm:$0xf]
    %v4923 = vld [vmem:[%s3 + $0x7e8] sm:$0xf]
    %v4924 = vld [vmem:[%s3 + $0x7ec] sm:$0xf]
    %v4925 = vld [vmem:[%s3 + $0x7f0] sm:$0xf]
    %v4926 = vld [vmem:[%s3 + $0x7f4] sm:$0xf]
    %v4927 = vld [vmem:[%s3 + $0x7f8] sm:$0xf]
    %v4928 = vld [vmem:[%s3 + $0x7fc] sm:$0xf]
    %v4929 = vld [vmem:[%s3 + $0x800] sm:$0xf]
    %v4930 = vld [vmem:[%s3 + $0x804] sm:$0xf]
    %v4931 = vld [vmem:[%s3 + $0x808] sm:$0xf]
    %v4932 = vld [vmem:[%s3 + $0x80c] sm:$0xf]
    %v4933 = vld [vmem:[%s3 + $0x810] sm:$0xf]
    %v4934 = vld [vmem:[%s3 + $0x814] sm:$0xf]
    %v4935 = vld [vmem:[%s3 + $0x818] sm:$0xf]
    %v4936 = vld [vmem:[%s3 + $0x81c] sm:$0xf]
    %v4937 = vld [vmem:[%s3 + $0x820] sm:$0xf]
    %v4938 = vld [vmem:[%s3 + $0x824] sm:$0xf]
    %v4939 = vld [vmem:[%s3 + $0x828] sm:$0xf]
    %v4940 = vld [vmem:[%s3 + $0x82c] sm:$0xf]
    %v4941 = vld [vmem:[%s3 + $0x830] sm:$0xf]
    %v4942 = vld [vmem:[%s3 + $0x834] sm:$0xf]
    %v4943 = vld [vmem:[%s3 + $0x838] sm:$0xf]
    %v4944 = vld [vmem:[%s3 + $0x83c] sm:$0xf]
    %v4945 = vld [vmem:[%s3 + $0x840] sm:$0xf]
    %v4946 = vld [vmem:[%s3 + $0x844] sm:$0xf]
    %v4947 = vld [vmem:[%s3 + $0x848] sm:$0xf]
    %v4948 = vld [vmem:[%s3 + $0x84c] sm:$0xf]
    %v4949 = vld [vmem:[%s3 + $0x850] sm:$0xf]
    %v4950 = vld [vmem:[%s3 + $0x854] sm:$0xf]
    %v4951 = vld [vmem:[%s3 + $0x858] sm:$0xf]
    %v4952 = vld [vmem:[%s3 + $0x85c] sm:$0xf]
    %v4953 = vld [vmem:[%s3 + $0x860] sm:$0xf]
    %v4954 = vld [vmem:[%s3 + $0x864] sm:$0xf]
    %v4955 = vld [vmem:[%s3 + $0x868] sm:$0xf]
    %v4956 = vld [vmem:[%s3 + $0x86c] sm:$0xf]
    %v4957 = vld [vmem:[%s3 + $0x870] sm:$0xf]
    %v4958 = vld [vmem:[%s3 + $0x874] sm:$0xf]
    %v4959 = vld [vmem:[%s3 + $0x878] sm:$0xf]
    %v4960 = vld [vmem:[%s3 + $0x87c] sm:$0xf]
    %v4961 = vld [vmem:[%s3 + $0x880] sm:$0xf]
    %v4962 = vld [vmem:[%s3 + $0x884] sm:$0xf]
    %v4963 = vld [vmem:[%s3 + $0x888] sm:$0xf]
    %v4964 = vld [vmem:[%s3 + $0x88c] sm:$0xf]
    %v4965 = vld [vmem:[%s3 + $0x890] sm:$0xf]
    %v4966 = vld [vmem:[%s3 + $0x894] sm:$0xf]
    %v4967 = vld [vmem:[%s3 + $0x898] sm:$0xf]
    %v4968 = vld [vmem:[%s3 + $0x89c] sm:$0xf]
    %v4969 = vld [vmem:[%s3 + $0x8a0] sm:$0xf]
    %v4970 = vld [vmem:[%s3 + $0x8a4] sm:$0xf]
    %v4971 = vld [vmem:[%s3 + $0x8a8] sm:$0xf]
    %v4972 = vld [vmem:[%s3 + $0x8ac] sm:$0xf]
    %v4973 = vld [vmem:[%s3 + $0x8b0] sm:$0xf]
    %v4974 = vld [vmem:[%s3 + $0x8b4] sm:$0xf]
    %v4975 = vld [vmem:[%s3 + $0x8b8] sm:$0xf]
    %v4976 = vld [vmem:[%s3 + $0x8bc] sm:$0xf]
    %v4977 = vld [vmem:[%s3 + $0x8c0] sm:$0xf]
    %v4978 = vld [vmem:[%s3 + $0x8c4] sm:$0xf]
    %v4979 = vld [vmem:[%s3 + $0x8c8] sm:$0xf]
    %v4980 = vld [vmem:[%s3 + $0x8cc] sm:$0xf]
    %v4981 = vld [vmem:[%s3 + $0x8d0] sm:$0xf]
    %v4982 = vld [vmem:[%s3 + $0x8d4] sm:$0xf]
    %v4983 = vld [vmem:[%s3 + $0x8d8] sm:$0xf]
    %v4984 = vld [vmem:[%s3 + $0x8dc] sm:$0xf]
    %v4985 = vld [vmem:[%s3 + $0x8e0] sm:$0xf]
    %v4986 = vld [vmem:[%s3 + $0x8e4] sm:$0xf]
    %v4987 = vld [vmem:[%s3 + $0x8e8] sm:$0xf]
    %v4988 = vld [vmem:[%s3 + $0x8ec] sm:$0xf]
    %v4989 = vld [vmem:[%s3 + $0x8f0] sm:$0xf]
    %v4990 = vld [vmem:[%s3 + $0x8f4] sm:$0xf]
    %v4991 = vld [vmem:[%s3 + $0x8f8] sm:$0xf]
    %v4992 = vld [vmem:[%s3 + $0x8fc] sm:$0xf]
    %v4993 = vpack.c.bf16 %v4721, %v4721
    %v4994 = vpack.c.bf16 %v4722, %v4722
    %v4995 = vpack.c.bf16 %v4723, %v4723
    %v4996 = vpack.c.bf16 %v4724, %v4724
    %v4997 = vpack.c.bf16 %v4725, %v4725
    %v4998 = vpack.c.bf16 %v4726, %v4726
    %v4999 = vpack.c.bf16 %v4727, %v4727
    %v5000 = vpack.c.bf16 %v4728, %v4728
    %v5001 = vpack.c.bf16 %v4729, %v4729
    %v5002 = vpack.c.bf16 %v4730, %v4730
    %v5003 = vpack.c.bf16 %v4731, %v4731
    %v5004 = vpack.c.bf16 %v4732, %v4732
    %v5005 = vpack.c.bf16 %v4733, %v4733
    %v5006 = vpack.c.bf16 %v4734, %v4734
    %v5007 = vpack.c.bf16 %v4735, %v4735
    %v5008 = vpack.c.bf16 %v4736, %v4736
    %v5265 = vunpack.c.l.b16 %v4737
    %v5266 = vunpack.c.l.b16 %v4738
    %v5267 = vunpack.c.l.b16 %v4739
    %v5268 = vunpack.c.l.b16 %v4740
    %v5269 = vunpack.c.l.b16 %v4741
    %v5270 = vunpack.c.l.b16 %v4742
    %v5271 = vunpack.c.l.b16 %v4743
    %v5272 = vunpack.c.l.b16 %v4744
    %v5273 = vunpack.c.l.b16 %v4745
    %v5274 = vunpack.c.l.b16 %v4746
    %v5275 = vunpack.c.l.b16 %v4747
    %v5276 = vunpack.c.l.b16 %v4748
    %v5277 = vunpack.c.l.b16 %v4749
    %v5278 = vunpack.c.l.b16 %v4750
    %v5279 = vunpack.c.l.b16 %v4751
    %v5280 = vunpack.c.l.b16 %v4752
    %v5281 = vunpack.c.l.b16 %v4753
    %v5282 = vunpack.c.l.b16 %v4754
    %v5283 = vunpack.c.l.b16 %v4755
    %v5284 = vunpack.c.l.b16 %v4756
    %v5285 = vunpack.c.l.b16 %v4757
    %v5286 = vunpack.c.l.b16 %v4758
    %v5287 = vunpack.c.l.b16 %v4759
    %v5288 = vunpack.c.l.b16 %v4760
    %v5289 = vunpack.c.l.b16 %v4761
    %v5290 = vunpack.c.l.b16 %v4762
    %v5291 = vunpack.c.l.b16 %v4763
    %v5292 = vunpack.c.l.b16 %v4764
    %v5293 = vunpack.c.l.b16 %v4765
    %v5294 = vunpack.c.l.b16 %v4766
    %v5295 = vunpack.c.l.b16 %v4767
    %v5296 = vunpack.c.l.b16 %v4768
    %v5297 = vunpack.c.l.b16 %v4769
    %v5298 = vunpack.c.l.b16 %v4770
    %v5299 = vunpack.c.l.b16 %v4771
    %v5300 = vunpack.c.l.b16 %v4772
    %v5301 = vunpack.c.l.b16 %v4773
    %v5302 = vunpack.c.l.b16 %v4774
    %v5303 = vunpack.c.l.b16 %v4775
    %v5304 = vunpack.c.l.b16 %v4776
    %v5305 = vunpack.c.l.b16 %v4777
    %v5306 = vunpack.c.l.b16 %v4778
    %v5307 = vunpack.c.l.b16 %v4779
    %v5308 = vunpack.c.l.b16 %v4780
    %v5309 = vunpack.c.l.b16 %v4781
    %v5310 = vunpack.c.l.b16 %v4782
    %v5311 = vunpack.c.l.b16 %v4783
    %v5312 = vunpack.c.l.b16 %v4784
    %v5313 = vunpack.c.l.b16 %v4785
    %v5314 = vunpack.c.l.b16 %v4786
    %v5315 = vunpack.c.l.b16 %v4787
    %v5316 = vunpack.c.l.b16 %v4788
    %v5317 = vunpack.c.l.b16 %v4789
    %v5318 = vunpack.c.l.b16 %v4790
    %v5319 = vunpack.c.l.b16 %v4791
    %v5320 = vunpack.c.l.b16 %v4792
    %v5321 = vunpack.c.l.b16 %v4793
    %v5322 = vunpack.c.l.b16 %v4794
    %v5323 = vunpack.c.l.b16 %v4795
    %v5324 = vunpack.c.l.b16 %v4796
    %v5325 = vunpack.c.l.b16 %v4797
    %v5326 = vunpack.c.l.b16 %v4798
    %v5327 = vunpack.c.l.b16 %v4799
    %v5328 = vunpack.c.l.b16 %v4800
    %v5329 = vunpack.c.l.b16 %v4801
    %v5330 = vunpack.c.l.b16 %v4802
    %v5331 = vunpack.c.l.b16 %v4803
    %v5332 = vunpack.c.l.b16 %v4804
    %v5333 = vunpack.c.l.b16 %v4805
    %v5334 = vunpack.c.l.b16 %v4806
    %v5335 = vunpack.c.l.b16 %v4807
    %v5336 = vunpack.c.l.b16 %v4808
    %v5337 = vunpack.c.l.b16 %v4809
    %v5338 = vunpack.c.l.b16 %v4810
    %v5339 = vunpack.c.l.b16 %v4811
    %v5340 = vunpack.c.l.b16 %v4812
    %v5341 = vunpack.c.l.b16 %v4813
    %v5342 = vunpack.c.l.b16 %v4814
    %v5343 = vunpack.c.l.b16 %v4815
    %v5344 = vunpack.c.l.b16 %v4816
    %v5345 = vunpack.c.l.b16 %v4817
    %v5346 = vunpack.c.l.b16 %v4818
    %v5347 = vunpack.c.l.b16 %v4819
    %v5348 = vunpack.c.l.b16 %v4820
    %v5349 = vunpack.c.l.b16 %v4821
    %v5350 = vunpack.c.l.b16 %v4822
    %v5351 = vunpack.c.l.b16 %v4823
    %v5352 = vunpack.c.l.b16 %v4824
    %v5353 = vunpack.c.l.b16 %v4825
    %v5354 = vunpack.c.l.b16 %v4826
    %v5355 = vunpack.c.l.b16 %v4827
    %v5356 = vunpack.c.l.b16 %v4828
    %v5357 = vunpack.c.l.b16 %v4829
    %v5358 = vunpack.c.l.b16 %v4830
    %v5359 = vunpack.c.l.b16 %v4831
    %v5360 = vunpack.c.l.b16 %v4832
    %v5361 = vunpack.c.l.b16 %v4833
    %v5362 = vunpack.c.l.b16 %v4834
    %v5363 = vunpack.c.l.b16 %v4835
    %v5364 = vunpack.c.l.b16 %v4836
    %v5365 = vunpack.c.l.b16 %v4837
    %v5366 = vunpack.c.l.b16 %v4838
    %v5367 = vunpack.c.l.b16 %v4839
    %v5368 = vunpack.c.l.b16 %v4840
    %v5369 = vunpack.c.l.b16 %v4841
    %v5370 = vunpack.c.l.b16 %v4842
    %v5371 = vunpack.c.l.b16 %v4843
    %v5372 = vunpack.c.l.b16 %v4844
    %v5373 = vunpack.c.l.b16 %v4845
    %v5374 = vunpack.c.l.b16 %v4846
    %v5375 = vunpack.c.l.b16 %v4847
    %v5376 = vunpack.c.l.b16 %v4848
    %v5377 = vunpack.c.l.b16 %v4849
    %v5378 = vunpack.c.l.b16 %v4850
    %v5379 = vunpack.c.l.b16 %v4851
    %v5380 = vunpack.c.l.b16 %v4852
    %v5381 = vunpack.c.l.b16 %v4853
    %v5382 = vunpack.c.l.b16 %v4854
    %v5383 = vunpack.c.l.b16 %v4855
    %v5384 = vunpack.c.l.b16 %v4856
    %v5385 = vunpack.c.l.b16 %v4857
    %v5386 = vunpack.c.l.b16 %v4858
    %v5387 = vunpack.c.l.b16 %v4859
    %v5388 = vunpack.c.l.b16 %v4860
    %v5389 = vunpack.c.l.b16 %v4861
    %v5390 = vunpack.c.l.b16 %v4862
    %v5391 = vunpack.c.l.b16 %v4863
    %v5392 = vunpack.c.l.b16 %v4864
    %v5393 = vunpack.c.l.b16 %v4865
    %v5394 = vunpack.c.l.b16 %v4866
    %v5395 = vunpack.c.l.b16 %v4867
    %v5396 = vunpack.c.l.b16 %v4868
    %v5397 = vunpack.c.l.b16 %v4869
    %v5398 = vunpack.c.l.b16 %v4870
    %v5399 = vunpack.c.l.b16 %v4871
    %v5400 = vunpack.c.l.b16 %v4872
    %v5401 = vunpack.c.l.b16 %v4873
    %v5402 = vunpack.c.l.b16 %v4874
    %v5403 = vunpack.c.l.b16 %v4875
    %v5404 = vunpack.c.l.b16 %v4876
    %v5405 = vunpack.c.l.b16 %v4877
    %v5406 = vunpack.c.l.b16 %v4878
    %v5407 = vunpack.c.l.b16 %v4879
    %v5408 = vunpack.c.l.b16 %v4880
    %v5409 = vunpack.c.l.b16 %v4881
    %v5410 = vunpack.c.l.b16 %v4882
    %v5411 = vunpack.c.l.b16 %v4883
    %v5412 = vunpack.c.l.b16 %v4884
    %v5413 = vunpack.c.l.b16 %v4885
    %v5414 = vunpack.c.l.b16 %v4886
    %v5415 = vunpack.c.l.b16 %v4887
    %v5416 = vunpack.c.l.b16 %v4888
    %v5417 = vunpack.c.l.b16 %v4889
    %v5418 = vunpack.c.l.b16 %v4890
    %v5419 = vunpack.c.l.b16 %v4891
    %v5420 = vunpack.c.l.b16 %v4892
    %v5421 = vunpack.c.l.b16 %v4893
    %v5422 = vunpack.c.l.b16 %v4894
    %v5423 = vunpack.c.l.b16 %v4895
    %v5424 = vunpack.c.l.b16 %v4896
    %v5425 = vunpack.c.l.b16 %v4897
    %v5426 = vunpack.c.l.b16 %v4898
    %v5427 = vunpack.c.l.b16 %v4899
    %v5428 = vunpack.c.l.b16 %v4900
    %v5429 = vunpack.c.l.b16 %v4901
    %v5430 = vunpack.c.l.b16 %v4902
    %v5431 = vunpack.c.l.b16 %v4903
    %v5432 = vunpack.c.l.b16 %v4904
    %v5433 = vunpack.c.l.b16 %v4905
    %v5434 = vunpack.c.l.b16 %v4906
    %v5435 = vunpack.c.l.b16 %v4907
    %v5436 = vunpack.c.l.b16 %v4908
    %v5437 = vunpack.c.l.b16 %v4909
    %v5438 = vunpack.c.l.b16 %v4910
    %v5439 = vunpack.c.l.b16 %v4911
    %v5440 = vunpack.c.l.b16 %v4912
    %v5441 = vunpack.c.l.b16 %v4913
    %v5442 = vunpack.c.l.b16 %v4914
    %v5443 = vunpack.c.l.b16 %v4915
    %v5444 = vunpack.c.l.b16 %v4916
    %v5445 = vunpack.c.l.b16 %v4917
    %v5446 = vunpack.c.l.b16 %v4918
    %v5447 = vunpack.c.l.b16 %v4919
    %v5448 = vunpack.c.l.b16 %v4920
    %v5449 = vunpack.c.l.b16 %v4921
    %v5450 = vunpack.c.l.b16 %v4922
    %v5451 = vunpack.c.l.b16 %v4923
    %v5452 = vunpack.c.l.b16 %v4924
    %v5453 = vunpack.c.l.b16 %v4925
    %v5454 = vunpack.c.l.b16 %v4926
    %v5455 = vunpack.c.l.b16 %v4927
    %v5456 = vunpack.c.l.b16 %v4928
    %v5457 = vunpack.c.l.b16 %v4929
    %v5458 = vunpack.c.l.b16 %v4930
    %v5459 = vunpack.c.l.b16 %v4931
    %v5460 = vunpack.c.l.b16 %v4932
    %v5461 = vunpack.c.l.b16 %v4933
    %v5462 = vunpack.c.l.b16 %v4934
    %v5463 = vunpack.c.l.b16 %v4935
    %v5464 = vunpack.c.l.b16 %v4936
    %v5465 = vunpack.c.l.b16 %v4937
    %v5466 = vunpack.c.l.b16 %v4938
    %v5467 = vunpack.c.l.b16 %v4939
    %v5468 = vunpack.c.l.b16 %v4940
    %v5469 = vunpack.c.l.b16 %v4941
    %v5470 = vunpack.c.l.b16 %v4942
    %v5471 = vunpack.c.l.b16 %v4943
    %v5472 = vunpack.c.l.b16 %v4944
    %v5473 = vunpack.c.l.b16 %v4945
    %v5474 = vunpack.c.l.b16 %v4946
    %v5475 = vunpack.c.l.b16 %v4947
    %v5476 = vunpack.c.l.b16 %v4948
    %v5477 = vunpack.c.l.b16 %v4949
    %v5478 = vunpack.c.l.b16 %v4950
    %v5479 = vunpack.c.l.b16 %v4951
    %v5480 = vunpack.c.l.b16 %v4952
    %v5481 = vunpack.c.l.b16 %v4953
    %v5482 = vunpack.c.l.b16 %v4954
    %v5483 = vunpack.c.l.b16 %v4955
    %v5484 = vunpack.c.l.b16 %v4956
    %v5485 = vunpack.c.l.b16 %v4957
    %v5486 = vunpack.c.l.b16 %v4958
    %v5487 = vunpack.c.l.b16 %v4959
    %v5488 = vunpack.c.l.b16 %v4960
    %v5489 = vunpack.c.l.b16 %v4961
    %v5490 = vunpack.c.l.b16 %v4962
    %v5491 = vunpack.c.l.b16 %v4963
    %v5492 = vunpack.c.l.b16 %v4964
    %v5493 = vunpack.c.l.b16 %v4965
    %v5494 = vunpack.c.l.b16 %v4966
    %v5495 = vunpack.c.l.b16 %v4967
    %v5496 = vunpack.c.l.b16 %v4968
    %v5497 = vunpack.c.l.b16 %v4969
    %v5498 = vunpack.c.l.b16 %v4970
    %v5499 = vunpack.c.l.b16 %v4971
    %v5500 = vunpack.c.l.b16 %v4972
    %v5501 = vunpack.c.l.b16 %v4973
    %v5502 = vunpack.c.l.b16 %v4974
    %v5503 = vunpack.c.l.b16 %v4975
    %v5504 = vunpack.c.l.b16 %v4976
    %v5505 = vunpack.c.l.b16 %v4977
    %v5506 = vunpack.c.l.b16 %v4978
    %v5507 = vunpack.c.l.b16 %v4979
    %v5508 = vunpack.c.l.b16 %v4980
    %v5509 = vunpack.c.l.b16 %v4981
    %v5510 = vunpack.c.l.b16 %v4982
    %v5511 = vunpack.c.l.b16 %v4983
    %v5512 = vunpack.c.l.b16 %v4984
    %v5513 = vunpack.c.l.b16 %v4985
    %v5514 = vunpack.c.l.b16 %v4986
    %v5515 = vunpack.c.l.b16 %v4987
    %v5516 = vunpack.c.l.b16 %v4988
    %v5517 = vunpack.c.l.b16 %v4989
    %v5518 = vunpack.c.l.b16 %v4990
    %v5519 = vunpack.c.l.b16 %v4991
    %v5520 = vunpack.c.l.b16 %v4992
    %v5521 = vpack.c.b16 %v5266, %v5265
    %v5522 = vpack.c.b16 %v5268, %v5267
    %v5523 = vpack.c.b16 %v5270, %v5269
    %v5524 = vpack.c.b16 %v5272, %v5271
    %v5525 = vpack.c.b16 %v5274, %v5273
    %v5526 = vpack.c.b16 %v5276, %v5275
    %v5527 = vpack.c.b16 %v5278, %v5277
    %v5528 = vpack.c.b16 %v5280, %v5279
    %v5529 = vpack.c.b16 %v5282, %v5281
    %v5530 = vpack.c.b16 %v5284, %v5283
    %v5531 = vpack.c.b16 %v5286, %v5285
    %v5532 = vpack.c.b16 %v5288, %v5287
    %v5533 = vpack.c.b16 %v5290, %v5289
    %v5534 = vpack.c.b16 %v5292, %v5291
    %v5535 = vpack.c.b16 %v5294, %v5293
    %v5536 = vpack.c.b16 %v5296, %v5295
    %v5537 = vpack.c.b16 %v5298, %v5297
    %v5538 = vpack.c.b16 %v5300, %v5299
    %v5539 = vpack.c.b16 %v5302, %v5301
    %v5540 = vpack.c.b16 %v5304, %v5303
    %v5541 = vpack.c.b16 %v5306, %v5305
    %v5542 = vpack.c.b16 %v5308, %v5307
    %v5543 = vpack.c.b16 %v5310, %v5309
    %v5544 = vpack.c.b16 %v5312, %v5311
    %v5545 = vpack.c.b16 %v5314, %v5313
    %v5546 = vpack.c.b16 %v5316, %v5315
    %v5547 = vpack.c.b16 %v5318, %v5317
    %v5548 = vpack.c.b16 %v5320, %v5319
    %v5549 = vpack.c.b16 %v5322, %v5321
    %v5550 = vpack.c.b16 %v5324, %v5323
    %v5551 = vpack.c.b16 %v5326, %v5325
    %v5552 = vpack.c.b16 %v5328, %v5327
    %v5553 = vpack.c.b16 %v5330, %v5329
    %v5554 = vpack.c.b16 %v5332, %v5331
    %v5555 = vpack.c.b16 %v5334, %v5333
    %v5556 = vpack.c.b16 %v5336, %v5335
    %v5557 = vpack.c.b16 %v5338, %v5337
    %v5558 = vpack.c.b16 %v5340, %v5339
    %v5559 = vpack.c.b16 %v5342, %v5341
    %v5560 = vpack.c.b16 %v5344, %v5343
    %v5561 = vpack.c.b16 %v5346, %v5345
    %v5562 = vpack.c.b16 %v5348, %v5347
    %v5563 = vpack.c.b16 %v5350, %v5349
    %v5564 = vpack.c.b16 %v5352, %v5351
    %v5565 = vpack.c.b16 %v5354, %v5353
    %v5566 = vpack.c.b16 %v5356, %v5355
    %v5567 = vpack.c.b16 %v5358, %v5357
    %v5568 = vpack.c.b16 %v5360, %v5359
    %v5569 = vpack.c.b16 %v5362, %v5361
    %v5570 = vpack.c.b16 %v5364, %v5363
    %v5571 = vpack.c.b16 %v5366, %v5365
    %v5572 = vpack.c.b16 %v5368, %v5367
    %v5573 = vpack.c.b16 %v5370, %v5369
    %v5574 = vpack.c.b16 %v5372, %v5371
    %v5575 = vpack.c.b16 %v5374, %v5373
    %v5576 = vpack.c.b16 %v5376, %v5375
    %v5577 = vpack.c.b16 %v5378, %v5377
    %v5578 = vpack.c.b16 %v5380, %v5379
    %v5579 = vpack.c.b16 %v5382, %v5381
    %v5580 = vpack.c.b16 %v5384, %v5383
    %v5581 = vpack.c.b16 %v5386, %v5385
    %v5582 = vpack.c.b16 %v5388, %v5387
    %v5583 = vpack.c.b16 %v5390, %v5389
    %v5584 = vpack.c.b16 %v5392, %v5391
    %v5585 = vpack.c.b16 %v5394, %v5393
    %v5586 = vpack.c.b16 %v5396, %v5395
    %v5587 = vpack.c.b16 %v5398, %v5397
    %v5588 = vpack.c.b16 %v5400, %v5399
    %v5589 = vpack.c.b16 %v5402, %v5401
    %v5590 = vpack.c.b16 %v5404, %v5403
    %v5591 = vpack.c.b16 %v5406, %v5405
    %v5592 = vpack.c.b16 %v5408, %v5407
    %v5593 = vpack.c.b16 %v5410, %v5409
    %v5594 = vpack.c.b16 %v5412, %v5411
    %v5595 = vpack.c.b16 %v5414, %v5413
    %v5596 = vpack.c.b16 %v5416, %v5415
    %v5597 = vpack.c.b16 %v5418, %v5417
    %v5598 = vpack.c.b16 %v5420, %v5419
    %v5599 = vpack.c.b16 %v5422, %v5421
    %v5600 = vpack.c.b16 %v5424, %v5423
    %v5601 = vpack.c.b16 %v5426, %v5425
    %v5602 = vpack.c.b16 %v5428, %v5427
    %v5603 = vpack.c.b16 %v5430, %v5429
    %v5604 = vpack.c.b16 %v5432, %v5431
    %v5605 = vpack.c.b16 %v5434, %v5433
    %v5606 = vpack.c.b16 %v5436, %v5435
    %v5607 = vpack.c.b16 %v5438, %v5437
    %v5608 = vpack.c.b16 %v5440, %v5439
    %v5609 = vpack.c.b16 %v5442, %v5441
    %v5610 = vpack.c.b16 %v5444, %v5443
    %v5611 = vpack.c.b16 %v5446, %v5445
    %v5612 = vpack.c.b16 %v5448, %v5447
    %v5613 = vpack.c.b16 %v5450, %v5449
    %v5614 = vpack.c.b16 %v5452, %v5451
    %v5615 = vpack.c.b16 %v5454, %v5453
    %v5616 = vpack.c.b16 %v5456, %v5455
    %v5617 = vpack.c.b16 %v5458, %v5457
    %v5618 = vpack.c.b16 %v5460, %v5459
    %v5619 = vpack.c.b16 %v5462, %v5461
    %v5620 = vpack.c.b16 %v5464, %v5463
    %v5621 = vpack.c.b16 %v5466, %v5465
    %v5622 = vpack.c.b16 %v5468, %v5467
    %v5623 = vpack.c.b16 %v5470, %v5469
    %v5624 = vpack.c.b16 %v5472, %v5471
    %v5625 = vpack.c.b16 %v5474, %v5473
    %v5626 = vpack.c.b16 %v5476, %v5475
    %v5627 = vpack.c.b16 %v5478, %v5477
    %v5628 = vpack.c.b16 %v5480, %v5479
    %v5629 = vpack.c.b16 %v5482, %v5481
    %v5630 = vpack.c.b16 %v5484, %v5483
    %v5631 = vpack.c.b16 %v5486, %v5485
    %v5632 = vpack.c.b16 %v5488, %v5487
    %v5633 = vpack.c.b16 %v5490, %v5489
    %v5634 = vpack.c.b16 %v5492, %v5491
    %v5635 = vpack.c.b16 %v5494, %v5493
    %v5636 = vpack.c.b16 %v5496, %v5495
    %v5637 = vpack.c.b16 %v5498, %v5497
    %v5638 = vpack.c.b16 %v5500, %v5499
    %v5639 = vpack.c.b16 %v5502, %v5501
    %v5640 = vpack.c.b16 %v5504, %v5503
    %v5641 = vpack.c.b16 %v5506, %v5505
    %v5642 = vpack.c.b16 %v5508, %v5507
    %v5643 = vpack.c.b16 %v5510, %v5509
    %v5644 = vpack.c.b16 %v5512, %v5511
    %v5645 = vpack.c.b16 %v5514, %v5513
    %v5646 = vpack.c.b16 %v5516, %v5515
    %v5647 = vpack.c.b16 %v5518, %v5517
    %v5648 = vpack.c.b16 %v5520, %v5519
    %5777 = vmatprep.subr.bf16.mxu0 0
    %5778 = vmatpush1.bf16.msra.mxu0 %v5521
    %5779 = vmatprep.subr.bf16.mxu0 0
    %5780 = vmatpush1.bf16.msra.mxu0 %v5522
    %5781 = vmatprep.subr.bf16.mxu0 0
    %5782 = vmatpush1.bf16.msra.mxu0 %v5523
    %5783 = vmatprep.subr.bf16.mxu0 0
    %5784 = vmatpush1.bf16.msra.mxu0 %v5524
    %5785 = vmatprep.subr.bf16.mxu0 0
    %5786 = vmatpush1.bf16.msra.mxu0 %v5525
    %5787 = vmatprep.subr.bf16.mxu0 0
    %5788 = vmatpush1.bf16.msra.mxu0 %v5526
    %5789 = vmatprep.subr.bf16.mxu0 0
    %5790 = vmatpush1.bf16.msra.mxu0 %v5527
    %5791 = vmatprep.subr.bf16.mxu0 0
    %5792 = vmatpush1.bf16.msra.mxu0 %v5528
    %5793 = vmatprep.subr.bf16.mxu0 0
    %5794 = vmatpush1.bf16.msra.mxu0 %v5529
    %5795 = vmatprep.subr.bf16.mxu0 0
    %5796 = vmatpush1.bf16.msra.mxu0 %v5530
    %5797 = vmatprep.subr.bf16.mxu0 0
    %5798 = vmatpush1.bf16.msra.mxu0 %v5531
    %5799 = vmatprep.subr.bf16.mxu0 0
    %5800 = vmatpush1.bf16.msra.mxu0 %v5532
    %5801 = vmatprep.subr.bf16.mxu0 0
    %5802 = vmatpush1.bf16.msra.mxu0 %v5533
    %5803 = vmatprep.subr.bf16.mxu0 0
    %5804 = vmatpush1.bf16.msra.mxu0 %v5534
    %5805 = vmatprep.subr.bf16.mxu0 0
    %5806 = vmatpush1.bf16.msra.mxu0 %v5535
    %5807 = vmatprep.subr.bf16.mxu0 0
    %5808 = vmatpush1.bf16.msra.mxu0 %v5536
    %5809 = vmatprep.mubr.bf16.mxu0 %v4994
    %5810 = vmatmul.mubr.bf16.gmra.mrb[0].mxu0 %v4993
    %v5811 = vpop.f32.mrb[0].mxu0
    %v5812 = vadd.f32 %v3353, %v5811
    %v5813 = vpop.f32.mrb[0].mxu0
    %v5814 = vpop.f32.mrb[0].mxu0
    %v5815 = vpop.f32.mrb[0].mxu0
    %5816 = vdwg.mxu0
    %5817 = vmatprep.subr.bf16.mxu0 0
    %5818 = vmatpush1.bf16.msra.mxu0 %v5537
    %5819 = vmatprep.subr.bf16.mxu0 0
    %5820 = vmatpush1.bf16.msra.mxu0 %v5538
    %5821 = vmatprep.subr.bf16.mxu0 0
    %5822 = vmatpush1.bf16.msra.mxu0 %v5539
    %5823 = vmatprep.subr.bf16.mxu0 0
    %5824 = vmatpush1.bf16.msra.mxu0 %v5540
    %5825 = vmatprep.subr.bf16.mxu0 0
    %5826 = vmatpush1.bf16.msra.mxu0 %v5541
    %5827 = vmatprep.subr.bf16.mxu0 0
    %5828 = vmatpush1.bf16.msra.mxu0 %v5542
    %5829 = vmatprep.subr.bf16.mxu0 0
    %5830 = vmatpush1.bf16.msra.mxu0 %v5543
    %5831 = vmatprep.subr.bf16.mxu0 0
    %5832 = vmatpush1.bf16.msra.mxu0 %v5544
    %5833 = vmatprep.subr.bf16.mxu0 0
    %5834 = vmatpush1.bf16.msra.mxu0 %v5545
    %5835 = vmatprep.subr.bf16.mxu0 0
    %5836 = vmatpush1.bf16.msra.mxu0 %v5546
    %5837 = vmatprep.subr.bf16.mxu0 0
    %5838 = vmatpush1.bf16.msra.mxu0 %v5547
    %5839 = vmatprep.subr.bf16.mxu0 0
    %5840 = vmatpush1.bf16.msra.mxu0 %v5548
    %5841 = vmatprep.subr.bf16.mxu0 0
    %5842 = vmatpush1.bf16.msra.mxu0 %v5549
    %5843 = vmatprep.subr.bf16.mxu0 0
    %5844 = vmatpush1.bf16.msra.mxu0 %v5550
    %5845 = vmatprep.subr.bf16.mxu0 0
    %5846 = vmatpush1.bf16.msra.mxu0 %v5551
    %5847 = vmatprep.subr.bf16.mxu0 0
    %5848 = vmatpush1.bf16.msra.mxu0 %v5552
    %5849 = vmatprep.mubr.bf16.mxu0 %v4996
    %5850 = vmatmul.mubr.bf16.gmra.mrb[0].mxu0 %v4995
    %v5851 = vpop.f32.mrb[0].mxu0
    %v5852 = vadd.f32 %v5812, %v5851
    %v5853 = vpop.f32.mrb[0].mxu0
    %v5854 = vpop.f32.mrb[0].mxu0
    %v5855 = vpop.f32.mrb[0].mxu0
    %5856 = vdwg.mxu0
    %5857 = vmatprep.subr.bf16.mxu0 0
    %5858 = vmatpush1.bf16.msra.mxu0 %v5553
    %5859 = vmatprep.subr.bf16.mxu0 0
    %5860 = vmatpush1.bf16.msra.mxu0 %v5554
    %5861 = vmatprep.subr.bf16.mxu0 0
    %5862 = vmatpush1.bf16.msra.mxu0 %v5555
    %5863 = vmatprep.subr.bf16.mxu0 0
    %5864 = vmatpush1.bf16.msra.mxu0 %v5556
    %5865 = vmatprep.subr.bf16.mxu0 0
    %5866 = vmatpush1.bf16.msra.mxu0 %v5557
    %5867 = vmatprep.subr.bf16.mxu0 0
    %5868 = vmatpush1.bf16.msra.mxu0 %v5558
    %5869 = vmatprep.subr.bf16.mxu0 0
    %5870 = vmatpush1.bf16.msra.mxu0 %v5559
    %5871 = vmatprep.subr.bf16.mxu0 0
    %5872 = vmatpush1.bf16.msra.mxu0 %v5560
    %5873 = vmatprep.subr.bf16.mxu0 0
    %5874 = vmatpush1.bf16.msra.mxu0 %v5561
    %5875 = vmatprep.subr.bf16.mxu0 0
    %5876 = vmatpush1.bf16.msra.mxu0 %v5562
    %5877 = vmatprep.subr.bf16.mxu0 0
    %5878 = vmatpush1.bf16.msra.mxu0 %v5563
    %5879 = vmatprep.subr.bf16.mxu0 0
    %5880 = vmatpush1.bf16.msra.mxu0 %v5564
    %5881 = vmatprep.subr.bf16.mxu0 0
    %5882 = vmatpush1.bf16.msra.mxu0 %v5565
    %5883 = vmatprep.subr.bf16.mxu0 0
    %5884 = vmatpush1.bf16.msra.mxu0 %v5566
    %5885 = vmatprep.subr.bf16.mxu0 0
    %5886 = vmatpush1.bf16.msra.mxu0 %v5567
    %5887 = vmatprep.subr.bf16.mxu0 0
    %5888 = vmatpush1.bf16.msra.mxu0 %v5568
    %5889 = vmatprep.mubr.bf16.mxu0 %v4998
    %5890 = vmatmul.mubr.bf16.gmra.mrb[0].mxu0 %v4997
    %v5891 = vpop.f32.mrb[0].mxu0
    %v5892 = vadd.f32 %v5852, %v5891
    %v5893 = vpop.f32.mrb[0].mxu0
    %v5894 = vpop.f32.mrb[0].mxu0
    %v5895 = vpop.f32.mrb[0].mxu0
    %5896 = vdwg.mxu0
    %5897 = vmatprep.subr.bf16.mxu0 0
    %5898 = vmatpush1.bf16.msra.mxu0 %v5569
    %5899 = vmatprep.subr.bf16.mxu0 0
    %5900 = vmatpush1.bf16.msra.mxu0 %v5570
    %5901 = vmatprep.subr.bf16.mxu0 0
    %5902 = vmatpush1.bf16.msra.mxu0 %v5571
    %5903 = vmatprep.subr.bf16.mxu0 0
    %5904 = vmatpush1.bf16.msra.mxu0 %v5572
    %5905 = vmatprep.subr.bf16.mxu0 0
    %5906 = vmatpush1.bf16.msra.mxu0 %v5573
    %5907 = vmatprep.subr.bf16.mxu0 0
    %5908 = vmatpush1.bf16.msra.mxu0 %v5574
    %5909 = vmatprep.subr.bf16.mxu0 0
    %5910 = vmatpush1.bf16.msra.mxu0 %v5575
    %5911 = vmatprep.subr.bf16.mxu0 0
    %5912 = vmatpush1.bf16.msra.mxu0 %v5576
    %5913 = vmatprep.subr.bf16.mxu0 0
    %5914 = vmatpush1.bf16.msra.mxu0 %v5577
    %5915 = vmatprep.subr.bf16.mxu0 0
    %5916 = vmatpush1.bf16.msra.mxu0 %v5578
    %5917 = vmatprep.subr.bf16.mxu0 0
    %5918 = vmatpush1.bf16.msra.mxu0 %v5579
    %5919 = vmatprep.subr.bf16.mxu0 0
    %5920 = vmatpush1.bf16.msra.mxu0 %v5580
    %5921 = vmatprep.subr.bf16.mxu0 0
    %5922 = vmatpush1.bf16.msra.mxu0 %v5581
    %5923 = vmatprep.subr.bf16.mxu0 0
    %5924 = vmatpush1.bf16.msra.mxu0 %v5582
    %5925 = vmatprep.subr.bf16.mxu0 0
    %5926 = vmatpush1.bf16.msra.mxu0 %v5583
    %5927 = vmatprep.subr.bf16.mxu0 0
    %5928 = vmatpush1.bf16.msra.mxu0 %v5584
    %5929 = vmatprep.mubr.bf16.mxu0 %v5000
    %5930 = vmatmul.mubr.bf16.gmra.mrb[0].mxu0 %v4999
    %v5931 = vpop.f32.mrb[0].mxu0
    %v5932 = vadd.f32 %v5892, %v5931
    %v5933 = vpop.f32.mrb[0].mxu0
    %v5934 = vpop.f32.mrb[0].mxu0
    %v5935 = vpop.f32.mrb[0].mxu0
    %5936 = vdwg.mxu0
    %5937 = vmatprep.subr.bf16.mxu0 0
    %5938 = vmatpush1.bf16.msra.mxu0 %v5585
    %5939 = vmatprep.subr.bf16.mxu0 0
    %5940 = vmatpush1.bf16.msra.mxu0 %v5586
    %5941 = vmatprep.subr.bf16.mxu0 0
    %5942 = vmatpush1.bf16.msra.mxu0 %v5587
    %5943 = vmatprep.subr.bf16.mxu0 0
    %5944 = vmatpush1.bf16.msra.mxu0 %v5588
    %5945 = vmatprep.subr.bf16.mxu0 0
    %5946 = vmatpush1.bf16.msra.mxu0 %v5589
    %5947 = vmatprep.subr.bf16.mxu0 0
    %5948 = vmatpush1.bf16.msra.mxu0 %v5590
    %5949 = vmatprep.subr.bf16.mxu0 0
    %5950 = vmatpush1.bf16.msra.mxu0 %v5591
    %5951 = vmatprep.subr.bf16.mxu0 0
    %5952 = vmatpush1.bf16.msra.mxu0 %v5592
    %5953 = vmatprep.subr.bf16.mxu0 0
    %5954 = vmatpush1.bf16.msra.mxu0 %v5593
    %5955 = vmatprep.subr.bf16.mxu0 0
    %5956 = vmatpush1.bf16.msra.mxu0 %v5594
    %5957 = vmatprep.subr.bf16.mxu0 0
    %5958 = vmatpush1.bf16.msra.mxu0 %v5595
    %5959 = vmatprep.subr.bf16.mxu0 0
    %5960 = vmatpush1.bf16.msra.mxu0 %v5596
    %5961 = vmatprep.subr.bf16.mxu0 0
    %5962 = vmatpush1.bf16.msra.mxu0 %v5597
    %5963 = vmatprep.subr.bf16.mxu0 0
    %5964 = vmatpush1.bf16.msra.mxu0 %v5598
    %5965 = vmatprep.subr.bf16.mxu0 0
    %5966 = vmatpush1.bf16.msra.mxu0 %v5599
    %5967 = vmatprep.subr.bf16.mxu0 0
    %5968 = vmatpush1.bf16.msra.mxu0 %v5600
    %5969 = vmatprep.mubr.bf16.mxu0 %v5002
    %5970 = vmatmul.mubr.bf16.gmra.mrb[0].mxu0 %v5001
    %v5971 = vpop.f32.mrb[0].mxu0
    %v5972 = vadd.f32 %v5932, %v5971
    %v5973 = vpop.f32.mrb[0].mxu0
    %v5974 = vpop.f32.mrb[0].mxu0
    %v5975 = vpop.f32.mrb[0].mxu0
    %5976 = vdwg.mxu0
    %5977 = vmatprep.subr.bf16.mxu0 0
    %5978 = vmatpush1.bf16.msra.mxu0 %v5601
    %5979 = vmatprep.subr.bf16.mxu0 0
    %5980 = vmatpush1.bf16.msra.mxu0 %v5602
    %5981 = vmatprep.subr.bf16.mxu0 0
    %5982 = vmatpush1.bf16.msra.mxu0 %v5603
    %5983 = vmatprep.subr.bf16.mxu0 0
    %5984 = vmatpush1.bf16.msra.mxu0 %v5604
    %5985 = vmatprep.subr.bf16.mxu0 0
    %5986 = vmatpush1.bf16.msra.mxu0 %v5605
    %5987 = vmatprep.subr.bf16.mxu0 0
    %5988 = vmatpush1.bf16.msra.mxu0 %v5606
    %5989 = vmatprep.subr.bf16.mxu0 0
    %5990 = vmatpush1.bf16.msra.mxu0 %v5607
    %5991 = vmatprep.subr.bf16.mxu0 0
    %5992 = vmatpush1.bf16.msra.mxu0 %v5608
    %5993 = vmatprep.subr.bf16.mxu0 0
    %5994 = vmatpush1.bf16.msra.mxu0 %v5609
    %5995 = vmatprep.subr.bf16.mxu0 0
    %5996 = vmatpush1.bf16.msra.mxu0 %v5610
    %5997 = vmatprep.subr.bf16.mxu0 0
    %5998 = vmatpush1.bf16.msra.mxu0 %v5611
    %5999 = vmatprep.subr.bf16.mxu0 0
    %6000 = vmatpush1.bf16.msra.mxu0 %v5612
    %6001 = vmatprep.subr.bf16.mxu0 0
    %6002 = vmatpush1.bf16.msra.mxu0 %v5613
    %6003 = vmatprep.subr.bf16.mxu0 0
    %6004 = vmatpush1.bf16.msra.mxu0 %v5614
    %6005 = vmatprep.subr.bf16.mxu0 0
    %6006 = vmatpush1.bf16.msra.mxu0 %v5615
    %6007 = vmatprep.subr.bf16.mxu0 0
    %6008 = vmatpush1.bf16.msra.mxu0 %v5616
    %6009 = vmatprep.mubr.bf16.mxu0 %v5004
    %6010 = vmatmul.mubr.bf16.gmra.mrb[0].mxu0 %v5003
    %v6011 = vpop.f32.mrb[0].mxu0
    %v6012 = vadd.f32 %v5972, %v6011
    %v6013 = vpop.f32.mrb[0].mxu0
    %v6014 = vpop.f32.mrb[0].mxu0
    %v6015 = vpop.f32.mrb[0].mxu0
    %6016 = vdwg.mxu0
    %6017 = vmatprep.subr.bf16.mxu0 0
    %6018 = vmatpush1.bf16.msra.mxu0 %v5617
    %6019 = vmatprep.subr.bf16.mxu0 0
    %6020 = vmatpush1.bf16.msra.mxu0 %v5618
    %6021 = vmatprep.subr.bf16.mxu0 0
    %6022 = vmatpush1.bf16.msra.mxu0 %v5619
    %6023 = vmatprep.subr.bf16.mxu0 0
    %6024 = vmatpush1.bf16.msra.mxu0 %v5620
    %6025 = vmatprep.subr.bf16.mxu0 0
    %6026 = vmatpush1.bf16.msra.mxu0 %v5621
    %6027 = vmatprep.subr.bf16.mxu0 0
    %6028 = vmatpush1.bf16.msra.mxu0 %v5622
    %6029 = vmatprep.subr.bf16.mxu0 0
    %6030 = vmatpush1.bf16.msra.mxu0 %v5623
    %6031 = vmatprep.subr.bf16.mxu0 0
    %6032 = vmatpush1.bf16.msra.mxu0 %v5624
    %6033 = vmatprep.subr.bf16.mxu0 0
    %6034 = vmatpush1.bf16.msra.mxu0 %v5625
    %6035 = vmatprep.subr.bf16.mxu0 0
    %6036 = vmatpush1.bf16.msra.mxu0 %v5626
    %6037 = vmatprep.subr.bf16.mxu0 0
    %6038 = vmatpush1.bf16.msra.mxu0 %v5627
    %6039 = vmatprep.subr.bf16.mxu0 0
    %6040 = vmatpush1.bf16.msra.mxu0 %v5628
    %6041 = vmatprep.subr.bf16.mxu0 0
    %6042 = vmatpush1.bf16.msra.mxu0 %v5629
    %6043 = vmatprep.subr.bf16.mxu0 0
    %6044 = vmatpush1.bf16.msra.mxu0 %v5630
    %6045 = vmatprep.subr.bf16.mxu0 0
    %6046 = vmatpush1.bf16.msra.mxu0 %v5631
    %6047 = vmatprep.subr.bf16.mxu0 0
    %6048 = vmatpush1.bf16.msra.mxu0 %v5632
    %6049 = vmatprep.mubr.bf16.mxu0 %v5006
    %6050 = vmatmul.mubr.bf16.gmra.mrb[0].mxu0 %v5005
    %v6051 = vpop.f32.mrb[0].mxu0
    %v6052 = vadd.f32 %v6012, %v6051
    %v6053 = vpop.f32.mrb[0].mxu0
    %v6054 = vpop.f32.mrb[0].mxu0
    %v6055 = vpop.f32.mrb[0].mxu0
    %6056 = vdwg.mxu0
    %6057 = vmatprep.subr.bf16.mxu0 0
    %6058 = vmatpush1.bf16.msra.mxu0 %v5633
    %6059 = vmatprep.subr.bf16.mxu0 0
    %6060 = vmatpush1.bf16.msra.mxu0 %v5634
    %6061 = vmatprep.subr.bf16.mxu0 0
    %6062 = vmatpush1.bf16.msra.mxu0 %v5635
    %6063 = vmatprep.subr.bf16.mxu0 0
    %6064 = vmatpush1.bf16.msra.mxu0 %v5636
    %6065 = vmatprep.subr.bf16.mxu0 0
    %6066 = vmatpush1.bf16.msra.mxu0 %v5637
    %6067 = vmatprep.subr.bf16.mxu0 0
    %6068 = vmatpush1.bf16.msra.mxu0 %v5638
    %6069 = vmatprep.subr.bf16.mxu0 0
    %6070 = vmatpush1.bf16.msra.mxu0 %v5639
    %6071 = vmatprep.subr.bf16.mxu0 0
    %6072 = vmatpush1.bf16.msra.mxu0 %v5640
    %6073 = vmatprep.subr.bf16.mxu0 0
    %6074 = vmatpush1.bf16.msra.mxu0 %v5641
    %6075 = vmatprep.subr.bf16.mxu0 0
    %6076 = vmatpush1.bf16.msra.mxu0 %v5642
    %6077 = vmatprep.subr.bf16.mxu0 0
    %6078 = vmatpush1.bf16.msra.mxu0 %v5643
    %6079 = vmatprep.subr.bf16.mxu0 0
    %6080 = vmatpush1.bf16.msra.mxu0 %v5644
    %6081 = vmatprep.subr.bf16.mxu0 0
    %6082 = vmatpush1.bf16.msra.mxu0 %v5645
    %6083 = vmatprep.subr.bf16.mxu0 0
    %6084 = vmatpush1.bf16.msra.mxu0 %v5646
    %6085 = vmatprep.subr.bf16.mxu0 0
    %6086 = vmatpush1.bf16.msra.mxu0 %v5647
    %6087 = vmatprep.subr.bf16.mxu0 0
    %6088 = vmatpush1.bf16.msra.mxu0 %v5648
    %6089 = vmatprep.mubr.bf16.mxu0 %v5008
    %6090 = vmatmul.mubr.bf16.gmra.mrb[0].mxu0 %v5007
    %v6091 = vpop.f32.mrb[0].mxu0
    %v6092 = vadd.f32 %v6052, %v6091
    %v6093 = vpop.f32.mrb[0].mxu0
    %v6094 = vpop.f32.mrb[0].mxu0
    %v6095 = vpop.f32.mrb[0].mxu0
    %6096 = vdwg.mxu0
    %v6097 = vadd.f32 %v4114, %v6092
    %v6098 = vsel %vm622, %v6097, 0.0
    %6099 = vadd.xlane.f32.xlu0 %v6098
    %v6100 = vpop.xlane.xlu0 %6099
    %v6101 = vmul.f32 %v6100, %v1338
    %v6102 = vsub.f32 %v6097, %v6101
    %v6103 = vmul.f32 %v6102, %v6102
    %v6104 = vsel %vm622, %v6103, 0.0
    %6105 = vadd.xlane.f32.xlu0 %v6104
    %v6106 = vpop.xlane.xlu0 %6105
    %v6107 = vmul.f32 %v6106, %v1338
    %v6108 = vadd.f32 %v6107, 1e-05
    %v6109 = vrsqrt.pop %v6108
    %v6110 = vmul.f32 %v6102, %v6109
    %v6111 = vmul.f32 %v6110, %v3354
    %v6112 = vadd.f32 %v6111, %v3355
    %v6113 = vld [vmem:[%s1 + $0x80] sm:$0xff]
    %v6114 = vld [vmem:[%s1 + $0x88] sm:$0xff]
    %v6115 = vld [vmem:[%s1 + $0x90] sm:$0xff]
    %v6116 = vld [vmem:[%s1 + $0x98] sm:$0xff]
    %v6117 = vld [vmem:[%s1 + $0xa0] sm:$0xff]
    %v6118 = vld [vmem:[%s1 + $0xa8] sm:$0xff]
    %v6119 = vld [vmem:[%s1 + $0xb0] sm:$0xff]
    %v6120 = vld [vmem:[%s1 + $0xb8] sm:$0xff]
    %v6121 = vpack.c.bf16 %v6112, %v6112
    %v6123 = vlaneseq
    %v6124 = vshrl.u32 %v6123, 7
    %v6125 = vsub.s32 0, %v6124
    %v6126 = vrot.slane %v30, %v6125
    %v6127 = vlaneseq
    %v6128 = vshrl.u32 %v6127, 7
    %v6129 = vsub.s32 1, %v6128
    %v6130 = vrot.slane %v30, %v6129
    %v6131 = vlaneseq
    %v6132 = vshrl.u32 %v6131, 7
    %v6133 = vsub.s32 2, %v6132
    %v6134 = vrot.slane %v30, %v6133
    %v6135 = vlaneseq
    %v6136 = vshrl.u32 %v6135, 7
    %v6137 = vsub.s32 3, %v6136
    %v6138 = vrot.slane %v30, %v6137
    %v6151 = vunpack.c.l.b16 %v6113
    %v6152 = vunpack.c.h.b16 %v6113
    %v6153 = vunpack.c.l.b16 %v6114
    %v6154 = vunpack.c.h.b16 %v6114
    %v6155 = vunpack.c.l.b16 %v6115
    %v6156 = vunpack.c.h.b16 %v6115
    %v6157 = vunpack.c.l.b16 %v6116
    %v6158 = vunpack.c.h.b16 %v6116
    %v6159 = vunpack.c.l.b16 %v6117
    %v6160 = vunpack.c.h.b16 %v6117
    %v6161 = vunpack.c.l.b16 %v6118
    %v6162 = vunpack.c.h.b16 %v6118
    %v6163 = vunpack.c.l.b16 %v6119
    %v6164 = vunpack.c.h.b16 %v6119
    %v6165 = vunpack.c.l.b16 %v6120
    %v6166 = vunpack.c.h.b16 %v6120
    %v6167 = vpack.c.b16 %v6155, %v6151
    %v6168 = vpack.c.b16 %v6156, %v6152
    %v6169 = vpack.c.b16 %v6157, %v6153
    %v6170 = vpack.c.b16 %v6158, %v6154
    %v6171 = vpack.c.b16 %v6163, %v6159
    %v6172 = vpack.c.b16 %v6164, %v6160
    %v6173 = vpack.c.b16 %v6165, %v6161
    %v6174 = vpack.c.b16 %v6166, %v6162
    %v6184 = vsel %vm622, %v6121, 0
    %6186 = vmatprep.subr.bf16.mxu0 %v6168
    %6187 = vmatpush1.bf16.msra.mxu0 %v6167
    %6188 = vmatprep.subr.bf16.mxu0 %v6172
    %6189 = vmatpush1.bf16.msra.mxu0 %v6171
    %6190 = vmatprep.subr.bf16.mxu0 0
    %6191 = vmatpush1.bf16.msra.mxu0 0
    %6192 = vmatprep.subr.bf16.mxu0 0
    %6193 = vmatpush1.bf16.msra.mxu0 0
    %6194 = vmatprep.subr.bf16.mxu0 0
    %6195 = vmatpush1.bf16.msra.mxu0 0
    %6196 = vmatprep.subr.bf16.mxu0 0
    %6197 = vmatpush1.bf16.msra.mxu0 0
    %6198 = vmatprep.subr.bf16.mxu0 0
    %6199 = vmatpush1.bf16.msra.mxu0 0
    %6200 = vmatprep.subr.bf16.mxu0 0
    %6201 = vmatpush1.bf16.msra.mxu0 0
    %6202 = vmatprep.subr.bf16.mxu0 0
    %6203 = vmatpush1.bf16.msra.mxu0 0
    %6204 = vmatprep.subr.bf16.mxu0 0
    %6205 = vmatpush1.bf16.msra.mxu0 0
    %6206 = vmatprep.subr.bf16.mxu0 0
    %6207 = vmatpush1.bf16.msra.mxu0 0
    %6208 = vmatprep.subr.bf16.mxu0 0
    %6209 = vmatpush1.bf16.msra.mxu0 0
    %6210 = vmatprep.subr.bf16.mxu0 0
    %6211 = vmatpush1.bf16.msra.mxu0 0
    %6212 = vmatprep.subr.bf16.mxu0 0
    %6213 = vmatpush1.bf16.msra.mxu0 0
    %6214 = vmatprep.subr.bf16.mxu0 0
    %6215 = vmatpush1.bf16.msra.mxu0 0
    %6216 = vmatprep.subr.bf16.mxu0 0
    %6217 = vmatpush1.bf16.msra.mxu0 0
    %6218 = vmatprep.mubr.bf16.mxu0 0
    %6219 = vmatmul.mubr.bf16.gmra.mrb[0].mxu0 %v6184
    %v6220 = vpop.f32.mrb[0].mxu0
    %v6221 = vadd.f32 %v6126, %v6220
    %v6222 = vpop.f32.mrb[0].mxu0
    %v6223 = vadd.f32 %v6130, %v6222
    %v6224 = vpop.f32.mrb[0].mxu0
    %v6225 = vpop.f32.mrb[0].mxu0
    %6226 = vdwg.mxu0
    %6227 = vmatprep.subr.bf16.mxu0 %v6170
    %6228 = vmatpush1.bf16.msra.mxu0 %v6169
    %6229 = vmatprep.subr.bf16.mxu0 %v6174
    %6230 = vmatpush1.bf16.msra.mxu0 %v6173
    %6231 = vmatprep.subr.bf16.mxu0 0
    %6232 = vmatpush1.bf16.msra.mxu0 0
    %6233 = vmatprep.subr.bf16.mxu0 0
    %6234 = vmatpush1.bf16.msra.mxu0 0
    %6235 = vmatprep.subr.bf16.mxu0 0
    %6236 = vmatpush1.bf16.msra.mxu0 0
    %6237 = vmatprep.subr.bf16.mxu0 0
    %6238 = vmatpush1.bf16.msra.mxu0 0
    %6239 = vmatprep.subr.bf16.mxu0 0
    %6240 = vmatpush1.bf16.msra.mxu0 0
    %6241 = vmatprep.subr.bf16.mxu0 0
    %6242 = vmatpush1.bf16.msra.mxu0 0
    %6243 = vmatprep.subr.bf16.mxu0 0
    %6244 = vmatpush1.bf16.msra.mxu0 0
    %6245 = vmatprep.subr.bf16.mxu0 0
    %6246 = vmatpush1.bf16.msra.mxu0 0
    %6247 = vmatprep.subr.bf16.mxu0 0
    %6248 = vmatpush1.bf16.msra.mxu0 0
    %6249 = vmatprep.subr.bf16.mxu0 0
    %6250 = vmatpush1.bf16.msra.mxu0 0
    %6251 = vmatprep.subr.bf16.mxu0 0
    %6252 = vmatpush1.bf16.msra.mxu0 0
    %6253 = vmatprep.subr.bf16.mxu0 0
    %6254 = vmatpush1.bf16.msra.mxu0 0
    %6255 = vmatprep.subr.bf16.mxu0 0
    %6256 = vmatpush1.bf16.msra.mxu0 0
    %6257 = vmatprep.subr.bf16.mxu0 0
    %6258 = vmatpush1.bf16.msra.mxu0 0
    %6259 = vmatprep.mubr.bf16.mxu0 0
    %6260 = vmatmul.mubr.bf16.gmra.mrb[0].mxu0 %v6184
    %v6261 = vpop.f32.mrb[0].mxu0
    %v6262 = vadd.f32 %v6134, %v6261
    %v6263 = vpop.f32.mrb[0].mxu0
    %v6264 = vadd.f32 %v6138, %v6263
    %v6265 = vpop.f32.mrb[0].mxu0
    %v6266 = vpop.f32.mrb[0].mxu0
    %6267 = vdwg.mxu0
    %v6268 = vmax.f32 %v6221, 0.0
    %v6269 = vmax.f32 %v6223, 0.0
    %v6270 = vmax.f32 %v6262, 0.0
    %v6271 = vmax.f32 %v6264, 0.0
    %v6272 = vld [vmem:[%s5] sm:$0xf]
    %v6273 = vld [vmem:[%s5 + $0x4] sm:$0xf]
    %v6274 = vld [vmem:[%s5 + $0x8] sm:$0xf]
    %v6275 = vld [vmem:[%s5 + $0xc] sm:$0xf]
    %v6276 = vld [vmem:[%s5 + $0x10] sm:$0xf]
    %v6277 = vld [vmem:[%s5 + $0x14] sm:$0xf]
    %v6278 = vld [vmem:[%s5 + $0x18] sm:$0xf]
    %v6279 = vld [vmem:[%s5 + $0x1c] sm:$0xf]
    %v6280 = vld [vmem:[%s5 + $0x20] sm:$0xf]
    %v6281 = vld [vmem:[%s5 + $0x24] sm:$0xf]
    %v6282 = vld [vmem:[%s5 + $0x28] sm:$0xf]
    %v6283 = vld [vmem:[%s5 + $0x2c] sm:$0xf]
    %v6284 = vld [vmem:[%s5 + $0x30] sm:$0xf]
    %v6285 = vld [vmem:[%s5 + $0x34] sm:$0xf]
    %v6286 = vld [vmem:[%s5 + $0x38] sm:$0xf]
    %v6287 = vld [vmem:[%s5 + $0x3c] sm:$0xf]
    %v6288 = vld [vmem:[%s5 + $0x40] sm:$0xf]
    %v6289 = vld [vmem:[%s5 + $0x44] sm:$0xf]
    %v6290 = vld [vmem:[%s5 + $0x48] sm:$0xf]
    %v6291 = vld [vmem:[%s5 + $0x4c] sm:$0xf]
    %v6292 = vld [vmem:[%s5 + $0x50] sm:$0xf]
    %v6293 = vld [vmem:[%s5 + $0x54] sm:$0xf]
    %v6294 = vld [vmem:[%s5 + $0x58] sm:$0xf]
    %v6295 = vld [vmem:[%s5 + $0x5c] sm:$0xf]
    %v6296 = vld [vmem:[%s5 + $0x60] sm:$0xf]
    %v6297 = vld [vmem:[%s5 + $0x64] sm:$0xf]
    %v6298 = vld [vmem:[%s5 + $0x68] sm:$0xf]
    %v6299 = vld [vmem:[%s5 + $0x6c] sm:$0xf]
    %v6300 = vld [vmem:[%s5 + $0x70] sm:$0xf]
    %v6301 = vld [vmem:[%s5 + $0x74] sm:$0xf]
    %v6302 = vld [vmem:[%s5 + $0x78] sm:$0xf]
    %v6303 = vld [vmem:[%s5 + $0x7c] sm:$0xf]
    %v6304 = vld [vmem:[%s5 + $0x80] sm:$0xf]
    %v6305 = vld [vmem:[%s5 + $0x84] sm:$0xf]
    %v6306 = vld [vmem:[%s5 + $0x88] sm:$0xf]
    %v6307 = vld [vmem:[%s5 + $0x8c] sm:$0xf]
    %v6308 = vld [vmem:[%s5 + $0x90] sm:$0xf]
    %v6309 = vld [vmem:[%s5 + $0x94] sm:$0xf]
    %v6310 = vld [vmem:[%s5 + $0x98] sm:$0xf]
    %v6311 = vld [vmem:[%s5 + $0x9c] sm:$0xf]
    %v6312 = vld [vmem:[%s5 + $0xa0] sm:$0xf]
    %v6313 = vld [vmem:[%s5 + $0xa4] sm:$0xf]
    %v6314 = vld [vmem:[%s5 + $0xa8] sm:$0xf]
    %v6315 = vld [vmem:[%s5 + $0xac] sm:$0xf]
    %v6316 = vld [vmem:[%s5 + $0xb0] sm:$0xf]
    %v6317 = vld [vmem:[%s5 + $0xb4] sm:$0xf]
    %v6318 = vld [vmem:[%s5 + $0xb8] sm:$0xf]
    %v6319 = vld [vmem:[%s5 + $0xbc] sm:$0xf]
    %v6320 = vld [vmem:[%s5 + $0xc0] sm:$0xf]
    %v6321 = vld [vmem:[%s5 + $0xc4] sm:$0xf]
    %v6322 = vld [vmem:[%s5 + $0xc8] sm:$0xf]
    %v6323 = vld [vmem:[%s5 + $0xcc] sm:$0xf]
    %v6324 = vld [vmem:[%s5 + $0xd0] sm:$0xf]
    %v6325 = vld [vmem:[%s5 + $0xd4] sm:$0xf]
    %v6326 = vld [vmem:[%s5 + $0xd8] sm:$0xf]
    %v6327 = vld [vmem:[%s5 + $0xdc] sm:$0xf]
    %v6328 = vld [vmem:[%s5 + $0xe0] sm:$0xf]
    %v6329 = vld [vmem:[%s5 + $0xe4] sm:$0xf]
    %v6330 = vld [vmem:[%s5 + $0xe8] sm:$0xf]
    %v6331 = vld [vmem:[%s5 + $0xec] sm:$0xf]
    %v6332 = vld [vmem:[%s5 + $0xf0] sm:$0xf]
    %v6333 = vld [vmem:[%s5 + $0xf4] sm:$0xf]
    %v6334 = vld [vmem:[%s5 + $0xf8] sm:$0xf]
    %v6335 = vld [vmem:[%s5 + $0xfc] sm:$0xf]
    %v6336 = vpack.c.bf16 %v6268, %v6268
    %v6337 = vpack.c.bf16 %v6269, %v6269
    %v6338 = vpack.c.bf16 %v6270, %v6270
    %v6339 = vpack.c.bf16 %v6271, %v6271
    %v6404 = vunpack.c.l.b16 %v6272
    %v6405 = vunpack.c.l.b16 %v6273
    %v6406 = vunpack.c.l.b16 %v6274
    %v6407 = vunpack.c.l.b16 %v6275
    %v6408 = vunpack.c.l.b16 %v6276
    %v6409 = vunpack.c.l.b16 %v6277
    %v6410 = vunpack.c.l.b16 %v6278
    %v6411 = vunpack.c.l.b16 %v6279
    %v6412 = vunpack.c.l.b16 %v6280
    %v6413 = vunpack.c.l.b16 %v6281
    %v6414 = vunpack.c.l.b16 %v6282
    %v6415 = vunpack.c.l.b16 %v6283
    %v6416 = vunpack.c.l.b16 %v6284
    %v6417 = vunpack.c.l.b16 %v6285
    %v6418 = vunpack.c.l.b16 %v6286
    %v6419 = vunpack.c.l.b16 %v6287
    %v6420 = vunpack.c.l.b16 %v6288
    %v6421 = vunpack.c.l.b16 %v6289
    %v6422 = vunpack.c.l.b16 %v6290
    %v6423 = vunpack.c.l.b16 %v6291
    %v6424 = vunpack.c.l.b16 %v6292
    %v6425 = vunpack.c.l.b16 %v6293
    %v6426 = vunpack.c.l.b16 %v6294
    %v6427 = vunpack.c.l.b16 %v6295
    %v6428 = vunpack.c.l.b16 %v6296
    %v6429 = vunpack.c.l.b16 %v6297
    %v6430 = vunpack.c.l.b16 %v6298
    %v6431 = vunpack.c.l.b16 %v6299
    %v6432 = vunpack.c.l.b16 %v6300
    %v6433 = vunpack.c.l.b16 %v6301
    %v6434 = vunpack.c.l.b16 %v6302
    %v6435 = vunpack.c.l.b16 %v6303
    %v6436 = vunpack.c.l.b16 %v6304
    %v6437 = vunpack.c.l.b16 %v6305
    %v6438 = vunpack.c.l.b16 %v6306
    %v6439 = vunpack.c.l.b16 %v6307
    %v6440 = vunpack.c.l.b16 %v6308
    %v6441 = vunpack.c.l.b16 %v6309
    %v6442 = vunpack.c.l.b16 %v6310
    %v6443 = vunpack.c.l.b16 %v6311
    %v6444 = vunpack.c.l.b16 %v6312
    %v6445 = vunpack.c.l.b16 %v6313
    %v6446 = vunpack.c.l.b16 %v6314
    %v6447 = vunpack.c.l.b16 %v6315
    %v6448 = vunpack.c.l.b16 %v6316
    %v6449 = vunpack.c.l.b16 %v6317
    %v6450 = vunpack.c.l.b16 %v6318
    %v6451 = vunpack.c.l.b16 %v6319
    %v6452 = vunpack.c.l.b16 %v6320
    %v6453 = vunpack.c.l.b16 %v6321
    %v6454 = vunpack.c.l.b16 %v6322
    %v6455 = vunpack.c.l.b16 %v6323
    %v6456 = vunpack.c.l.b16 %v6324
    %v6457 = vunpack.c.l.b16 %v6325
    %v6458 = vunpack.c.l.b16 %v6326
    %v6459 = vunpack.c.l.b16 %v6327
    %v6460 = vunpack.c.l.b16 %v6328
    %v6461 = vunpack.c.l.b16 %v6329
    %v6462 = vunpack.c.l.b16 %v6330
    %v6463 = vunpack.c.l.b16 %v6331
    %v6464 = vunpack.c.l.b16 %v6332
    %v6465 = vunpack.c.l.b16 %v6333
    %v6466 = vunpack.c.l.b16 %v6334
    %v6467 = vunpack.c.l.b16 %v6335
    %v6468 = vpack.c.b16 %v6405, %v6404
    %v6469 = vpack.c.b16 %v6407, %v6406
    %v6470 = vpack.c.b16 %v6409, %v6408
    %v6471 = vpack.c.b16 %v6411, %v6410
    %v6472 = vpack.c.b16 %v6413, %v6412
    %v6473 = vpack.c.b16 %v6415, %v6414
    %v6474 = vpack.c.b16 %v6417, %v6416
    %v6475 = vpack.c.b16 %v6419, %v6418
    %v6476 = vpack.c.b16 %v6421, %v6420
    %v6477 = vpack.c.b16 %v6423, %v6422
    %v6478 = vpack.c.b16 %v6425, %v6424
    %v6479 = vpack.c.b16 %v6427, %v6426
    %v6480 = vpack.c.b16 %v6429, %v6428
    %v6481 = vpack.c.b16 %v6431, %v6430
    %v6482 = vpack.c.b16 %v6433, %v6432
    %v6483 = vpack.c.b16 %v6435, %v6434
    %v6484 = vpack.c.b16 %v6437, %v6436
    %v6485 = vpack.c.b16 %v6439, %v6438
    %v6486 = vpack.c.b16 %v6441, %v6440
    %v6487 = vpack.c.b16 %v6443, %v6442
    %v6488 = vpack.c.b16 %v6445, %v6444
    %v6489 = vpack.c.b16 %v6447, %v6446
    %v6490 = vpack.c.b16 %v6449, %v6448
    %v6491 = vpack.c.b16 %v6451, %v6450
    %v6492 = vpack.c.b16 %v6453, %v6452
    %v6493 = vpack.c.b16 %v6455, %v6454
    %v6494 = vpack.c.b16 %v6457, %v6456
    %v6495 = vpack.c.b16 %v6459, %v6458
    %v6496 = vpack.c.b16 %v6461, %v6460
    %v6497 = vpack.c.b16 %v6463, %v6462
    %v6498 = vpack.c.b16 %v6465, %v6464
    %v6499 = vpack.c.b16 %v6467, %v6466
    %6532 = vmatprep.subr.bf16.mxu0 0
    %6533 = vmatpush1.bf16.msra.mxu0 %v6468
    %6534 = vmatprep.subr.bf16.mxu0 0
    %6535 = vmatpush1.bf16.msra.mxu0 %v6469
    %6536 = vmatprep.subr.bf16.mxu0 0
    %6537 = vmatpush1.bf16.msra.mxu0 %v6470
    %6538 = vmatprep.subr.bf16.mxu0 0
    %6539 = vmatpush1.bf16.msra.mxu0 %v6471
    %6540 = vmatprep.subr.bf16.mxu0 0
    %6541 = vmatpush1.bf16.msra.mxu0 %v6472
    %6542 = vmatprep.subr.bf16.mxu0 0
    %6543 = vmatpush1.bf16.msra.mxu0 %v6473
    %6544 = vmatprep.subr.bf16.mxu0 0
    %6545 = vmatpush1.bf16.msra.mxu0 %v6474
    %6546 = vmatprep.subr.bf16.mxu0 0
    %6547 = vmatpush1.bf16.msra.mxu0 %v6475
    %6548 = vmatprep.subr.bf16.mxu0 0
    %6549 = vmatpush1.bf16.msra.mxu0 %v6476
    %6550 = vmatprep.subr.bf16.mxu0 0
    %6551 = vmatpush1.bf16.msra.mxu0 %v6477
    %6552 = vmatprep.subr.bf16.mxu0 0
    %6553 = vmatpush1.bf16.msra.mxu0 %v6478
    %6554 = vmatprep.subr.bf16.mxu0 0
    %6555 = vmatpush1.bf16.msra.mxu0 %v6479
    %6556 = vmatprep.subr.bf16.mxu0 0
    %6557 = vmatpush1.bf16.msra.mxu0 %v6480
    %6558 = vmatprep.subr.bf16.mxu0 0
    %6559 = vmatpush1.bf16.msra.mxu0 %v6481
    %6560 = vmatprep.subr.bf16.mxu0 0
    %6561 = vmatpush1.bf16.msra.mxu0 %v6482
    %6562 = vmatprep.subr.bf16.mxu0 0
    %6563 = vmatpush1.bf16.msra.mxu0 %v6483
    %6564 = vmatprep.mubr.bf16.mxu0 %v6337
    %6565 = vmatmul.mubr.bf16.gmra.mrb[0].mxu0 %v6336
    %v6566 = vpop.f32.mrb[0].mxu0
    %v6567 = vadd.f32 %v32, %v6566
    %v6568 = vpop.f32.mrb[0].mxu0
    %v6569 = vpop.f32.mrb[0].mxu0
    %v6570 = vpop.f32.mrb[0].mxu0
    %6571 = vdwg.mxu0
    %6572 = vmatprep.subr.bf16.mxu0 0
    %6573 = vmatpush1.bf16.msra.mxu0 %v6484
    %6574 = vmatprep.subr.bf16.mxu0 0
    %6575 = vmatpush1.bf16.msra.mxu0 %v6485
    %6576 = vmatprep.subr.bf16.mxu0 0
    %6577 = vmatpush1.bf16.msra.mxu0 %v6486
    %6578 = vmatprep.subr.bf16.mxu0 0
    %6579 = vmatpush1.bf16.msra.mxu0 %v6487
    %6580 = vmatprep.subr.bf16.mxu0 0
    %6581 = vmatpush1.bf16.msra.mxu0 %v6488
    %6582 = vmatprep.subr.bf16.mxu0 0
    %6583 = vmatpush1.bf16.msra.mxu0 %v6489
    %6584 = vmatprep.subr.bf16.mxu0 0
    %6585 = vmatpush1.bf16.msra.mxu0 %v6490
    %6586 = vmatprep.subr.bf16.mxu0 0
    %6587 = vmatpush1.bf16.msra.mxu0 %v6491
    %6588 = vmatprep.subr.bf16.mxu0 0
    %6589 = vmatpush1.bf16.msra.mxu0 %v6492
    %6590 = vmatprep.subr.bf16.mxu0 0
    %6591 = vmatpush1.bf16.msra.mxu0 %v6493
    %6592 = vmatprep.subr.bf16.mxu0 0
    %6593 = vmatpush1.bf16.msra.mxu0 %v6494
    %6594 = vmatprep.subr.bf16.mxu0 0
    %6595 = vmatpush1.bf16.msra.mxu0 %v6495
    %6596 = vmatprep.subr.bf16.mxu0 0
    %6597 = vmatpush1.bf16.msra.mxu0 %v6496
    %6598 = vmatprep.subr.bf16.mxu0 0
    %6599 = vmatpush1.bf16.msra.mxu0 %v6497
    %6600 = vmatprep.subr.bf16.mxu0 0
    %6601 = vmatpush1.bf16.msra.mxu0 %v6498
    %6602 = vmatprep.subr.bf16.mxu0 0
    %6603 = vmatpush1.bf16.msra.mxu0 %v6499
    %6604 = vmatprep.mubr.bf16.mxu0 %v6339
    %6605 = vmatmul.mubr.bf16.gmra.mrb[0].mxu0 %v6338
    %v6606 = vpop.f32.mrb[0].mxu0
    %v6607 = vadd.f32 %v6567, %v6606
    %v6608 = vpop.f32.mrb[0].mxu0
    %v6609 = vpop.f32.mrb[0].mxu0
    %v6610 = vpop.f32.mrb[0].mxu0
    %6611 = vdwg.mxu0
    %v6612 = vsel %vm152, %v6607, -inf
    %6613 = vmax.xlane.f32.xlu0 %v6612
    %v6614 = vpop.xlane.xlu0 %6613
    %v6615 = vsub.f32 %v6607, %v6614
    %v6616 = vmul.f32 %v6615, 1.442695
    %v6617 = vpow.pop %v6616
    %v6618 = vsel %vm152, %v6617, 0.0
    %6619 = vadd.xlane.f32.xlu0 %v6618
    %v6620 = vpop.xlane.xlu0 %6619
    %v6621 = vrcp.pop %v6620
    %v6622 = vmul.f32 %v6617, %v6621
    %6623 = vst.msk [vmem:[#allocation2] sm:$0xff] %vm152, %v6622
    // Predicated region
    $region30: #{model_trans_forward.1} parent=1 // pred_check
      _
    $region31: #{model_trans_forward.1} parent=1 // pred_check_branch
      %6625 = sbr.rel (0) target = $region33
    $region32: #{model_trans_forward.1} parent=1 // pred_region
      %s6627 = ssub.s32 128, 128
      %6628 = vsyncadd [#allocation3], %s6627
      %s6630 = sshll.u32 [#allocation2], 4
      %s6631 = int_to_ptr.vmem [resolvable:$true] %s6630
      %6633 = dma.vmem_to_hbm [thread:$0]  %s6631, 128, %s7, [#allocation3]
    $region33: #{model_trans_forward.1} parent=1 // pred_fallthru
      _
    // Predicated region
    $region34: #{model_trans_forward.1} parent=1 // pred_check
      _
    $region35: #{model_trans_forward.1} parent=1 // pred_check_branch
      %6635 = sbr.rel (0) target = $region37
    $region36: #{model_trans_forward.1} parent=1 // pred_region
      %6636 = dma.done [#allocation3], 128
    $region37: #{model_trans_forward.1} parent=1 // pred_fallthru
      _
    %6637 = vsyncpa [#allocation3], 1

</llo_original>
